<compile_context>
chip_gen: v6e
topology: v6e:2x2x1
jax: 0.10.0
libtpu: 0.0.40
codegen_flags: <defaults>
</compile_context>

<pallas_src>
import functools

import jax
import jax.numpy as jnp
from jax import lax
from jax.experimental import pallas as pl
from jax.experimental.pallas import tpu as pltpu

SEMEME_NUMBER = 1400
MAX_NORM = 5.0
RENORM_EPS = 1e-7  # eps torch uses in embedding_renorm_


def _renorm_table(table):
    """torch.nn.Embedding(max_norm=5): rows with L2 norm > 5 rescaled to norm 5."""
    norm = jnp.sqrt(jnp.sum(table * table, axis=1, keepdims=True))
    scale = jnp.where(norm > MAX_NORM, MAX_NORM / (norm + RENORM_EPS), 1.0)
    return table * scale


def _sememe_kernel(idx_ref, hi_ref, lo_ref, out_ref, *, slab, counts_dtype):
    # idx_ref: (TR, K)  int32  — sememe indices; padding already remapped to -1
    # hi_ref : (Vp, D)  bf16   — high half of the renormed table
    # lo_ref : (Vp, D)  bf16   — low  half (f32 table - hi), zero vocab padding
    # out_ref: (TR, D)  f32    — averaged embedding per (batch*seq) row
    idx = idx_ref[...]
    tr, k = idx.shape
    vp, d = hi_ref.shape

    # Denominator: max(#non-padding sememes, 1) from the tiny (TR, K) tile.
    valid = (idx >= 0).astype(jnp.float32)
    denom = jnp.maximum(jnp.sum(valid, axis=1, keepdims=True), 1.0)   # (TR, 1)
    inv = 1.0 / denom        # exact per-row reciprocal (NOT approx EUP recip)

    # Single hoisted 2-D iota, reused for every vocab slab (idx is shifted
    # by the slab base instead of rebuilding / offsetting the iota).
    v_iota = lax.broadcasted_iota(jnp.int32, (tr, slab), 1)           # (TR, slab)

    acc = jnp.zeros((tr, d), jnp.float32)
    for s in range(vp // slab):                 # static unroll over vocab slabs
        base = s * slab
        idx_s = idx - base                      # (TR, K): tiny VPU op
        counts = jnp.zeros((tr, slab), counts_dtype)
        for j in range(k):                      # K is small and static
            counts = counts + (idx_s[:, j:j + 1] == v_iota).astype(counts_dtype)
        counts_mx = counts.astype(jnp.bfloat16)   # no-op when counts_dtype=bf16

        # Table slabs loaded at the point of use (short live range).
        hi = hi_ref[pl.ds(base, slab), :]
        lo = lo_ref[pl.ds(base, slab), :]
        # Two bf16 MXU passes with f32 accumulation == near-f32 precision
        # (counts <= K are exact in bf16; hi+lo represents the f32 table to
        # ~2^-17 relative error).
        acc = acc + jnp.dot(counts_mx, hi, preferred_element_type=jnp.float32)
        acc = acc + jnp.dot(counts_mx, lo, preferred_element_type=jnp.float32)

    out_ref[...] = acc * inv


def sememe_embedding(x, table, *, tile_rows=256, vocab_slab=256,
                     counts_dtype=jnp.bfloat16):
    """x: (B, S, K) int indices; table: (sememe_number+1, D) f32 -> (B, S, D) f32.

    On v5e pass counts_dtype=jnp.float32 (no native bf16 VALU there).
    """
    B, S, K = x.shape
    V1, D = table.shape
    N = B * S

    # Hoisted, one-shot max_norm renorm (wrapper-side; table is tiny).
    # TODO(synk): torch renorms in-place only the rows touched by this call
    # (mutating the weights for later steps); forward output is equivalent but
    # training-state semantics are not.
    table = _renorm_table(table.astype(jnp.float32))

    # bf16 hi/lo split of the table for explicit-precision MXU matmuls.
    hi = table.astype(jnp.bfloat16)
    lo = (table - hi.astype(jnp.float32)).astype(jnp.bfloat16)

    # Pad the vocabulary axis to a multiple of the slab width with zero rows.
    Vp = pl.cdiv(V1, vocab_slab) * vocab_slab
    if Vp != V1:
        hi = jnp.pad(hi, ((0, Vp - V1), (0, 0)))
        lo = jnp.pad(lo, ((0, Vp - V1), (0, 0)))

    # Flatten (B, S) -> rows and remap the padding index to -1 so that
    # (a) padding never matches the slab iota (no full-width mask pass) and
    # (b) the same tile gives the valid-count denominator (idx >= 0).
    x2 = x.reshape(N, K).astype(jnp.int32)
    x2 = jnp.where(x2 >= SEMEME_NUMBER, -1, x2)

    # Pad rows to a multiple of tile_rows with -1 rows (their outputs are zero
    # and get sliced off).
    Np = pl.cdiv(N, tile_rows) * tile_rows
    if Np != N:
        x2 = jnp.pad(x2, ((0, Np - N), (0, 0)), constant_values=-1)

    kernel = functools.partial(_sememe_kernel, slab=vocab_slab,
                               counts_dtype=counts_dtype)

    # NOTE: for large workloads keep the grid >= 2 so v7x's two TensorCores
    # are both fed (the grid axis is marked "parallel").  At realistic D
    # (>= 200) consider single-buffering the constant table blocks
    # (pipeline_mode=pl.Buffered(1)) and a lane-dense (N*D/128, 128) output
    # layout; at D=32 here both are noise vs. the one-hot build.
    out = pl.pallas_call(
        kernel,
        out_shape=jax.ShapeDtypeStruct((Np, D), jnp.float32),
        grid_spec=pltpu.PrefetchScalarGridSpec(
            num_scalar_prefetch=0,
            grid=(Np // tile_rows,),
            in_specs=[
                pl.BlockSpec((tile_rows, K), lambda i: (i, 0)),  # index tile
                pl.BlockSpec((Vp, D), lambda i: (0, 0)),         # table hi (resident)
                pl.BlockSpec((Vp, D), lambda i: (0, 0)),         # table lo (resident)
            ],
            out_specs=pl.BlockSpec((tile_rows, D), lambda i: (i, 0)),
        ),
        compiler_params=pltpu.CompilerParams(
            dimension_semantics=("parallel",)),
    )(x2, hi, lo)
    return out[:N].reshape(B, S, D)


def sememe_embedding_ref(x, table):
    """Pure-JAX f32 reference mirroring the PyTorch forward."""
    t = _renorm_table(table)
    emb = t[x]                                                  # (B, S, K, D)
    mask = (x < SEMEME_NUMBER).astype(jnp.float32)              # (B, S, K)
    denom = jnp.maximum(jnp.sum(mask, axis=2, keepdims=True), 1.0)
    return jnp.sum(emb, axis=2) / denom


if __name__ == "__main__":
    key = jax.random.PRNGKey(0)
    k_idx, k_emb = jax.random.split(key)

    B, S, K, D = 2, 8, 4, 32

    # Deterministic parameter init (torch.nn.Embedding default ~ N(0,1)),
    # with the padding row zeroed exactly as in __init__.
    table = jax.random.normal(k_emb, (SEMEME_NUMBER + 1, D), dtype=jnp.float32)
    table = table.at[SEMEME_NUMBER].set(0.0)

    # Indices in [0, sememe_number]; value == sememe_number acts as padding.
    x = jax.random.randint(k_idx, (B, S, K), 0, SEMEME_NUMBER + 1, dtype=jnp.int32)

    out = sememe_embedding(x, table)
    jax.block_until_ready(out)

    ref = sememe_embedding_ref(x, table)
    assert out.shape == (B, S, D)
    # The bf16 hi/lo table split carries ~2^-17 relative representation error
    # per table entry (sums of <= K=4 entries), so compare at 1e-4 rather than
    # strict f32 round-off.
    assert jnp.allclose(out, ref, atol=1e-4, rtol=1e-4)

    # TODO(synk): sparse=True only affects the backward/gradient representation;
    # there is no forward-pass equivalent to translate.
    print("KERNEL_OK")
</pallas_src>

<mosaic_0001>
module attributes {stable_mosaic.version = 11 : i64} {
  func.func @_sememe_kernel(%arg0: i32, %arg1: memref<256x4xi32, #tpu.memory_space<vmem>>, %arg2: memref<1536x32xbf16, #tpu.memory_space<vmem>>, %arg3: memref<1536x32xbf16, #tpu.memory_space<vmem>>, %arg4: memref<256x32xf32, #tpu.memory_space<vmem>>) attributes {dimension_semantics = [#tpu.dimension_semantics<parallel>], iteration_bounds = array<i64: 1>, scalar_prefetch = 0 : i64, scratch_operands = 0 : i64, tpu.core_type = #tpu.core_type<tc>, window_params = [{transform_indices = @transform_0, window_bounds = array<i64: 256, 4>}, {pipeline_mode = #tpu.pipeline_mode<synchronous>, transform_indices = @transform_1, window_bounds = array<i64: 1536, 32>}, {pipeline_mode = #tpu.pipeline_mode<synchronous>, transform_indices = @transform_2, window_bounds = array<i64: 1536, 32>}, {transform_indices = @transform_3, window_bounds = array<i64: 256, 32>}]} {
    %c0 = arith.constant 0 : index
    %c0_0 = arith.constant 0 : index
    %0 = vector.load %arg1[%c0, %c0_0] : memref<256x4xi32, #tpu.memory_space<vmem>>, vector<256x4xi32>
    %c0_i32 = arith.constant 0 : i32
    %1 = vector.broadcast %c0_i32 : i32 to vector<256x4xi32>
    %2 = arith.cmpi sge, %0, %1 : vector<256x4xi32>
    %3 = arith.extui %2 : vector<256x4xi1> to vector<256x4xi32>
    %4 = arith.sitofp %3 : vector<256x4xi32> to vector<256x4xf32>
    %cst = arith.constant dense<0.000000e+00> : vector<256xf32>
    %5 = vector.multi_reduction <add>, %4, %cst [1] : vector<256x4xf32> to vector<256xf32>
    %6 = vector.shape_cast %5 : vector<256xf32> to vector<256x1xf32>
    %cst_1 = arith.constant 1.000000e+00 : f32
    %7 = vector.broadcast %cst_1 : f32 to vector<256x1xf32>
    %8 = arith.maximumf %6, %7 : vector<256x1xf32>
    %cst_2 = arith.constant 1.000000e+00 : f32
    %9 = vector.broadcast %cst_2 : f32 to vector<256x1xf32>
    %10 = arith.divf %9, %8 : vector<256x1xf32>
    %11 = tpu.iota {dimensions = array<i32: 1>} : vector<256x256xi32>
    %cst_3 = arith.constant 0.000000e+00 : f32
    %12 = vector.broadcast %cst_3 : f32 to vector<256x32xf32>
    %c0_i32_4 = arith.constant 0 : i32
    %13 = vector.broadcast %c0_i32_4 : i32 to vector<256x4xi32>
    %14 = arith.subi %0, %13 : vector<256x4xi32>
    %cst_5 = arith.constant 0.000000e+00 : bf16
    %15 = vector.broadcast %cst_5 : bf16 to vector<256x256xbf16>
    %16 = vector.extract_strided_slice %14 {offsets = [0, 0], sizes = [256, 1], strides = [1, 1]} : vector<256x4xi32> to vector<256x1xi32>
    %17 = vector.broadcast %16 : vector<256x1xi32> to vector<256x256xi32>
    %18 = arith.cmpi eq, %17, %11 : vector<256x256xi32>
    %19 = arith.extui %18 : vector<256x256xi1> to vector<256x256xi32>
    %20 = arith.sitofp %19 : vector<256x256xi32> to vector<256x256xf32>
    %21 = arith.truncf %20 : vector<256x256xf32> to vector<256x256xbf16>
    %22 = arith.addf %15, %21 : vector<256x256xbf16>
    %23 = vector.extract_strided_slice %14 {offsets = [0, 1], sizes = [256, 1], strides = [1, 1]} : vector<256x4xi32> to vector<256x1xi32>
    %24 = vector.broadcast %23 : vector<256x1xi32> to vector<256x256xi32>
    %25 = arith.cmpi eq, %24, %11 : vector<256x256xi32>
    %26 = arith.extui %25 : vector<256x256xi1> to vector<256x256xi32>
    %27 = arith.sitofp %26 : vector<256x256xi32> to vector<256x256xf32>
    %28 = arith.truncf %27 : vector<256x256xf32> to vector<256x256xbf16>
    %29 = arith.addf %22, %28 : vector<256x256xbf16>
    %30 = vector.extract_strided_slice %14 {offsets = [0, 2], sizes = [256, 1], strides = [1, 1]} : vector<256x4xi32> to vector<256x1xi32>
    %31 = vector.broadcast %30 : vector<256x1xi32> to vector<256x256xi32>
    %32 = arith.cmpi eq, %31, %11 : vector<256x256xi32>
    %33 = arith.extui %32 : vector<256x256xi1> to vector<256x256xi32>
    %34 = arith.sitofp %33 : vector<256x256xi32> to vector<256x256xf32>
    %35 = arith.truncf %34 : vector<256x256xf32> to vector<256x256xbf16>
    %36 = arith.addf %29, %35 : vector<256x256xbf16>
    %37 = vector.extract_strided_slice %14 {offsets = [0, 3], sizes = [256, 1], strides = [1, 1]} : vector<256x4xi32> to vector<256x1xi32>
    %38 = vector.broadcast %37 : vector<256x1xi32> to vector<256x256xi32>
    %39 = arith.cmpi eq, %38, %11 : vector<256x256xi32>
    %40 = arith.extui %39 : vector<256x256xi1> to vector<256x256xi32>
    %41 = arith.sitofp %40 : vector<256x256xi32> to vector<256x256xf32>
    %42 = arith.truncf %41 : vector<256x256xf32> to vector<256x256xbf16>
    %43 = arith.addf %36, %42 : vector<256x256xbf16>
    %c0_6 = arith.constant 0 : index
    %c0_7 = arith.constant 0 : index
    %44 = vector.load %arg2[%c0_6, %c0_7] : memref<1536x32xbf16, #tpu.memory_space<vmem>>, vector<256x32xbf16>
    %c0_8 = arith.constant 0 : index
    %c0_9 = arith.constant 0 : index
    %45 = vector.load %arg3[%c0_8, %c0_9] : memref<1536x32xbf16, #tpu.memory_space<vmem>>, vector<256x32xbf16>
    %cst_10 = arith.constant dense<0.000000e+00> : vector<256x32xf32>
    %46 = tpu.matmul %43, %44, %cst_10 {dimension_numbers = #tpu.dot_dimension_numbers<[1], [0], [0], [1], [0, 0, 1, 1], [], []>} : vector<256x256xbf16>, vector<256x32xbf16>, vector<256x32xf32> -> vector<256x32xf32>
    %47 = arith.addf %12, %46 : vector<256x32xf32>
    %cst_11 = arith.constant dense<0.000000e+00> : vector<256x32xf32>
    %48 = tpu.matmul %43, %45, %cst_11 {dimension_numbers = #tpu.dot_dimension_numbers<[1], [0], [0], [1], [0, 0, 1, 1], [], []>} : vector<256x256xbf16>, vector<256x32xbf16>, vector<256x32xf32> -> vector<256x32xf32>
    %49 = arith.addf %47, %48 : vector<256x32xf32>
    %c256_i32 = arith.constant 256 : i32
    %50 = vector.broadcast %c256_i32 : i32 to vector<256x4xi32>
    %51 = arith.subi %0, %50 : vector<256x4xi32>
    %cst_12 = arith.constant 0.000000e+00 : bf16
    %52 = vector.broadcast %cst_12 : bf16 to vector<256x256xbf16>
    %53 = vector.extract_strided_slice %51 {offsets = [0, 0], sizes = [256, 1], strides = [1, 1]} : vector<256x4xi32> to vector<256x1xi32>
    %54 = vector.broadcast %53 : vector<256x1xi32> to vector<256x256xi32>
    %55 = arith.cmpi eq, %54, %11 : vector<256x256xi32>
    %56 = arith.extui %55 : vector<256x256xi1> to vector<256x256xi32>
    %57 = arith.sitofp %56 : vector<256x256xi32> to vector<256x256xf32>
    %58 = arith.truncf %57 : vector<256x256xf32> to vector<256x256xbf16>
    %59 = arith.addf %52, %58 : vector<256x256xbf16>
    %60 = vector.extract_strided_slice %51 {offsets = [0, 1], sizes = [256, 1], strides = [1, 1]} : vector<256x4xi32> to vector<256x1xi32>
    %61 = vector.broadcast %60 : vector<256x1xi32> to vector<256x256xi32>
    %62 = arith.cmpi eq, %61, %11 : vector<256x256xi32>
    %63 = arith.extui %62 : vector<256x256xi1> to vector<256x256xi32>
    %64 = arith.sitofp %63 : vector<256x256xi32> to vector<256x256xf32>
    %65 = arith.truncf %64 : vector<256x256xf32> to vector<256x256xbf16>
    %66 = arith.addf %59, %65 : vector<256x256xbf16>
    %67 = vector.extract_strided_slice %51 {offsets = [0, 2], sizes = [256, 1], strides = [1, 1]} : vector<256x4xi32> to vector<256x1xi32>
    %68 = vector.broadcast %67 : vector<256x1xi32> to vector<256x256xi32>
    %69 = arith.cmpi eq, %68, %11 : vector<256x256xi32>
    %70 = arith.extui %69 : vector<256x256xi1> to vector<256x256xi32>
    %71 = arith.sitofp %70 : vector<256x256xi32> to vector<256x256xf32>
    %72 = arith.truncf %71 : vector<256x256xf32> to vector<256x256xbf16>
    %73 = arith.addf %66, %72 : vector<256x256xbf16>
    %74 = vector.extract_strided_slice %51 {offsets = [0, 3], sizes = [256, 1], strides = [1, 1]} : vector<256x4xi32> to vector<256x1xi32>
    %75 = vector.broadcast %74 : vector<256x1xi32> to vector<256x256xi32>
    %76 = arith.cmpi eq, %75, %11 : vector<256x256xi32>
    %77 = arith.extui %76 : vector<256x256xi1> to vector<256x256xi32>
    %78 = arith.sitofp %77 : vector<256x256xi32> to vector<256x256xf32>
    %79 = arith.truncf %78 : vector<256x256xf32> to vector<256x256xbf16>
    %80 = arith.addf %73, %79 : vector<256x256xbf16>
    %c256 = arith.constant 256 : index
    %c0_13 = arith.constant 0 : index
    %81 = vector.load %arg2[%c256, %c0_13] : memref<1536x32xbf16, #tpu.memory_space<vmem>>, vector<256x32xbf16>
    %c256_14 = arith.constant 256 : index
    %c0_15 = arith.constant 0 : index
    %82 = vector.load %arg3[%c256_14, %c0_15] : memref<1536x32xbf16, #tpu.memory_space<vmem>>, vector<256x32xbf16>
    %cst_16 = arith.constant dense<0.000000e+00> : vector<256x32xf32>
    %83 = tpu.matmul %80, %81, %cst_16 {dimension_numbers = #tpu.dot_dimension_numbers<[1], [0], [0], [1], [0, 0, 1, 1], [], []>} : vector<256x256xbf16>, vector<256x32xbf16>, vector<256x32xf32> -> vector<256x32xf32>
    %84 = arith.addf %49, %83 : vector<256x32xf32>
    %cst_17 = arith.constant dense<0.000000e+00> : vector<256x32xf32>
    %85 = tpu.matmul %80, %82, %cst_17 {dimension_numbers = #tpu.dot_dimension_numbers<[1], [0], [0], [1], [0, 0, 1, 1], [], []>} : vector<256x256xbf16>, vector<256x32xbf16>, vector<256x32xf32> -> vector<256x32xf32>
    %86 = arith.addf %84, %85 : vector<256x32xf32>
    %c512_i32 = arith.constant 512 : i32
    %87 = vector.broadcast %c512_i32 : i32 to vector<256x4xi32>
    %88 = arith.subi %0, %87 : vector<256x4xi32>
    %cst_18 = arith.constant 0.000000e+00 : bf16
    %89 = vector.broadcast %cst_18 : bf16 to vector<256x256xbf16>
    %90 = vector.extract_strided_slice %88 {offsets = [0, 0], sizes = [256, 1], strides = [1, 1]} : vector<256x4xi32> to vector<256x1xi32>
    %91 = vector.broadcast %90 : vector<256x1xi32> to vector<256x256xi32>
    %92 = arith.cmpi eq, %91, %11 : vector<256x256xi32>
    %93 = arith.extui %92 : vector<256x256xi1> to vector<256x256xi32>
    %94 = arith.sitofp %93 : vector<256x256xi32> to vector<256x256xf32>
    %95 = arith.truncf %94 : vector<256x256xf32> to vector<256x256xbf16>
    %96 = arith.addf %89, %95 : vector<256x256xbf16>
    %97 = vector.extract_strided_slice %88 {offsets = [0, 1], sizes = [256, 1], strides = [1, 1]} : vector<256x4xi32> to vector<256x1xi32>
    %98 = vector.broadcast %97 : vector<256x1xi32> to vector<256x256xi32>
    %99 = arith.cmpi eq, %98, %11 : vector<256x256xi32>
    %100 = arith.extui %99 : vector<256x256xi1> to vector<256x256xi32>
    %101 = arith.sitofp %100 : vector<256x256xi32> to vector<256x256xf32>
    %102 = arith.truncf %101 : vector<256x256xf32> to vector<256x256xbf16>
    %103 = arith.addf %96, %102 : vector<256x256xbf16>
    %104 = vector.extract_strided_slice %88 {offsets = [0, 2], sizes = [256, 1], strides = [1, 1]} : vector<256x4xi32> to vector<256x1xi32>
    %105 = vector.broadcast %104 : vector<256x1xi32> to vector<256x256xi32>
    %106 = arith.cmpi eq, %105, %11 : vector<256x256xi32>
    %107 = arith.extui %106 : vector<256x256xi1> to vector<256x256xi32>
    %108 = arith.sitofp %107 : vector<256x256xi32> to vector<256x256xf32>
    %109 = arith.truncf %108 : vector<256x256xf32> to vector<256x256xbf16>
    %110 = arith.addf %103, %109 : vector<256x256xbf16>
    %111 = vector.extract_strided_slice %88 {offsets = [0, 3], sizes = [256, 1], strides = [1, 1]} : vector<256x4xi32> to vector<256x1xi32>
    %112 = vector.broadcast %111 : vector<256x1xi32> to vector<256x256xi32>
    %113 = arith.cmpi eq, %112, %11 : vector<256x256xi32>
    %114 = arith.extui %113 : vector<256x256xi1> to vector<256x256xi32>
    %115 = arith.sitofp %114 : vector<256x256xi32> to vector<256x256xf32>
    %116 = arith.truncf %115 : vector<256x256xf32> to vector<256x256xbf16>
    %117 = arith.addf %110, %116 : vector<256x256xbf16>
    %c512 = arith.constant 512 : index
    %c0_19 = arith.constant 0 : index
    %118 = vector.load %arg2[%c512, %c0_19] : memref<1536x32xbf16, #tpu.memory_space<vmem>>, vector<256x32xbf16>
    %c512_20 = arith.constant 512 : index
    %c0_21 = arith.constant 0 : index
    %119 = vector.load %arg3[%c512_20, %c0_21] : memref<1536x32xbf16, #tpu.memory_space<vmem>>, vector<256x32xbf16>
    %cst_22 = arith.constant dense<0.000000e+00> : vector<256x32xf32>
    %120 = tpu.matmul %117, %118, %cst_22 {dimension_numbers = #tpu.dot_dimension_numbers<[1], [0], [0], [1], [0, 0, 1, 1], [], []>} : vector<256x256xbf16>, vector<256x32xbf16>, vector<256x32xf32> -> vector<256x32xf32>
    %121 = arith.addf %86, %120 : vector<256x32xf32>
    %cst_23 = arith.constant dense<0.000000e+00> : vector<256x32xf32>
    %122 = tpu.matmul %117, %119, %cst_23 {dimension_numbers = #tpu.dot_dimension_numbers<[1], [0], [0], [1], [0, 0, 1, 1], [], []>} : vector<256x256xbf16>, vector<256x32xbf16>, vector<256x32xf32> -> vector<256x32xf32>
    %123 = arith.addf %121, %122 : vector<256x32xf32>
    %c768_i32 = arith.constant 768 : i32
    %124 = vector.broadcast %c768_i32 : i32 to vector<256x4xi32>
    %125 = arith.subi %0, %124 : vector<256x4xi32>
    %cst_24 = arith.constant 0.000000e+00 : bf16
    %126 = vector.broadcast %cst_24 : bf16 to vector<256x256xbf16>
    %127 = vector.extract_strided_slice %125 {offsets = [0, 0], sizes = [256, 1], strides = [1, 1]} : vector<256x4xi32> to vector<256x1xi32>
    %128 = vector.broadcast %127 : vector<256x1xi32> to vector<256x256xi32>
    %129 = arith.cmpi eq, %128, %11 : vector<256x256xi32>
    %130 = arith.extui %129 : vector<256x256xi1> to vector<256x256xi32>
    %131 = arith.sitofp %130 : vector<256x256xi32> to vector<256x256xf32>
    %132 = arith.truncf %131 : vector<256x256xf32> to vector<256x256xbf16>
    %133 = arith.addf %126, %132 : vector<256x256xbf16>
    %134 = vector.extract_strided_slice %125 {offsets = [0, 1], sizes = [256, 1], strides = [1, 1]} : vector<256x4xi32> to vector<256x1xi32>
    %135 = vector.broadcast %134 : vector<256x1xi32> to vector<256x256xi32>
    %136 = arith.cmpi eq, %135, %11 : vector<256x256xi32>
    %137 = arith.extui %136 : vector<256x256xi1> to vector<256x256xi32>
    %138 = arith.sitofp %137 : vector<256x256xi32> to vector<256x256xf32>
    %139 = arith.truncf %138 : vector<256x256xf32> to vector<256x256xbf16>
    %140 = arith.addf %133, %139 : vector<256x256xbf16>
    %141 = vector.extract_strided_slice %125 {offsets = [0, 2], sizes = [256, 1], strides = [1, 1]} : vector<256x4xi32> to vector<256x1xi32>
    %142 = vector.broadcast %141 : vector<256x1xi32> to vector<256x256xi32>
    %143 = arith.cmpi eq, %142, %11 : vector<256x256xi32>
    %144 = arith.extui %143 : vector<256x256xi1> to vector<256x256xi32>
    %145 = arith.sitofp %144 : vector<256x256xi32> to vector<256x256xf32>
    %146 = arith.truncf %145 : vector<256x256xf32> to vector<256x256xbf16>
    %147 = arith.addf %140, %146 : vector<256x256xbf16>
    %148 = vector.extract_strided_slice %125 {offsets = [0, 3], sizes = [256, 1], strides = [1, 1]} : vector<256x4xi32> to vector<256x1xi32>
    %149 = vector.broadcast %148 : vector<256x1xi32> to vector<256x256xi32>
    %150 = arith.cmpi eq, %149, %11 : vector<256x256xi32>
    %151 = arith.extui %150 : vector<256x256xi1> to vector<256x256xi32>
    %152 = arith.sitofp %151 : vector<256x256xi32> to vector<256x256xf32>
    %153 = arith.truncf %152 : vector<256x256xf32> to vector<256x256xbf16>
    %154 = arith.addf %147, %153 : vector<256x256xbf16>
    %c768 = arith.constant 768 : index
    %c0_25 = arith.constant 0 : index
    %155 = vector.load %arg2[%c768, %c0_25] : memref<1536x32xbf16, #tpu.memory_space<vmem>>, vector<256x32xbf16>
    %c768_26 = arith.constant 768 : index
    %c0_27 = arith.constant 0 : index
    %156 = vector.load %arg3[%c768_26, %c0_27] : memref<1536x32xbf16, #tpu.memory_space<vmem>>, vector<256x32xbf16>
    %cst_28 = arith.constant dense<0.000000e+00> : vector<256x32xf32>
    %157 = tpu.matmul %154, %155, %cst_28 {dimension_numbers = #tpu.dot_dimension_numbers<[1], [0], [0], [1], [0, 0, 1, 1], [], []>} : vector<256x256xbf16>, vector<256x32xbf16>, vector<256x32xf32> -> vector<256x32xf32>
    %158 = arith.addf %123, %157 : vector<256x32xf32>
    %cst_29 = arith.constant dense<0.000000e+00> : vector<256x32xf32>
    %159 = tpu.matmul %154, %156, %cst_29 {dimension_numbers = #tpu.dot_dimension_numbers<[1], [0], [0], [1], [0, 0, 1, 1], [], []>} : vector<256x256xbf16>, vector<256x32xbf16>, vector<256x32xf32> -> vector<256x32xf32>
    %160 = arith.addf %158, %159 : vector<256x32xf32>
    %c1024_i32 = arith.constant 1024 : i32
    %161 = vector.broadcast %c1024_i32 : i32 to vector<256x4xi32>
    %162 = arith.subi %0, %161 : vector<256x4xi32>
    %cst_30 = arith.constant 0.000000e+00 : bf16
    %163 = vector.broadcast %cst_30 : bf16 to vector<256x256xbf16>
    %164 = vector.extract_strided_slice %162 {offsets = [0, 0], sizes = [256, 1], strides = [1, 1]} : vector<256x4xi32> to vector<256x1xi32>
    %165 = vector.broadcast %164 : vector<256x1xi32> to vector<256x256xi32>
    %166 = arith.cmpi eq, %165, %11 : vector<256x256xi32>
    %167 = arith.extui %166 : vector<256x256xi1> to vector<256x256xi32>
    %168 = arith.sitofp %167 : vector<256x256xi32> to vector<256x256xf32>
    %169 = arith.truncf %168 : vector<256x256xf32> to vector<256x256xbf16>
    %170 = arith.addf %163, %169 : vector<256x256xbf16>
    %171 = vector.extract_strided_slice %162 {offsets = [0, 1], sizes = [256, 1], strides = [1, 1]} : vector<256x4xi32> to vector<256x1xi32>
    %172 = vector.broadcast %171 : vector<256x1xi32> to vector<256x256xi32>
    %173 = arith.cmpi eq, %172, %11 : vector<256x256xi32>
    %174 = arith.extui %173 : vector<256x256xi1> to vector<256x256xi32>
    %175 = arith.sitofp %174 : vector<256x256xi32> to vector<256x256xf32>
    %176 = arith.truncf %175 : vector<256x256xf32> to vector<256x256xbf16>
    %177 = arith.addf %170, %176 : vector<256x256xbf16>
    %178 = vector.extract_strided_slice %162 {offsets = [0, 2], sizes = [256, 1], strides = [1, 1]} : vector<256x4xi32> to vector<256x1xi32>
    %179 = vector.broadcast %178 : vector<256x1xi32> to vector<256x256xi32>
    %180 = arith.cmpi eq, %179, %11 : vector<256x256xi32>
    %181 = arith.extui %180 : vector<256x256xi1> to vector<256x256xi32>
    %182 = arith.sitofp %181 : vector<256x256xi32> to vector<256x256xf32>
    %183 = arith.truncf %182 : vector<256x256xf32> to vector<256x256xbf16>
    %184 = arith.addf %177, %183 : vector<256x256xbf16>
    %185 = vector.extract_strided_slice %162 {offsets = [0, 3], sizes = [256, 1], strides = [1, 1]} : vector<256x4xi32> to vector<256x1xi32>
    %186 = vector.broadcast %185 : vector<256x1xi32> to vector<256x256xi32>
    %187 = arith.cmpi eq, %186, %11 : vector<256x256xi32>
    %188 = arith.extui %187 : vector<256x256xi1> to vector<256x256xi32>
    %189 = arith.sitofp %188 : vector<256x256xi32> to vector<256x256xf32>
    %190 = arith.truncf %189 : vector<256x256xf32> to vector<256x256xbf16>
    %191 = arith.addf %184, %190 : vector<256x256xbf16>
    %c1024 = arith.constant 1024 : index
    %c0_31 = arith.constant 0 : index
    %192 = vector.load %arg2[%c1024, %c0_31] : memref<1536x32xbf16, #tpu.memory_space<vmem>>, vector<256x32xbf16>
    %c1024_32 = arith.constant 1024 : index
    %c0_33 = arith.constant 0 : index
    %193 = vector.load %arg3[%c1024_32, %c0_33] : memref<1536x32xbf16, #tpu.memory_space<vmem>>, vector<256x32xbf16>
    %cst_34 = arith.constant dense<0.000000e+00> : vector<256x32xf32>
    %194 = tpu.matmul %191, %192, %cst_34 {dimension_numbers = #tpu.dot_dimension_numbers<[1], [0], [0], [1], [0, 0, 1, 1], [], []>} : vector<256x256xbf16>, vector<256x32xbf16>, vector<256x32xf32> -> vector<256x32xf32>
    %195 = arith.addf %160, %194 : vector<256x32xf32>
    %cst_35 = arith.constant dense<0.000000e+00> : vector<256x32xf32>
    %196 = tpu.matmul %191, %193, %cst_35 {dimension_numbers = #tpu.dot_dimension_numbers<[1], [0], [0], [1], [0, 0, 1, 1], [], []>} : vector<256x256xbf16>, vector<256x32xbf16>, vector<256x32xf32> -> vector<256x32xf32>
    %197 = arith.addf %195, %196 : vector<256x32xf32>
    %c1280_i32 = arith.constant 1280 : i32
    %198 = vector.broadcast %c1280_i32 : i32 to vector<256x4xi32>
    %199 = arith.subi %0, %198 : vector<256x4xi32>
    %cst_36 = arith.constant 0.000000e+00 : bf16
    %200 = vector.broadcast %cst_36 : bf16 to vector<256x256xbf16>
    %201 = vector.extract_strided_slice %199 {offsets = [0, 0], sizes = [256, 1], strides = [1, 1]} : vector<256x4xi32> to vector<256x1xi32>
    %202 = vector.broadcast %201 : vector<256x1xi32> to vector<256x256xi32>
    %203 = arith.cmpi eq, %202, %11 : vector<256x256xi32>
    %204 = arith.extui %203 : vector<256x256xi1> to vector<256x256xi32>
    %205 = arith.sitofp %204 : vector<256x256xi32> to vector<256x256xf32>
    %206 = arith.truncf %205 : vector<256x256xf32> to vector<256x256xbf16>
    %207 = arith.addf %200, %206 : vector<256x256xbf16>
    %208 = vector.extract_strided_slice %199 {offsets = [0, 1], sizes = [256, 1], strides = [1, 1]} : vector<256x4xi32> to vector<256x1xi32>
    %209 = vector.broadcast %208 : vector<256x1xi32> to vector<256x256xi32>
    %210 = arith.cmpi eq, %209, %11 : vector<256x256xi32>
    %211 = arith.extui %210 : vector<256x256xi1> to vector<256x256xi32>
    %212 = arith.sitofp %211 : vector<256x256xi32> to vector<256x256xf32>
    %213 = arith.truncf %212 : vector<256x256xf32> to vector<256x256xbf16>
    %214 = arith.addf %207, %213 : vector<256x256xbf16>
    %215 = vector.extract_strided_slice %199 {offsets = [0, 2], sizes = [256, 1], strides = [1, 1]} : vector<256x4xi32> to vector<256x1xi32>
    %216 = vector.broadcast %215 : vector<256x1xi32> to vector<256x256xi32>
    %217 = arith.cmpi eq, %216, %11 : vector<256x256xi32>
    %218 = arith.extui %217 : vector<256x256xi1> to vector<256x256xi32>
    %219 = arith.sitofp %218 : vector<256x256xi32> to vector<256x256xf32>
    %220 = arith.truncf %219 : vector<256x256xf32> to vector<256x256xbf16>
    %221 = arith.addf %214, %220 : vector<256x256xbf16>
    %222 = vector.extract_strided_slice %199 {offsets = [0, 3], sizes = [256, 1], strides = [1, 1]} : vector<256x4xi32> to vector<256x1xi32>
    %223 = vector.broadcast %222 : vector<256x1xi32> to vector<256x256xi32>
    %224 = arith.cmpi eq, %223, %11 : vector<256x256xi32>
    %225 = arith.extui %224 : vector<256x256xi1> to vector<256x256xi32>
    %226 = arith.sitofp %225 : vector<256x256xi32> to vector<256x256xf32>
    %227 = arith.truncf %226 : vector<256x256xf32> to vector<256x256xbf16>
    %228 = arith.addf %221, %227 : vector<256x256xbf16>
    %c1280 = arith.constant 1280 : index
    %c0_37 = arith.constant 0 : index
    %229 = vector.load %arg2[%c1280, %c0_37] : memref<1536x32xbf16, #tpu.memory_space<vmem>>, vector<256x32xbf16>
    %c1280_38 = arith.constant 1280 : index
    %c0_39 = arith.constant 0 : index
    %230 = vector.load %arg3[%c1280_38, %c0_39] : memref<1536x32xbf16, #tpu.memory_space<vmem>>, vector<256x32xbf16>
    %cst_40 = arith.constant dense<0.000000e+00> : vector<256x32xf32>
    %231 = tpu.matmul %228, %229, %cst_40 {dimension_numbers = #tpu.dot_dimension_numbers<[1], [0], [0], [1], [0, 0, 1, 1], [], []>} : vector<256x256xbf16>, vector<256x32xbf16>, vector<256x32xf32> -> vector<256x32xf32>
    %232 = arith.addf %197, %231 : vector<256x32xf32>
    %cst_41 = arith.constant dense<0.000000e+00> : vector<256x32xf32>
    %233 = tpu.matmul %228, %230, %cst_41 {dimension_numbers = #tpu.dot_dimension_numbers<[1], [0], [0], [1], [0, 0, 1, 1], [], []>} : vector<256x256xbf16>, vector<256x32xbf16>, vector<256x32xf32> -> vector<256x32xf32>
    %234 = arith.addf %232, %233 : vector<256x32xf32>
    %235 = vector.broadcast %10 : vector<256x1xf32> to vector<256x32xf32>
    %236 = arith.mulf %234, %235 : vector<256x32xf32>
    %c0_42 = arith.constant 0 : index
    %c0_43 = arith.constant 0 : index
    %237 = vector.load %arg4[%c0_42, %c0_43] : memref<256x32xf32, #tpu.memory_space<vmem>>, vector<256x32xf32>
    tpu.vector_store %arg4[%c0_42, %c0_43], %236 {strides = array<i32>} : memref<256x32xf32, #tpu.memory_space<vmem>>, vector<256x32xf32>,
    return
  }
  func.func @transform_0(%arg0: i32) -> (i32, i32) {
    %c0_i32 = arith.constant 0 : i32
    %c0_i32_0 = arith.constant 0 : i32
    return %arg0, %c0_i32 : i32, i32
  }
  func.func @transform_1(%arg0: i32) -> (i32, i32) {
    %c0_i32 = arith.constant 0 : i32
    %c0_i32_0 = arith.constant 0 : i32
    %c0_i32_1 = arith.constant 0 : i32
    return %c0_i32, %c0_i32_0 : i32, i32
  }
  func.func @transform_2(%arg0: i32) -> (i32, i32) {
    %c0_i32 = arith.constant 0 : i32
    %c0_i32_0 = arith.constant 0 : i32
    %c0_i32_1 = arith.constant 0 : i32
    return %c0_i32, %c0_i32_0 : i32, i32
  }
  func.func @transform_3(%arg0: i32) -> (i32, i32) {
    %c0_i32 = arith.constant 0 : i32
    %c0_i32_0 = arith.constant 0 : i32
    return %arg0, %c0_i32 : i32, i32
  }
}

</mosaic_0001>

<llo_original>
// kernel: tpu_custom_call.1
$region0: #{tpu_custom_call.1}
  #allocation0 [shape = 'u32[]', space=smem, size = 0x4, offset = 0x4, fixed_abs, tag = 'smem constant byte address 0x4 - core index']
  #allocation1 [shape = 'u32[144,128]{1,0:T(1,128)}', space=vmem, size = 0x12000, scoped, tag = 'internal scratch']
  %s0 = inlined_call_operand.vmem [shape: s32[256,4], index: 0, kind: input, shape index: {}]
  %s1 = inlined_call_operand.vmem [shape: bf16[1536,32], index: 1, kind: input, shape index: {}]
  %s2 = inlined_call_operand.vmem [shape: bf16[1536,32], index: 2, kind: input, shape index: {}]
  %s3 = inlined_call_operand.vmem [shape: f32[256,32], index: 3, kind: output, shape index: {}]
  %s4 = sld [smem:[#allocation0]]
  $region22: #{tpu_custom_call.1} parent=0
    _
  %s6 = ssub.s32 1, %s4
  %s7 = scalar_select 0, %s6, %s4
  // Predicated region
  $region2: #{tpu_custom_call.1} parent=0 // pred_check
    _
  $region3: #{tpu_custom_call.1} parent=0 // pred_check_branch
    %9 = sbr.rel (0) target = $region5
  $region4: #{tpu_custom_call.1} parent=0 // pred_region
    _
  $region5: #{tpu_custom_call.1} parent=0 // pred_fallthru
    _
  // Predicated region
  $region6: #{tpu_custom_call.1} parent=0 // pred_check
    _
  $region7: #{tpu_custom_call.1} parent=0 // pred_check_branch
    %11 = sbr.rel (0) target = $region9
  $region8: #{tpu_custom_call.1} parent=0 // pred_region
    _
  $region9: #{tpu_custom_call.1} parent=0 // pred_fallthru
    _
  // Predicated region
  $region10: #{tpu_custom_call.1} parent=0 // pred_check
    _
  $region11: #{tpu_custom_call.1} parent=0 // pred_check_branch
    %13 = sbr.rel (0) target = $region13
  $region12: #{tpu_custom_call.1} parent=0 // pred_region
    _
  $region13: #{tpu_custom_call.1} parent=0 // pred_fallthru
    _
  %v15 = vld [vmem:[%s0] sm:$0xff]
  %v16 = vld [vmem:[%s0 + $0x8] sm:$0xff]
  %v17 = vld [vmem:[%s0 + $0x10] sm:$0xff]
  %v18 = vld [vmem:[%s0 + $0x18] sm:$0xff]
  %v19 = vld [vmem:[%s0 + $0x20] sm:$0xff]
  %v20 = vld [vmem:[%s0 + $0x28] sm:$0xff]
  %v21 = vld [vmem:[%s0 + $0x30] sm:$0xff]
  %v22 = vld [vmem:[%s0 + $0x38] sm:$0xff]
  %v23 = vld [vmem:[%s0 + $0x40] sm:$0xff]
  %v24 = vld [vmem:[%s0 + $0x48] sm:$0xff]
  %v25 = vld [vmem:[%s0 + $0x50] sm:$0xff]
  %v26 = vld [vmem:[%s0 + $0x58] sm:$0xff]
  %v27 = vld [vmem:[%s0 + $0x60] sm:$0xff]
  %v28 = vld [vmem:[%s0 + $0x68] sm:$0xff]
  %v29 = vld [vmem:[%s0 + $0x70] sm:$0xff]
  %v30 = vld [vmem:[%s0 + $0x78] sm:$0xff]
  %v31 = vld [vmem:[%s0 + $0x80] sm:$0xff]
  %v32 = vld [vmem:[%s0 + $0x88] sm:$0xff]
  %v33 = vld [vmem:[%s0 + $0x90] sm:$0xff]
  %v34 = vld [vmem:[%s0 + $0x98] sm:$0xff]
  %v35 = vld [vmem:[%s0 + $0xa0] sm:$0xff]
  %v36 = vld [vmem:[%s0 + $0xa8] sm:$0xff]
  %v37 = vld [vmem:[%s0 + $0xb0] sm:$0xff]
  %v38 = vld [vmem:[%s0 + $0xb8] sm:$0xff]
  %v39 = vld [vmem:[%s0 + $0xc0] sm:$0xff]
  %v40 = vld [vmem:[%s0 + $0xc8] sm:$0xff]
  %v41 = vld [vmem:[%s0 + $0xd0] sm:$0xff]
  %v42 = vld [vmem:[%s0 + $0xd8] sm:$0xff]
  %v43 = vld [vmem:[%s0 + $0xe0] sm:$0xff]
  %v44 = vld [vmem:[%s0 + $0xe8] sm:$0xff]
  %v45 = vld [vmem:[%s0 + $0xf0] sm:$0xff]
  %v46 = vld [vmem:[%s0 + $0xf8] sm:$0xff]
  %vm47 = vcmp.ge.s32.totalorder %v15, 0
  %vm48 = vcmp.ge.s32.totalorder %v16, 0
  %vm49 = vcmp.ge.s32.totalorder %v17, 0
  %vm50 = vcmp.ge.s32.totalorder %v18, 0
  %vm51 = vcmp.ge.s32.totalorder %v19, 0
  %vm52 = vcmp.ge.s32.totalorder %v20, 0
  %vm53 = vcmp.ge.s32.totalorder %v21, 0
  %vm54 = vcmp.ge.s32.totalorder %v22, 0
  %vm55 = vcmp.ge.s32.totalorder %v23, 0
  %vm56 = vcmp.ge.s32.totalorder %v24, 0
  %vm57 = vcmp.ge.s32.totalorder %v25, 0
  %vm58 = vcmp.ge.s32.totalorder %v26, 0
  %vm59 = vcmp.ge.s32.totalorder %v27, 0
  %vm60 = vcmp.ge.s32.totalorder %v28, 0
  %vm61 = vcmp.ge.s32.totalorder %v29, 0
  %vm62 = vcmp.ge.s32.totalorder %v30, 0
  %vm63 = vcmp.ge.s32.totalorder %v31, 0
  %vm64 = vcmp.ge.s32.totalorder %v32, 0
  %vm65 = vcmp.ge.s32.totalorder %v33, 0
  %vm66 = vcmp.ge.s32.totalorder %v34, 0
  %vm67 = vcmp.ge.s32.totalorder %v35, 0
  %vm68 = vcmp.ge.s32.totalorder %v36, 0
  %vm69 = vcmp.ge.s32.totalorder %v37, 0
  %vm70 = vcmp.ge.s32.totalorder %v38, 0
  %vm71 = vcmp.ge.s32.totalorder %v39, 0
  %vm72 = vcmp.ge.s32.totalorder %v40, 0
  %vm73 = vcmp.ge.s32.totalorder %v41, 0
  %vm74 = vcmp.ge.s32.totalorder %v42, 0
  %vm75 = vcmp.ge.s32.totalorder %v43, 0
  %vm76 = vcmp.ge.s32.totalorder %v44, 0
  %vm77 = vcmp.ge.s32.totalorder %v45, 0
  %vm78 = vcmp.ge.s32.totalorder %v46, 0
  %v79 = vsel %vm47, 1, 0
  %v80 = vsel %vm48, 1, 0
  %v81 = vsel %vm49, 1, 0
  %v82 = vsel %vm50, 1, 0
  %v83 = vsel %vm51, 1, 0
  %v84 = vsel %vm52, 1, 0
  %v85 = vsel %vm53, 1, 0
  %v86 = vsel %vm54, 1, 0
  %v87 = vsel %vm55, 1, 0
  %v88 = vsel %vm56, 1, 0
  %v89 = vsel %vm57, 1, 0
  %v90 = vsel %vm58, 1, 0
  %v91 = vsel %vm59, 1, 0
  %v92 = vsel %vm60, 1, 0
  %v93 = vsel %vm61, 1, 0
  %v94 = vsel %vm62, 1, 0
  %v95 = vsel %vm63, 1, 0
  %v96 = vsel %vm64, 1, 0
  %v97 = vsel %vm65, 1, 0
  %v98 = vsel %vm66, 1, 0
  %v99 = vsel %vm67, 1, 0
  %v100 = vsel %vm68, 1, 0
  %v101 = vsel %vm69, 1, 0
  %v102 = vsel %vm70, 1, 0
  %v103 = vsel %vm71, 1, 0
  %v104 = vsel %vm72, 1, 0
  %v105 = vsel %vm73, 1, 0
  %v106 = vsel %vm74, 1, 0
  %v107 = vsel %vm75, 1, 0
  %v108 = vsel %vm76, 1, 0
  %v109 = vsel %vm77, 1, 0
  %v110 = vsel %vm78, 1, 0
  %v111 = vcvt.s32.f32 %v79
  %v112 = vcvt.s32.f32 %v80
  %v113 = vcvt.s32.f32 %v81
  %v114 = vcvt.s32.f32 %v82
  %v115 = vcvt.s32.f32 %v83
  %v116 = vcvt.s32.f32 %v84
  %v117 = vcvt.s32.f32 %v85
  %v118 = vcvt.s32.f32 %v86
  %v119 = vcvt.s32.f32 %v87
  %v120 = vcvt.s32.f32 %v88
  %v121 = vcvt.s32.f32 %v89
  %v122 = vcvt.s32.f32 %v90
  %v123 = vcvt.s32.f32 %v91
  %v124 = vcvt.s32.f32 %v92
  %v125 = vcvt.s32.f32 %v93
  %v126 = vcvt.s32.f32 %v94
  %v127 = vcvt.s32.f32 %v95
  %v128 = vcvt.s32.f32 %v96
  %v129 = vcvt.s32.f32 %v97
  %v130 = vcvt.s32.f32 %v98
  %v131 = vcvt.s32.f32 %v99
  %v132 = vcvt.s32.f32 %v100
  %v133 = vcvt.s32.f32 %v101
  %v134 = vcvt.s32.f32 %v102
  %v135 = vcvt.s32.f32 %v103
  %v136 = vcvt.s32.f32 %v104
  %v137 = vcvt.s32.f32 %v105
  %v138 = vcvt.s32.f32 %v106
  %v139 = vcvt.s32.f32 %v107
  %v140 = vcvt.s32.f32 %v108
  %v141 = vcvt.s32.f32 %v109
  %v142 = vcvt.s32.f32 %v110
  %vm143 = vcmask 31744
  %v144 = vsel %vm143, %v111, 0.0
  %145 = vadd.xlane.f32.xlu0 %v144
  %v146 = vpop.xlane.xlu0 %145
  %v147 = vsel %vm143, %v112, 0.0
  %148 = vadd.xlane.f32.xlu0 %v147
  %v149 = vpop.xlane.xlu0 %148
  %v150 = vsel %vm143, %v113, 0.0
  %151 = vadd.xlane.f32.xlu0 %v150
  %v152 = vpop.xlane.xlu0 %151
  %v153 = vsel %vm143, %v114, 0.0
  %154 = vadd.xlane.f32.xlu0 %v153
  %v155 = vpop.xlane.xlu0 %154
  %v156 = vsel %vm143, %v115, 0.0
  %157 = vadd.xlane.f32.xlu0 %v156
  %v158 = vpop.xlane.xlu0 %157
  %v159 = vsel %vm143, %v116, 0.0
  %160 = vadd.xlane.f32.xlu0 %v159
  %v161 = vpop.xlane.xlu0 %160
  %v162 = vsel %vm143, %v117, 0.0
  %163 = vadd.xlane.f32.xlu0 %v162
  %v164 = vpop.xlane.xlu0 %163
  %v165 = vsel %vm143, %v118, 0.0
  %166 = vadd.xlane.f32.xlu0 %v165
  %v167 = vpop.xlane.xlu0 %166
  %v168 = vsel %vm143, %v119, 0.0
  %169 = vadd.xlane.f32.xlu0 %v168
  %v170 = vpop.xlane.xlu0 %169
  %v171 = vsel %vm143, %v120, 0.0
  %172 = vadd.xlane.f32.xlu0 %v171
  %v173 = vpop.xlane.xlu0 %172
  %v174 = vsel %vm143, %v121, 0.0
  %175 = vadd.xlane.f32.xlu0 %v174
  %v176 = vpop.xlane.xlu0 %175
  %v177 = vsel %vm143, %v122, 0.0
  %178 = vadd.xlane.f32.xlu0 %v177
  %v179 = vpop.xlane.xlu0 %178
  %v180 = vsel %vm143, %v123, 0.0
  %181 = vadd.xlane.f32.xlu0 %v180
  %v182 = vpop.xlane.xlu0 %181
  %v183 = vsel %vm143, %v124, 0.0
  %184 = vadd.xlane.f32.xlu0 %v183
  %v185 = vpop.xlane.xlu0 %184
  %v186 = vsel %vm143, %v125, 0.0
  %187 = vadd.xlane.f32.xlu0 %v186
  %v188 = vpop.xlane.xlu0 %187
  %v189 = vsel %vm143, %v126, 0.0
  %190 = vadd.xlane.f32.xlu0 %v189
  %v191 = vpop.xlane.xlu0 %190
  %v192 = vsel %vm143, %v127, 0.0
  %193 = vadd.xlane.f32.xlu0 %v192
  %v194 = vpop.xlane.xlu0 %193
  %v195 = vsel %vm143, %v128, 0.0
  %196 = vadd.xlane.f32.xlu0 %v195
  %v197 = vpop.xlane.xlu0 %196
  %v198 = vsel %vm143, %v129, 0.0
  %199 = vadd.xlane.f32.xlu0 %v198
  %v200 = vpop.xlane.xlu0 %199
  %v201 = vsel %vm143, %v130, 0.0
  %202 = vadd.xlane.f32.xlu0 %v201
  %v203 = vpop.xlane.xlu0 %202
  %v204 = vsel %vm143, %v131, 0.0
  %205 = vadd.xlane.f32.xlu0 %v204
  %v206 = vpop.xlane.xlu0 %205
  %v207 = vsel %vm143, %v132, 0.0
  %208 = vadd.xlane.f32.xlu0 %v207
  %v209 = vpop.xlane.xlu0 %208
  %v210 = vsel %vm143, %v133, 0.0
  %211 = vadd.xlane.f32.xlu0 %v210
  %v212 = vpop.xlane.xlu0 %211
  %v213 = vsel %vm143, %v134, 0.0
  %214 = vadd.xlane.f32.xlu0 %v213
  %v215 = vpop.xlane.xlu0 %214
  %v216 = vsel %vm143, %v135, 0.0
  %217 = vadd.xlane.f32.xlu0 %v216
  %v218 = vpop.xlane.xlu0 %217
  %v219 = vsel %vm143, %v136, 0.0
  %220 = vadd.xlane.f32.xlu0 %v219
  %v221 = vpop.xlane.xlu0 %220
  %v222 = vsel %vm143, %v137, 0.0
  %223 = vadd.xlane.f32.xlu0 %v222
  %v224 = vpop.xlane.xlu0 %223
  %v225 = vsel %vm143, %v138, 0.0
  %226 = vadd.xlane.f32.xlu0 %v225
  %v227 = vpop.xlane.xlu0 %226
  %v228 = vsel %vm143, %v139, 0.0
  %229 = vadd.xlane.f32.xlu0 %v228
  %v230 = vpop.xlane.xlu0 %229
  %v231 = vsel %vm143, %v140, 0.0
  %232 = vadd.xlane.f32.xlu0 %v231
  %v233 = vpop.xlane.xlu0 %232
  %v234 = vsel %vm143, %v141, 0.0
  %235 = vadd.xlane.f32.xlu0 %v234
  %v236 = vpop.xlane.xlu0 %235
  %v237 = vsel %vm143, %v142, 0.0
  %238 = vadd.xlane.f32.xlu0 %v237
  %v239 = vpop.xlane.xlu0 %238
  %v240 = vmax.f32 %v146, 1.0
  %v241 = vmax.f32 %v149, 1.0
  %v242 = vmax.f32 %v152, 1.0
  %v243 = vmax.f32 %v155, 1.0
  %v244 = vmax.f32 %v158, 1.0
  %v245 = vmax.f32 %v161, 1.0
  %v246 = vmax.f32 %v164, 1.0
  %v247 = vmax.f32 %v167, 1.0
  %v248 = vmax.f32 %v170, 1.0
  %v249 = vmax.f32 %v173, 1.0
  %v250 = vmax.f32 %v176, 1.0
  %v251 = vmax.f32 %v179, 1.0
  %v252 = vmax.f32 %v182, 1.0
  %v253 = vmax.f32 %v185, 1.0
  %v254 = vmax.f32 %v188, 1.0
  %v255 = vmax.f32 %v191, 1.0
  %v256 = vmax.f32 %v194, 1.0
  %v257 = vmax.f32 %v197, 1.0
  %v258 = vmax.f32 %v200, 1.0
  %v259 = vmax.f32 %v203, 1.0
  %v260 = vmax.f32 %v206, 1.0
  %v261 = vmax.f32 %v209, 1.0
  %v262 = vmax.f32 %v212, 1.0
  %v263 = vmax.f32 %v215, 1.0
  %v264 = vmax.f32 %v218, 1.0
  %v265 = vmax.f32 %v221, 1.0
  %v266 = vmax.f32 %v224, 1.0
  %v267 = vmax.f32 %v227, 1.0
  %v268 = vmax.f32 %v230, 1.0
  %v269 = vmax.f32 %v233, 1.0
  %v270 = vmax.f32 %v236, 1.0
  %v271 = vmax.f32 %v239, 1.0
  %v272 = vrcp.pop %v240
  %v273 = vmul.f32 1.0, %v272
  %v274 = vrcp.pop %v241
  %v275 = vmul.f32 1.0, %v274
  %v276 = vrcp.pop %v242
  %v277 = vmul.f32 1.0, %v276
  %v278 = vrcp.pop %v243
  %v279 = vmul.f32 1.0, %v278
  %v280 = vrcp.pop %v244
  %v281 = vmul.f32 1.0, %v280
  %v282 = vrcp.pop %v245
  %v283 = vmul.f32 1.0, %v282
  %v284 = vrcp.pop %v246
  %v285 = vmul.f32 1.0, %v284
  %v286 = vrcp.pop %v247
  %v287 = vmul.f32 1.0, %v286
  %v288 = vrcp.pop %v248
  %v289 = vmul.f32 1.0, %v288
  %v290 = vrcp.pop %v249
  %v291 = vmul.f32 1.0, %v290
  %v292 = vrcp.pop %v250
  %v293 = vmul.f32 1.0, %v292
  %v294 = vrcp.pop %v251
  %v295 = vmul.f32 1.0, %v294
  %v296 = vrcp.pop %v252
  %v297 = vmul.f32 1.0, %v296
  %v298 = vrcp.pop %v253
  %v299 = vmul.f32 1.0, %v298
  %v300 = vrcp.pop %v254
  %v301 = vmul.f32 1.0, %v300
  %v302 = vrcp.pop %v255
  %v303 = vmul.f32 1.0, %v302
  %v304 = vrcp.pop %v256
  %v305 = vmul.f32 1.0, %v304
  %v306 = vrcp.pop %v257
  %v307 = vmul.f32 1.0, %v306
  %v308 = vrcp.pop %v258
  %v309 = vmul.f32 1.0, %v308
  %v310 = vrcp.pop %v259
  %v311 = vmul.f32 1.0, %v310
  %v312 = vrcp.pop %v260
  %v313 = vmul.f32 1.0, %v312
  %v314 = vrcp.pop %v261
  %v315 = vmul.f32 1.0, %v314
  %v316 = vrcp.pop %v262
  %v317 = vmul.f32 1.0, %v316
  %v318 = vrcp.pop %v263
  %v319 = vmul.f32 1.0, %v318
  %v320 = vrcp.pop %v264
  %v321 = vmul.f32 1.0, %v320
  %v322 = vrcp.pop %v265
  %v323 = vmul.f32 1.0, %v322
  %v324 = vrcp.pop %v266
  %v325 = vmul.f32 1.0, %v324
  %v326 = vrcp.pop %v267
  %v327 = vmul.f32 1.0, %v326
  %v328 = vrcp.pop %v268
  %v329 = vmul.f32 1.0, %v328
  %v330 = vrcp.pop %v269
  %v331 = vmul.f32 1.0, %v330
  %v332 = vrcp.pop %v270
  %v333 = vmul.f32 1.0, %v332
  %v334 = vrcp.pop %v271
  %v335 = vmul.f32 1.0, %v334
  %v336 = vlaneseq
  %v337 = vand.u32 %v336, 127
  %v338 = vadd.s32 %v337, 128
  %339 = vset.pattern.permute.xlu0 0
  %340 = vperm.xlu0 %339, %v15
  %v341 = vpop.permute.xlu0 %340
  %342 = vset.pattern.permute.xlu0 0
  %343 = vperm.xlu0 %342, %v16
  %v344 = vpop.permute.xlu0 %343
  %345 = vset.pattern.permute.xlu0 0
  %346 = vperm.xlu0 %345, %v17
  %v347 = vpop.permute.xlu0 %346
  %348 = vset.pattern.permute.xlu0 0
  %349 = vperm.xlu0 %348, %v18
  %v350 = vpop.permute.xlu0 %349
  %351 = vset.pattern.permute.xlu0 0
  %352 = vperm.xlu0 %351, %v19
  %v353 = vpop.permute.xlu0 %352
  %354 = vset.pattern.permute.xlu0 0
  %355 = vperm.xlu0 %354, %v20
  %v356 = vpop.permute.xlu0 %355
  %357 = vset.pattern.permute.xlu0 0
  %358 = vperm.xlu0 %357, %v21
  %v359 = vpop.permute.xlu0 %358
  %360 = vset.pattern.permute.xlu0 0
  %361 = vperm.xlu0 %360, %v22
  %v362 = vpop.permute.xlu0 %361
  %363 = vset.pattern.permute.xlu0 0
  %364 = vperm.xlu0 %363, %v23
  %v365 = vpop.permute.xlu0 %364
  %366 = vset.pattern.permute.xlu0 0
  %367 = vperm.xlu0 %366, %v24
  %v368 = vpop.permute.xlu0 %367
  %369 = vset.pattern.permute.xlu0 0
  %370 = vperm.xlu0 %369, %v25
  %v371 = vpop.permute.xlu0 %370
  %372 = vset.pattern.permute.xlu0 0
  %373 = vperm.xlu0 %372, %v26
  %v374 = vpop.permute.xlu0 %373
  %375 = vset.pattern.permute.xlu0 0
  %376 = vperm.xlu0 %375, %v27
  %v377 = vpop.permute.xlu0 %376
  %378 = vset.pattern.permute.xlu0 0
  %379 = vperm.xlu0 %378, %v28
  %v380 = vpop.permute.xlu0 %379
  %381 = vset.pattern.permute.xlu0 0
  %382 = vperm.xlu0 %381, %v29
  %v383 = vpop.permute.xlu0 %382
  %384 = vset.pattern.permute.xlu0 0
  %385 = vperm.xlu0 %384, %v30
  %v386 = vpop.permute.xlu0 %385
  %387 = vset.pattern.permute.xlu0 0
  %388 = vperm.xlu0 %387, %v31
  %v389 = vpop.permute.xlu0 %388
  %390 = vset.pattern.permute.xlu0 0
  %391 = vperm.xlu0 %390, %v32
  %v392 = vpop.permute.xlu0 %391
  %393 = vset.pattern.permute.xlu0 0
  %394 = vperm.xlu0 %393, %v33
  %v395 = vpop.permute.xlu0 %394
  %396 = vset.pattern.permute.xlu0 0
  %397 = vperm.xlu0 %396, %v34
  %v398 = vpop.permute.xlu0 %397
  %399 = vset.pattern.permute.xlu0 0
  %400 = vperm.xlu0 %399, %v35
  %v401 = vpop.permute.xlu0 %400
  %402 = vset.pattern.permute.xlu0 0
  %403 = vperm.xlu0 %402, %v36
  %v404 = vpop.permute.xlu0 %403
  %405 = vset.pattern.permute.xlu0 0
  %406 = vperm.xlu0 %405, %v37
  %v407 = vpop.permute.xlu0 %406
  %408 = vset.pattern.permute.xlu0 0
  %409 = vperm.xlu0 %408, %v38
  %v410 = vpop.permute.xlu0 %409
  %411 = vset.pattern.permute.xlu0 0
  %412 = vperm.xlu0 %411, %v39
  %v413 = vpop.permute.xlu0 %412
  %414 = vset.pattern.permute.xlu0 0
  %415 = vperm.xlu0 %414, %v40
  %v416 = vpop.permute.xlu0 %415
  %417 = vset.pattern.permute.xlu0 0
  %418 = vperm.xlu0 %417, %v41
  %v419 = vpop.permute.xlu0 %418
  %420 = vset.pattern.permute.xlu0 0
  %421 = vperm.xlu0 %420, %v42
  %v422 = vpop.permute.xlu0 %421
  %423 = vset.pattern.permute.xlu0 0
  %424 = vperm.xlu0 %423, %v43
  %v425 = vpop.permute.xlu0 %424
  %426 = vset.pattern.permute.xlu0 0
  %427 = vperm.xlu0 %426, %v44
  %v428 = vpop.permute.xlu0 %427
  %429 = vset.pattern.permute.xlu0 0
  %430 = vperm.xlu0 %429, %v45
  %v431 = vpop.permute.xlu0 %430
  %432 = vset.pattern.permute.xlu0 0
  %433 = vperm.xlu0 %432, %v46
  %v434 = vpop.permute.xlu0 %433
  %vm435 = vcmp.eq.s32.totalorder %v341, %v337
  %vm436 = vcmp.eq.s32.totalorder %v341, %v338
  %vm437 = vcmp.eq.s32.totalorder %v344, %v337
  %vm438 = vcmp.eq.s32.totalorder %v344, %v338
  %vm439 = vcmp.eq.s32.totalorder %v347, %v337
  %vm440 = vcmp.eq.s32.totalorder %v347, %v338
  %vm441 = vcmp.eq.s32.totalorder %v350, %v337
  %vm442 = vcmp.eq.s32.totalorder %v350, %v338
  %vm443 = vcmp.eq.s32.totalorder %v353, %v337
  %vm444 = vcmp.eq.s32.totalorder %v353, %v338
  %vm445 = vcmp.eq.s32.totalorder %v356, %v337
  %vm446 = vcmp.eq.s32.totalorder %v356, %v338
  %vm447 = vcmp.eq.s32.totalorder %v359, %v337
  %vm448 = vcmp.eq.s32.totalorder %v359, %v338
  %vm449 = vcmp.eq.s32.totalorder %v362, %v337
  %vm450 = vcmp.eq.s32.totalorder %v362, %v338
  %vm451 = vcmp.eq.s32.totalorder %v365, %v337
  %vm452 = vcmp.eq.s32.totalorder %v365, %v338
  %vm453 = vcmp.eq.s32.totalorder %v368, %v337
  %vm454 = vcmp.eq.s32.totalorder %v368, %v338
  %vm455 = vcmp.eq.s32.totalorder %v371, %v337
  %vm456 = vcmp.eq.s32.totalorder %v371, %v338
  %vm457 = vcmp.eq.s32.totalorder %v374, %v337
  %vm458 = vcmp.eq.s32.totalorder %v374, %v338
  %vm459 = vcmp.eq.s32.totalorder %v377, %v337
  %vm460 = vcmp.eq.s32.totalorder %v377, %v338
  %vm461 = vcmp.eq.s32.totalorder %v380, %v337
  %vm462 = vcmp.eq.s32.totalorder %v380, %v338
  %vm463 = vcmp.eq.s32.totalorder %v383, %v337
  %vm464 = vcmp.eq.s32.totalorder %v383, %v338
  %vm465 = vcmp.eq.s32.totalorder %v386, %v337
  %vm466 = vcmp.eq.s32.totalorder %v386, %v338
  %vm467 = vcmp.eq.s32.totalorder %v389, %v337
  %vm468 = vcmp.eq.s32.totalorder %v389, %v338
  %vm469 = vcmp.eq.s32.totalorder %v392, %v337
  %vm470 = vcmp.eq.s32.totalorder %v392, %v338
  %vm471 = vcmp.eq.s32.totalorder %v395, %v337
  %vm472 = vcmp.eq.s32.totalorder %v395, %v338
  %vm473 = vcmp.eq.s32.totalorder %v398, %v337
  %vm474 = vcmp.eq.s32.totalorder %v398, %v338
  %vm475 = vcmp.eq.s32.totalorder %v401, %v337
  %vm476 = vcmp.eq.s32.totalorder %v401, %v338
  %vm477 = vcmp.eq.s32.totalorder %v404, %v337
  %vm478 = vcmp.eq.s32.totalorder %v404, %v338
  %vm479 = vcmp.eq.s32.totalorder %v407, %v337
  %vm480 = vcmp.eq.s32.totalorder %v407, %v338
  %vm481 = vcmp.eq.s32.totalorder %v410, %v337
  %vm482 = vcmp.eq.s32.totalorder %v410, %v338
  %vm483 = vcmp.eq.s32.totalorder %v413, %v337
  %vm484 = vcmp.eq.s32.totalorder %v413, %v338
  %vm485 = vcmp.eq.s32.totalorder %v416, %v337
  %vm486 = vcmp.eq.s32.totalorder %v416, %v338
  %vm487 = vcmp.eq.s32.totalorder %v419, %v337
  %vm488 = vcmp.eq.s32.totalorder %v419, %v338
  %vm489 = vcmp.eq.s32.totalorder %v422, %v337
  %vm490 = vcmp.eq.s32.totalorder %v422, %v338
  %vm491 = vcmp.eq.s32.totalorder %v425, %v337
  %vm492 = vcmp.eq.s32.totalorder %v425, %v338
  %vm493 = vcmp.eq.s32.totalorder %v428, %v337
  %vm494 = vcmp.eq.s32.totalorder %v428, %v338
  %vm495 = vcmp.eq.s32.totalorder %v431, %v337
  %vm496 = vcmp.eq.s32.totalorder %v431, %v338
  %vm497 = vcmp.eq.s32.totalorder %v434, %v337
  %vm498 = vcmp.eq.s32.totalorder %v434, %v338
  %v499 = vsel %vm435, 1, 0
  %v500 = vsel %vm436, 1, 0
  %v501 = vsel %vm437, 1, 0
  %v502 = vsel %vm438, 1, 0
  %v503 = vsel %vm439, 1, 0
  %v504 = vsel %vm440, 1, 0
  %v505 = vsel %vm441, 1, 0
  %v506 = vsel %vm442, 1, 0
  %v507 = vsel %vm443, 1, 0
  %v508 = vsel %vm444, 1, 0
  %v509 = vsel %vm445, 1, 0
  %v510 = vsel %vm446, 1, 0
  %v511 = vsel %vm447, 1, 0
  %v512 = vsel %vm448, 1, 0
  %v513 = vsel %vm449, 1, 0
  %v514 = vsel %vm450, 1, 0
  %v515 = vsel %vm451, 1, 0
  %v516 = vsel %vm452, 1, 0
  %v517 = vsel %vm453, 1, 0
  %v518 = vsel %vm454, 1, 0
  %v519 = vsel %vm455, 1, 0
  %v520 = vsel %vm456, 1, 0
  %v521 = vsel %vm457, 1, 0
  %v522 = vsel %vm458, 1, 0
  %v523 = vsel %vm459, 1, 0
  %v524 = vsel %vm460, 1, 0
  %v525 = vsel %vm461, 1, 0
  %v526 = vsel %vm462, 1, 0
  %v527 = vsel %vm463, 1, 0
  %v528 = vsel %vm464, 1, 0
  %v529 = vsel %vm465, 1, 0
  %v530 = vsel %vm466, 1, 0
  %v531 = vsel %vm467, 1, 0
  %v532 = vsel %vm468, 1, 0
  %v533 = vsel %vm469, 1, 0
  %v534 = vsel %vm470, 1, 0
  %v535 = vsel %vm471, 1, 0
  %v536 = vsel %vm472, 1, 0
  %v537 = vsel %vm473, 1, 0
  %v538 = vsel %vm474, 1, 0
  %v539 = vsel %vm475, 1, 0
  %v540 = vsel %vm476, 1, 0
  %v541 = vsel %vm477, 1, 0
  %v542 = vsel %vm478, 1, 0
  %v543 = vsel %vm479, 1, 0
  %v544 = vsel %vm480, 1, 0
  %v545 = vsel %vm481, 1, 0
  %v546 = vsel %vm482, 1, 0
  %v547 = vsel %vm483, 1, 0
  %v548 = vsel %vm484, 1, 0
  %v549 = vsel %vm485, 1, 0
  %v550 = vsel %vm486, 1, 0
  %v551 = vsel %vm487, 1, 0
  %v552 = vsel %vm488, 1, 0
  %v553 = vsel %vm489, 1, 0
  %v554 = vsel %vm490, 1, 0
  %v555 = vsel %vm491, 1, 0
  %v556 = vsel %vm492, 1, 0
  %v557 = vsel %vm493, 1, 0
  %v558 = vsel %vm494, 1, 0
  %v559 = vsel %vm495, 1, 0
  %v560 = vsel %vm496, 1, 0
  %v561 = vsel %vm497, 1, 0
  %v562 = vsel %vm498, 1, 0
  %v563 = vcvt.s32.f32 %v499
  %v564 = vcvt.s32.f32 %v500
  %v565 = vcvt.s32.f32 %v501
  %v566 = vcvt.s32.f32 %v502
  %v567 = vcvt.s32.f32 %v503
  %v568 = vcvt.s32.f32 %v504
  %v569 = vcvt.s32.f32 %v505
  %v570 = vcvt.s32.f32 %v506
  %v571 = vcvt.s32.f32 %v507
  %v572 = vcvt.s32.f32 %v508
  %v573 = vcvt.s32.f32 %v509
  %v574 = vcvt.s32.f32 %v510
  %v575 = vcvt.s32.f32 %v511
  %v576 = vcvt.s32.f32 %v512
  %v577 = vcvt.s32.f32 %v513
  %v578 = vcvt.s32.f32 %v514
  %v579 = vcvt.s32.f32 %v515
  %v580 = vcvt.s32.f32 %v516
  %v581 = vcvt.s32.f32 %v517
  %v582 = vcvt.s32.f32 %v518
  %v583 = vcvt.s32.f32 %v519
  %v584 = vcvt.s32.f32 %v520
  %v585 = vcvt.s32.f32 %v521
  %v586 = vcvt.s32.f32 %v522
  %v587 = vcvt.s32.f32 %v523
  %v588 = vcvt.s32.f32 %v524
  %v589 = vcvt.s32.f32 %v525
  %v590 = vcvt.s32.f32 %v526
  %v591 = vcvt.s32.f32 %v527
  %v592 = vcvt.s32.f32 %v528
  %v593 = vcvt.s32.f32 %v529
  %v594 = vcvt.s32.f32 %v530
  %v595 = vcvt.s32.f32 %v531
  %v596 = vcvt.s32.f32 %v532
  %v597 = vcvt.s32.f32 %v533
  %v598 = vcvt.s32.f32 %v534
  %v599 = vcvt.s32.f32 %v535
  %v600 = vcvt.s32.f32 %v536
  %v601 = vcvt.s32.f32 %v537
  %v602 = vcvt.s32.f32 %v538
  %v603 = vcvt.s32.f32 %v539
  %v604 = vcvt.s32.f32 %v540
  %v605 = vcvt.s32.f32 %v541
  %v606 = vcvt.s32.f32 %v542
  %v607 = vcvt.s32.f32 %v543
  %v608 = vcvt.s32.f32 %v544
  %v609 = vcvt.s32.f32 %v545
  %v610 = vcvt.s32.f32 %v546
  %v611 = vcvt.s32.f32 %v547
  %v612 = vcvt.s32.f32 %v548
  %v613 = vcvt.s32.f32 %v549
  %v614 = vcvt.s32.f32 %v550
  %v615 = vcvt.s32.f32 %v551
  %v616 = vcvt.s32.f32 %v552
  %v617 = vcvt.s32.f32 %v553
  %v618 = vcvt.s32.f32 %v554
  %v619 = vcvt.s32.f32 %v555
  %v620 = vcvt.s32.f32 %v556
  %v621 = vcvt.s32.f32 %v557
  %v622 = vcvt.s32.f32 %v558
  %v623 = vcvt.s32.f32 %v559
  %v624 = vcvt.s32.f32 %v560
  %v625 = vcvt.s32.f32 %v561
  %v626 = vcvt.s32.f32 %v562
  %v627 = vpack.c.bf16 %v565, %v563
  %v628 = vpack.c.bf16 %v566, %v564
  %v629 = vpack.c.bf16 %v569, %v567
  %v630 = vpack.c.bf16 %v570, %v568
  %v631 = vpack.c.bf16 %v573, %v571
  %v632 = vpack.c.bf16 %v574, %v572
  %v633 = vpack.c.bf16 %v577, %v575
  %v634 = vpack.c.bf16 %v578, %v576
  %v635 = vpack.c.bf16 %v581, %v579
  %v636 = vpack.c.bf16 %v582, %v580
  %v637 = vpack.c.bf16 %v585, %v583
  %v638 = vpack.c.bf16 %v586, %v584
  %v639 = vpack.c.bf16 %v589, %v587
  %v640 = vpack.c.bf16 %v590, %v588
  %v641 = vpack.c.bf16 %v593, %v591
  %v642 = vpack.c.bf16 %v594, %v592
  %v643 = vpack.c.bf16 %v597, %v595
  %v644 = vpack.c.bf16 %v598, %v596
  %v645 = vpack.c.bf16 %v601, %v599
  %v646 = vpack.c.bf16 %v602, %v600
  %v647 = vpack.c.bf16 %v605, %v603
  %v648 = vpack.c.bf16 %v606, %v604
  %v649 = vpack.c.bf16 %v609, %v607
  %v650 = vpack.c.bf16 %v610, %v608
  %v651 = vpack.c.bf16 %v613, %v611
  %v652 = vpack.c.bf16 %v614, %v612
  %v653 = vpack.c.bf16 %v617, %v615
  %v654 = vpack.c.bf16 %v618, %v616
  %v655 = vpack.c.bf16 %v621, %v619
  %v656 = vpack.c.bf16 %v622, %v620
  %v657 = vpack.c.bf16 %v625, %v623
  %v658 = vpack.c.bf16 %v626, %v624
  %v659 = vadd.bf16 %v627, 0
  %v660 = vadd.bf16 %v628, 0
  %v661 = vadd.bf16 %v629, 0
  %v662 = vadd.bf16 %v630, 0
  %v663 = vadd.bf16 %v631, 0
  %v664 = vadd.bf16 %v632, 0
  %v665 = vadd.bf16 %v633, 0
  %v666 = vadd.bf16 %v634, 0
  %v667 = vadd.bf16 %v635, 0
  %v668 = vadd.bf16 %v636, 0
  %v669 = vadd.bf16 %v637, 0
  %v670 = vadd.bf16 %v638, 0
  %v671 = vadd.bf16 %v639, 0
  %v672 = vadd.bf16 %v640, 0
  %v673 = vadd.bf16 %v641, 0
  %v674 = vadd.bf16 %v642, 0
  %v675 = vadd.bf16 %v643, 0
  %v676 = vadd.bf16 %v644, 0
  %v677 = vadd.bf16 %v645, 0
  %v678 = vadd.bf16 %v646, 0
  %v679 = vadd.bf16 %v647, 0
  %v680 = vadd.bf16 %v648, 0
  %v681 = vadd.bf16 %v649, 0
  %v682 = vadd.bf16 %v650, 0
  %v683 = vadd.bf16 %v651, 0
  %v684 = vadd.bf16 %v652, 0
  %v685 = vadd.bf16 %v653, 0
  %v686 = vadd.bf16 %v654, 0
  %v687 = vadd.bf16 %v655, 0
  %v688 = vadd.bf16 %v656, 0
  %v689 = vadd.bf16 %v657, 0
  %v690 = vadd.bf16 %v658, 0
  %691 = vset.pattern.permute.xlu0 1
  %692 = vperm.xlu0 %691, %v15
  %v693 = vpop.permute.xlu0 %692
  %694 = vset.pattern.permute.xlu0 1
  %695 = vperm.xlu0 %694, %v16
  %v696 = vpop.permute.xlu0 %695
  %697 = vset.pattern.permute.xlu0 1
  %698 = vperm.xlu0 %697, %v17
  %v699 = vpop.permute.xlu0 %698
  %700 = vset.pattern.permute.xlu0 1
  %701 = vperm.xlu0 %700, %v18
  %v702 = vpop.permute.xlu0 %701
  %703 = vset.pattern.permute.xlu0 1
  %704 = vperm.xlu0 %703, %v19
  %v705 = vpop.permute.xlu0 %704
  %706 = vset.pattern.permute.xlu0 1
  %707 = vperm.xlu0 %706, %v20
  %v708 = vpop.permute.xlu0 %707
  %709 = vset.pattern.permute.xlu0 1
  %710 = vperm.xlu0 %709, %v21
  %v711 = vpop.permute.xlu0 %710
  %712 = vset.pattern.permute.xlu0 1
  %713 = vperm.xlu0 %712, %v22
  %v714 = vpop.permute.xlu0 %713
  %715 = vset.pattern.permute.xlu0 1
  %716 = vperm.xlu0 %715, %v23
  %v717 = vpop.permute.xlu0 %716
  %718 = vset.pattern.permute.xlu0 1
  %719 = vperm.xlu0 %718, %v24
  %v720 = vpop.permute.xlu0 %719
  %721 = vset.pattern.permute.xlu0 1
  %722 = vperm.xlu0 %721, %v25
  %v723 = vpop.permute.xlu0 %722
  %724 = vset.pattern.permute.xlu0 1
  %725 = vperm.xlu0 %724, %v26
  %v726 = vpop.permute.xlu0 %725
  %727 = vset.pattern.permute.xlu0 1
  %728 = vperm.xlu0 %727, %v27
  %v729 = vpop.permute.xlu0 %728
  %730 = vset.pattern.permute.xlu0 1
  %731 = vperm.xlu0 %730, %v28
  %v732 = vpop.permute.xlu0 %731
  %733 = vset.pattern.permute.xlu0 1
  %734 = vperm.xlu0 %733, %v29
  %v735 = vpop.permute.xlu0 %734
  %736 = vset.pattern.permute.xlu0 1
  %737 = vperm.xlu0 %736, %v30
  %v738 = vpop.permute.xlu0 %737
  %739 = vset.pattern.permute.xlu0 1
  %740 = vperm.xlu0 %739, %v31
  %v741 = vpop.permute.xlu0 %740
  %742 = vset.pattern.permute.xlu0 1
  %743 = vperm.xlu0 %742, %v32
  %v744 = vpop.permute.xlu0 %743
  %745 = vset.pattern.permute.xlu0 1
  %746 = vperm.xlu0 %745, %v33
  %v747 = vpop.permute.xlu0 %746
  %748 = vset.pattern.permute.xlu0 1
  %749 = vperm.xlu0 %748, %v34
  %v750 = vpop.permute.xlu0 %749
  %751 = vset.pattern.permute.xlu0 1
  %752 = vperm.xlu0 %751, %v35
  %v753 = vpop.permute.xlu0 %752
  %754 = vset.pattern.permute.xlu0 1
  %755 = vperm.xlu0 %754, %v36
  %v756 = vpop.permute.xlu0 %755
  %757 = vset.pattern.permute.xlu0 1
  %758 = vperm.xlu0 %757, %v37
  %v759 = vpop.permute.xlu0 %758
  %760 = vset.pattern.permute.xlu0 1
  %761 = vperm.xlu0 %760, %v38
  %v762 = vpop.permute.xlu0 %761
  %763 = vset.pattern.permute.xlu0 1
  %764 = vperm.xlu0 %763, %v39
  %v765 = vpop.permute.xlu0 %764
  %766 = vset.pattern.permute.xlu0 1
  %767 = vperm.xlu0 %766, %v40
  %v768 = vpop.permute.xlu0 %767
  %769 = vset.pattern.permute.xlu0 1
  %770 = vperm.xlu0 %769, %v41
  %v771 = vpop.permute.xlu0 %770
  %772 = vset.pattern.permute.xlu0 1
  %773 = vperm.xlu0 %772, %v42
  %v774 = vpop.permute.xlu0 %773
  %775 = vset.pattern.permute.xlu0 1
  %776 = vperm.xlu0 %775, %v43
  %v777 = vpop.permute.xlu0 %776
  %778 = vset.pattern.permute.xlu0 1
  %779 = vperm.xlu0 %778, %v44
  %v780 = vpop.permute.xlu0 %779
  %781 = vset.pattern.permute.xlu0 1
  %782 = vperm.xlu0 %781, %v45
  %v783 = vpop.permute.xlu0 %782
  %784 = vset.pattern.permute.xlu0 1
  %785 = vperm.xlu0 %784, %v46
  %v786 = vpop.permute.xlu0 %785
  %vm787 = vcmp.eq.s32.totalorder %v693, %v337
  %vm788 = vcmp.eq.s32.totalorder %v693, %v338
  %vm789 = vcmp.eq.s32.totalorder %v696, %v337
  %vm790 = vcmp.eq.s32.totalorder %v696, %v338
  %vm791 = vcmp.eq.s32.totalorder %v699, %v337
  %vm792 = vcmp.eq.s32.totalorder %v699, %v338
  %vm793 = vcmp.eq.s32.totalorder %v702, %v337
  %vm794 = vcmp.eq.s32.totalorder %v702, %v338
  %vm795 = vcmp.eq.s32.totalorder %v705, %v337
  %vm796 = vcmp.eq.s32.totalorder %v705, %v338
  %vm797 = vcmp.eq.s32.totalorder %v708, %v337
  %vm798 = vcmp.eq.s32.totalorder %v708, %v338
  %vm799 = vcmp.eq.s32.totalorder %v711, %v337
  %vm800 = vcmp.eq.s32.totalorder %v711, %v338
  %vm801 = vcmp.eq.s32.totalorder %v714, %v337
  %vm802 = vcmp.eq.s32.totalorder %v714, %v338
  %vm803 = vcmp.eq.s32.totalorder %v717, %v337
  %vm804 = vcmp.eq.s32.totalorder %v717, %v338
  %vm805 = vcmp.eq.s32.totalorder %v720, %v337
  %vm806 = vcmp.eq.s32.totalorder %v720, %v338
  %vm807 = vcmp.eq.s32.totalorder %v723, %v337
  %vm808 = vcmp.eq.s32.totalorder %v723, %v338
  %vm809 = vcmp.eq.s32.totalorder %v726, %v337
  %vm810 = vcmp.eq.s32.totalorder %v726, %v338
  %vm811 = vcmp.eq.s32.totalorder %v729, %v337
  %vm812 = vcmp.eq.s32.totalorder %v729, %v338
  %vm813 = vcmp.eq.s32.totalorder %v732, %v337
  %vm814 = vcmp.eq.s32.totalorder %v732, %v338
  %vm815 = vcmp.eq.s32.totalorder %v735, %v337
  %vm816 = vcmp.eq.s32.totalorder %v735, %v338
  %vm817 = vcmp.eq.s32.totalorder %v738, %v337
  %vm818 = vcmp.eq.s32.totalorder %v738, %v338
  %vm819 = vcmp.eq.s32.totalorder %v741, %v337
  %vm820 = vcmp.eq.s32.totalorder %v741, %v338
  %vm821 = vcmp.eq.s32.totalorder %v744, %v337
  %vm822 = vcmp.eq.s32.totalorder %v744, %v338
  %vm823 = vcmp.eq.s32.totalorder %v747, %v337
  %vm824 = vcmp.eq.s32.totalorder %v747, %v338
  %vm825 = vcmp.eq.s32.totalorder %v750, %v337
  %vm826 = vcmp.eq.s32.totalorder %v750, %v338
  %vm827 = vcmp.eq.s32.totalorder %v753, %v337
  %vm828 = vcmp.eq.s32.totalorder %v753, %v338
  %vm829 = vcmp.eq.s32.totalorder %v756, %v337
  %vm830 = vcmp.eq.s32.totalorder %v756, %v338
  %vm831 = vcmp.eq.s32.totalorder %v759, %v337
  %vm832 = vcmp.eq.s32.totalorder %v759, %v338
  %vm833 = vcmp.eq.s32.totalorder %v762, %v337
  %vm834 = vcmp.eq.s32.totalorder %v762, %v338
  %vm835 = vcmp.eq.s32.totalorder %v765, %v337
  %vm836 = vcmp.eq.s32.totalorder %v765, %v338
  %vm837 = vcmp.eq.s32.totalorder %v768, %v337
  %vm838 = vcmp.eq.s32.totalorder %v768, %v338
  %vm839 = vcmp.eq.s32.totalorder %v771, %v337
  %vm840 = vcmp.eq.s32.totalorder %v771, %v338
  %vm841 = vcmp.eq.s32.totalorder %v774, %v337
  %vm842 = vcmp.eq.s32.totalorder %v774, %v338
  %vm843 = vcmp.eq.s32.totalorder %v777, %v337
  %vm844 = vcmp.eq.s32.totalorder %v777, %v338
  %vm845 = vcmp.eq.s32.totalorder %v780, %v337
  %vm846 = vcmp.eq.s32.totalorder %v780, %v338
  %vm847 = vcmp.eq.s32.totalorder %v783, %v337
  %vm848 = vcmp.eq.s32.totalorder %v783, %v338
  %vm849 = vcmp.eq.s32.totalorder %v786, %v337
  %vm850 = vcmp.eq.s32.totalorder %v786, %v338
  %v851 = vsel %vm787, 1, 0
  %v852 = vsel %vm788, 1, 0
  %v853 = vsel %vm789, 1, 0
  %v854 = vsel %vm790, 1, 0
  %v855 = vsel %vm791, 1, 0
  %v856 = vsel %vm792, 1, 0
  %v857 = vsel %vm793, 1, 0
  %v858 = vsel %vm794, 1, 0
  %v859 = vsel %vm795, 1, 0
  %v860 = vsel %vm796, 1, 0
  %v861 = vsel %vm797, 1, 0
  %v862 = vsel %vm798, 1, 0
  %v863 = vsel %vm799, 1, 0
  %v864 = vsel %vm800, 1, 0
  %v865 = vsel %vm801, 1, 0
  %v866 = vsel %vm802, 1, 0
  %v867 = vsel %vm803, 1, 0
  %v868 = vsel %vm804, 1, 0
  %v869 = vsel %vm805, 1, 0
  %v870 = vsel %vm806, 1, 0
  %v871 = vsel %vm807, 1, 0
  %v872 = vsel %vm808, 1, 0
  %v873 = vsel %vm809, 1, 0
  %v874 = vsel %vm810, 1, 0
  %v875 = vsel %vm811, 1, 0
  %v876 = vsel %vm812, 1, 0
  %v877 = vsel %vm813, 1, 0
  %v878 = vsel %vm814, 1, 0
  %v879 = vsel %vm815, 1, 0
  %v880 = vsel %vm816, 1, 0
  %v881 = vsel %vm817, 1, 0
  %v882 = vsel %vm818, 1, 0
  %v883 = vsel %vm819, 1, 0
  %v884 = vsel %vm820, 1, 0
  %v885 = vsel %vm821, 1, 0
  %v886 = vsel %vm822, 1, 0
  %v887 = vsel %vm823, 1, 0
  %v888 = vsel %vm824, 1, 0
  %v889 = vsel %vm825, 1, 0
  %v890 = vsel %vm826, 1, 0
  %v891 = vsel %vm827, 1, 0
  %v892 = vsel %vm828, 1, 0
  %v893 = vsel %vm829, 1, 0
  %v894 = vsel %vm830, 1, 0
  %v895 = vsel %vm831, 1, 0
  %v896 = vsel %vm832, 1, 0
  %v897 = vsel %vm833, 1, 0
  %v898 = vsel %vm834, 1, 0
  %v899 = vsel %vm835, 1, 0
  %v900 = vsel %vm836, 1, 0
  %v901 = vsel %vm837, 1, 0
  %v902 = vsel %vm838, 1, 0
  %v903 = vsel %vm839, 1, 0
  %v904 = vsel %vm840, 1, 0
  %v905 = vsel %vm841, 1, 0
  %v906 = vsel %vm842, 1, 0
  %v907 = vsel %vm843, 1, 0
  %v908 = vsel %vm844, 1, 0
  %v909 = vsel %vm845, 1, 0
  %v910 = vsel %vm846, 1, 0
  %v911 = vsel %vm847, 1, 0
  %v912 = vsel %vm848, 1, 0
  %v913 = vsel %vm849, 1, 0
  %v914 = vsel %vm850, 1, 0
  %v915 = vcvt.s32.f32 %v851
  %v916 = vcvt.s32.f32 %v852
  %v917 = vcvt.s32.f32 %v853
  %v918 = vcvt.s32.f32 %v854
  %v919 = vcvt.s32.f32 %v855
  %v920 = vcvt.s32.f32 %v856
  %v921 = vcvt.s32.f32 %v857
  %v922 = vcvt.s32.f32 %v858
  %v923 = vcvt.s32.f32 %v859
  %v924 = vcvt.s32.f32 %v860
  %v925 = vcvt.s32.f32 %v861
  %v926 = vcvt.s32.f32 %v862
  %v927 = vcvt.s32.f32 %v863
  %v928 = vcvt.s32.f32 %v864
  %v929 = vcvt.s32.f32 %v865
  %v930 = vcvt.s32.f32 %v866
  %v931 = vcvt.s32.f32 %v867
  %v932 = vcvt.s32.f32 %v868
  %v933 = vcvt.s32.f32 %v869
  %v934 = vcvt.s32.f32 %v870
  %v935 = vcvt.s32.f32 %v871
  %v936 = vcvt.s32.f32 %v872
  %v937 = vcvt.s32.f32 %v873
  %v938 = vcvt.s32.f32 %v874
  %v939 = vcvt.s32.f32 %v875
  %v940 = vcvt.s32.f32 %v876
  %v941 = vcvt.s32.f32 %v877
  %v942 = vcvt.s32.f32 %v878
  %v943 = vcvt.s32.f32 %v879
  %v944 = vcvt.s32.f32 %v880
  %v945 = vcvt.s32.f32 %v881
  %v946 = vcvt.s32.f32 %v882
  %v947 = vcvt.s32.f32 %v883
  %v948 = vcvt.s32.f32 %v884
  %v949 = vcvt.s32.f32 %v885
  %v950 = vcvt.s32.f32 %v886
  %v951 = vcvt.s32.f32 %v887
  %v952 = vcvt.s32.f32 %v888
  %v953 = vcvt.s32.f32 %v889
  %v954 = vcvt.s32.f32 %v890
  %v955 = vcvt.s32.f32 %v891
  %v956 = vcvt.s32.f32 %v892
  %v957 = vcvt.s32.f32 %v893
  %v958 = vcvt.s32.f32 %v894
  %v959 = vcvt.s32.f32 %v895
  %v960 = vcvt.s32.f32 %v896
  %v961 = vcvt.s32.f32 %v897
  %v962 = vcvt.s32.f32 %v898
  %v963 = vcvt.s32.f32 %v899
  %v964 = vcvt.s32.f32 %v900
  %v965 = vcvt.s32.f32 %v901
  %v966 = vcvt.s32.f32 %v902
  %v967 = vcvt.s32.f32 %v903
  %v968 = vcvt.s32.f32 %v904
  %v969 = vcvt.s32.f32 %v905
  %v970 = vcvt.s32.f32 %v906
  %v971 = vcvt.s32.f32 %v907
  %v972 = vcvt.s32.f32 %v908
  %v973 = vcvt.s32.f32 %v909
  %v974 = vcvt.s32.f32 %v910
  %v975 = vcvt.s32.f32 %v911
  %v976 = vcvt.s32.f32 %v912
  %v977 = vcvt.s32.f32 %v913
  %v978 = vcvt.s32.f32 %v914
  %v979 = vpack.c.bf16 %v917, %v915
  %v980 = vpack.c.bf16 %v918, %v916
  %v981 = vpack.c.bf16 %v921, %v919
  %v982 = vpack.c.bf16 %v922, %v920
  %v983 = vpack.c.bf16 %v925, %v923
  %v984 = vpack.c.bf16 %v926, %v924
  %v985 = vpack.c.bf16 %v929, %v927
  %v986 = vpack.c.bf16 %v930, %v928
  %v987 = vpack.c.bf16 %v933, %v931
  %v988 = vpack.c.bf16 %v934, %v932
  %v989 = vpack.c.bf16 %v937, %v935
  %v990 = vpack.c.bf16 %v938, %v936
  %v991 = vpack.c.bf16 %v941, %v939
  %v992 = vpack.c.bf16 %v942, %v940
  %v993 = vpack.c.bf16 %v945, %v943
  %v994 = vpack.c.bf16 %v946, %v944
  %v995 = vpack.c.bf16 %v949, %v947
  %v996 = vpack.c.bf16 %v950, %v948
  %v997 = vpack.c.bf16 %v953, %v951
  %v998 = vpack.c.bf16 %v954, %v952
  %v999 = vpack.c.bf16 %v957, %v955
  %v1000 = vpack.c.bf16 %v958, %v956
  %v1001 = vpack.c.bf16 %v961, %v959
  %v1002 = vpack.c.bf16 %v962, %v960
  %v1003 = vpack.c.bf16 %v965, %v963
  %v1004 = vpack.c.bf16 %v966, %v964
  %v1005 = vpack.c.bf16 %v969, %v967
  %v1006 = vpack.c.bf16 %v970, %v968
  %v1007 = vpack.c.bf16 %v973, %v971
  %v1008 = vpack.c.bf16 %v974, %v972
  %v1009 = vpack.c.bf16 %v977, %v975
  %v1010 = vpack.c.bf16 %v978, %v976
  %v1011 = vadd.bf16 %v659, %v979
  %v1012 = vadd.bf16 %v660, %v980
  %v1013 = vadd.bf16 %v661, %v981
  %v1014 = vadd.bf16 %v662, %v982
  %v1015 = vadd.bf16 %v663, %v983
  %v1016 = vadd.bf16 %v664, %v984
  %v1017 = vadd.bf16 %v665, %v985
  %v1018 = vadd.bf16 %v666, %v986
  %v1019 = vadd.bf16 %v667, %v987
  %v1020 = vadd.bf16 %v668, %v988
  %v1021 = vadd.bf16 %v669, %v989
  %v1022 = vadd.bf16 %v670, %v990
  %v1023 = vadd.bf16 %v671, %v991
  %v1024 = vadd.bf16 %v672, %v992
  %v1025 = vadd.bf16 %v673, %v993
  %v1026 = vadd.bf16 %v674, %v994
  %v1027 = vadd.bf16 %v675, %v995
  %v1028 = vadd.bf16 %v676, %v996
  %v1029 = vadd.bf16 %v677, %v997
  %v1030 = vadd.bf16 %v678, %v998
  %v1031 = vadd.bf16 %v679, %v999
  %v1032 = vadd.bf16 %v680, %v1000
  %v1033 = vadd.bf16 %v681, %v1001
  %v1034 = vadd.bf16 %v682, %v1002
  %v1035 = vadd.bf16 %v683, %v1003
  %v1036 = vadd.bf16 %v684, %v1004
  %v1037 = vadd.bf16 %v685, %v1005
  %v1038 = vadd.bf16 %v686, %v1006
  %v1039 = vadd.bf16 %v687, %v1007
  %v1040 = vadd.bf16 %v688, %v1008
  %v1041 = vadd.bf16 %v689, %v1009
  %v1042 = vadd.bf16 %v690, %v1010
  %1043 = vset.pattern.permute.xlu0 2
  %1044 = vperm.xlu0 %1043, %v15
  %v1045 = vpop.permute.xlu0 %1044
  %1046 = vset.pattern.permute.xlu0 2
  %1047 = vperm.xlu0 %1046, %v16
  %v1048 = vpop.permute.xlu0 %1047
  %1049 = vset.pattern.permute.xlu0 2
  %1050 = vperm.xlu0 %1049, %v17
  %v1051 = vpop.permute.xlu0 %1050
  %1052 = vset.pattern.permute.xlu0 2
  %1053 = vperm.xlu0 %1052, %v18
  %v1054 = vpop.permute.xlu0 %1053
  %1055 = vset.pattern.permute.xlu0 2
  %1056 = vperm.xlu0 %1055, %v19
  %v1057 = vpop.permute.xlu0 %1056
  %1058 = vset.pattern.permute.xlu0 2
  %1059 = vperm.xlu0 %1058, %v20
  %v1060 = vpop.permute.xlu0 %1059
  %1061 = vset.pattern.permute.xlu0 2
  %1062 = vperm.xlu0 %1061, %v21
  %v1063 = vpop.permute.xlu0 %1062
  %1064 = vset.pattern.permute.xlu0 2
  %1065 = vperm.xlu0 %1064, %v22
  %v1066 = vpop.permute.xlu0 %1065
  %1067 = vset.pattern.permute.xlu0 2
  %1068 = vperm.xlu0 %1067, %v23
  %v1069 = vpop.permute.xlu0 %1068
  %1070 = vset.pattern.permute.xlu0 2
  %1071 = vperm.xlu0 %1070, %v24
  %v1072 = vpop.permute.xlu0 %1071
  %1073 = vset.pattern.permute.xlu0 2
  %1074 = vperm.xlu0 %1073, %v25
  %v1075 = vpop.permute.xlu0 %1074
  %1076 = vset.pattern.permute.xlu0 2
  %1077 = vperm.xlu0 %1076, %v26
  %v1078 = vpop.permute.xlu0 %1077
  %1079 = vset.pattern.permute.xlu0 2
  %1080 = vperm.xlu0 %1079, %v27
  %v1081 = vpop.permute.xlu0 %1080
  %1082 = vset.pattern.permute.xlu0 2
  %1083 = vperm.xlu0 %1082, %v28
  %v1084 = vpop.permute.xlu0 %1083
  %1085 = vset.pattern.permute.xlu0 2
  %1086 = vperm.xlu0 %1085, %v29
  %v1087 = vpop.permute.xlu0 %1086
  %1088 = vset.pattern.permute.xlu0 2
  %1089 = vperm.xlu0 %1088, %v30
  %v1090 = vpop.permute.xlu0 %1089
  %1091 = vset.pattern.permute.xlu0 2
  %1092 = vperm.xlu0 %1091, %v31
  %v1093 = vpop.permute.xlu0 %1092
  %1094 = vset.pattern.permute.xlu0 2
  %1095 = vperm.xlu0 %1094, %v32
  %v1096 = vpop.permute.xlu0 %1095
  %1097 = vset.pattern.permute.xlu0 2
  %1098 = vperm.xlu0 %1097, %v33
  %v1099 = vpop.permute.xlu0 %1098
  %1100 = vset.pattern.permute.xlu0 2
  %1101 = vperm.xlu0 %1100, %v34
  %v1102 = vpop.permute.xlu0 %1101
  %1103 = vset.pattern.permute.xlu0 2
  %1104 = vperm.xlu0 %1103, %v35
  %v1105 = vpop.permute.xlu0 %1104
  %1106 = vset.pattern.permute.xlu0 2
  %1107 = vperm.xlu0 %1106, %v36
  %v1108 = vpop.permute.xlu0 %1107
  %1109 = vset.pattern.permute.xlu0 2
  %1110 = vperm.xlu0 %1109, %v37
  %v1111 = vpop.permute.xlu0 %1110
  %1112 = vset.pattern.permute.xlu0 2
  %1113 = vperm.xlu0 %1112, %v38
  %v1114 = vpop.permute.xlu0 %1113
  %1115 = vset.pattern.permute.xlu0 2
  %1116 = vperm.xlu0 %1115, %v39
  %v1117 = vpop.permute.xlu0 %1116
  %1118 = vset.pattern.permute.xlu0 2
  %1119 = vperm.xlu0 %1118, %v40
  %v1120 = vpop.permute.xlu0 %1119
  %1121 = vset.pattern.permute.xlu0 2
  %1122 = vperm.xlu0 %1121, %v41
  %v1123 = vpop.permute.xlu0 %1122
  %1124 = vset.pattern.permute.xlu0 2
  %1125 = vperm.xlu0 %1124, %v42
  %v1126 = vpop.permute.xlu0 %1125
  %1127 = vset.pattern.permute.xlu0 2
  %1128 = vperm.xlu0 %1127, %v43
  %v1129 = vpop.permute.xlu0 %1128
  %1130 = vset.pattern.permute.xlu0 2
  %1131 = vperm.xlu0 %1130, %v44
  %v1132 = vpop.permute.xlu0 %1131
  %1133 = vset.pattern.permute.xlu0 2
  %1134 = vperm.xlu0 %1133, %v45
  %v1135 = vpop.permute.xlu0 %1134
  %1136 = vset.pattern.permute.xlu0 2
  %1137 = vperm.xlu0 %1136, %v46
  %v1138 = vpop.permute.xlu0 %1137
  %vm1139 = vcmp.eq.s32.totalorder %v1045, %v337
  %vm1140 = vcmp.eq.s32.totalorder %v1045, %v338
  %vm1141 = vcmp.eq.s32.totalorder %v1048, %v337
  %vm1142 = vcmp.eq.s32.totalorder %v1048, %v338
  %vm1143 = vcmp.eq.s32.totalorder %v1051, %v337
  %vm1144 = vcmp.eq.s32.totalorder %v1051, %v338
  %vm1145 = vcmp.eq.s32.totalorder %v1054, %v337
  %vm1146 = vcmp.eq.s32.totalorder %v1054, %v338
  %vm1147 = vcmp.eq.s32.totalorder %v1057, %v337
  %vm1148 = vcmp.eq.s32.totalorder %v1057, %v338
  %vm1149 = vcmp.eq.s32.totalorder %v1060, %v337
  %vm1150 = vcmp.eq.s32.totalorder %v1060, %v338
  %vm1151 = vcmp.eq.s32.totalorder %v1063, %v337
  %vm1152 = vcmp.eq.s32.totalorder %v1063, %v338
  %vm1153 = vcmp.eq.s32.totalorder %v1066, %v337
  %vm1154 = vcmp.eq.s32.totalorder %v1066, %v338
  %vm1155 = vcmp.eq.s32.totalorder %v1069, %v337
  %vm1156 = vcmp.eq.s32.totalorder %v1069, %v338
  %vm1157 = vcmp.eq.s32.totalorder %v1072, %v337
  %vm1158 = vcmp.eq.s32.totalorder %v1072, %v338
  %vm1159 = vcmp.eq.s32.totalorder %v1075, %v337
  %vm1160 = vcmp.eq.s32.totalorder %v1075, %v338
  %vm1161 = vcmp.eq.s32.totalorder %v1078, %v337
  %vm1162 = vcmp.eq.s32.totalorder %v1078, %v338
  %vm1163 = vcmp.eq.s32.totalorder %v1081, %v337
  %vm1164 = vcmp.eq.s32.totalorder %v1081, %v338
  %vm1165 = vcmp.eq.s32.totalorder %v1084, %v337
  %vm1166 = vcmp.eq.s32.totalorder %v1084, %v338
  %vm1167 = vcmp.eq.s32.totalorder %v1087, %v337
  %vm1168 = vcmp.eq.s32.totalorder %v1087, %v338
  %vm1169 = vcmp.eq.s32.totalorder %v1090, %v337
  %vm1170 = vcmp.eq.s32.totalorder %v1090, %v338
  %vm1171 = vcmp.eq.s32.totalorder %v1093, %v337
  %vm1172 = vcmp.eq.s32.totalorder %v1093, %v338
  %vm1173 = vcmp.eq.s32.totalorder %v1096, %v337
  %vm1174 = vcmp.eq.s32.totalorder %v1096, %v338
  %vm1175 = vcmp.eq.s32.totalorder %v1099, %v337
  %vm1176 = vcmp.eq.s32.totalorder %v1099, %v338
  %vm1177 = vcmp.eq.s32.totalorder %v1102, %v337
  %vm1178 = vcmp.eq.s32.totalorder %v1102, %v338
  %vm1179 = vcmp.eq.s32.totalorder %v1105, %v337
  %vm1180 = vcmp.eq.s32.totalorder %v1105, %v338
  %vm1181 = vcmp.eq.s32.totalorder %v1108, %v337
  %vm1182 = vcmp.eq.s32.totalorder %v1108, %v338
  %vm1183 = vcmp.eq.s32.totalorder %v1111, %v337
  %vm1184 = vcmp.eq.s32.totalorder %v1111, %v338
  %vm1185 = vcmp.eq.s32.totalorder %v1114, %v337
  %vm1186 = vcmp.eq.s32.totalorder %v1114, %v338
  %vm1187 = vcmp.eq.s32.totalorder %v1117, %v337
  %vm1188 = vcmp.eq.s32.totalorder %v1117, %v338
  %vm1189 = vcmp.eq.s32.totalorder %v1120, %v337
  %vm1190 = vcmp.eq.s32.totalorder %v1120, %v338
  %vm1191 = vcmp.eq.s32.totalorder %v1123, %v337
  %vm1192 = vcmp.eq.s32.totalorder %v1123, %v338
  %vm1193 = vcmp.eq.s32.totalorder %v1126, %v337
  %vm1194 = vcmp.eq.s32.totalorder %v1126, %v338
  %vm1195 = vcmp.eq.s32.totalorder %v1129, %v337
  %vm1196 = vcmp.eq.s32.totalorder %v1129, %v338
  %vm1197 = vcmp.eq.s32.totalorder %v1132, %v337
  %vm1198 = vcmp.eq.s32.totalorder %v1132, %v338
  %vm1199 = vcmp.eq.s32.totalorder %v1135, %v337
  %vm1200 = vcmp.eq.s32.totalorder %v1135, %v338
  %vm1201 = vcmp.eq.s32.totalorder %v1138, %v337
  %vm1202 = vcmp.eq.s32.totalorder %v1138, %v338
  %v1203 = vsel %vm1139, 1, 0
  %v1204 = vsel %vm1140, 1, 0
  %v1205 = vsel %vm1141, 1, 0
  %v1206 = vsel %vm1142, 1, 0
  %v1207 = vsel %vm1143, 1, 0
  %v1208 = vsel %vm1144, 1, 0
  %v1209 = vsel %vm1145, 1, 0
  %v1210 = vsel %vm1146, 1, 0
  %v1211 = vsel %vm1147, 1, 0
  %v1212 = vsel %vm1148, 1, 0
  %v1213 = vsel %vm1149, 1, 0
  %v1214 = vsel %vm1150, 1, 0
  %v1215 = vsel %vm1151, 1, 0
  %v1216 = vsel %vm1152, 1, 0
  %v1217 = vsel %vm1153, 1, 0
  %v1218 = vsel %vm1154, 1, 0
  %v1219 = vsel %vm1155, 1, 0
  %v1220 = vsel %vm1156, 1, 0
  %v1221 = vsel %vm1157, 1, 0
  %v1222 = vsel %vm1158, 1, 0
  %v1223 = vsel %vm1159, 1, 0
  %v1224 = vsel %vm1160, 1, 0
  %v1225 = vsel %vm1161, 1, 0
  %v1226 = vsel %vm1162, 1, 0
  %v1227 = vsel %vm1163, 1, 0
  %v1228 = vsel %vm1164, 1, 0
  %v1229 = vsel %vm1165, 1, 0
  %v1230 = vsel %vm1166, 1, 0
  %v1231 = vsel %vm1167, 1, 0
  %v1232 = vsel %vm1168, 1, 0
  %v1233 = vsel %vm1169, 1, 0
  %v1234 = vsel %vm1170, 1, 0
  %v1235 = vsel %vm1171, 1, 0
  %v1236 = vsel %vm1172, 1, 0
  %v1237 = vsel %vm1173, 1, 0
  %v1238 = vsel %vm1174, 1, 0
  %v1239 = vsel %vm1175, 1, 0
  %v1240 = vsel %vm1176, 1, 0
  %v1241 = vsel %vm1177, 1, 0
  %v1242 = vsel %vm1178, 1, 0
  %v1243 = vsel %vm1179, 1, 0
  %v1244 = vsel %vm1180, 1, 0
  %v1245 = vsel %vm1181, 1, 0
  %v1246 = vsel %vm1182, 1, 0
  %v1247 = vsel %vm1183, 1, 0
  %v1248 = vsel %vm1184, 1, 0
  %v1249 = vsel %vm1185, 1, 0
  %v1250 = vsel %vm1186, 1, 0
  %v1251 = vsel %vm1187, 1, 0
  %v1252 = vsel %vm1188, 1, 0
  %v1253 = vsel %vm1189, 1, 0
  %v1254 = vsel %vm1190, 1, 0
  %v1255 = vsel %vm1191, 1, 0
  %v1256 = vsel %vm1192, 1, 0
  %v1257 = vsel %vm1193, 1, 0
  %v1258 = vsel %vm1194, 1, 0
  %v1259 = vsel %vm1195, 1, 0
  %v1260 = vsel %vm1196, 1, 0
  %v1261 = vsel %vm1197, 1, 0
  %v1262 = vsel %vm1198, 1, 0
  %v1263 = vsel %vm1199, 1, 0
  %v1264 = vsel %vm1200, 1, 0
  %v1265 = vsel %vm1201, 1, 0
  %v1266 = vsel %vm1202, 1, 0
  %v1267 = vcvt.s32.f32 %v1203
  %v1268 = vcvt.s32.f32 %v1204
  %v1269 = vcvt.s32.f32 %v1205
  %v1270 = vcvt.s32.f32 %v1206
  %v1271 = vcvt.s32.f32 %v1207
  %v1272 = vcvt.s32.f32 %v1208
  %v1273 = vcvt.s32.f32 %v1209
  %v1274 = vcvt.s32.f32 %v1210
  %v1275 = vcvt.s32.f32 %v1211
  %v1276 = vcvt.s32.f32 %v1212
  %v1277 = vcvt.s32.f32 %v1213
  %v1278 = vcvt.s32.f32 %v1214
  %v1279 = vcvt.s32.f32 %v1215
  %v1280 = vcvt.s32.f32 %v1216
  %v1281 = vcvt.s32.f32 %v1217
  %v1282 = vcvt.s32.f32 %v1218
  %v1283 = vcvt.s32.f32 %v1219
  %v1284 = vcvt.s32.f32 %v1220
  %v1285 = vcvt.s32.f32 %v1221
  %v1286 = vcvt.s32.f32 %v1222
  %v1287 = vcvt.s32.f32 %v1223
  %v1288 = vcvt.s32.f32 %v1224
  %v1289 = vcvt.s32.f32 %v1225
  %v1290 = vcvt.s32.f32 %v1226
  %v1291 = vcvt.s32.f32 %v1227
  %v1292 = vcvt.s32.f32 %v1228
  %v1293 = vcvt.s32.f32 %v1229
  %v1294 = vcvt.s32.f32 %v1230
  %v1295 = vcvt.s32.f32 %v1231
  %v1296 = vcvt.s32.f32 %v1232
  %v1297 = vcvt.s32.f32 %v1233
  %v1298 = vcvt.s32.f32 %v1234
  %v1299 = vcvt.s32.f32 %v1235
  %v1300 = vcvt.s32.f32 %v1236
  %v1301 = vcvt.s32.f32 %v1237
  %v1302 = vcvt.s32.f32 %v1238
  %v1303 = vcvt.s32.f32 %v1239
  %v1304 = vcvt.s32.f32 %v1240
  %v1305 = vcvt.s32.f32 %v1241
  %v1306 = vcvt.s32.f32 %v1242
  %v1307 = vcvt.s32.f32 %v1243
  %v1308 = vcvt.s32.f32 %v1244
  %v1309 = vcvt.s32.f32 %v1245
  %v1310 = vcvt.s32.f32 %v1246
  %v1311 = vcvt.s32.f32 %v1247
  %v1312 = vcvt.s32.f32 %v1248
  %v1313 = vcvt.s32.f32 %v1249
  %v1314 = vcvt.s32.f32 %v1250
  %v1315 = vcvt.s32.f32 %v1251
  %v1316 = vcvt.s32.f32 %v1252
  %v1317 = vcvt.s32.f32 %v1253
  %v1318 = vcvt.s32.f32 %v1254
  %v1319 = vcvt.s32.f32 %v1255
  %v1320 = vcvt.s32.f32 %v1256
  %v1321 = vcvt.s32.f32 %v1257
  %v1322 = vcvt.s32.f32 %v1258
  %v1323 = vcvt.s32.f32 %v1259
  %v1324 = vcvt.s32.f32 %v1260
  %v1325 = vcvt.s32.f32 %v1261
  %v1326 = vcvt.s32.f32 %v1262
  %v1327 = vcvt.s32.f32 %v1263
  %v1328 = vcvt.s32.f32 %v1264
  %v1329 = vcvt.s32.f32 %v1265
  %v1330 = vcvt.s32.f32 %v1266
  %v1331 = vpack.c.bf16 %v1269, %v1267
  %v1332 = vpack.c.bf16 %v1270, %v1268
  %v1333 = vpack.c.bf16 %v1273, %v1271
  %v1334 = vpack.c.bf16 %v1274, %v1272
  %v1335 = vpack.c.bf16 %v1277, %v1275
  %v1336 = vpack.c.bf16 %v1278, %v1276
  %v1337 = vpack.c.bf16 %v1281, %v1279
  %v1338 = vpack.c.bf16 %v1282, %v1280
  %v1339 = vpack.c.bf16 %v1285, %v1283
  %v1340 = vpack.c.bf16 %v1286, %v1284
  %v1341 = vpack.c.bf16 %v1289, %v1287
  %v1342 = vpack.c.bf16 %v1290, %v1288
  %v1343 = vpack.c.bf16 %v1293, %v1291
  %v1344 = vpack.c.bf16 %v1294, %v1292
  %v1345 = vpack.c.bf16 %v1297, %v1295
  %v1346 = vpack.c.bf16 %v1298, %v1296
  %v1347 = vpack.c.bf16 %v1301, %v1299
  %v1348 = vpack.c.bf16 %v1302, %v1300
  %v1349 = vpack.c.bf16 %v1305, %v1303
  %v1350 = vpack.c.bf16 %v1306, %v1304
  %v1351 = vpack.c.bf16 %v1309, %v1307
  %v1352 = vpack.c.bf16 %v1310, %v1308
  %v1353 = vpack.c.bf16 %v1313, %v1311
  %v1354 = vpack.c.bf16 %v1314, %v1312
  %v1355 = vpack.c.bf16 %v1317, %v1315
  %v1356 = vpack.c.bf16 %v1318, %v1316
  %v1357 = vpack.c.bf16 %v1321, %v1319
  %v1358 = vpack.c.bf16 %v1322, %v1320
  %v1359 = vpack.c.bf16 %v1325, %v1323
  %v1360 = vpack.c.bf16 %v1326, %v1324
  %v1361 = vpack.c.bf16 %v1329, %v1327
  %v1362 = vpack.c.bf16 %v1330, %v1328
  %v1363 = vadd.bf16 %v1011, %v1331
  %v1364 = vadd.bf16 %v1012, %v1332
  %v1365 = vadd.bf16 %v1013, %v1333
  %v1366 = vadd.bf16 %v1014, %v1334
  %v1367 = vadd.bf16 %v1015, %v1335
  %v1368 = vadd.bf16 %v1016, %v1336
  %v1369 = vadd.bf16 %v1017, %v1337
  %v1370 = vadd.bf16 %v1018, %v1338
  %v1371 = vadd.bf16 %v1019, %v1339
  %v1372 = vadd.bf16 %v1020, %v1340
  %v1373 = vadd.bf16 %v1021, %v1341
  %v1374 = vadd.bf16 %v1022, %v1342
  %v1375 = vadd.bf16 %v1023, %v1343
  %v1376 = vadd.bf16 %v1024, %v1344
  %v1377 = vadd.bf16 %v1025, %v1345
  %v1378 = vadd.bf16 %v1026, %v1346
  %v1379 = vadd.bf16 %v1027, %v1347
  %v1380 = vadd.bf16 %v1028, %v1348
  %v1381 = vadd.bf16 %v1029, %v1349
  %v1382 = vadd.bf16 %v1030, %v1350
  %v1383 = vadd.bf16 %v1031, %v1351
  %v1384 = vadd.bf16 %v1032, %v1352
  %v1385 = vadd.bf16 %v1033, %v1353
  %v1386 = vadd.bf16 %v1034, %v1354
  %v1387 = vadd.bf16 %v1035, %v1355
  %v1388 = vadd.bf16 %v1036, %v1356
  %v1389 = vadd.bf16 %v1037, %v1357
  %v1390 = vadd.bf16 %v1038, %v1358
  %v1391 = vadd.bf16 %v1039, %v1359
  %v1392 = vadd.bf16 %v1040, %v1360
  %v1393 = vadd.bf16 %v1041, %v1361
  %v1394 = vadd.bf16 %v1042, %v1362
  %1395 = vset.pattern.permute.xlu0 3
  %1396 = vperm.xlu0 %1395, %v15
  %v1397 = vpop.permute.xlu0 %1396
  %1398 = vset.pattern.permute.xlu0 3
  %1399 = vperm.xlu0 %1398, %v16
  %v1400 = vpop.permute.xlu0 %1399
  %1401 = vset.pattern.permute.xlu0 3
  %1402 = vperm.xlu0 %1401, %v17
  %v1403 = vpop.permute.xlu0 %1402
  %1404 = vset.pattern.permute.xlu0 3
  %1405 = vperm.xlu0 %1404, %v18
  %v1406 = vpop.permute.xlu0 %1405
  %1407 = vset.pattern.permute.xlu0 3
  %1408 = vperm.xlu0 %1407, %v19
  %v1409 = vpop.permute.xlu0 %1408
  %1410 = vset.pattern.permute.xlu0 3
  %1411 = vperm.xlu0 %1410, %v20
  %v1412 = vpop.permute.xlu0 %1411
  %1413 = vset.pattern.permute.xlu0 3
  %1414 = vperm.xlu0 %1413, %v21
  %v1415 = vpop.permute.xlu0 %1414
  %1416 = vset.pattern.permute.xlu0 3
  %1417 = vperm.xlu0 %1416, %v22
  %v1418 = vpop.permute.xlu0 %1417
  %1419 = vset.pattern.permute.xlu0 3
  %1420 = vperm.xlu0 %1419, %v23
  %v1421 = vpop.permute.xlu0 %1420
  %1422 = vset.pattern.permute.xlu0 3
  %1423 = vperm.xlu0 %1422, %v24
  %v1424 = vpop.permute.xlu0 %1423
  %1425 = vset.pattern.permute.xlu0 3
  %1426 = vperm.xlu0 %1425, %v25
  %v1427 = vpop.permute.xlu0 %1426
  %1428 = vset.pattern.permute.xlu0 3
  %1429 = vperm.xlu0 %1428, %v26
  %v1430 = vpop.permute.xlu0 %1429
  %1431 = vset.pattern.permute.xlu0 3
  %1432 = vperm.xlu0 %1431, %v27
  %v1433 = vpop.permute.xlu0 %1432
  %1434 = vset.pattern.permute.xlu0 3
  %1435 = vperm.xlu0 %1434, %v28
  %v1436 = vpop.permute.xlu0 %1435
  %1437 = vset.pattern.permute.xlu0 3
  %1438 = vperm.xlu0 %1437, %v29
  %v1439 = vpop.permute.xlu0 %1438
  %1440 = vset.pattern.permute.xlu0 3
  %1441 = vperm.xlu0 %1440, %v30
  %v1442 = vpop.permute.xlu0 %1441
  %1443 = vset.pattern.permute.xlu0 3
  %1444 = vperm.xlu0 %1443, %v31
  %v1445 = vpop.permute.xlu0 %1444
  %1446 = vset.pattern.permute.xlu0 3
  %1447 = vperm.xlu0 %1446, %v32
  %v1448 = vpop.permute.xlu0 %1447
  %1449 = vset.pattern.permute.xlu0 3
  %1450 = vperm.xlu0 %1449, %v33
  %v1451 = vpop.permute.xlu0 %1450
  %1452 = vset.pattern.permute.xlu0 3
  %1453 = vperm.xlu0 %1452, %v34
  %v1454 = vpop.permute.xlu0 %1453
  %1455 = vset.pattern.permute.xlu0 3
  %1456 = vperm.xlu0 %1455, %v35
  %v1457 = vpop.permute.xlu0 %1456
  %1458 = vset.pattern.permute.xlu0 3
  %1459 = vperm.xlu0 %1458, %v36
  %v1460 = vpop.permute.xlu0 %1459
  %1461 = vset.pattern.permute.xlu0 3
  %1462 = vperm.xlu0 %1461, %v37
  %v1463 = vpop.permute.xlu0 %1462
  %1464 = vset.pattern.permute.xlu0 3
  %1465 = vperm.xlu0 %1464, %v38
  %v1466 = vpop.permute.xlu0 %1465
  %1467 = vset.pattern.permute.xlu0 3
  %1468 = vperm.xlu0 %1467, %v39
  %v1469 = vpop.permute.xlu0 %1468
  %1470 = vset.pattern.permute.xlu0 3
  %1471 = vperm.xlu0 %1470, %v40
  %v1472 = vpop.permute.xlu0 %1471
  %1473 = vset.pattern.permute.xlu0 3
  %1474 = vperm.xlu0 %1473, %v41
  %v1475 = vpop.permute.xlu0 %1474
  %1476 = vset.pattern.permute.xlu0 3
  %1477 = vperm.xlu0 %1476, %v42
  %v1478 = vpop.permute.xlu0 %1477
  %1479 = vset.pattern.permute.xlu0 3
  %1480 = vperm.xlu0 %1479, %v43
  %v1481 = vpop.permute.xlu0 %1480
  %1482 = vset.pattern.permute.xlu0 3
  %1483 = vperm.xlu0 %1482, %v44
  %v1484 = vpop.permute.xlu0 %1483
  %1485 = vset.pattern.permute.xlu0 3
  %1486 = vperm.xlu0 %1485, %v45
  %v1487 = vpop.permute.xlu0 %1486
  %1488 = vset.pattern.permute.xlu0 3
  %1489 = vperm.xlu0 %1488, %v46
  %v1490 = vpop.permute.xlu0 %1489
  %vm1491 = vcmp.eq.s32.totalorder %v1397, %v337
  %vm1492 = vcmp.eq.s32.totalorder %v1397, %v338
  %vm1493 = vcmp.eq.s32.totalorder %v1400, %v337
  %vm1494 = vcmp.eq.s32.totalorder %v1400, %v338
  %vm1495 = vcmp.eq.s32.totalorder %v1403, %v337
  %vm1496 = vcmp.eq.s32.totalorder %v1403, %v338
  %vm1497 = vcmp.eq.s32.totalorder %v1406, %v337
  %vm1498 = vcmp.eq.s32.totalorder %v1406, %v338
  %vm1499 = vcmp.eq.s32.totalorder %v1409, %v337
  %vm1500 = vcmp.eq.s32.totalorder %v1409, %v338
  %vm1501 = vcmp.eq.s32.totalorder %v1412, %v337
  %vm1502 = vcmp.eq.s32.totalorder %v1412, %v338
  %vm1503 = vcmp.eq.s32.totalorder %v1415, %v337
  %vm1504 = vcmp.eq.s32.totalorder %v1415, %v338
  %vm1505 = vcmp.eq.s32.totalorder %v1418, %v337
  %vm1506 = vcmp.eq.s32.totalorder %v1418, %v338
  %vm1507 = vcmp.eq.s32.totalorder %v1421, %v337
  %vm1508 = vcmp.eq.s32.totalorder %v1421, %v338
  %vm1509 = vcmp.eq.s32.totalorder %v1424, %v337
  %vm1510 = vcmp.eq.s32.totalorder %v1424, %v338
  %vm1511 = vcmp.eq.s32.totalorder %v1427, %v337
  %vm1512 = vcmp.eq.s32.totalorder %v1427, %v338
  %vm1513 = vcmp.eq.s32.totalorder %v1430, %v337
  %vm1514 = vcmp.eq.s32.totalorder %v1430, %v338
  %vm1515 = vcmp.eq.s32.totalorder %v1433, %v337
  %vm1516 = vcmp.eq.s32.totalorder %v1433, %v338
  %vm1517 = vcmp.eq.s32.totalorder %v1436, %v337
  %vm1518 = vcmp.eq.s32.totalorder %v1436, %v338
  %vm1519 = vcmp.eq.s32.totalorder %v1439, %v337
  %vm1520 = vcmp.eq.s32.totalorder %v1439, %v338
  %vm1521 = vcmp.eq.s32.totalorder %v1442, %v337
  %vm1522 = vcmp.eq.s32.totalorder %v1442, %v338
  %vm1523 = vcmp.eq.s32.totalorder %v1445, %v337
  %vm1524 = vcmp.eq.s32.totalorder %v1445, %v338
  %vm1525 = vcmp.eq.s32.totalorder %v1448, %v337
  %vm1526 = vcmp.eq.s32.totalorder %v1448, %v338
  %vm1527 = vcmp.eq.s32.totalorder %v1451, %v337
  %vm1528 = vcmp.eq.s32.totalorder %v1451, %v338
  %vm1529 = vcmp.eq.s32.totalorder %v1454, %v337
  %vm1530 = vcmp.eq.s32.totalorder %v1454, %v338
  %vm1531 = vcmp.eq.s32.totalorder %v1457, %v337
  %vm1532 = vcmp.eq.s32.totalorder %v1457, %v338
  %vm1533 = vcmp.eq.s32.totalorder %v1460, %v337
  %vm1534 = vcmp.eq.s32.totalorder %v1460, %v338
  %vm1535 = vcmp.eq.s32.totalorder %v1463, %v337
  %vm1536 = vcmp.eq.s32.totalorder %v1463, %v338
  %vm1537 = vcmp.eq.s32.totalorder %v1466, %v337
  %vm1538 = vcmp.eq.s32.totalorder %v1466, %v338
  %vm1539 = vcmp.eq.s32.totalorder %v1469, %v337
  %vm1540 = vcmp.eq.s32.totalorder %v1469, %v338
  %vm1541 = vcmp.eq.s32.totalorder %v1472, %v337
  %vm1542 = vcmp.eq.s32.totalorder %v1472, %v338
  %vm1543 = vcmp.eq.s32.totalorder %v1475, %v337
  %vm1544 = vcmp.eq.s32.totalorder %v1475, %v338
  %vm1545 = vcmp.eq.s32.totalorder %v1478, %v337
  %vm1546 = vcmp.eq.s32.totalorder %v1478, %v338
  %vm1547 = vcmp.eq.s32.totalorder %v1481, %v337
  %vm1548 = vcmp.eq.s32.totalorder %v1481, %v338
  %vm1549 = vcmp.eq.s32.totalorder %v1484, %v337
  %vm1550 = vcmp.eq.s32.totalorder %v1484, %v338
  %vm1551 = vcmp.eq.s32.totalorder %v1487, %v337
  %vm1552 = vcmp.eq.s32.totalorder %v1487, %v338
  %vm1553 = vcmp.eq.s32.totalorder %v1490, %v337
  %vm1554 = vcmp.eq.s32.totalorder %v1490, %v338
  %v1555 = vsel %vm1491, 1, 0
  %v1556 = vsel %vm1492, 1, 0
  %v1557 = vsel %vm1493, 1, 0
  %v1558 = vsel %vm1494, 1, 0
  %v1559 = vsel %vm1495, 1, 0
  %v1560 = vsel %vm1496, 1, 0
  %v1561 = vsel %vm1497, 1, 0
  %v1562 = vsel %vm1498, 1, 0
  %v1563 = vsel %vm1499, 1, 0
  %v1564 = vsel %vm1500, 1, 0
  %v1565 = vsel %vm1501, 1, 0
  %v1566 = vsel %vm1502, 1, 0
  %v1567 = vsel %vm1503, 1, 0
  %v1568 = vsel %vm1504, 1, 0
  %v1569 = vsel %vm1505, 1, 0
  %v1570 = vsel %vm1506, 1, 0
  %v1571 = vsel %vm1507, 1, 0
  %v1572 = vsel %vm1508, 1, 0
  %v1573 = vsel %vm1509, 1, 0
  %v1574 = vsel %vm1510, 1, 0
  %v1575 = vsel %vm1511, 1, 0
  %v1576 = vsel %vm1512, 1, 0
  %v1577 = vsel %vm1513, 1, 0
  %v1578 = vsel %vm1514, 1, 0
  %v1579 = vsel %vm1515, 1, 0
  %v1580 = vsel %vm1516, 1, 0
  %v1581 = vsel %vm1517, 1, 0
  %v1582 = vsel %vm1518, 1, 0
  %v1583 = vsel %vm1519, 1, 0
  %v1584 = vsel %vm1520, 1, 0
  %v1585 = vsel %vm1521, 1, 0
  %v1586 = vsel %vm1522, 1, 0
  %v1587 = vsel %vm1523, 1, 0
  %v1588 = vsel %vm1524, 1, 0
  %v1589 = vsel %vm1525, 1, 0
  %v1590 = vsel %vm1526, 1, 0
  %v1591 = vsel %vm1527, 1, 0
  %v1592 = vsel %vm1528, 1, 0
  %v1593 = vsel %vm1529, 1, 0
  %v1594 = vsel %vm1530, 1, 0
  %v1595 = vsel %vm1531, 1, 0
  %v1596 = vsel %vm1532, 1, 0
  %v1597 = vsel %vm1533, 1, 0
  %v1598 = vsel %vm1534, 1, 0
  %v1599 = vsel %vm1535, 1, 0
  %v1600 = vsel %vm1536, 1, 0
  %v1601 = vsel %vm1537, 1, 0
  %v1602 = vsel %vm1538, 1, 0
  %v1603 = vsel %vm1539, 1, 0
  %v1604 = vsel %vm1540, 1, 0
  %v1605 = vsel %vm1541, 1, 0
  %v1606 = vsel %vm1542, 1, 0
  %v1607 = vsel %vm1543, 1, 0
  %v1608 = vsel %vm1544, 1, 0
  %v1609 = vsel %vm1545, 1, 0
  %v1610 = vsel %vm1546, 1, 0
  %v1611 = vsel %vm1547, 1, 0
  %v1612 = vsel %vm1548, 1, 0
  %v1613 = vsel %vm1549, 1, 0
  %v1614 = vsel %vm1550, 1, 0
  %v1615 = vsel %vm1551, 1, 0
  %v1616 = vsel %vm1552, 1, 0
  %v1617 = vsel %vm1553, 1, 0
  %v1618 = vsel %vm1554, 1, 0
  %v1619 = vcvt.s32.f32 %v1555
  %v1620 = vcvt.s32.f32 %v1556
  %v1621 = vcvt.s32.f32 %v1557
  %v1622 = vcvt.s32.f32 %v1558
  %v1623 = vcvt.s32.f32 %v1559
  %v1624 = vcvt.s32.f32 %v1560
  %v1625 = vcvt.s32.f32 %v1561
  %v1626 = vcvt.s32.f32 %v1562
  %v1627 = vcvt.s32.f32 %v1563
  %v1628 = vcvt.s32.f32 %v1564
  %v1629 = vcvt.s32.f32 %v1565
  %v1630 = vcvt.s32.f32 %v1566
  %v1631 = vcvt.s32.f32 %v1567
  %v1632 = vcvt.s32.f32 %v1568
  %v1633 = vcvt.s32.f32 %v1569
  %v1634 = vcvt.s32.f32 %v1570
  %v1635 = vcvt.s32.f32 %v1571
  %v1636 = vcvt.s32.f32 %v1572
  %v1637 = vcvt.s32.f32 %v1573
  %v1638 = vcvt.s32.f32 %v1574
  %v1639 = vcvt.s32.f32 %v1575
  %v1640 = vcvt.s32.f32 %v1576
  %v1641 = vcvt.s32.f32 %v1577
  %v1642 = vcvt.s32.f32 %v1578
  %v1643 = vcvt.s32.f32 %v1579
  %v1644 = vcvt.s32.f32 %v1580
  %v1645 = vcvt.s32.f32 %v1581
  %v1646 = vcvt.s32.f32 %v1582
  %v1647 = vcvt.s32.f32 %v1583
  %v1648 = vcvt.s32.f32 %v1584
  %v1649 = vcvt.s32.f32 %v1585
  %v1650 = vcvt.s32.f32 %v1586
  %v1651 = vcvt.s32.f32 %v1587
  %v1652 = vcvt.s32.f32 %v1588
  %v1653 = vcvt.s32.f32 %v1589
  %v1654 = vcvt.s32.f32 %v1590
  %v1655 = vcvt.s32.f32 %v1591
  %v1656 = vcvt.s32.f32 %v1592
  %v1657 = vcvt.s32.f32 %v1593
  %v1658 = vcvt.s32.f32 %v1594
  %v1659 = vcvt.s32.f32 %v1595
  %v1660 = vcvt.s32.f32 %v1596
  %v1661 = vcvt.s32.f32 %v1597
  %v1662 = vcvt.s32.f32 %v1598
  %v1663 = vcvt.s32.f32 %v1599
  %v1664 = vcvt.s32.f32 %v1600
  %v1665 = vcvt.s32.f32 %v1601
  %v1666 = vcvt.s32.f32 %v1602
  %v1667 = vcvt.s32.f32 %v1603
  %v1668 = vcvt.s32.f32 %v1604
  %v1669 = vcvt.s32.f32 %v1605
  %v1670 = vcvt.s32.f32 %v1606
  %v1671 = vcvt.s32.f32 %v1607
  %v1672 = vcvt.s32.f32 %v1608
  %v1673 = vcvt.s32.f32 %v1609
  %v1674 = vcvt.s32.f32 %v1610
  %v1675 = vcvt.s32.f32 %v1611
  %v1676 = vcvt.s32.f32 %v1612
  %v1677 = vcvt.s32.f32 %v1613
  %v1678 = vcvt.s32.f32 %v1614
  %v1679 = vcvt.s32.f32 %v1615
  %v1680 = vcvt.s32.f32 %v1616
  %v1681 = vcvt.s32.f32 %v1617
  %v1682 = vcvt.s32.f32 %v1618
  %v1683 = vpack.c.bf16 %v1621, %v1619
  %v1684 = vpack.c.bf16 %v1622, %v1620
  %v1685 = vpack.c.bf16 %v1625, %v1623
  %v1686 = vpack.c.bf16 %v1626, %v1624
  %v1687 = vpack.c.bf16 %v1629, %v1627
  %v1688 = vpack.c.bf16 %v1630, %v1628
  %v1689 = vpack.c.bf16 %v1633, %v1631
  %v1690 = vpack.c.bf16 %v1634, %v1632
  %v1691 = vpack.c.bf16 %v1637, %v1635
  %v1692 = vpack.c.bf16 %v1638, %v1636
  %v1693 = vpack.c.bf16 %v1641, %v1639
  %v1694 = vpack.c.bf16 %v1642, %v1640
  %v1695 = vpack.c.bf16 %v1645, %v1643
  %v1696 = vpack.c.bf16 %v1646, %v1644
  %v1697 = vpack.c.bf16 %v1649, %v1647
  %v1698 = vpack.c.bf16 %v1650, %v1648
  %v1699 = vpack.c.bf16 %v1653, %v1651
  %v1700 = vpack.c.bf16 %v1654, %v1652
  %v1701 = vpack.c.bf16 %v1657, %v1655
  %v1702 = vpack.c.bf16 %v1658, %v1656
  %v1703 = vpack.c.bf16 %v1661, %v1659
  %v1704 = vpack.c.bf16 %v1662, %v1660
  %v1705 = vpack.c.bf16 %v1665, %v1663
  %v1706 = vpack.c.bf16 %v1666, %v1664
  %v1707 = vpack.c.bf16 %v1669, %v1667
  %v1708 = vpack.c.bf16 %v1670, %v1668
  %v1709 = vpack.c.bf16 %v1673, %v1671
  %v1710 = vpack.c.bf16 %v1674, %v1672
  %v1711 = vpack.c.bf16 %v1677, %v1675
  %v1712 = vpack.c.bf16 %v1678, %v1676
  %v1713 = vpack.c.bf16 %v1681, %v1679
  %v1714 = vpack.c.bf16 %v1682, %v1680
  %v1715 = vadd.bf16 %v1363, %v1683
  %v1716 = vadd.bf16 %v1364, %v1684
  %v1717 = vadd.bf16 %v1365, %v1685
  %v1718 = vadd.bf16 %v1366, %v1686
  %v1719 = vadd.bf16 %v1367, %v1687
  %v1720 = vadd.bf16 %v1368, %v1688
  %v1721 = vadd.bf16 %v1369, %v1689
  %v1722 = vadd.bf16 %v1370, %v1690
  %v1723 = vadd.bf16 %v1371, %v1691
  %v1724 = vadd.bf16 %v1372, %v1692
  %v1725 = vadd.bf16 %v1373, %v1693
  %v1726 = vadd.bf16 %v1374, %v1694
  %v1727 = vadd.bf16 %v1375, %v1695
  %v1728 = vadd.bf16 %v1376, %v1696
  %v1729 = vadd.bf16 %v1377, %v1697
  %v1730 = vadd.bf16 %v1378, %v1698
  %v1731 = vadd.bf16 %v1379, %v1699
  %v1732 = vadd.bf16 %v1380, %v1700
  %v1733 = vadd.bf16 %v1381, %v1701
  %v1734 = vadd.bf16 %v1382, %v1702
  %v1735 = vadd.bf16 %v1383, %v1703
  %v1736 = vadd.bf16 %v1384, %v1704
  %v1737 = vadd.bf16 %v1385, %v1705
  %v1738 = vadd.bf16 %v1386, %v1706
  %v1739 = vadd.bf16 %v1387, %v1707
  %v1740 = vadd.bf16 %v1388, %v1708
  %v1741 = vadd.bf16 %v1389, %v1709
  %v1742 = vadd.bf16 %v1390, %v1710
  %v1743 = vadd.bf16 %v1391, %v1711
  %v1744 = vadd.bf16 %v1392, %v1712
  %v1745 = vadd.bf16 %v1393, %v1713
  %v1746 = vadd.bf16 %v1394, %v1714
  %v1747 = vld [vmem:[%s1] sm:$0xf]
  %v1748 = vld [vmem:[%s1 + $0x4] sm:$0xf]
  %v1749 = vld [vmem:[%s1 + $0x8] sm:$0xf]
  %v1750 = vld [vmem:[%s1 + $0xc] sm:$0xf]
  %v1751 = vld [vmem:[%s1 + $0x10] sm:$0xf]
  %v1752 = vld [vmem:[%s1 + $0x14] sm:$0xf]
  %v1753 = vld [vmem:[%s1 + $0x18] sm:$0xf]
  %v1754 = vld [vmem:[%s1 + $0x1c] sm:$0xf]
  %v1755 = vld [vmem:[%s1 + $0x20] sm:$0xf]
  %v1756 = vld [vmem:[%s1 + $0x24] sm:$0xf]
  %v1757 = vld [vmem:[%s1 + $0x28] sm:$0xf]
  %v1758 = vld [vmem:[%s1 + $0x2c] sm:$0xf]
  %v1759 = vld [vmem:[%s1 + $0x30] sm:$0xf]
  %v1760 = vld [vmem:[%s1 + $0x34] sm:$0xf]
  %v1761 = vld [vmem:[%s1 + $0x38] sm:$0xf]
  %v1762 = vld [vmem:[%s1 + $0x3c] sm:$0xf]
  %v1763 = vld [vmem:[%s1 + $0x40] sm:$0xf]
  %v1764 = vld [vmem:[%s1 + $0x44] sm:$0xf]
  %v1765 = vld [vmem:[%s1 + $0x48] sm:$0xf]
  %v1766 = vld [vmem:[%s1 + $0x4c] sm:$0xf]
  %v1767 = vld [vmem:[%s1 + $0x50] sm:$0xf]
  %v1768 = vld [vmem:[%s1 + $0x54] sm:$0xf]
  %v1769 = vld [vmem:[%s1 + $0x58] sm:$0xf]
  %v1770 = vld [vmem:[%s1 + $0x5c] sm:$0xf]
  %v1771 = vld [vmem:[%s1 + $0x60] sm:$0xf]
  %v1772 = vld [vmem:[%s1 + $0x64] sm:$0xf]
  %v1773 = vld [vmem:[%s1 + $0x68] sm:$0xf]
  %v1774 = vld [vmem:[%s1 + $0x6c] sm:$0xf]
  %v1775 = vld [vmem:[%s1 + $0x70] sm:$0xf]
  %v1776 = vld [vmem:[%s1 + $0x74] sm:$0xf]
  %v1777 = vld [vmem:[%s1 + $0x78] sm:$0xf]
  %v1778 = vld [vmem:[%s1 + $0x7c] sm:$0xf]
  %v1779 = vld [vmem:[%s2] sm:$0xf]
  %v1780 = vld [vmem:[%s2 + $0x4] sm:$0xf]
  %v1781 = vld [vmem:[%s2 + $0x8] sm:$0xf]
  %v1782 = vld [vmem:[%s2 + $0xc] sm:$0xf]
  %v1783 = vld [vmem:[%s2 + $0x10] sm:$0xf]
  %v1784 = vld [vmem:[%s2 + $0x14] sm:$0xf]
  %v1785 = vld [vmem:[%s2 + $0x18] sm:$0xf]
  %v1786 = vld [vmem:[%s2 + $0x1c] sm:$0xf]
  %v1787 = vld [vmem:[%s2 + $0x20] sm:$0xf]
  %v1788 = vld [vmem:[%s2 + $0x24] sm:$0xf]
  %v1789 = vld [vmem:[%s2 + $0x28] sm:$0xf]
  %v1790 = vld [vmem:[%s2 + $0x2c] sm:$0xf]
  %v1791 = vld [vmem:[%s2 + $0x30] sm:$0xf]
  %v1792 = vld [vmem:[%s2 + $0x34] sm:$0xf]
  %v1793 = vld [vmem:[%s2 + $0x38] sm:$0xf]
  %v1794 = vld [vmem:[%s2 + $0x3c] sm:$0xf]
  %v1795 = vld [vmem:[%s2 + $0x40] sm:$0xf]
  %v1796 = vld [vmem:[%s2 + $0x44] sm:$0xf]
  %v1797 = vld [vmem:[%s2 + $0x48] sm:$0xf]
  %v1798 = vld [vmem:[%s2 + $0x4c] sm:$0xf]
  %v1799 = vld [vmem:[%s2 + $0x50] sm:$0xf]
  %v1800 = vld [vmem:[%s2 + $0x54] sm:$0xf]
  %v1801 = vld [vmem:[%s2 + $0x58] sm:$0xf]
  %v1802 = vld [vmem:[%s2 + $0x5c] sm:$0xf]
  %v1803 = vld [vmem:[%s2 + $0x60] sm:$0xf]
  %v1804 = vld [vmem:[%s2 + $0x64] sm:$0xf]
  %v1805 = vld [vmem:[%s2 + $0x68] sm:$0xf]
  %v1806 = vld [vmem:[%s2 + $0x6c] sm:$0xf]
  %v1807 = vld [vmem:[%s2 + $0x70] sm:$0xf]
  %v1808 = vld [vmem:[%s2 + $0x74] sm:$0xf]
  %v1809 = vld [vmem:[%s2 + $0x78] sm:$0xf]
  %v1810 = vld [vmem:[%s2 + $0x7c] sm:$0xf]
  %v1843 = vunpack.c.l.b16 %v1779
  %v1844 = vunpack.c.l.b16 %v1780
  %v1845 = vunpack.c.l.b16 %v1781
  %v1846 = vunpack.c.l.b16 %v1782
  %v1847 = vunpack.c.l.b16 %v1783
  %v1848 = vunpack.c.l.b16 %v1784
  %v1849 = vunpack.c.l.b16 %v1785
  %v1850 = vunpack.c.l.b16 %v1786
  %v1851 = vunpack.c.l.b16 %v1787
  %v1852 = vunpack.c.l.b16 %v1788
  %v1853 = vunpack.c.l.b16 %v1789
  %v1854 = vunpack.c.l.b16 %v1790
  %v1855 = vunpack.c.l.b16 %v1791
  %v1856 = vunpack.c.l.b16 %v1792
  %v1857 = vunpack.c.l.b16 %v1793
  %v1858 = vunpack.c.l.b16 %v1794
  %v1859 = vunpack.c.l.b16 %v1795
  %v1860 = vunpack.c.l.b16 %v1796
  %v1861 = vunpack.c.l.b16 %v1797
  %v1862 = vunpack.c.l.b16 %v1798
  %v1863 = vunpack.c.l.b16 %v1799
  %v1864 = vunpack.c.l.b16 %v1800
  %v1865 = vunpack.c.l.b16 %v1801
  %v1866 = vunpack.c.l.b16 %v1802
  %v1867 = vunpack.c.l.b16 %v1803
  %v1868 = vunpack.c.l.b16 %v1804
  %v1869 = vunpack.c.l.b16 %v1805
  %v1870 = vunpack.c.l.b16 %v1806
  %v1871 = vunpack.c.l.b16 %v1807
  %v1872 = vunpack.c.l.b16 %v1808
  %v1873 = vunpack.c.l.b16 %v1809
  %v1874 = vunpack.c.l.b16 %v1810
  %v1875 = vpack.c.b16 %v1844, %v1843
  %v1876 = vpack.c.b16 %v1846, %v1845
  %v1877 = vpack.c.b16 %v1848, %v1847
  %v1878 = vpack.c.b16 %v1850, %v1849
  %v1879 = vpack.c.b16 %v1852, %v1851
  %v1880 = vpack.c.b16 %v1854, %v1853
  %v1881 = vpack.c.b16 %v1856, %v1855
  %v1882 = vpack.c.b16 %v1858, %v1857
  %v1883 = vpack.c.b16 %v1860, %v1859
  %v1884 = vpack.c.b16 %v1862, %v1861
  %v1885 = vpack.c.b16 %v1864, %v1863
  %v1886 = vpack.c.b16 %v1866, %v1865
  %v1887 = vpack.c.b16 %v1868, %v1867
  %v1888 = vpack.c.b16 %v1870, %v1869
  %v1889 = vpack.c.b16 %v1872, %v1871
  %v1890 = vpack.c.b16 %v1874, %v1873
  %1907 = vmatprep.subr.bf16.mxu0 0
  %1908 = vmatpush1.bf16.msra.mxu0 %v1882
  %1909 = vmatprep.subr.bf16.mxu0 0
  %1910 = vmatpush1.bf16.msra.mxu0 %v1881
  %1911 = vmatprep.subr.bf16.mxu0 0
  %1912 = vmatpush1.bf16.msra.mxu0 %v1880
  %1913 = vmatprep.subr.bf16.mxu0 0
  %1914 = vmatpush1.bf16.msra.mxu0 %v1879
  %1915 = vmatprep.subr.bf16.mxu0 0
  %1916 = vmatpush1.bf16.msra.mxu0 %v1878
  %1917 = vmatprep.subr.bf16.mxu0 0
  %1918 = vmatpush1.bf16.msra.mxu0 %v1877
  %1919 = vmatprep.subr.bf16.mxu0 0
  %1920 = vmatpush1.bf16.msra.mxu0 %v1876
  %1921 = vmatprep.subr.bf16.mxu0 0
  %1922 = vmatpush1.bf16.msra.mxu0 %v1875
  %1923 = vmatprep.subr.bf16.mxu0 0
  %1924 = vmatpush2.bf16.msra.mxu0 %v1890
  %1925 = vmatprep.subr.bf16.mxu0 0
  %1926 = vmatpush2.bf16.msra.mxu0 %v1889
  %1927 = vmatprep.subr.bf16.mxu0 0
  %1928 = vmatpush2.bf16.msra.mxu0 %v1888
  %1929 = vmatprep.subr.bf16.mxu0 0
  %1930 = vmatpush2.bf16.msra.mxu0 %v1887
  %1931 = vmatprep.subr.bf16.mxu0 0
  %1932 = vmatpush2.bf16.msra.mxu0 %v1886
  %1933 = vmatprep.subr.bf16.mxu0 0
  %1934 = vmatpush2.bf16.msra.mxu0 %v1885
  %1935 = vmatprep.subr.bf16.mxu0 0
  %1936 = vmatpush2.bf16.msra.mxu0 %v1884
  %1937 = vmatprep.subr.bf16.mxu0 0
  %1938 = vmatpush2.bf16.msra.mxu0 %v1883
  %1939 = vmatprep.mubr.bf16.mxu0 %v1716
  %1940 = vmatmul.mubr.bf16.gmra.mxu0 %v1715
  %v1941 = vpop.f32.mrf.mxu0
  %v1942 = vadd.f32 0.0, %v1941
  %v1943 = vpop.f32.mrf.mxu0
  %v1944 = vpop.f32.mrf.mxu0
  %v1945 = vadd.f32 0.0, %v1944
  %v1946 = vpop.f32.mrf.mxu0
  %1947 = vmatprep.mubr.bf16.mxu0 %v1718
  %1948 = vmatmul.mubr.bf16.gmra.mxu0 %v1717
  %v1949 = vpop.f32.mrf.mxu0
  %v1950 = vadd.f32 0.0, %v1949
  %v1951 = vpop.f32.mrf.mxu0
  %v1952 = vpop.f32.mrf.mxu0
  %v1953 = vadd.f32 0.0, %v1952
  %v1954 = vpop.f32.mrf.mxu0
  %1955 = vmatprep.mubr.bf16.mxu0 %v1720
  %1956 = vmatmul.mubr.bf16.gmra.mxu0 %v1719
  %v1957 = vpop.f32.mrf.mxu0
  %v1958 = vadd.f32 0.0, %v1957
  %v1959 = vpop.f32.mrf.mxu0
  %v1960 = vpop.f32.mrf.mxu0
  %v1961 = vadd.f32 0.0, %v1960
  %v1962 = vpop.f32.mrf.mxu0
  %1963 = vmatprep.mubr.bf16.mxu0 %v1722
  %1964 = vmatmul.mubr.bf16.gmra.mxu0 %v1721
  %v1965 = vpop.f32.mrf.mxu0
  %v1966 = vadd.f32 0.0, %v1965
  %v1967 = vpop.f32.mrf.mxu0
  %v1968 = vpop.f32.mrf.mxu0
  %v1969 = vadd.f32 0.0, %v1968
  %v1970 = vpop.f32.mrf.mxu0
  %1971 = vmatprep.mubr.bf16.mxu0 %v1724
  %1972 = vmatmul.mubr.bf16.gmra.mxu0 %v1723
  %v1973 = vpop.f32.mrf.mxu0
  %v1974 = vadd.f32 0.0, %v1973
  %v1975 = vpop.f32.mrf.mxu0
  %v1976 = vpop.f32.mrf.mxu0
  %v1977 = vadd.f32 0.0, %v1976
  %v1978 = vpop.f32.mrf.mxu0
  %1979 = vmatprep.mubr.bf16.mxu0 %v1726
  %1980 = vmatmul.mubr.bf16.gmra.mxu0 %v1725
  %v1981 = vpop.f32.mrf.mxu0
  %v1982 = vadd.f32 0.0, %v1981
  %v1983 = vpop.f32.mrf.mxu0
  %v1984 = vpop.f32.mrf.mxu0
  %v1985 = vadd.f32 0.0, %v1984
  %v1986 = vpop.f32.mrf.mxu0
  %1987 = vmatprep.mubr.bf16.mxu0 %v1728
  %1988 = vmatmul.mubr.bf16.gmra.mxu0 %v1727
  %v1989 = vpop.f32.mrf.mxu0
  %v1990 = vadd.f32 0.0, %v1989
  %v1991 = vpop.f32.mrf.mxu0
  %v1992 = vpop.f32.mrf.mxu0
  %v1993 = vadd.f32 0.0, %v1992
  %v1994 = vpop.f32.mrf.mxu0
  %1995 = vmatprep.mubr.bf16.mxu0 %v1730
  %1996 = vmatmul.mubr.bf16.gmra.mxu0 %v1729
  %v1997 = vpop.f32.mrf.mxu0
  %v1998 = vadd.f32 0.0, %v1997
  %v1999 = vpop.f32.mrf.mxu0
  %v2000 = vpop.f32.mrf.mxu0
  %v2001 = vadd.f32 0.0, %v2000
  %v2002 = vpop.f32.mrf.mxu0
  %2003 = vmatprep.mubr.bf16.mxu0 %v1732
  %2004 = vmatmul.mubr.bf16.gmra.mxu0 %v1731
  %v2005 = vpop.f32.mrf.mxu0
  %v2006 = vadd.f32 0.0, %v2005
  %v2007 = vpop.f32.mrf.mxu0
  %v2008 = vpop.f32.mrf.mxu0
  %v2009 = vadd.f32 0.0, %v2008
  %v2010 = vpop.f32.mrf.mxu0
  %2011 = vmatprep.mubr.bf16.mxu0 %v1734
  %2012 = vmatmul.mubr.bf16.gmra.mxu0 %v1733
  %v2013 = vpop.f32.mrf.mxu0
  %v2014 = vadd.f32 0.0, %v2013
  %v2015 = vpop.f32.mrf.mxu0
  %v2016 = vpop.f32.mrf.mxu0
  %v2017 = vadd.f32 0.0, %v2016
  %v2018 = vpop.f32.mrf.mxu0
  %2019 = vmatprep.mubr.bf16.mxu0 %v1736
  %2020 = vmatmul.mubr.bf16.gmra.mxu0 %v1735
  %v2021 = vpop.f32.mrf.mxu0
  %v2022 = vadd.f32 0.0, %v2021
  %v2023 = vpop.f32.mrf.mxu0
  %v2024 = vpop.f32.mrf.mxu0
  %v2025 = vadd.f32 0.0, %v2024
  %v2026 = vpop.f32.mrf.mxu0
  %2027 = vmatprep.mubr.bf16.mxu0 %v1738
  %2028 = vmatmul.mubr.bf16.gmra.mxu0 %v1737
  %v2029 = vpop.f32.mrf.mxu0
  %v2030 = vadd.f32 0.0, %v2029
  %v2031 = vpop.f32.mrf.mxu0
  %v2032 = vpop.f32.mrf.mxu0
  %v2033 = vadd.f32 0.0, %v2032
  %v2034 = vpop.f32.mrf.mxu0
  %2035 = vmatprep.mubr.bf16.mxu0 %v1740
  %2036 = vmatmul.mubr.bf16.gmra.mxu0 %v1739
  %v2037 = vpop.f32.mrf.mxu0
  %v2038 = vadd.f32 0.0, %v2037
  %v2039 = vpop.f32.mrf.mxu0
  %v2040 = vpop.f32.mrf.mxu0
  %v2041 = vadd.f32 0.0, %v2040
  %v2042 = vpop.f32.mrf.mxu0
  %2043 = vmatprep.mubr.bf16.mxu0 %v1742
  %2044 = vmatmul.mubr.bf16.gmra.mxu0 %v1741
  %v2045 = vpop.f32.mrf.mxu0
  %v2046 = vadd.f32 0.0, %v2045
  %v2047 = vpop.f32.mrf.mxu0
  %v2048 = vpop.f32.mrf.mxu0
  %v2049 = vadd.f32 0.0, %v2048
  %v2050 = vpop.f32.mrf.mxu0
  %2051 = vmatprep.mubr.bf16.mxu0 %v1744
  %2052 = vmatmul.mubr.bf16.gmra.mxu0 %v1743
  %v2053 = vpop.f32.mrf.mxu0
  %v2054 = vadd.f32 0.0, %v2053
  %v2055 = vpop.f32.mrf.mxu0
  %v2056 = vpop.f32.mrf.mxu0
  %v2057 = vadd.f32 0.0, %v2056
  %v2058 = vpop.f32.mrf.mxu0
  %2059 = vmatprep.mubr.bf16.mxu0 %v1746
  %2060 = vmatmul.mubr.bf16.gmra.mxu0 %v1745
  %v2061 = vpop.f32.mrf.mxu0
  %v2062 = vadd.f32 0.0, %v2061
  %v2063 = vpop.f32.mrf.mxu0
  %v2064 = vpop.f32.mrf.mxu0
  %v2065 = vadd.f32 0.0, %v2064
  %v2066 = vpop.f32.mrf.mxu0
  %2067 = vdwg.mxu0
  %v2100 = vunpack.c.l.b16 %v1747
  %v2101 = vunpack.c.l.b16 %v1748
  %v2102 = vunpack.c.l.b16 %v1749
  %v2103 = vunpack.c.l.b16 %v1750
  %v2104 = vunpack.c.l.b16 %v1751
  %v2105 = vunpack.c.l.b16 %v1752
  %v2106 = vunpack.c.l.b16 %v1753
  %v2107 = vunpack.c.l.b16 %v1754
  %v2108 = vunpack.c.l.b16 %v1755
  %v2109 = vunpack.c.l.b16 %v1756
  %v2110 = vunpack.c.l.b16 %v1757
  %v2111 = vunpack.c.l.b16 %v1758
  %v2112 = vunpack.c.l.b16 %v1759
  %v2113 = vunpack.c.l.b16 %v1760
  %v2114 = vunpack.c.l.b16 %v1761
  %v2115 = vunpack.c.l.b16 %v1762
  %v2116 = vunpack.c.l.b16 %v1763
  %v2117 = vunpack.c.l.b16 %v1764
  %v2118 = vunpack.c.l.b16 %v1765
  %v2119 = vunpack.c.l.b16 %v1766
  %v2120 = vunpack.c.l.b16 %v1767
  %v2121 = vunpack.c.l.b16 %v1768
  %v2122 = vunpack.c.l.b16 %v1769
  %v2123 = vunpack.c.l.b16 %v1770
  %v2124 = vunpack.c.l.b16 %v1771
  %v2125 = vunpack.c.l.b16 %v1772
  %v2126 = vunpack.c.l.b16 %v1773
  %v2127 = vunpack.c.l.b16 %v1774
  %v2128 = vunpack.c.l.b16 %v1775
  %v2129 = vunpack.c.l.b16 %v1776
  %v2130 = vunpack.c.l.b16 %v1777
  %v2131 = vunpack.c.l.b16 %v1778
  %v2132 = vpack.c.b16 %v2101, %v2100
  %v2133 = vpack.c.b16 %v2103, %v2102
  %v2134 = vpack.c.b16 %v2105, %v2104
  %v2135 = vpack.c.b16 %v2107, %v2106
  %v2136 = vpack.c.b16 %v2109, %v2108
  %v2137 = vpack.c.b16 %v2111, %v2110
  %v2138 = vpack.c.b16 %v2113, %v2112
  %v2139 = vpack.c.b16 %v2115, %v2114
  %v2140 = vpack.c.b16 %v2117, %v2116
  %v2141 = vpack.c.b16 %v2119, %v2118
  %v2142 = vpack.c.b16 %v2121, %v2120
  %v2143 = vpack.c.b16 %v2123, %v2122
  %v2144 = vpack.c.b16 %v2125, %v2124
  %v2145 = vpack.c.b16 %v2127, %v2126
  %v2146 = vpack.c.b16 %v2129, %v2128
  %v2147 = vpack.c.b16 %v2131, %v2130
  %2164 = vmatprep.subr.bf16.mxu0 0
  %2165 = vmatpush1.bf16.msra.mxu0 %v2139
  %2166 = vmatprep.subr.bf16.mxu0 0
  %2167 = vmatpush1.bf16.msra.mxu0 %v2138
  %2168 = vmatprep.subr.bf16.mxu0 0
  %2169 = vmatpush1.bf16.msra.mxu0 %v2137
  %2170 = vmatprep.subr.bf16.mxu0 0
  %2171 = vmatpush1.bf16.msra.mxu0 %v2136
  %2172 = vmatprep.subr.bf16.mxu0 0
  %2173 = vmatpush1.bf16.msra.mxu0 %v2135
  %2174 = vmatprep.subr.bf16.mxu0 0
  %2175 = vmatpush1.bf16.msra.mxu0 %v2134
  %2176 = vmatprep.subr.bf16.mxu0 0
  %2177 = vmatpush1.bf16.msra.mxu0 %v2133
  %2178 = vmatprep.subr.bf16.mxu0 0
  %2179 = vmatpush1.bf16.msra.mxu0 %v2132
  %2180 = vmatprep.subr.bf16.mxu0 0
  %2181 = vmatpush2.bf16.msra.mxu0 %v2147
  %2182 = vmatprep.subr.bf16.mxu0 0
  %2183 = vmatpush2.bf16.msra.mxu0 %v2146
  %2184 = vmatprep.subr.bf16.mxu0 0
  %2185 = vmatpush2.bf16.msra.mxu0 %v2145
  %2186 = vmatprep.subr.bf16.mxu0 0
  %2187 = vmatpush2.bf16.msra.mxu0 %v2144
  %2188 = vmatprep.subr.bf16.mxu0 0
  %2189 = vmatpush2.bf16.msra.mxu0 %v2143
  %2190 = vmatprep.subr.bf16.mxu0 0
  %2191 = vmatpush2.bf16.msra.mxu0 %v2142
  %2192 = vmatprep.subr.bf16.mxu0 0
  %2193 = vmatpush2.bf16.msra.mxu0 %v2141
  %2194 = vmatprep.subr.bf16.mxu0 0
  %2195 = vmatpush2.bf16.msra.mxu0 %v2140
  %2196 = vmatprep.mubr.bf16.mxu0 %v1716
  %2197 = vmatmul.mubr.bf16.gmra.mxu0 %v1715
  %v2198 = vpop.f32.mrf.mxu0
  %v2199 = vadd.f32 %v1942, %v2198
  %v2200 = vpop.f32.mrf.mxu0
  %v2201 = vpop.f32.mrf.mxu0
  %v2202 = vadd.f32 %v1945, %v2201
  %v2203 = vpop.f32.mrf.mxu0
  %2204 = vmatprep.mubr.bf16.mxu0 %v1718
  %2205 = vmatmul.mubr.bf16.gmra.mxu0 %v1717
  %v2206 = vpop.f32.mrf.mxu0
  %v2207 = vadd.f32 %v1950, %v2206
  %v2208 = vpop.f32.mrf.mxu0
  %v2209 = vpop.f32.mrf.mxu0
  %v2210 = vadd.f32 %v1953, %v2209
  %v2211 = vpop.f32.mrf.mxu0
  %2212 = vmatprep.mubr.bf16.mxu0 %v1720
  %2213 = vmatmul.mubr.bf16.gmra.mxu0 %v1719
  %v2214 = vpop.f32.mrf.mxu0
  %v2215 = vadd.f32 %v1958, %v2214
  %v2216 = vpop.f32.mrf.mxu0
  %v2217 = vpop.f32.mrf.mxu0
  %v2218 = vadd.f32 %v1961, %v2217
  %v2219 = vpop.f32.mrf.mxu0
  %2220 = vmatprep.mubr.bf16.mxu0 %v1722
  %2221 = vmatmul.mubr.bf16.gmra.mxu0 %v1721
  %v2222 = vpop.f32.mrf.mxu0
  %v2223 = vadd.f32 %v1966, %v2222
  %v2224 = vpop.f32.mrf.mxu0
  %v2225 = vpop.f32.mrf.mxu0
  %v2226 = vadd.f32 %v1969, %v2225
  %v2227 = vpop.f32.mrf.mxu0
  %2228 = vmatprep.mubr.bf16.mxu0 %v1724
  %2229 = vmatmul.mubr.bf16.gmra.mxu0 %v1723
  %v2230 = vpop.f32.mrf.mxu0
  %v2231 = vadd.f32 %v1974, %v2230
  %v2232 = vpop.f32.mrf.mxu0
  %v2233 = vpop.f32.mrf.mxu0
  %v2234 = vadd.f32 %v1977, %v2233
  %v2235 = vpop.f32.mrf.mxu0
  %2236 = vmatprep.mubr.bf16.mxu0 %v1726
  %2237 = vmatmul.mubr.bf16.gmra.mxu0 %v1725
  %v2238 = vpop.f32.mrf.mxu0
  %v2239 = vadd.f32 %v1982, %v2238
  %v2240 = vpop.f32.mrf.mxu0
  %v2241 = vpop.f32.mrf.mxu0
  %v2242 = vadd.f32 %v1985, %v2241
  %v2243 = vpop.f32.mrf.mxu0
  %2244 = vmatprep.mubr.bf16.mxu0 %v1728
  %2245 = vmatmul.mubr.bf16.gmra.mxu0 %v1727
  %v2246 = vpop.f32.mrf.mxu0
  %v2247 = vadd.f32 %v1990, %v2246
  %v2248 = vpop.f32.mrf.mxu0
  %v2249 = vpop.f32.mrf.mxu0
  %v2250 = vadd.f32 %v1993, %v2249
  %v2251 = vpop.f32.mrf.mxu0
  %2252 = vmatprep.mubr.bf16.mxu0 %v1730
  %2253 = vmatmul.mubr.bf16.gmra.mxu0 %v1729
  %v2254 = vpop.f32.mrf.mxu0
  %v2255 = vadd.f32 %v1998, %v2254
  %v2256 = vpop.f32.mrf.mxu0
  %v2257 = vpop.f32.mrf.mxu0
  %v2258 = vadd.f32 %v2001, %v2257
  %v2259 = vpop.f32.mrf.mxu0
  %2260 = vmatprep.mubr.bf16.mxu0 %v1732
  %2261 = vmatmul.mubr.bf16.gmra.mxu0 %v1731
  %v2262 = vpop.f32.mrf.mxu0
  %v2263 = vadd.f32 %v2006, %v2262
  %v2264 = vpop.f32.mrf.mxu0
  %v2265 = vpop.f32.mrf.mxu0
  %v2266 = vadd.f32 %v2009, %v2265
  %v2267 = vpop.f32.mrf.mxu0
  %2268 = vmatprep.mubr.bf16.mxu0 %v1734
  %2269 = vmatmul.mubr.bf16.gmra.mxu0 %v1733
  %v2270 = vpop.f32.mrf.mxu0
  %v2271 = vadd.f32 %v2014, %v2270
  %v2272 = vpop.f32.mrf.mxu0
  %v2273 = vpop.f32.mrf.mxu0
  %v2274 = vadd.f32 %v2017, %v2273
  %v2275 = vpop.f32.mrf.mxu0
  %2276 = vmatprep.mubr.bf16.mxu0 %v1736
  %2277 = vmatmul.mubr.bf16.gmra.mxu0 %v1735
  %v2278 = vpop.f32.mrf.mxu0
  %v2279 = vadd.f32 %v2022, %v2278
  %v2280 = vpop.f32.mrf.mxu0
  %v2281 = vpop.f32.mrf.mxu0
  %v2282 = vadd.f32 %v2025, %v2281
  %v2283 = vpop.f32.mrf.mxu0
  %2284 = vmatprep.mubr.bf16.mxu0 %v1738
  %2285 = vmatmul.mubr.bf16.gmra.mxu0 %v1737
  %v2286 = vpop.f32.mrf.mxu0
  %v2287 = vadd.f32 %v2030, %v2286
  %v2288 = vpop.f32.mrf.mxu0
  %v2289 = vpop.f32.mrf.mxu0
  %v2290 = vadd.f32 %v2033, %v2289
  %v2291 = vpop.f32.mrf.mxu0
  %2292 = vmatprep.mubr.bf16.mxu0 %v1740
  %2293 = vmatmul.mubr.bf16.gmra.mxu0 %v1739
  %v2294 = vpop.f32.mrf.mxu0
  %v2295 = vadd.f32 %v2038, %v2294
  %v2296 = vpop.f32.mrf.mxu0
  %v2297 = vpop.f32.mrf.mxu0
  %v2298 = vadd.f32 %v2041, %v2297
  %v2299 = vpop.f32.mrf.mxu0
  %2300 = vmatprep.mubr.bf16.mxu0 %v1742
  %2301 = vmatmul.mubr.bf16.gmra.mxu0 %v1741
  %v2302 = vpop.f32.mrf.mxu0
  %v2303 = vadd.f32 %v2046, %v2302
  %v2304 = vpop.f32.mrf.mxu0
  %v2305 = vpop.f32.mrf.mxu0
  %v2306 = vadd.f32 %v2049, %v2305
  %v2307 = vpop.f32.mrf.mxu0
  %2308 = vmatprep.mubr.bf16.mxu0 %v1744
  %2309 = vmatmul.mubr.bf16.gmra.mxu0 %v1743
  %v2310 = vpop.f32.mrf.mxu0
  %v2311 = vadd.f32 %v2054, %v2310
  %v2312 = vpop.f32.mrf.mxu0
  %v2313 = vpop.f32.mrf.mxu0
  %v2314 = vadd.f32 %v2057, %v2313
  %v2315 = vpop.f32.mrf.mxu0
  %2316 = vmatprep.mubr.bf16.mxu0 %v1746
  %2317 = vmatmul.mubr.bf16.gmra.mxu0 %v1745
  %v2318 = vpop.f32.mrf.mxu0
  %v2319 = vadd.f32 %v2062, %v2318
  %v2320 = vpop.f32.mrf.mxu0
  %v2321 = vpop.f32.mrf.mxu0
  %v2322 = vadd.f32 %v2065, %v2321
  %v2323 = vpop.f32.mrf.mxu0
  %2324 = vdwg.mxu0
  %v2325 = vsub.s32 %v15, 256
  %v2326 = vsub.s32 %v16, 256
  %v2327 = vsub.s32 %v17, 256
  %v2328 = vsub.s32 %v18, 256
  %v2329 = vsub.s32 %v19, 256
  %v2330 = vsub.s32 %v20, 256
  %v2331 = vsub.s32 %v21, 256
  %v2332 = vsub.s32 %v22, 256
  %v2333 = vsub.s32 %v23, 256
  %v2334 = vsub.s32 %v24, 256
  %v2335 = vsub.s32 %v25, 256
  %v2336 = vsub.s32 %v26, 256
  %v2337 = vsub.s32 %v27, 256
  %v2338 = vsub.s32 %v28, 256
  %v2339 = vsub.s32 %v29, 256
  %v2340 = vsub.s32 %v30, 256
  %v2341 = vsub.s32 %v31, 256
  %v2342 = vsub.s32 %v32, 256
  %v2343 = vsub.s32 %v33, 256
  %v2344 = vsub.s32 %v34, 256
  %v2345 = vsub.s32 %v35, 256
  %v2346 = vsub.s32 %v36, 256
  %v2347 = vsub.s32 %v37, 256
  %v2348 = vsub.s32 %v38, 256
  %v2349 = vsub.s32 %v39, 256
  %v2350 = vsub.s32 %v40, 256
  %v2351 = vsub.s32 %v41, 256
  %v2352 = vsub.s32 %v42, 256
  %v2353 = vsub.s32 %v43, 256
  %v2354 = vsub.s32 %v44, 256
  %v2355 = vsub.s32 %v45, 256
  %v2356 = vsub.s32 %v46, 256
  %2357 = vset.pattern.permute.xlu0 0
  %2358 = vperm.xlu0 %2357, %v2325
  %v2359 = vpop.permute.xlu0 %2358
  %2360 = vset.pattern.permute.xlu0 0
  %2361 = vperm.xlu0 %2360, %v2326
  %v2362 = vpop.permute.xlu0 %2361
  %2363 = vset.pattern.permute.xlu0 0
  %2364 = vperm.xlu0 %2363, %v2327
  %v2365 = vpop.permute.xlu0 %2364
  %2366 = vset.pattern.permute.xlu0 0
  %2367 = vperm.xlu0 %2366, %v2328
  %v2368 = vpop.permute.xlu0 %2367
  %2369 = vset.pattern.permute.xlu0 0
  %2370 = vperm.xlu0 %2369, %v2329
  %v2371 = vpop.permute.xlu0 %2370
  %2372 = vset.pattern.permute.xlu0 0
  %2373 = vperm.xlu0 %2372, %v2330
  %v2374 = vpop.permute.xlu0 %2373
  %2375 = vset.pattern.permute.xlu0 0
  %2376 = vperm.xlu0 %2375, %v2331
  %v2377 = vpop.permute.xlu0 %2376
  %2378 = vset.pattern.permute.xlu0 0
  %2379 = vperm.xlu0 %2378, %v2332
  %v2380 = vpop.permute.xlu0 %2379
  %2381 = vset.pattern.permute.xlu0 0
  %2382 = vperm.xlu0 %2381, %v2333
  %v2383 = vpop.permute.xlu0 %2382
  %2384 = vset.pattern.permute.xlu0 0
  %2385 = vperm.xlu0 %2384, %v2334
  %v2386 = vpop.permute.xlu0 %2385
  %2387 = vset.pattern.permute.xlu0 0
  %2388 = vperm.xlu0 %2387, %v2335
  %v2389 = vpop.permute.xlu0 %2388
  %2390 = vset.pattern.permute.xlu0 0
  %2391 = vperm.xlu0 %2390, %v2336
  %v2392 = vpop.permute.xlu0 %2391
  %2393 = vset.pattern.permute.xlu0 0
  %2394 = vperm.xlu0 %2393, %v2337
  %v2395 = vpop.permute.xlu0 %2394
  %2396 = vset.pattern.permute.xlu0 0
  %2397 = vperm.xlu0 %2396, %v2338
  %v2398 = vpop.permute.xlu0 %2397
  %2399 = vset.pattern.permute.xlu0 0
  %2400 = vperm.xlu0 %2399, %v2339
  %v2401 = vpop.permute.xlu0 %2400
  %2402 = vset.pattern.permute.xlu0 0
  %2403 = vperm.xlu0 %2402, %v2340
  %v2404 = vpop.permute.xlu0 %2403
  %2405 = vset.pattern.permute.xlu0 0
  %2406 = vperm.xlu0 %2405, %v2341
  %v2407 = vpop.permute.xlu0 %2406
  %2408 = vset.pattern.permute.xlu0 0
  %2409 = vperm.xlu0 %2408, %v2342
  %v2410 = vpop.permute.xlu0 %2409
  %2411 = vset.pattern.permute.xlu0 0
  %2412 = vperm.xlu0 %2411, %v2343
  %v2413 = vpop.permute.xlu0 %2412
  %2414 = vset.pattern.permute.xlu0 0
  %2415 = vperm.xlu0 %2414, %v2344
  %v2416 = vpop.permute.xlu0 %2415
  %2417 = vset.pattern.permute.xlu0 0
  %2418 = vperm.xlu0 %2417, %v2345
  %v2419 = vpop.permute.xlu0 %2418
  %2420 = vset.pattern.permute.xlu0 0
  %2421 = vperm.xlu0 %2420, %v2346
  %v2422 = vpop.permute.xlu0 %2421
  %2423 = vset.pattern.permute.xlu0 0
  %2424 = vperm.xlu0 %2423, %v2347
  %v2425 = vpop.permute.xlu0 %2424
  %2426 = vset.pattern.permute.xlu0 0
  %2427 = vperm.xlu0 %2426, %v2348
  %v2428 = vpop.permute.xlu0 %2427
  %2429 = vset.pattern.permute.xlu0 0
  %2430 = vperm.xlu0 %2429, %v2349
  %v2431 = vpop.permute.xlu0 %2430
  %2432 = vset.pattern.permute.xlu0 0
  %2433 = vperm.xlu0 %2432, %v2350
  %v2434 = vpop.permute.xlu0 %2433
  %2435 = vset.pattern.permute.xlu0 0
  %2436 = vperm.xlu0 %2435, %v2351
  %v2437 = vpop.permute.xlu0 %2436
  %2438 = vset.pattern.permute.xlu0 0
  %2439 = vperm.xlu0 %2438, %v2352
  %v2440 = vpop.permute.xlu0 %2439
  %2441 = vset.pattern.permute.xlu0 0
  %2442 = vperm.xlu0 %2441, %v2353
  %v2443 = vpop.permute.xlu0 %2442
  %2444 = vset.pattern.permute.xlu0 0
  %2445 = vperm.xlu0 %2444, %v2354
  %v2446 = vpop.permute.xlu0 %2445
  %2447 = vset.pattern.permute.xlu0 0
  %2448 = vperm.xlu0 %2447, %v2355
  %v2449 = vpop.permute.xlu0 %2448
  %2450 = vset.pattern.permute.xlu0 0
  %2451 = vperm.xlu0 %2450, %v2356
  %v2452 = vpop.permute.xlu0 %2451
  %vm2453 = vcmp.eq.s32.totalorder %v2359, %v337
  %vm2454 = vcmp.eq.s32.totalorder %v2359, %v338
  %vm2455 = vcmp.eq.s32.totalorder %v2362, %v337
  %vm2456 = vcmp.eq.s32.totalorder %v2362, %v338
  %vm2457 = vcmp.eq.s32.totalorder %v2365, %v337
  %vm2458 = vcmp.eq.s32.totalorder %v2365, %v338
  %vm2459 = vcmp.eq.s32.totalorder %v2368, %v337
  %vm2460 = vcmp.eq.s32.totalorder %v2368, %v338
  %vm2461 = vcmp.eq.s32.totalorder %v2371, %v337
  %vm2462 = vcmp.eq.s32.totalorder %v2371, %v338
  %vm2463 = vcmp.eq.s32.totalorder %v2374, %v337
  %vm2464 = vcmp.eq.s32.totalorder %v2374, %v338
  %vm2465 = vcmp.eq.s32.totalorder %v2377, %v337
  %vm2466 = vcmp.eq.s32.totalorder %v2377, %v338
  %vm2467 = vcmp.eq.s32.totalorder %v2380, %v337
  %vm2468 = vcmp.eq.s32.totalorder %v2380, %v338
  %vm2469 = vcmp.eq.s32.totalorder %v2383, %v337
  %vm2470 = vcmp.eq.s32.totalorder %v2383, %v338
  %vm2471 = vcmp.eq.s32.totalorder %v2386, %v337
  %vm2472 = vcmp.eq.s32.totalorder %v2386, %v338
  %vm2473 = vcmp.eq.s32.totalorder %v2389, %v337
  %vm2474 = vcmp.eq.s32.totalorder %v2389, %v338
  %vm2475 = vcmp.eq.s32.totalorder %v2392, %v337
  %vm2476 = vcmp.eq.s32.totalorder %v2392, %v338
  %vm2477 = vcmp.eq.s32.totalorder %v2395, %v337
  %vm2478 = vcmp.eq.s32.totalorder %v2395, %v338
  %vm2479 = vcmp.eq.s32.totalorder %v2398, %v337
  %vm2480 = vcmp.eq.s32.totalorder %v2398, %v338
  %vm2481 = vcmp.eq.s32.totalorder %v2401, %v337
  %vm2482 = vcmp.eq.s32.totalorder %v2401, %v338
  %vm2483 = vcmp.eq.s32.totalorder %v2404, %v337
  %vm2484 = vcmp.eq.s32.totalorder %v2404, %v338
  %vm2485 = vcmp.eq.s32.totalorder %v2407, %v337
  %vm2486 = vcmp.eq.s32.totalorder %v2407, %v338
  %vm2487 = vcmp.eq.s32.totalorder %v2410, %v337
  %vm2488 = vcmp.eq.s32.totalorder %v2410, %v338
  %vm2489 = vcmp.eq.s32.totalorder %v2413, %v337
  %vm2490 = vcmp.eq.s32.totalorder %v2413, %v338
  %vm2491 = vcmp.eq.s32.totalorder %v2416, %v337
  %vm2492 = vcmp.eq.s32.totalorder %v2416, %v338
  %vm2493 = vcmp.eq.s32.totalorder %v2419, %v337
  %vm2494 = vcmp.eq.s32.totalorder %v2419, %v338
  %vm2495 = vcmp.eq.s32.totalorder %v2422, %v337
  %vm2496 = vcmp.eq.s32.totalorder %v2422, %v338
  %vm2497 = vcmp.eq.s32.totalorder %v2425, %v337
  %vm2498 = vcmp.eq.s32.totalorder %v2425, %v338
  %vm2499 = vcmp.eq.s32.totalorder %v2428, %v337
  %vm2500 = vcmp.eq.s32.totalorder %v2428, %v338
  %vm2501 = vcmp.eq.s32.totalorder %v2431, %v337
  %vm2502 = vcmp.eq.s32.totalorder %v2431, %v338
  %vm2503 = vcmp.eq.s32.totalorder %v2434, %v337
  %vm2504 = vcmp.eq.s32.totalorder %v2434, %v338
  %vm2505 = vcmp.eq.s32.totalorder %v2437, %v337
  %vm2506 = vcmp.eq.s32.totalorder %v2437, %v338
  %vm2507 = vcmp.eq.s32.totalorder %v2440, %v337
  %vm2508 = vcmp.eq.s32.totalorder %v2440, %v338
  %vm2509 = vcmp.eq.s32.totalorder %v2443, %v337
  %vm2510 = vcmp.eq.s32.totalorder %v2443, %v338
  %vm2511 = vcmp.eq.s32.totalorder %v2446, %v337
  %vm2512 = vcmp.eq.s32.totalorder %v2446, %v338
  %vm2513 = vcmp.eq.s32.totalorder %v2449, %v337
  %vm2514 = vcmp.eq.s32.totalorder %v2449, %v338
  %vm2515 = vcmp.eq.s32.totalorder %v2452, %v337
  %vm2516 = vcmp.eq.s32.totalorder %v2452, %v338
  %v2517 = vsel %vm2453, 1, 0
  %v2518 = vsel %vm2454, 1, 0
  %v2519 = vsel %vm2455, 1, 0
  %v2520 = vsel %vm2456, 1, 0
  %v2521 = vsel %vm2457, 1, 0
  %v2522 = vsel %vm2458, 1, 0
  %v2523 = vsel %vm2459, 1, 0
  %v2524 = vsel %vm2460, 1, 0
  %v2525 = vsel %vm2461, 1, 0
  %v2526 = vsel %vm2462, 1, 0
  %v2527 = vsel %vm2463, 1, 0
  %v2528 = vsel %vm2464, 1, 0
  %v2529 = vsel %vm2465, 1, 0
  %v2530 = vsel %vm2466, 1, 0
  %v2531 = vsel %vm2467, 1, 0
  %v2532 = vsel %vm2468, 1, 0
  %v2533 = vsel %vm2469, 1, 0
  %v2534 = vsel %vm2470, 1, 0
  %v2535 = vsel %vm2471, 1, 0
  %v2536 = vsel %vm2472, 1, 0
  %v2537 = vsel %vm2473, 1, 0
  %v2538 = vsel %vm2474, 1, 0
  %v2539 = vsel %vm2475, 1, 0
  %v2540 = vsel %vm2476, 1, 0
  %v2541 = vsel %vm2477, 1, 0
  %v2542 = vsel %vm2478, 1, 0
  %v2543 = vsel %vm2479, 1, 0
  %v2544 = vsel %vm2480, 1, 0
  %v2545 = vsel %vm2481, 1, 0
  %v2546 = vsel %vm2482, 1, 0
  %v2547 = vsel %vm2483, 1, 0
  %v2548 = vsel %vm2484, 1, 0
  %v2549 = vsel %vm2485, 1, 0
  %v2550 = vsel %vm2486, 1, 0
  %v2551 = vsel %vm2487, 1, 0
  %v2552 = vsel %vm2488, 1, 0
  %v2553 = vsel %vm2489, 1, 0
  %v2554 = vsel %vm2490, 1, 0
  %v2555 = vsel %vm2491, 1, 0
  %v2556 = vsel %vm2492, 1, 0
  %v2557 = vsel %vm2493, 1, 0
  %v2558 = vsel %vm2494, 1, 0
  %v2559 = vsel %vm2495, 1, 0
  %v2560 = vsel %vm2496, 1, 0
  %v2561 = vsel %vm2497, 1, 0
  %v2562 = vsel %vm2498, 1, 0
  %v2563 = vsel %vm2499, 1, 0
  %v2564 = vsel %vm2500, 1, 0
  %v2565 = vsel %vm2501, 1, 0
  %v2566 = vsel %vm2502, 1, 0
  %v2567 = vsel %vm2503, 1, 0
  %v2568 = vsel %vm2504, 1, 0
  %v2569 = vsel %vm2505, 1, 0
  %v2570 = vsel %vm2506, 1, 0
  %v2571 = vsel %vm2507, 1, 0
  %v2572 = vsel %vm2508, 1, 0
  %v2573 = vsel %vm2509, 1, 0
  %v2574 = vsel %vm2510, 1, 0
  %v2575 = vsel %vm2511, 1, 0
  %v2576 = vsel %vm2512, 1, 0
  %v2577 = vsel %vm2513, 1, 0
  %v2578 = vsel %vm2514, 1, 0
  %v2579 = vsel %vm2515, 1, 0
  %v2580 = vsel %vm2516, 1, 0
  %v2581 = vcvt.s32.f32 %v2517
  %v2582 = vcvt.s32.f32 %v2518
  %v2583 = vcvt.s32.f32 %v2519
  %v2584 = vcvt.s32.f32 %v2520
  %v2585 = vcvt.s32.f32 %v2521
  %v2586 = vcvt.s32.f32 %v2522
  %v2587 = vcvt.s32.f32 %v2523
  %v2588 = vcvt.s32.f32 %v2524
  %v2589 = vcvt.s32.f32 %v2525
  %v2590 = vcvt.s32.f32 %v2526
  %v2591 = vcvt.s32.f32 %v2527
  %v2592 = vcvt.s32.f32 %v2528
  %v2593 = vcvt.s32.f32 %v2529
  %v2594 = vcvt.s32.f32 %v2530
  %v2595 = vcvt.s32.f32 %v2531
  %v2596 = vcvt.s32.f32 %v2532
  %v2597 = vcvt.s32.f32 %v2533
  %v2598 = vcvt.s32.f32 %v2534
  %v2599 = vcvt.s32.f32 %v2535
  %v2600 = vcvt.s32.f32 %v2536
  %v2601 = vcvt.s32.f32 %v2537
  %v2602 = vcvt.s32.f32 %v2538
  %v2603 = vcvt.s32.f32 %v2539
  %v2604 = vcvt.s32.f32 %v2540
  %v2605 = vcvt.s32.f32 %v2541
  %v2606 = vcvt.s32.f32 %v2542
  %v2607 = vcvt.s32.f32 %v2543
  %v2608 = vcvt.s32.f32 %v2544
  %v2609 = vcvt.s32.f32 %v2545
  %v2610 = vcvt.s32.f32 %v2546
  %v2611 = vcvt.s32.f32 %v2547
  %v2612 = vcvt.s32.f32 %v2548
  %v2613 = vcvt.s32.f32 %v2549
  %v2614 = vcvt.s32.f32 %v2550
  %v2615 = vcvt.s32.f32 %v2551
  %v2616 = vcvt.s32.f32 %v2552
  %v2617 = vcvt.s32.f32 %v2553
  %v2618 = vcvt.s32.f32 %v2554
  %v2619 = vcvt.s32.f32 %v2555
  %v2620 = vcvt.s32.f32 %v2556
  %v2621 = vcvt.s32.f32 %v2557
  %v2622 = vcvt.s32.f32 %v2558
  %v2623 = vcvt.s32.f32 %v2559
  %v2624 = vcvt.s32.f32 %v2560
  %v2625 = vcvt.s32.f32 %v2561
  %v2626 = vcvt.s32.f32 %v2562
  %v2627 = vcvt.s32.f32 %v2563
  %v2628 = vcvt.s32.f32 %v2564
  %v2629 = vcvt.s32.f32 %v2565
  %v2630 = vcvt.s32.f32 %v2566
  %v2631 = vcvt.s32.f32 %v2567
  %v2632 = vcvt.s32.f32 %v2568
  %v2633 = vcvt.s32.f32 %v2569
  %v2634 = vcvt.s32.f32 %v2570
  %v2635 = vcvt.s32.f32 %v2571
  %v2636 = vcvt.s32.f32 %v2572
  %v2637 = vcvt.s32.f32 %v2573
  %v2638 = vcvt.s32.f32 %v2574
  %v2639 = vcvt.s32.f32 %v2575
  %v2640 = vcvt.s32.f32 %v2576
  %v2641 = vcvt.s32.f32 %v2577
  %v2642 = vcvt.s32.f32 %v2578
  %v2643 = vcvt.s32.f32 %v2579
  %v2644 = vcvt.s32.f32 %v2580
  %v2645 = vpack.c.bf16 %v2583, %v2581
  %v2646 = vpack.c.bf16 %v2584, %v2582
  %v2647 = vpack.c.bf16 %v2587, %v2585
  %v2648 = vpack.c.bf16 %v2588, %v2586
  %v2649 = vpack.c.bf16 %v2591, %v2589
  %v2650 = vpack.c.bf16 %v2592, %v2590
  %v2651 = vpack.c.bf16 %v2595, %v2593
  %v2652 = vpack.c.bf16 %v2596, %v2594
  %v2653 = vpack.c.bf16 %v2599, %v2597
  %v2654 = vpack.c.bf16 %v2600, %v2598
  %v2655 = vpack.c.bf16 %v2603, %v2601
  %v2656 = vpack.c.bf16 %v2604, %v2602
  %v2657 = vpack.c.bf16 %v2607, %v2605
  %v2658 = vpack.c.bf16 %v2608, %v2606
  %v2659 = vpack.c.bf16 %v2611, %v2609
  %v2660 = vpack.c.bf16 %v2612, %v2610
  %v2661 = vpack.c.bf16 %v2615, %v2613
  %v2662 = vpack.c.bf16 %v2616, %v2614
  %v2663 = vpack.c.bf16 %v2619, %v2617
  %v2664 = vpack.c.bf16 %v2620, %v2618
  %v2665 = vpack.c.bf16 %v2623, %v2621
  %v2666 = vpack.c.bf16 %v2624, %v2622
  %v2667 = vpack.c.bf16 %v2627, %v2625
  %v2668 = vpack.c.bf16 %v2628, %v2626
  %v2669 = vpack.c.bf16 %v2631, %v2629
  %v2670 = vpack.c.bf16 %v2632, %v2630
  %v2671 = vpack.c.bf16 %v2635, %v2633
  %v2672 = vpack.c.bf16 %v2636, %v2634
  %v2673 = vpack.c.bf16 %v2639, %v2637
  %v2674 = vpack.c.bf16 %v2640, %v2638
  %v2675 = vpack.c.bf16 %v2643, %v2641
  %v2676 = vpack.c.bf16 %v2644, %v2642
  %v2677 = vadd.bf16 %v2645, 0
  %v2678 = vadd.bf16 %v2646, 0
  %v2679 = vadd.bf16 %v2647, 0
  %v2680 = vadd.bf16 %v2648, 0
  %v2681 = vadd.bf16 %v2649, 0
  %v2682 = vadd.bf16 %v2650, 0
  %v2683 = vadd.bf16 %v2651, 0
  %v2684 = vadd.bf16 %v2652, 0
  %v2685 = vadd.bf16 %v2653, 0
  %v2686 = vadd.bf16 %v2654, 0
  %v2687 = vadd.bf16 %v2655, 0
  %v2688 = vadd.bf16 %v2656, 0
  %v2689 = vadd.bf16 %v2657, 0
  %v2690 = vadd.bf16 %v2658, 0
  %v2691 = vadd.bf16 %v2659, 0
  %v2692 = vadd.bf16 %v2660, 0
  %v2693 = vadd.bf16 %v2661, 0
  %v2694 = vadd.bf16 %v2662, 0
  %v2695 = vadd.bf16 %v2663, 0
  %v2696 = vadd.bf16 %v2664, 0
  %v2697 = vadd.bf16 %v2665, 0
  %v2698 = vadd.bf16 %v2666, 0
  %v2699 = vadd.bf16 %v2667, 0
  %v2700 = vadd.bf16 %v2668, 0
  %v2701 = vadd.bf16 %v2669, 0
  %v2702 = vadd.bf16 %v2670, 0
  %v2703 = vadd.bf16 %v2671, 0
  %v2704 = vadd.bf16 %v2672, 0
  %v2705 = vadd.bf16 %v2673, 0
  %v2706 = vadd.bf16 %v2674, 0
  %v2707 = vadd.bf16 %v2675, 0
  %v2708 = vadd.bf16 %v2676, 0
  %2709 = vset.pattern.permute.xlu0 1
  %2710 = vperm.xlu0 %2709, %v2325
  %v2711 = vpop.permute.xlu0 %2710
  %2712 = vset.pattern.permute.xlu0 1
  %2713 = vperm.xlu0 %2712, %v2326
  %v2714 = vpop.permute.xlu0 %2713
  %2715 = vset.pattern.permute.xlu0 1
  %2716 = vperm.xlu0 %2715, %v2327
  %v2717 = vpop.permute.xlu0 %2716
  %2718 = vset.pattern.permute.xlu0 1
  %2719 = vperm.xlu0 %2718, %v2328
  %v2720 = vpop.permute.xlu0 %2719
  %2721 = vset.pattern.permute.xlu0 1
  %2722 = vperm.xlu0 %2721, %v2329
  %v2723 = vpop.permute.xlu0 %2722
  %2724 = vset.pattern.permute.xlu0 1
  %2725 = vperm.xlu0 %2724, %v2330
  %v2726 = vpop.permute.xlu0 %2725
  %2727 = vset.pattern.permute.xlu0 1
  %2728 = vperm.xlu0 %2727, %v2331
  %v2729 = vpop.permute.xlu0 %2728
  %2730 = vset.pattern.permute.xlu0 1
  %2731 = vperm.xlu0 %2730, %v2332
  %v2732 = vpop.permute.xlu0 %2731
  %2733 = vset.pattern.permute.xlu0 1
  %2734 = vperm.xlu0 %2733, %v2333
  %v2735 = vpop.permute.xlu0 %2734
  %2736 = vset.pattern.permute.xlu0 1
  %2737 = vperm.xlu0 %2736, %v2334
  %v2738 = vpop.permute.xlu0 %2737
  %2739 = vset.pattern.permute.xlu0 1
  %2740 = vperm.xlu0 %2739, %v2335
  %v2741 = vpop.permute.xlu0 %2740
  %2742 = vset.pattern.permute.xlu0 1
  %2743 = vperm.xlu0 %2742, %v2336
  %v2744 = vpop.permute.xlu0 %2743
  %2745 = vset.pattern.permute.xlu0 1
  %2746 = vperm.xlu0 %2745, %v2337
  %v2747 = vpop.permute.xlu0 %2746
  %2748 = vset.pattern.permute.xlu0 1
  %2749 = vperm.xlu0 %2748, %v2338
  %v2750 = vpop.permute.xlu0 %2749
  %2751 = vset.pattern.permute.xlu0 1
  %2752 = vperm.xlu0 %2751, %v2339
  %v2753 = vpop.permute.xlu0 %2752
  %2754 = vset.pattern.permute.xlu0 1
  %2755 = vperm.xlu0 %2754, %v2340
  %v2756 = vpop.permute.xlu0 %2755
  %2757 = vset.pattern.permute.xlu0 1
  %2758 = vperm.xlu0 %2757, %v2341
  %v2759 = vpop.permute.xlu0 %2758
  %2760 = vset.pattern.permute.xlu0 1
  %2761 = vperm.xlu0 %2760, %v2342
  %v2762 = vpop.permute.xlu0 %2761
  %2763 = vset.pattern.permute.xlu0 1
  %2764 = vperm.xlu0 %2763, %v2343
  %v2765 = vpop.permute.xlu0 %2764
  %2766 = vset.pattern.permute.xlu0 1
  %2767 = vperm.xlu0 %2766, %v2344
  %v2768 = vpop.permute.xlu0 %2767
  %2769 = vset.pattern.permute.xlu0 1
  %2770 = vperm.xlu0 %2769, %v2345
  %v2771 = vpop.permute.xlu0 %2770
  %2772 = vset.pattern.permute.xlu0 1
  %2773 = vperm.xlu0 %2772, %v2346
  %v2774 = vpop.permute.xlu0 %2773
  %2775 = vset.pattern.permute.xlu0 1
  %2776 = vperm.xlu0 %2775, %v2347
  %v2777 = vpop.permute.xlu0 %2776
  %2778 = vset.pattern.permute.xlu0 1
  %2779 = vperm.xlu0 %2778, %v2348
  %v2780 = vpop.permute.xlu0 %2779
  %2781 = vset.pattern.permute.xlu0 1
  %2782 = vperm.xlu0 %2781, %v2349
  %v2783 = vpop.permute.xlu0 %2782
  %2784 = vset.pattern.permute.xlu0 1
  %2785 = vperm.xlu0 %2784, %v2350
  %v2786 = vpop.permute.xlu0 %2785
  %2787 = vset.pattern.permute.xlu0 1
  %2788 = vperm.xlu0 %2787, %v2351
  %v2789 = vpop.permute.xlu0 %2788
  %2790 = vset.pattern.permute.xlu0 1
  %2791 = vperm.xlu0 %2790, %v2352
  %v2792 = vpop.permute.xlu0 %2791
  %2793 = vset.pattern.permute.xlu0 1
  %2794 = vperm.xlu0 %2793, %v2353
  %v2795 = vpop.permute.xlu0 %2794
  %2796 = vset.pattern.permute.xlu0 1
  %2797 = vperm.xlu0 %2796, %v2354
  %v2798 = vpop.permute.xlu0 %2797
  %2799 = vset.pattern.permute.xlu0 1
  %2800 = vperm.xlu0 %2799, %v2355
  %v2801 = vpop.permute.xlu0 %2800
  %2802 = vset.pattern.permute.xlu0 1
  %2803 = vperm.xlu0 %2802, %v2356
  %v2804 = vpop.permute.xlu0 %2803
  %vm2805 = vcmp.eq.s32.totalorder %v2711, %v337
  %vm2806 = vcmp.eq.s32.totalorder %v2711, %v338
  %vm2807 = vcmp.eq.s32.totalorder %v2714, %v337
  %vm2808 = vcmp.eq.s32.totalorder %v2714, %v338
  %vm2809 = vcmp.eq.s32.totalorder %v2717, %v337
  %vm2810 = vcmp.eq.s32.totalorder %v2717, %v338
  %vm2811 = vcmp.eq.s32.totalorder %v2720, %v337
  %vm2812 = vcmp.eq.s32.totalorder %v2720, %v338
  %vm2813 = vcmp.eq.s32.totalorder %v2723, %v337
  %vm2814 = vcmp.eq.s32.totalorder %v2723, %v338
  %vm2815 = vcmp.eq.s32.totalorder %v2726, %v337
  %vm2816 = vcmp.eq.s32.totalorder %v2726, %v338
  %vm2817 = vcmp.eq.s32.totalorder %v2729, %v337
  %vm2818 = vcmp.eq.s32.totalorder %v2729, %v338
  %vm2819 = vcmp.eq.s32.totalorder %v2732, %v337
  %vm2820 = vcmp.eq.s32.totalorder %v2732, %v338
  %vm2821 = vcmp.eq.s32.totalorder %v2735, %v337
  %vm2822 = vcmp.eq.s32.totalorder %v2735, %v338
  %vm2823 = vcmp.eq.s32.totalorder %v2738, %v337
  %vm2824 = vcmp.eq.s32.totalorder %v2738, %v338
  %vm2825 = vcmp.eq.s32.totalorder %v2741, %v337
  %vm2826 = vcmp.eq.s32.totalorder %v2741, %v338
  %vm2827 = vcmp.eq.s32.totalorder %v2744, %v337
  %vm2828 = vcmp.eq.s32.totalorder %v2744, %v338
  %vm2829 = vcmp.eq.s32.totalorder %v2747, %v337
  %vm2830 = vcmp.eq.s32.totalorder %v2747, %v338
  %vm2831 = vcmp.eq.s32.totalorder %v2750, %v337
  %vm2832 = vcmp.eq.s32.totalorder %v2750, %v338
  %vm2833 = vcmp.eq.s32.totalorder %v2753, %v337
  %vm2834 = vcmp.eq.s32.totalorder %v2753, %v338
  %vm2835 = vcmp.eq.s32.totalorder %v2756, %v337
  %vm2836 = vcmp.eq.s32.totalorder %v2756, %v338
  %vm2837 = vcmp.eq.s32.totalorder %v2759, %v337
  %vm2838 = vcmp.eq.s32.totalorder %v2759, %v338
  %vm2839 = vcmp.eq.s32.totalorder %v2762, %v337
  %vm2840 = vcmp.eq.s32.totalorder %v2762, %v338
  %vm2841 = vcmp.eq.s32.totalorder %v2765, %v337
  %vm2842 = vcmp.eq.s32.totalorder %v2765, %v338
  %vm2843 = vcmp.eq.s32.totalorder %v2768, %v337
  %vm2844 = vcmp.eq.s32.totalorder %v2768, %v338
  %vm2845 = vcmp.eq.s32.totalorder %v2771, %v337
  %vm2846 = vcmp.eq.s32.totalorder %v2771, %v338
  %vm2847 = vcmp.eq.s32.totalorder %v2774, %v337
  %vm2848 = vcmp.eq.s32.totalorder %v2774, %v338
  %vm2849 = vcmp.eq.s32.totalorder %v2777, %v337
  %vm2850 = vcmp.eq.s32.totalorder %v2777, %v338
  %vm2851 = vcmp.eq.s32.totalorder %v2780, %v337
  %vm2852 = vcmp.eq.s32.totalorder %v2780, %v338
  %vm2853 = vcmp.eq.s32.totalorder %v2783, %v337
  %vm2854 = vcmp.eq.s32.totalorder %v2783, %v338
  %vm2855 = vcmp.eq.s32.totalorder %v2786, %v337
  %vm2856 = vcmp.eq.s32.totalorder %v2786, %v338
  %vm2857 = vcmp.eq.s32.totalorder %v2789, %v337
  %vm2858 = vcmp.eq.s32.totalorder %v2789, %v338
  %vm2859 = vcmp.eq.s32.totalorder %v2792, %v337
  %vm2860 = vcmp.eq.s32.totalorder %v2792, %v338
  %vm2861 = vcmp.eq.s32.totalorder %v2795, %v337
  %vm2862 = vcmp.eq.s32.totalorder %v2795, %v338
  %vm2863 = vcmp.eq.s32.totalorder %v2798, %v337
  %vm2864 = vcmp.eq.s32.totalorder %v2798, %v338
  %vm2865 = vcmp.eq.s32.totalorder %v2801, %v337
  %vm2866 = vcmp.eq.s32.totalorder %v2801, %v338
  %vm2867 = vcmp.eq.s32.totalorder %v2804, %v337
  %vm2868 = vcmp.eq.s32.totalorder %v2804, %v338
  %v2869 = vsel %vm2805, 1, 0
  %v2870 = vsel %vm2806, 1, 0
  %v2871 = vsel %vm2807, 1, 0
  %v2872 = vsel %vm2808, 1, 0
  %v2873 = vsel %vm2809, 1, 0
  %v2874 = vsel %vm2810, 1, 0
  %v2875 = vsel %vm2811, 1, 0
  %v2876 = vsel %vm2812, 1, 0
  %v2877 = vsel %vm2813, 1, 0
  %v2878 = vsel %vm2814, 1, 0
  %v2879 = vsel %vm2815, 1, 0
  %v2880 = vsel %vm2816, 1, 0
  %v2881 = vsel %vm2817, 1, 0
  %v2882 = vsel %vm2818, 1, 0
  %v2883 = vsel %vm2819, 1, 0
  %v2884 = vsel %vm2820, 1, 0
  %v2885 = vsel %vm2821, 1, 0
  %v2886 = vsel %vm2822, 1, 0
  %v2887 = vsel %vm2823, 1, 0
  %v2888 = vsel %vm2824, 1, 0
  %v2889 = vsel %vm2825, 1, 0
  %v2890 = vsel %vm2826, 1, 0
  %v2891 = vsel %vm2827, 1, 0
  %v2892 = vsel %vm2828, 1, 0
  %v2893 = vsel %vm2829, 1, 0
  %v2894 = vsel %vm2830, 1, 0
  %v2895 = vsel %vm2831, 1, 0
  %v2896 = vsel %vm2832, 1, 0
  %v2897 = vsel %vm2833, 1, 0
  %v2898 = vsel %vm2834, 1, 0
  %v2899 = vsel %vm2835, 1, 0
  %v2900 = vsel %vm2836, 1, 0
  %v2901 = vsel %vm2837, 1, 0
  %v2902 = vsel %vm2838, 1, 0
  %v2903 = vsel %vm2839, 1, 0
  %v2904 = vsel %vm2840, 1, 0
  %v2905 = vsel %vm2841, 1, 0
  %v2906 = vsel %vm2842, 1, 0
  %v2907 = vsel %vm2843, 1, 0
  %v2908 = vsel %vm2844, 1, 0
  %v2909 = vsel %vm2845, 1, 0
  %v2910 = vsel %vm2846, 1, 0
  %v2911 = vsel %vm2847, 1, 0
  %v2912 = vsel %vm2848, 1, 0
  %v2913 = vsel %vm2849, 1, 0
  %v2914 = vsel %vm2850, 1, 0
  %v2915 = vsel %vm2851, 1, 0
  %v2916 = vsel %vm2852, 1, 0
  %v2917 = vsel %vm2853, 1, 0
  %v2918 = vsel %vm2854, 1, 0
  %v2919 = vsel %vm2855, 1, 0
  %v2920 = vsel %vm2856, 1, 0
  %v2921 = vsel %vm2857, 1, 0
  %v2922 = vsel %vm2858, 1, 0
  %v2923 = vsel %vm2859, 1, 0
  %v2924 = vsel %vm2860, 1, 0
  %v2925 = vsel %vm2861, 1, 0
  %v2926 = vsel %vm2862, 1, 0
  %v2927 = vsel %vm2863, 1, 0
  %v2928 = vsel %vm2864, 1, 0
  %v2929 = vsel %vm2865, 1, 0
  %v2930 = vsel %vm2866, 1, 0
  %v2931 = vsel %vm2867, 1, 0
  %v2932 = vsel %vm2868, 1, 0
  %v2933 = vcvt.s32.f32 %v2869
  %v2934 = vcvt.s32.f32 %v2870
  %v2935 = vcvt.s32.f32 %v2871
  %v2936 = vcvt.s32.f32 %v2872
  %v2937 = vcvt.s32.f32 %v2873
  %v2938 = vcvt.s32.f32 %v2874
  %v2939 = vcvt.s32.f32 %v2875
  %v2940 = vcvt.s32.f32 %v2876
  %v2941 = vcvt.s32.f32 %v2877
  %v2942 = vcvt.s32.f32 %v2878
  %v2943 = vcvt.s32.f32 %v2879
  %v2944 = vcvt.s32.f32 %v2880
  %v2945 = vcvt.s32.f32 %v2881
  %v2946 = vcvt.s32.f32 %v2882
  %v2947 = vcvt.s32.f32 %v2883
  %v2948 = vcvt.s32.f32 %v2884
  %v2949 = vcvt.s32.f32 %v2885
  %v2950 = vcvt.s32.f32 %v2886
  %v2951 = vcvt.s32.f32 %v2887
  %v2952 = vcvt.s32.f32 %v2888
  %v2953 = vcvt.s32.f32 %v2889
  %v2954 = vcvt.s32.f32 %v2890
  %v2955 = vcvt.s32.f32 %v2891
  %v2956 = vcvt.s32.f32 %v2892
  %v2957 = vcvt.s32.f32 %v2893
  %v2958 = vcvt.s32.f32 %v2894
  %v2959 = vcvt.s32.f32 %v2895
  %v2960 = vcvt.s32.f32 %v2896
  %v2961 = vcvt.s32.f32 %v2897
  %v2962 = vcvt.s32.f32 %v2898
  %v2963 = vcvt.s32.f32 %v2899
  %v2964 = vcvt.s32.f32 %v2900
  %v2965 = vcvt.s32.f32 %v2901
  %v2966 = vcvt.s32.f32 %v2902
  %v2967 = vcvt.s32.f32 %v2903
  %v2968 = vcvt.s32.f32 %v2904
  %v2969 = vcvt.s32.f32 %v2905
  %v2970 = vcvt.s32.f32 %v2906
  %v2971 = vcvt.s32.f32 %v2907
  %v2972 = vcvt.s32.f32 %v2908
  %v2973 = vcvt.s32.f32 %v2909
  %v2974 = vcvt.s32.f32 %v2910
  %v2975 = vcvt.s32.f32 %v2911
  %v2976 = vcvt.s32.f32 %v2912
  %v2977 = vcvt.s32.f32 %v2913
  %v2978 = vcvt.s32.f32 %v2914
  %v2979 = vcvt.s32.f32 %v2915
  %v2980 = vcvt.s32.f32 %v2916
  %v2981 = vcvt.s32.f32 %v2917
  %v2982 = vcvt.s32.f32 %v2918
  %v2983 = vcvt.s32.f32 %v2919
  %v2984 = vcvt.s32.f32 %v2920
  %v2985 = vcvt.s32.f32 %v2921
  %v2986 = vcvt.s32.f32 %v2922
  %v2987 = vcvt.s32.f32 %v2923
  %v2988 = vcvt.s32.f32 %v2924
  %v2989 = vcvt.s32.f32 %v2925
  %v2990 = vcvt.s32.f32 %v2926
  %v2991 = vcvt.s32.f32 %v2927
  %v2992 = vcvt.s32.f32 %v2928
  %v2993 = vcvt.s32.f32 %v2929
  %v2994 = vcvt.s32.f32 %v2930
  %v2995 = vcvt.s32.f32 %v2931
  %v2996 = vcvt.s32.f32 %v2932
  %v2997 = vpack.c.bf16 %v2935, %v2933
  %v2998 = vpack.c.bf16 %v2936, %v2934
  %v2999 = vpack.c.bf16 %v2939, %v2937
  %v3000 = vpack.c.bf16 %v2940, %v2938
  %v3001 = vpack.c.bf16 %v2943, %v2941
  %v3002 = vpack.c.bf16 %v2944, %v2942
  %v3003 = vpack.c.bf16 %v2947, %v2945
  %v3004 = vpack.c.bf16 %v2948, %v2946
  %v3005 = vpack.c.bf16 %v2951, %v2949
  %v3006 = vpack.c.bf16 %v2952, %v2950
  %v3007 = vpack.c.bf16 %v2955, %v2953
  %v3008 = vpack.c.bf16 %v2956, %v2954
  %v3009 = vpack.c.bf16 %v2959, %v2957
  %v3010 = vpack.c.bf16 %v2960, %v2958
  %v3011 = vpack.c.bf16 %v2963, %v2961
  %v3012 = vpack.c.bf16 %v2964, %v2962
  %v3013 = vpack.c.bf16 %v2967, %v2965
  %v3014 = vpack.c.bf16 %v2968, %v2966
  %v3015 = vpack.c.bf16 %v2971, %v2969
  %v3016 = vpack.c.bf16 %v2972, %v2970
  %v3017 = vpack.c.bf16 %v2975, %v2973
  %v3018 = vpack.c.bf16 %v2976, %v2974
  %v3019 = vpack.c.bf16 %v2979, %v2977
  %v3020 = vpack.c.bf16 %v2980, %v2978
  %v3021 = vpack.c.bf16 %v2983, %v2981
  %v3022 = vpack.c.bf16 %v2984, %v2982
  %v3023 = vpack.c.bf16 %v2987, %v2985
  %v3024 = vpack.c.bf16 %v2988, %v2986
  %v3025 = vpack.c.bf16 %v2991, %v2989
  %v3026 = vpack.c.bf16 %v2992, %v2990
  %v3027 = vpack.c.bf16 %v2995, %v2993
  %v3028 = vpack.c.bf16 %v2996, %v2994
  %v3029 = vadd.bf16 %v2677, %v2997
  %v3030 = vadd.bf16 %v2678, %v2998
  %v3031 = vadd.bf16 %v2679, %v2999
  %v3032 = vadd.bf16 %v2680, %v3000
  %v3033 = vadd.bf16 %v2681, %v3001
  %v3034 = vadd.bf16 %v2682, %v3002
  %v3035 = vadd.bf16 %v2683, %v3003
  %v3036 = vadd.bf16 %v2684, %v3004
  %v3037 = vadd.bf16 %v2685, %v3005
  %v3038 = vadd.bf16 %v2686, %v3006
  %v3039 = vadd.bf16 %v2687, %v3007
  %v3040 = vadd.bf16 %v2688, %v3008
  %v3041 = vadd.bf16 %v2689, %v3009
  %v3042 = vadd.bf16 %v2690, %v3010
  %v3043 = vadd.bf16 %v2691, %v3011
  %v3044 = vadd.bf16 %v2692, %v3012
  %v3045 = vadd.bf16 %v2693, %v3013
  %v3046 = vadd.bf16 %v2694, %v3014
  %v3047 = vadd.bf16 %v2695, %v3015
  %v3048 = vadd.bf16 %v2696, %v3016
  %v3049 = vadd.bf16 %v2697, %v3017
  %v3050 = vadd.bf16 %v2698, %v3018
  %v3051 = vadd.bf16 %v2699, %v3019
  %v3052 = vadd.bf16 %v2700, %v3020
  %v3053 = vadd.bf16 %v2701, %v3021
  %v3054 = vadd.bf16 %v2702, %v3022
  %v3055 = vadd.bf16 %v2703, %v3023
  %v3056 = vadd.bf16 %v2704, %v3024
  %v3057 = vadd.bf16 %v2705, %v3025
  %v3058 = vadd.bf16 %v2706, %v3026
  %v3059 = vadd.bf16 %v2707, %v3027
  %v3060 = vadd.bf16 %v2708, %v3028
  %3061 = vset.pattern.permute.xlu0 2
  %3062 = vperm.xlu0 %3061, %v2325
  %v3063 = vpop.permute.xlu0 %3062
  %3064 = vset.pattern.permute.xlu0 2
  %3065 = vperm.xlu0 %3064, %v2326
  %v3066 = vpop.permute.xlu0 %3065
  %3067 = vset.pattern.permute.xlu0 2
  %3068 = vperm.xlu0 %3067, %v2327
  %v3069 = vpop.permute.xlu0 %3068
  %3070 = vset.pattern.permute.xlu0 2
  %3071 = vperm.xlu0 %3070, %v2328
  %v3072 = vpop.permute.xlu0 %3071
  %3073 = vset.pattern.permute.xlu0 2
  %3074 = vperm.xlu0 %3073, %v2329
  %v3075 = vpop.permute.xlu0 %3074
  %3076 = vset.pattern.permute.xlu0 2
  %3077 = vperm.xlu0 %3076, %v2330
  %v3078 = vpop.permute.xlu0 %3077
  %3079 = vset.pattern.permute.xlu0 2
  %3080 = vperm.xlu0 %3079, %v2331
  %v3081 = vpop.permute.xlu0 %3080
  %3082 = vset.pattern.permute.xlu0 2
  %3083 = vperm.xlu0 %3082, %v2332
  %v3084 = vpop.permute.xlu0 %3083
  %3085 = vset.pattern.permute.xlu0 2
  %3086 = vperm.xlu0 %3085, %v2333
  %v3087 = vpop.permute.xlu0 %3086
  %3088 = vset.pattern.permute.xlu0 2
  %3089 = vperm.xlu0 %3088, %v2334
  %v3090 = vpop.permute.xlu0 %3089
  %3091 = vset.pattern.permute.xlu0 2
  %3092 = vperm.xlu0 %3091, %v2335
  %v3093 = vpop.permute.xlu0 %3092
  %3094 = vset.pattern.permute.xlu0 2
  %3095 = vperm.xlu0 %3094, %v2336
  %v3096 = vpop.permute.xlu0 %3095
  %3097 = vset.pattern.permute.xlu0 2
  %3098 = vperm.xlu0 %3097, %v2337
  %v3099 = vpop.permute.xlu0 %3098
  %3100 = vset.pattern.permute.xlu0 2
  %3101 = vperm.xlu0 %3100, %v2338
  %v3102 = vpop.permute.xlu0 %3101
  %3103 = vset.pattern.permute.xlu0 2
  %3104 = vperm.xlu0 %3103, %v2339
  %v3105 = vpop.permute.xlu0 %3104
  %3106 = vset.pattern.permute.xlu0 2
  %3107 = vperm.xlu0 %3106, %v2340
  %v3108 = vpop.permute.xlu0 %3107
  %3109 = vset.pattern.permute.xlu0 2
  %3110 = vperm.xlu0 %3109, %v2341
  %v3111 = vpop.permute.xlu0 %3110
  %3112 = vset.pattern.permute.xlu0 2
  %3113 = vperm.xlu0 %3112, %v2342
  %v3114 = vpop.permute.xlu0 %3113
  %3115 = vset.pattern.permute.xlu0 2
  %3116 = vperm.xlu0 %3115, %v2343
  %v3117 = vpop.permute.xlu0 %3116
  %3118 = vset.pattern.permute.xlu0 2
  %3119 = vperm.xlu0 %3118, %v2344
  %v3120 = vpop.permute.xlu0 %3119
  %3121 = vset.pattern.permute.xlu0 2
  %3122 = vperm.xlu0 %3121, %v2345
  %v3123 = vpop.permute.xlu0 %3122
  %3124 = vset.pattern.permute.xlu0 2
  %3125 = vperm.xlu0 %3124, %v2346
  %v3126 = vpop.permute.xlu0 %3125
  %3127 = vset.pattern.permute.xlu0 2
  %3128 = vperm.xlu0 %3127, %v2347
  %v3129 = vpop.permute.xlu0 %3128
  %3130 = vset.pattern.permute.xlu0 2
  %3131 = vperm.xlu0 %3130, %v2348
  %v3132 = vpop.permute.xlu0 %3131
  %3133 = vset.pattern.permute.xlu0 2
  %3134 = vperm.xlu0 %3133, %v2349
  %v3135 = vpop.permute.xlu0 %3134
  %3136 = vset.pattern.permute.xlu0 2
  %3137 = vperm.xlu0 %3136, %v2350
  %v3138 = vpop.permute.xlu0 %3137
  %3139 = vset.pattern.permute.xlu0 2
  %3140 = vperm.xlu0 %3139, %v2351
  %v3141 = vpop.permute.xlu0 %3140
  %3142 = vset.pattern.permute.xlu0 2
  %3143 = vperm.xlu0 %3142, %v2352
  %v3144 = vpop.permute.xlu0 %3143
  %3145 = vset.pattern.permute.xlu0 2
  %3146 = vperm.xlu0 %3145, %v2353
  %v3147 = vpop.permute.xlu0 %3146
  %3148 = vset.pattern.permute.xlu0 2
  %3149 = vperm.xlu0 %3148, %v2354
  %v3150 = vpop.permute.xlu0 %3149
  %3151 = vset.pattern.permute.xlu0 2
  %3152 = vperm.xlu0 %3151, %v2355
  %v3153 = vpop.permute.xlu0 %3152
  %3154 = vset.pattern.permute.xlu0 2
  %3155 = vperm.xlu0 %3154, %v2356
  %v3156 = vpop.permute.xlu0 %3155
  %vm3157 = vcmp.eq.s32.totalorder %v3063, %v337
  %vm3158 = vcmp.eq.s32.totalorder %v3063, %v338
  %vm3159 = vcmp.eq.s32.totalorder %v3066, %v337
  %vm3160 = vcmp.eq.s32.totalorder %v3066, %v338
  %vm3161 = vcmp.eq.s32.totalorder %v3069, %v337
  %vm3162 = vcmp.eq.s32.totalorder %v3069, %v338
  %vm3163 = vcmp.eq.s32.totalorder %v3072, %v337
  %vm3164 = vcmp.eq.s32.totalorder %v3072, %v338
  %vm3165 = vcmp.eq.s32.totalorder %v3075, %v337
  %vm3166 = vcmp.eq.s32.totalorder %v3075, %v338
  %vm3167 = vcmp.eq.s32.totalorder %v3078, %v337
  %vm3168 = vcmp.eq.s32.totalorder %v3078, %v338
  %vm3169 = vcmp.eq.s32.totalorder %v3081, %v337
  %vm3170 = vcmp.eq.s32.totalorder %v3081, %v338
  %vm3171 = vcmp.eq.s32.totalorder %v3084, %v337
  %vm3172 = vcmp.eq.s32.totalorder %v3084, %v338
  %vm3173 = vcmp.eq.s32.totalorder %v3087, %v337
  %vm3174 = vcmp.eq.s32.totalorder %v3087, %v338
  %vm3175 = vcmp.eq.s32.totalorder %v3090, %v337
  %vm3176 = vcmp.eq.s32.totalorder %v3090, %v338
  %vm3177 = vcmp.eq.s32.totalorder %v3093, %v337
  %vm3178 = vcmp.eq.s32.totalorder %v3093, %v338
  %vm3179 = vcmp.eq.s32.totalorder %v3096, %v337
  %vm3180 = vcmp.eq.s32.totalorder %v3096, %v338
  %vm3181 = vcmp.eq.s32.totalorder %v3099, %v337
  %vm3182 = vcmp.eq.s32.totalorder %v3099, %v338
  %vm3183 = vcmp.eq.s32.totalorder %v3102, %v337
  %vm3184 = vcmp.eq.s32.totalorder %v3102, %v338
  %vm3185 = vcmp.eq.s32.totalorder %v3105, %v337
  %vm3186 = vcmp.eq.s32.totalorder %v3105, %v338
  %vm3187 = vcmp.eq.s32.totalorder %v3108, %v337
  %vm3188 = vcmp.eq.s32.totalorder %v3108, %v338
  %vm3189 = vcmp.eq.s32.totalorder %v3111, %v337
  %vm3190 = vcmp.eq.s32.totalorder %v3111, %v338
  %vm3191 = vcmp.eq.s32.totalorder %v3114, %v337
  %vm3192 = vcmp.eq.s32.totalorder %v3114, %v338
  %vm3193 = vcmp.eq.s32.totalorder %v3117, %v337
  %vm3194 = vcmp.eq.s32.totalorder %v3117, %v338
  %vm3195 = vcmp.eq.s32.totalorder %v3120, %v337
  %vm3196 = vcmp.eq.s32.totalorder %v3120, %v338
  %vm3197 = vcmp.eq.s32.totalorder %v3123, %v337
  %vm3198 = vcmp.eq.s32.totalorder %v3123, %v338
  %vm3199 = vcmp.eq.s32.totalorder %v3126, %v337
  %vm3200 = vcmp.eq.s32.totalorder %v3126, %v338
  %vm3201 = vcmp.eq.s32.totalorder %v3129, %v337
  %vm3202 = vcmp.eq.s32.totalorder %v3129, %v338
  %vm3203 = vcmp.eq.s32.totalorder %v3132, %v337
  %vm3204 = vcmp.eq.s32.totalorder %v3132, %v338
  %vm3205 = vcmp.eq.s32.totalorder %v3135, %v337
  %vm3206 = vcmp.eq.s32.totalorder %v3135, %v338
  %vm3207 = vcmp.eq.s32.totalorder %v3138, %v337
  %vm3208 = vcmp.eq.s32.totalorder %v3138, %v338
  %vm3209 = vcmp.eq.s32.totalorder %v3141, %v337
  %vm3210 = vcmp.eq.s32.totalorder %v3141, %v338
  %vm3211 = vcmp.eq.s32.totalorder %v3144, %v337
  %vm3212 = vcmp.eq.s32.totalorder %v3144, %v338
  %vm3213 = vcmp.eq.s32.totalorder %v3147, %v337
  %vm3214 = vcmp.eq.s32.totalorder %v3147, %v338
  %vm3215 = vcmp.eq.s32.totalorder %v3150, %v337
  %vm3216 = vcmp.eq.s32.totalorder %v3150, %v338
  %vm3217 = vcmp.eq.s32.totalorder %v3153, %v337
  %vm3218 = vcmp.eq.s32.totalorder %v3153, %v338
  %vm3219 = vcmp.eq.s32.totalorder %v3156, %v337
  %vm3220 = vcmp.eq.s32.totalorder %v3156, %v338
  %v3221 = vsel %vm3157, 1, 0
  %v3222 = vsel %vm3158, 1, 0
  %v3223 = vsel %vm3159, 1, 0
  %v3224 = vsel %vm3160, 1, 0
  %v3225 = vsel %vm3161, 1, 0
  %v3226 = vsel %vm3162, 1, 0
  %v3227 = vsel %vm3163, 1, 0
  %v3228 = vsel %vm3164, 1, 0
  %v3229 = vsel %vm3165, 1, 0
  %v3230 = vsel %vm3166, 1, 0
  %v3231 = vsel %vm3167, 1, 0
  %v3232 = vsel %vm3168, 1, 0
  %v3233 = vsel %vm3169, 1, 0
  %v3234 = vsel %vm3170, 1, 0
  %v3235 = vsel %vm3171, 1, 0
  %v3236 = vsel %vm3172, 1, 0
  %v3237 = vsel %vm3173, 1, 0
  %v3238 = vsel %vm3174, 1, 0
  %v3239 = vsel %vm3175, 1, 0
  %v3240 = vsel %vm3176, 1, 0
  %v3241 = vsel %vm3177, 1, 0
  %v3242 = vsel %vm3178, 1, 0
  %v3243 = vsel %vm3179, 1, 0
  %v3244 = vsel %vm3180, 1, 0
  %v3245 = vsel %vm3181, 1, 0
  %v3246 = vsel %vm3182, 1, 0
  %v3247 = vsel %vm3183, 1, 0
  %v3248 = vsel %vm3184, 1, 0
  %v3249 = vsel %vm3185, 1, 0
  %v3250 = vsel %vm3186, 1, 0
  %v3251 = vsel %vm3187, 1, 0
  %v3252 = vsel %vm3188, 1, 0
  %v3253 = vsel %vm3189, 1, 0
  %v3254 = vsel %vm3190, 1, 0
  %v3255 = vsel %vm3191, 1, 0
  %v3256 = vsel %vm3192, 1, 0
  %v3257 = vsel %vm3193, 1, 0
  %v3258 = vsel %vm3194, 1, 0
  %v3259 = vsel %vm3195, 1, 0
  %v3260 = vsel %vm3196, 1, 0
  %v3261 = vsel %vm3197, 1, 0
  %v3262 = vsel %vm3198, 1, 0
  %v3263 = vsel %vm3199, 1, 0
  %v3264 = vsel %vm3200, 1, 0
  %v3265 = vsel %vm3201, 1, 0
  %v3266 = vsel %vm3202, 1, 0
  %v3267 = vsel %vm3203, 1, 0
  %v3268 = vsel %vm3204, 1, 0
  %v3269 = vsel %vm3205, 1, 0
  %v3270 = vsel %vm3206, 1, 0
  %v3271 = vsel %vm3207, 1, 0
  %v3272 = vsel %vm3208, 1, 0
  %v3273 = vsel %vm3209, 1, 0
  %v3274 = vsel %vm3210, 1, 0
  %v3275 = vsel %vm3211, 1, 0
  %v3276 = vsel %vm3212, 1, 0
  %v3277 = vsel %vm3213, 1, 0
  %v3278 = vsel %vm3214, 1, 0
  %v3279 = vsel %vm3215, 1, 0
  %v3280 = vsel %vm3216, 1, 0
  %v3281 = vsel %vm3217, 1, 0
  %v3282 = vsel %vm3218, 1, 0
  %v3283 = vsel %vm3219, 1, 0
  %v3284 = vsel %vm3220, 1, 0
  %v3285 = vcvt.s32.f32 %v3221
  %v3286 = vcvt.s32.f32 %v3222
  %v3287 = vcvt.s32.f32 %v3223
  %v3288 = vcvt.s32.f32 %v3224
  %v3289 = vcvt.s32.f32 %v3225
  %v3290 = vcvt.s32.f32 %v3226
  %v3291 = vcvt.s32.f32 %v3227
  %v3292 = vcvt.s32.f32 %v3228
  %v3293 = vcvt.s32.f32 %v3229
  %v3294 = vcvt.s32.f32 %v3230
  %v3295 = vcvt.s32.f32 %v3231
  %v3296 = vcvt.s32.f32 %v3232
  %v3297 = vcvt.s32.f32 %v3233
  %v3298 = vcvt.s32.f32 %v3234
  %v3299 = vcvt.s32.f32 %v3235
  %v3300 = vcvt.s32.f32 %v3236
  %v3301 = vcvt.s32.f32 %v3237
  %v3302 = vcvt.s32.f32 %v3238
  %v3303 = vcvt.s32.f32 %v3239
  %v3304 = vcvt.s32.f32 %v3240
  %v3305 = vcvt.s32.f32 %v3241
  %v3306 = vcvt.s32.f32 %v3242
  %v3307 = vcvt.s32.f32 %v3243
  %v3308 = vcvt.s32.f32 %v3244
  %v3309 = vcvt.s32.f32 %v3245
  %v3310 = vcvt.s32.f32 %v3246
  %v3311 = vcvt.s32.f32 %v3247
  %v3312 = vcvt.s32.f32 %v3248
  %v3313 = vcvt.s32.f32 %v3249
  %v3314 = vcvt.s32.f32 %v3250
  %v3315 = vcvt.s32.f32 %v3251
  %v3316 = vcvt.s32.f32 %v3252
  %v3317 = vcvt.s32.f32 %v3253
  %v3318 = vcvt.s32.f32 %v3254
  %v3319 = vcvt.s32.f32 %v3255
  %v3320 = vcvt.s32.f32 %v3256
  %v3321 = vcvt.s32.f32 %v3257
  %v3322 = vcvt.s32.f32 %v3258
  %v3323 = vcvt.s32.f32 %v3259
  %v3324 = vcvt.s32.f32 %v3260
  %v3325 = vcvt.s32.f32 %v3261
  %v3326 = vcvt.s32.f32 %v3262
  %v3327 = vcvt.s32.f32 %v3263
  %v3328 = vcvt.s32.f32 %v3264
  %v3329 = vcvt.s32.f32 %v3265
  %v3330 = vcvt.s32.f32 %v3266
  %v3331 = vcvt.s32.f32 %v3267
  %v3332 = vcvt.s32.f32 %v3268
  %v3333 = vcvt.s32.f32 %v3269
  %v3334 = vcvt.s32.f32 %v3270
  %v3335 = vcvt.s32.f32 %v3271
  %v3336 = vcvt.s32.f32 %v3272
  %v3337 = vcvt.s32.f32 %v3273
  %v3338 = vcvt.s32.f32 %v3274
  %v3339 = vcvt.s32.f32 %v3275
  %v3340 = vcvt.s32.f32 %v3276
  %v3341 = vcvt.s32.f32 %v3277
  %v3342 = vcvt.s32.f32 %v3278
  %v3343 = vcvt.s32.f32 %v3279
  %v3344 = vcvt.s32.f32 %v3280
  %v3345 = vcvt.s32.f32 %v3281
  %v3346 = vcvt.s32.f32 %v3282
  %v3347 = vcvt.s32.f32 %v3283
  %v3348 = vcvt.s32.f32 %v3284
  %v3349 = vpack.c.bf16 %v3287, %v3285
  %v3350 = vpack.c.bf16 %v3288, %v3286
  %v3351 = vpack.c.bf16 %v3291, %v3289
  %v3352 = vpack.c.bf16 %v3292, %v3290
  %v3353 = vpack.c.bf16 %v3295, %v3293
  %v3354 = vpack.c.bf16 %v3296, %v3294
  %v3355 = vpack.c.bf16 %v3299, %v3297
  %v3356 = vpack.c.bf16 %v3300, %v3298
  %v3357 = vpack.c.bf16 %v3303, %v3301
  %v3358 = vpack.c.bf16 %v3304, %v3302
  %v3359 = vpack.c.bf16 %v3307, %v3305
  %v3360 = vpack.c.bf16 %v3308, %v3306
  %v3361 = vpack.c.bf16 %v3311, %v3309
  %v3362 = vpack.c.bf16 %v3312, %v3310
  %v3363 = vpack.c.bf16 %v3315, %v3313
  %v3364 = vpack.c.bf16 %v3316, %v3314
  %v3365 = vpack.c.bf16 %v3319, %v3317
  %v3366 = vpack.c.bf16 %v3320, %v3318
  %v3367 = vpack.c.bf16 %v3323, %v3321
  %v3368 = vpack.c.bf16 %v3324, %v3322
  %v3369 = vpack.c.bf16 %v3327, %v3325
  %v3370 = vpack.c.bf16 %v3328, %v3326
  %v3371 = vpack.c.bf16 %v3331, %v3329
  %v3372 = vpack.c.bf16 %v3332, %v3330
  %v3373 = vpack.c.bf16 %v3335, %v3333
  %v3374 = vpack.c.bf16 %v3336, %v3334
  %v3375 = vpack.c.bf16 %v3339, %v3337
  %v3376 = vpack.c.bf16 %v3340, %v3338
  %v3377 = vpack.c.bf16 %v3343, %v3341
  %v3378 = vpack.c.bf16 %v3344, %v3342
  %v3379 = vpack.c.bf16 %v3347, %v3345
  %v3380 = vpack.c.bf16 %v3348, %v3346
  %v3381 = vadd.bf16 %v3029, %v3349
  %v3382 = vadd.bf16 %v3030, %v3350
  %v3383 = vadd.bf16 %v3031, %v3351
  %v3384 = vadd.bf16 %v3032, %v3352
  %v3385 = vadd.bf16 %v3033, %v3353
  %v3386 = vadd.bf16 %v3034, %v3354
  %v3387 = vadd.bf16 %v3035, %v3355
  %v3388 = vadd.bf16 %v3036, %v3356
  %v3389 = vadd.bf16 %v3037, %v3357
  %v3390 = vadd.bf16 %v3038, %v3358
  %v3391 = vadd.bf16 %v3039, %v3359
  %v3392 = vadd.bf16 %v3040, %v3360
  %v3393 = vadd.bf16 %v3041, %v3361
  %v3394 = vadd.bf16 %v3042, %v3362
  %v3395 = vadd.bf16 %v3043, %v3363
  %v3396 = vadd.bf16 %v3044, %v3364
  %v3397 = vadd.bf16 %v3045, %v3365
  %v3398 = vadd.bf16 %v3046, %v3366
  %v3399 = vadd.bf16 %v3047, %v3367
  %v3400 = vadd.bf16 %v3048, %v3368
  %v3401 = vadd.bf16 %v3049, %v3369
  %v3402 = vadd.bf16 %v3050, %v3370
  %v3403 = vadd.bf16 %v3051, %v3371
  %v3404 = vadd.bf16 %v3052, %v3372
  %v3405 = vadd.bf16 %v3053, %v3373
  %v3406 = vadd.bf16 %v3054, %v3374
  %v3407 = vadd.bf16 %v3055, %v3375
  %v3408 = vadd.bf16 %v3056, %v3376
  %v3409 = vadd.bf16 %v3057, %v3377
  %v3410 = vadd.bf16 %v3058, %v3378
  %v3411 = vadd.bf16 %v3059, %v3379
  %v3412 = vadd.bf16 %v3060, %v3380
  %3413 = vset.pattern.permute.xlu0 3
  %3414 = vperm.xlu0 %3413, %v2325
  %v3415 = vpop.permute.xlu0 %3414
  %3416 = vset.pattern.permute.xlu0 3
  %3417 = vperm.xlu0 %3416, %v2326
  %v3418 = vpop.permute.xlu0 %3417
  %3419 = vset.pattern.permute.xlu0 3
  %3420 = vperm.xlu0 %3419, %v2327
  %v3421 = vpop.permute.xlu0 %3420
  %3422 = vset.pattern.permute.xlu0 3
  %3423 = vperm.xlu0 %3422, %v2328
  %v3424 = vpop.permute.xlu0 %3423
  %3425 = vset.pattern.permute.xlu0 3
  %3426 = vperm.xlu0 %3425, %v2329
  %v3427 = vpop.permute.xlu0 %3426
  %3428 = vset.pattern.permute.xlu0 3
  %3429 = vperm.xlu0 %3428, %v2330
  %v3430 = vpop.permute.xlu0 %3429
  %3431 = vset.pattern.permute.xlu0 3
  %3432 = vperm.xlu0 %3431, %v2331
  %v3433 = vpop.permute.xlu0 %3432
  %3434 = vset.pattern.permute.xlu0 3
  %3435 = vperm.xlu0 %3434, %v2332
  %v3436 = vpop.permute.xlu0 %3435
  %3437 = vset.pattern.permute.xlu0 3
  %3438 = vperm.xlu0 %3437, %v2333
  %v3439 = vpop.permute.xlu0 %3438
  %3440 = vset.pattern.permute.xlu0 3
  %3441 = vperm.xlu0 %3440, %v2334
  %v3442 = vpop.permute.xlu0 %3441
  %3443 = vset.pattern.permute.xlu0 3
  %3444 = vperm.xlu0 %3443, %v2335
  %v3445 = vpop.permute.xlu0 %3444
  %3446 = vset.pattern.permute.xlu0 3
  %3447 = vperm.xlu0 %3446, %v2336
  %v3448 = vpop.permute.xlu0 %3447
  %3449 = vset.pattern.permute.xlu0 3
  %3450 = vperm.xlu0 %3449, %v2337
  %v3451 = vpop.permute.xlu0 %3450
  %3452 = vset.pattern.permute.xlu0 3
  %3453 = vperm.xlu0 %3452, %v2338
  %v3454 = vpop.permute.xlu0 %3453
  %3455 = vset.pattern.permute.xlu0 3
  %3456 = vperm.xlu0 %3455, %v2339
  %v3457 = vpop.permute.xlu0 %3456
  %3458 = vset.pattern.permute.xlu0 3
  %3459 = vperm.xlu0 %3458, %v2340
  %v3460 = vpop.permute.xlu0 %3459
  %3461 = vset.pattern.permute.xlu0 3
  %3462 = vperm.xlu0 %3461, %v2341
  %v3463 = vpop.permute.xlu0 %3462
  %3464 = vset.pattern.permute.xlu0 3
  %3465 = vperm.xlu0 %3464, %v2342
  %v3466 = vpop.permute.xlu0 %3465
  %3467 = vset.pattern.permute.xlu0 3
  %3468 = vperm.xlu0 %3467, %v2343
  %v3469 = vpop.permute.xlu0 %3468
  %3470 = vset.pattern.permute.xlu0 3
  %3471 = vperm.xlu0 %3470, %v2344
  %v3472 = vpop.permute.xlu0 %3471
  %3473 = vset.pattern.permute.xlu0 3
  %3474 = vperm.xlu0 %3473, %v2345
  %v3475 = vpop.permute.xlu0 %3474
  %3476 = vset.pattern.permute.xlu0 3
  %3477 = vperm.xlu0 %3476, %v2346
  %v3478 = vpop.permute.xlu0 %3477
  %3479 = vset.pattern.permute.xlu0 3
  %3480 = vperm.xlu0 %3479, %v2347
  %v3481 = vpop.permute.xlu0 %3480
  %3482 = vset.pattern.permute.xlu0 3
  %3483 = vperm.xlu0 %3482, %v2348
  %v3484 = vpop.permute.xlu0 %3483
  %3485 = vset.pattern.permute.xlu0 3
  %3486 = vperm.xlu0 %3485, %v2349
  %v3487 = vpop.permute.xlu0 %3486
  %3488 = vset.pattern.permute.xlu0 3
  %3489 = vperm.xlu0 %3488, %v2350
  %v3490 = vpop.permute.xlu0 %3489
  %3491 = vset.pattern.permute.xlu0 3
  %3492 = vperm.xlu0 %3491, %v2351
  %v3493 = vpop.permute.xlu0 %3492
  %3494 = vset.pattern.permute.xlu0 3
  %3495 = vperm.xlu0 %3494, %v2352
  %v3496 = vpop.permute.xlu0 %3495
  %3497 = vset.pattern.permute.xlu0 3
  %3498 = vperm.xlu0 %3497, %v2353
  %v3499 = vpop.permute.xlu0 %3498
  %3500 = vset.pattern.permute.xlu0 3
  %3501 = vperm.xlu0 %3500, %v2354
  %v3502 = vpop.permute.xlu0 %3501
  %3503 = vset.pattern.permute.xlu0 3
  %3504 = vperm.xlu0 %3503, %v2355
  %v3505 = vpop.permute.xlu0 %3504
  %3506 = vset.pattern.permute.xlu0 3
  %3507 = vperm.xlu0 %3506, %v2356
  %v3508 = vpop.permute.xlu0 %3507
  %vm3509 = vcmp.eq.s32.totalorder %v3415, %v337
  %vm3510 = vcmp.eq.s32.totalorder %v3415, %v338
  %vm3511 = vcmp.eq.s32.totalorder %v3418, %v337
  %vm3512 = vcmp.eq.s32.totalorder %v3418, %v338
  %vm3513 = vcmp.eq.s32.totalorder %v3421, %v337
  %vm3514 = vcmp.eq.s32.totalorder %v3421, %v338
  %vm3515 = vcmp.eq.s32.totalorder %v3424, %v337
  %vm3516 = vcmp.eq.s32.totalorder %v3424, %v338
  %vm3517 = vcmp.eq.s32.totalorder %v3427, %v337
  %vm3518 = vcmp.eq.s32.totalorder %v3427, %v338
  %vm3519 = vcmp.eq.s32.totalorder %v3430, %v337
  %vm3520 = vcmp.eq.s32.totalorder %v3430, %v338
  %vm3521 = vcmp.eq.s32.totalorder %v3433, %v337
  %vm3522 = vcmp.eq.s32.totalorder %v3433, %v338
  %vm3523 = vcmp.eq.s32.totalorder %v3436, %v337
  %vm3524 = vcmp.eq.s32.totalorder %v3436, %v338
  %vm3525 = vcmp.eq.s32.totalorder %v3439, %v337
  %vm3526 = vcmp.eq.s32.totalorder %v3439, %v338
  %vm3527 = vcmp.eq.s32.totalorder %v3442, %v337
  %vm3528 = vcmp.eq.s32.totalorder %v3442, %v338
  %vm3529 = vcmp.eq.s32.totalorder %v3445, %v337
  %vm3530 = vcmp.eq.s32.totalorder %v3445, %v338
  %vm3531 = vcmp.eq.s32.totalorder %v3448, %v337
  %vm3532 = vcmp.eq.s32.totalorder %v3448, %v338
  %vm3533 = vcmp.eq.s32.totalorder %v3451, %v337
  %vm3534 = vcmp.eq.s32.totalorder %v3451, %v338
  %vm3535 = vcmp.eq.s32.totalorder %v3454, %v337
  %vm3536 = vcmp.eq.s32.totalorder %v3454, %v338
  %vm3537 = vcmp.eq.s32.totalorder %v3457, %v337
  %vm3538 = vcmp.eq.s32.totalorder %v3457, %v338
  %vm3539 = vcmp.eq.s32.totalorder %v3460, %v337
  %vm3540 = vcmp.eq.s32.totalorder %v3460, %v338
  %vm3541 = vcmp.eq.s32.totalorder %v3463, %v337
  %vm3542 = vcmp.eq.s32.totalorder %v3463, %v338
  %vm3543 = vcmp.eq.s32.totalorder %v3466, %v337
  %vm3544 = vcmp.eq.s32.totalorder %v3466, %v338
  %vm3545 = vcmp.eq.s32.totalorder %v3469, %v337
  %vm3546 = vcmp.eq.s32.totalorder %v3469, %v338
  %vm3547 = vcmp.eq.s32.totalorder %v3472, %v337
  %vm3548 = vcmp.eq.s32.totalorder %v3472, %v338
  %vm3549 = vcmp.eq.s32.totalorder %v3475, %v337
  %vm3550 = vcmp.eq.s32.totalorder %v3475, %v338
  %vm3551 = vcmp.eq.s32.totalorder %v3478, %v337
  %vm3552 = vcmp.eq.s32.totalorder %v3478, %v338
  %vm3553 = vcmp.eq.s32.totalorder %v3481, %v337
  %vm3554 = vcmp.eq.s32.totalorder %v3481, %v338
  %vm3555 = vcmp.eq.s32.totalorder %v3484, %v337
  %vm3556 = vcmp.eq.s32.totalorder %v3484, %v338
  %vm3557 = vcmp.eq.s32.totalorder %v3487, %v337
  %vm3558 = vcmp.eq.s32.totalorder %v3487, %v338
  %vm3559 = vcmp.eq.s32.totalorder %v3490, %v337
  %vm3560 = vcmp.eq.s32.totalorder %v3490, %v338
  %vm3561 = vcmp.eq.s32.totalorder %v3493, %v337
  %vm3562 = vcmp.eq.s32.totalorder %v3493, %v338
  %vm3563 = vcmp.eq.s32.totalorder %v3496, %v337
  %vm3564 = vcmp.eq.s32.totalorder %v3496, %v338
  %vm3565 = vcmp.eq.s32.totalorder %v3499, %v337
  %vm3566 = vcmp.eq.s32.totalorder %v3499, %v338
  %vm3567 = vcmp.eq.s32.totalorder %v3502, %v337
  %vm3568 = vcmp.eq.s32.totalorder %v3502, %v338
  %vm3569 = vcmp.eq.s32.totalorder %v3505, %v337
  %vm3570 = vcmp.eq.s32.totalorder %v3505, %v338
  %vm3571 = vcmp.eq.s32.totalorder %v3508, %v337
  %vm3572 = vcmp.eq.s32.totalorder %v3508, %v338
  %v3573 = vsel %vm3509, 1, 0
  %v3574 = vsel %vm3510, 1, 0
  %v3575 = vsel %vm3511, 1, 0
  %v3576 = vsel %vm3512, 1, 0
  %v3577 = vsel %vm3513, 1, 0
  %v3578 = vsel %vm3514, 1, 0
  %v3579 = vsel %vm3515, 1, 0
  %v3580 = vsel %vm3516, 1, 0
  %v3581 = vsel %vm3517, 1, 0
  %v3582 = vsel %vm3518, 1, 0
  %v3583 = vsel %vm3519, 1, 0
  %v3584 = vsel %vm3520, 1, 0
  %v3585 = vsel %vm3521, 1, 0
  %v3586 = vsel %vm3522, 1, 0
  %v3587 = vsel %vm3523, 1, 0
  %v3588 = vsel %vm3524, 1, 0
  %v3589 = vsel %vm3525, 1, 0
  %v3590 = vsel %vm3526, 1, 0
  %v3591 = vsel %vm3527, 1, 0
  %v3592 = vsel %vm3528, 1, 0
  %v3593 = vsel %vm3529, 1, 0
  %v3594 = vsel %vm3530, 1, 0
  %v3595 = vsel %vm3531, 1, 0
  %v3596 = vsel %vm3532, 1, 0
  %v3597 = vsel %vm3533, 1, 0
  %v3598 = vsel %vm3534, 1, 0
  %v3599 = vsel %vm3535, 1, 0
  %v3600 = vsel %vm3536, 1, 0
  %v3601 = vsel %vm3537, 1, 0
  %v3602 = vsel %vm3538, 1, 0
  %v3603 = vsel %vm3539, 1, 0
  %v3604 = vsel %vm3540, 1, 0
  %v3605 = vsel %vm3541, 1, 0
  %v3606 = vsel %vm3542, 1, 0
  %v3607 = vsel %vm3543, 1, 0
  %v3608 = vsel %vm3544, 1, 0
  %v3609 = vsel %vm3545, 1, 0
  %v3610 = vsel %vm3546, 1, 0
  %v3611 = vsel %vm3547, 1, 0
  %v3612 = vsel %vm3548, 1, 0
  %v3613 = vsel %vm3549, 1, 0
  %v3614 = vsel %vm3550, 1, 0
  %v3615 = vsel %vm3551, 1, 0
  %v3616 = vsel %vm3552, 1, 0
  %v3617 = vsel %vm3553, 1, 0
  %v3618 = vsel %vm3554, 1, 0
  %v3619 = vsel %vm3555, 1, 0
  %v3620 = vsel %vm3556, 1, 0
  %v3621 = vsel %vm3557, 1, 0
  %v3622 = vsel %vm3558, 1, 0
  %v3623 = vsel %vm3559, 1, 0
  %v3624 = vsel %vm3560, 1, 0
  %v3625 = vsel %vm3561, 1, 0
  %v3626 = vsel %vm3562, 1, 0
  %v3627 = vsel %vm3563, 1, 0
  %v3628 = vsel %vm3564, 1, 0
  %v3629 = vsel %vm3565, 1, 0
  %v3630 = vsel %vm3566, 1, 0
  %v3631 = vsel %vm3567, 1, 0
  %v3632 = vsel %vm3568, 1, 0
  %v3633 = vsel %vm3569, 1, 0
  %v3634 = vsel %vm3570, 1, 0
  %v3635 = vsel %vm3571, 1, 0
  %v3636 = vsel %vm3572, 1, 0
  %v3637 = vcvt.s32.f32 %v3573
  %v3638 = vcvt.s32.f32 %v3574
  %v3639 = vcvt.s32.f32 %v3575
  %v3640 = vcvt.s32.f32 %v3576
  %v3641 = vcvt.s32.f32 %v3577
  %v3642 = vcvt.s32.f32 %v3578
  %v3643 = vcvt.s32.f32 %v3579
  %v3644 = vcvt.s32.f32 %v3580
  %v3645 = vcvt.s32.f32 %v3581
  %v3646 = vcvt.s32.f32 %v3582
  %v3647 = vcvt.s32.f32 %v3583
  %v3648 = vcvt.s32.f32 %v3584
  %v3649 = vcvt.s32.f32 %v3585
  %v3650 = vcvt.s32.f32 %v3586
  %v3651 = vcvt.s32.f32 %v3587
  %v3652 = vcvt.s32.f32 %v3588
  %v3653 = vcvt.s32.f32 %v3589
  %v3654 = vcvt.s32.f32 %v3590
  %v3655 = vcvt.s32.f32 %v3591
  %v3656 = vcvt.s32.f32 %v3592
  %v3657 = vcvt.s32.f32 %v3593
  %v3658 = vcvt.s32.f32 %v3594
  %v3659 = vcvt.s32.f32 %v3595
  %v3660 = vcvt.s32.f32 %v3596
  %v3661 = vcvt.s32.f32 %v3597
  %v3662 = vcvt.s32.f32 %v3598
  %v3663 = vcvt.s32.f32 %v3599
  %v3664 = vcvt.s32.f32 %v3600
  %v3665 = vcvt.s32.f32 %v3601
  %v3666 = vcvt.s32.f32 %v3602
  %v3667 = vcvt.s32.f32 %v3603
  %v3668 = vcvt.s32.f32 %v3604
  %v3669 = vcvt.s32.f32 %v3605
  %v3670 = vcvt.s32.f32 %v3606
  %v3671 = vcvt.s32.f32 %v3607
  %v3672 = vcvt.s32.f32 %v3608
  %v3673 = vcvt.s32.f32 %v3609
  %v3674 = vcvt.s32.f32 %v3610
  %v3675 = vcvt.s32.f32 %v3611
  %v3676 = vcvt.s32.f32 %v3612
  %v3677 = vcvt.s32.f32 %v3613
  %v3678 = vcvt.s32.f32 %v3614
  %v3679 = vcvt.s32.f32 %v3615
  %v3680 = vcvt.s32.f32 %v3616
  %v3681 = vcvt.s32.f32 %v3617
  %v3682 = vcvt.s32.f32 %v3618
  %v3683 = vcvt.s32.f32 %v3619
  %v3684 = vcvt.s32.f32 %v3620
  %v3685 = vcvt.s32.f32 %v3621
  %v3686 = vcvt.s32.f32 %v3622
  %v3687 = vcvt.s32.f32 %v3623
  %v3688 = vcvt.s32.f32 %v3624
  %v3689 = vcvt.s32.f32 %v3625
  %v3690 = vcvt.s32.f32 %v3626
  %v3691 = vcvt.s32.f32 %v3627
  %v3692 = vcvt.s32.f32 %v3628
  %v3693 = vcvt.s32.f32 %v3629
  %v3694 = vcvt.s32.f32 %v3630
  %v3695 = vcvt.s32.f32 %v3631
  %v3696 = vcvt.s32.f32 %v3632
  %v3697 = vcvt.s32.f32 %v3633
  %v3698 = vcvt.s32.f32 %v3634
  %v3699 = vcvt.s32.f32 %v3635
  %v3700 = vcvt.s32.f32 %v3636
  %v3701 = vpack.c.bf16 %v3639, %v3637
  %v3702 = vpack.c.bf16 %v3640, %v3638
  %v3703 = vpack.c.bf16 %v3643, %v3641
  %v3704 = vpack.c.bf16 %v3644, %v3642
  %v3705 = vpack.c.bf16 %v3647, %v3645
  %v3706 = vpack.c.bf16 %v3648, %v3646
  %v3707 = vpack.c.bf16 %v3651, %v3649
  %v3708 = vpack.c.bf16 %v3652, %v3650
  %v3709 = vpack.c.bf16 %v3655, %v3653
  %v3710 = vpack.c.bf16 %v3656, %v3654
  %v3711 = vpack.c.bf16 %v3659, %v3657
  %v3712 = vpack.c.bf16 %v3660, %v3658
  %v3713 = vpack.c.bf16 %v3663, %v3661
  %v3714 = vpack.c.bf16 %v3664, %v3662
  %v3715 = vpack.c.bf16 %v3667, %v3665
  %v3716 = vpack.c.bf16 %v3668, %v3666
  %v3717 = vpack.c.bf16 %v3671, %v3669
  %v3718 = vpack.c.bf16 %v3672, %v3670
  %v3719 = vpack.c.bf16 %v3675, %v3673
  %v3720 = vpack.c.bf16 %v3676, %v3674
  %v3721 = vpack.c.bf16 %v3679, %v3677
  %v3722 = vpack.c.bf16 %v3680, %v3678
  %v3723 = vpack.c.bf16 %v3683, %v3681
  %v3724 = vpack.c.bf16 %v3684, %v3682
  %v3725 = vpack.c.bf16 %v3687, %v3685
  %v3726 = vpack.c.bf16 %v3688, %v3686
  %v3727 = vpack.c.bf16 %v3691, %v3689
  %v3728 = vpack.c.bf16 %v3692, %v3690
  %v3729 = vpack.c.bf16 %v3695, %v3693
  %v3730 = vpack.c.bf16 %v3696, %v3694
  %v3731 = vpack.c.bf16 %v3699, %v3697
  %v3732 = vpack.c.bf16 %v3700, %v3698
  %v3733 = vadd.bf16 %v3381, %v3701
  %v3734 = vadd.bf16 %v3382, %v3702
  %v3735 = vadd.bf16 %v3383, %v3703
  %v3736 = vadd.bf16 %v3384, %v3704
  %v3737 = vadd.bf16 %v3385, %v3705
  %v3738 = vadd.bf16 %v3386, %v3706
  %v3739 = vadd.bf16 %v3387, %v3707
  %v3740 = vadd.bf16 %v3388, %v3708
  %v3741 = vadd.bf16 %v3389, %v3709
  %v3742 = vadd.bf16 %v3390, %v3710
  %v3743 = vadd.bf16 %v3391, %v3711
  %v3744 = vadd.bf16 %v3392, %v3712
  %v3745 = vadd.bf16 %v3393, %v3713
  %v3746 = vadd.bf16 %v3394, %v3714
  %v3747 = vadd.bf16 %v3395, %v3715
  %v3748 = vadd.bf16 %v3396, %v3716
  %v3749 = vadd.bf16 %v3397, %v3717
  %v3750 = vadd.bf16 %v3398, %v3718
  %v3751 = vadd.bf16 %v3399, %v3719
  %v3752 = vadd.bf16 %v3400, %v3720
  %v3753 = vadd.bf16 %v3401, %v3721
  %v3754 = vadd.bf16 %v3402, %v3722
  %v3755 = vadd.bf16 %v3403, %v3723
  %v3756 = vadd.bf16 %v3404, %v3724
  %v3757 = vadd.bf16 %v3405, %v3725
  %v3758 = vadd.bf16 %v3406, %v3726
  %v3759 = vadd.bf16 %v3407, %v3727
  %v3760 = vadd.bf16 %v3408, %v3728
  %v3761 = vadd.bf16 %v3409, %v3729
  %v3762 = vadd.bf16 %v3410, %v3730
  %v3763 = vadd.bf16 %v3411, %v3731
  %v3764 = vadd.bf16 %v3412, %v3732
  %v3765 = vld [vmem:[%s1 + $0x80] sm:$0xf]
  %v3766 = vld [vmem:[%s1 + $0x84] sm:$0xf]
  %v3767 = vld [vmem:[%s1 + $0x88] sm:$0xf]
  %v3768 = vld [vmem:[%s1 + $0x8c] sm:$0xf]
  %v3769 = vld [vmem:[%s1 + $0x90] sm:$0xf]
  %v3770 = vld [vmem:[%s1 + $0x94] sm:$0xf]
  %v3771 = vld [vmem:[%s1 + $0x98] sm:$0xf]
  %v3772 = vld [vmem:[%s1 + $0x9c] sm:$0xf]
  %v3773 = vld [vmem:[%s1 + $0xa0] sm:$0xf]
  %v3774 = vld [vmem:[%s1 + $0xa4] sm:$0xf]
  %v3775 = vld [vmem:[%s1 + $0xa8] sm:$0xf]
  %v3776 = vld [vmem:[%s1 + $0xac] sm:$0xf]
  %v3777 = vld [vmem:[%s1 + $0xb0] sm:$0xf]
  %v3778 = vld [vmem:[%s1 + $0xb4] sm:$0xf]
  %v3779 = vld [vmem:[%s1 + $0xb8] sm:$0xf]
  %v3780 = vld [vmem:[%s1 + $0xbc] sm:$0xf]
  %v3781 = vld [vmem:[%s1 + $0xc0] sm:$0xf]
  %v3782 = vld [vmem:[%s1 + $0xc4] sm:$0xf]
  %v3783 = vld [vmem:[%s1 + $0xc8] sm:$0xf]
  %v3784 = vld [vmem:[%s1 + $0xcc] sm:$0xf]
  %v3785 = vld [vmem:[%s1 + $0xd0] sm:$0xf]
  %v3786 = vld [vmem:[%s1 + $0xd4] sm:$0xf]
  %v3787 = vld [vmem:[%s1 + $0xd8] sm:$0xf]
  %v3788 = vld [vmem:[%s1 + $0xdc] sm:$0xf]
  %v3789 = vld [vmem:[%s1 + $0xe0] sm:$0xf]
  %v3790 = vld [vmem:[%s1 + $0xe4] sm:$0xf]
  %v3791 = vld [vmem:[%s1 + $0xe8] sm:$0xf]
  %v3792 = vld [vmem:[%s1 + $0xec] sm:$0xf]
  %v3793 = vld [vmem:[%s1 + $0xf0] sm:$0xf]
  %v3794 = vld [vmem:[%s1 + $0xf4] sm:$0xf]
  %v3795 = vld [vmem:[%s1 + $0xf8] sm:$0xf]
  %v3796 = vld [vmem:[%s1 + $0xfc] sm:$0xf]
  %v3797 = vld [vmem:[%s2 + $0x80] sm:$0xf]
  %v3798 = vld [vmem:[%s2 + $0x84] sm:$0xf]
  %v3799 = vld [vmem:[%s2 + $0x88] sm:$0xf]
  %v3800 = vld [vmem:[%s2 + $0x8c] sm:$0xf]
  %v3801 = vld [vmem:[%s2 + $0x90] sm:$0xf]
  %v3802 = vld [vmem:[%s2 + $0x94] sm:$0xf]
  %v3803 = vld [vmem:[%s2 + $0x98] sm:$0xf]
  %v3804 = vld [vmem:[%s2 + $0x9c] sm:$0xf]
  %v3805 = vld [vmem:[%s2 + $0xa0] sm:$0xf]
  %v3806 = vld [vmem:[%s2 + $0xa4] sm:$0xf]
  %v3807 = vld [vmem:[%s2 + $0xa8] sm:$0xf]
  %v3808 = vld [vmem:[%s2 + $0xac] sm:$0xf]
  %v3809 = vld [vmem:[%s2 + $0xb0] sm:$0xf]
  %v3810 = vld [vmem:[%s2 + $0xb4] sm:$0xf]
  %v3811 = vld [vmem:[%s2 + $0xb8] sm:$0xf]
  %v3812 = vld [vmem:[%s2 + $0xbc] sm:$0xf]
  %v3813 = vld [vmem:[%s2 + $0xc0] sm:$0xf]
  %v3814 = vld [vmem:[%s2 + $0xc4] sm:$0xf]
  %v3815 = vld [vmem:[%s2 + $0xc8] sm:$0xf]
  %v3816 = vld [vmem:[%s2 + $0xcc] sm:$0xf]
  %v3817 = vld [vmem:[%s2 + $0xd0] sm:$0xf]
  %v3818 = vld [vmem:[%s2 + $0xd4] sm:$0xf]
  %v3819 = vld [vmem:[%s2 + $0xd8] sm:$0xf]
  %v3820 = vld [vmem:[%s2 + $0xdc] sm:$0xf]
  %v3821 = vld [vmem:[%s2 + $0xe0] sm:$0xf]
  %v3822 = vld [vmem:[%s2 + $0xe4] sm:$0xf]
  %v3823 = vld [vmem:[%s2 + $0xe8] sm:$0xf]
  %v3824 = vld [vmem:[%s2 + $0xec] sm:$0xf]
  %v3825 = vld [vmem:[%s2 + $0xf0] sm:$0xf]
  %v3826 = vld [vmem:[%s2 + $0xf4] sm:$0xf]
  %v3827 = vld [vmem:[%s2 + $0xf8] sm:$0xf]
  %v3828 = vld [vmem:[%s2 + $0xfc] sm:$0xf]
  %v3861 = vunpack.c.l.b16 %v3765
  %v3862 = vunpack.c.l.b16 %v3766
  %v3863 = vunpack.c.l.b16 %v3767
  %v3864 = vunpack.c.l.b16 %v3768
  %v3865 = vunpack.c.l.b16 %v3769
  %v3866 = vunpack.c.l.b16 %v3770
  %v3867 = vunpack.c.l.b16 %v3771
  %v3868 = vunpack.c.l.b16 %v3772
  %v3869 = vunpack.c.l.b16 %v3773
  %v3870 = vunpack.c.l.b16 %v3774
  %v3871 = vunpack.c.l.b16 %v3775
  %v3872 = vunpack.c.l.b16 %v3776
  %v3873 = vunpack.c.l.b16 %v3777
  %v3874 = vunpack.c.l.b16 %v3778
  %v3875 = vunpack.c.l.b16 %v3779
  %v3876 = vunpack.c.l.b16 %v3780
  %v3877 = vunpack.c.l.b16 %v3781
  %v3878 = vunpack.c.l.b16 %v3782
  %v3879 = vunpack.c.l.b16 %v3783
  %v3880 = vunpack.c.l.b16 %v3784
  %v3881 = vunpack.c.l.b16 %v3785
  %v3882 = vunpack.c.l.b16 %v3786
  %v3883 = vunpack.c.l.b16 %v3787
  %v3884 = vunpack.c.l.b16 %v3788
  %v3885 = vunpack.c.l.b16 %v3789
  %v3886 = vunpack.c.l.b16 %v3790
  %v3887 = vunpack.c.l.b16 %v3791
  %v3888 = vunpack.c.l.b16 %v3792
  %v3889 = vunpack.c.l.b16 %v3793
  %v3890 = vunpack.c.l.b16 %v3794
  %v3891 = vunpack.c.l.b16 %v3795
  %v3892 = vunpack.c.l.b16 %v3796
  %v3893 = vpack.c.b16 %v3862, %v3861
  %v3894 = vpack.c.b16 %v3864, %v3863
  %v3895 = vpack.c.b16 %v3866, %v3865
  %v3896 = vpack.c.b16 %v3868, %v3867
  %v3897 = vpack.c.b16 %v3870, %v3869
  %v3898 = vpack.c.b16 %v3872, %v3871
  %v3899 = vpack.c.b16 %v3874, %v3873
  %v3900 = vpack.c.b16 %v3876, %v3875
  %v3901 = vpack.c.b16 %v3878, %v3877
  %v3902 = vpack.c.b16 %v3880, %v3879
  %v3903 = vpack.c.b16 %v3882, %v3881
  %v3904 = vpack.c.b16 %v3884, %v3883
  %v3905 = vpack.c.b16 %v3886, %v3885
  %v3906 = vpack.c.b16 %v3888, %v3887
  %v3907 = vpack.c.b16 %v3890, %v3889
  %v3908 = vpack.c.b16 %v3892, %v3891
  %3925 = vmatprep.subr.bf16.mxu0 0
  %3926 = vmatpush1.bf16.msra.mxu0 %v3900
  %3927 = vmatprep.subr.bf16.mxu0 0
  %3928 = vmatpush1.bf16.msra.mxu0 %v3899
  %3929 = vmatprep.subr.bf16.mxu0 0
  %3930 = vmatpush1.bf16.msra.mxu0 %v3898
  %3931 = vmatprep.subr.bf16.mxu0 0
  %3932 = vmatpush1.bf16.msra.mxu0 %v3897
  %3933 = vmatprep.subr.bf16.mxu0 0
  %3934 = vmatpush1.bf16.msra.mxu0 %v3896
  %3935 = vmatprep.subr.bf16.mxu0 0
  %3936 = vmatpush1.bf16.msra.mxu0 %v3895
  %3937 = vmatprep.subr.bf16.mxu0 0
  %3938 = vmatpush1.bf16.msra.mxu0 %v3894
  %3939 = vmatprep.subr.bf16.mxu0 0
  %3940 = vmatpush1.bf16.msra.mxu0 %v3893
  %3941 = vmatprep.subr.bf16.mxu0 0
  %3942 = vmatpush2.bf16.msra.mxu0 %v3908
  %3943 = vmatprep.subr.bf16.mxu0 0
  %3944 = vmatpush2.bf16.msra.mxu0 %v3907
  %3945 = vmatprep.subr.bf16.mxu0 0
  %3946 = vmatpush2.bf16.msra.mxu0 %v3906
  %3947 = vmatprep.subr.bf16.mxu0 0
  %3948 = vmatpush2.bf16.msra.mxu0 %v3905
  %3949 = vmatprep.subr.bf16.mxu0 0
  %3950 = vmatpush2.bf16.msra.mxu0 %v3904
  %3951 = vmatprep.subr.bf16.mxu0 0
  %3952 = vmatpush2.bf16.msra.mxu0 %v3903
  %3953 = vmatprep.subr.bf16.mxu0 0
  %3954 = vmatpush2.bf16.msra.mxu0 %v3902
  %3955 = vmatprep.subr.bf16.mxu0 0
  %3956 = vmatpush2.bf16.msra.mxu0 %v3901
  %3957 = vmatprep.mubr.bf16.mxu0 %v3734
  %3958 = vmatmul.mubr.bf16.gmra.mxu0 %v3733
  %v3959 = vpop.f32.mrf.mxu0
  %v3960 = vadd.f32 0.0, %v3959
  %v3961 = vpop.f32.mrf.mxu0
  %v3962 = vpop.f32.mrf.mxu0
  %v3963 = vadd.f32 0.0, %v3962
  %v3964 = vpop.f32.mrf.mxu0
  %3965 = vmatprep.mubr.bf16.mxu0 %v3736
  %3966 = vmatmul.mubr.bf16.gmra.mxu0 %v3735
  %v3967 = vpop.f32.mrf.mxu0
  %v3968 = vadd.f32 0.0, %v3967
  %v3969 = vpop.f32.mrf.mxu0
  %v3970 = vpop.f32.mrf.mxu0
  %v3971 = vadd.f32 0.0, %v3970
  %v3972 = vpop.f32.mrf.mxu0
  %3973 = vmatprep.mubr.bf16.mxu0 %v3738
  %3974 = vmatmul.mubr.bf16.gmra.mxu0 %v3737
  %v3975 = vpop.f32.mrf.mxu0
  %v3976 = vadd.f32 0.0, %v3975
  %v3977 = vpop.f32.mrf.mxu0
  %v3978 = vpop.f32.mrf.mxu0
  %v3979 = vadd.f32 0.0, %v3978
  %v3980 = vpop.f32.mrf.mxu0
  %3981 = vmatprep.mubr.bf16.mxu0 %v3740
  %3982 = vmatmul.mubr.bf16.gmra.mxu0 %v3739
  %v3983 = vpop.f32.mrf.mxu0
  %v3984 = vadd.f32 0.0, %v3983
  %v3985 = vpop.f32.mrf.mxu0
  %v3986 = vpop.f32.mrf.mxu0
  %v3987 = vadd.f32 0.0, %v3986
  %v3988 = vpop.f32.mrf.mxu0
  %3989 = vmatprep.mubr.bf16.mxu0 %v3742
  %3990 = vmatmul.mubr.bf16.gmra.mxu0 %v3741
  %v3991 = vpop.f32.mrf.mxu0
  %v3992 = vadd.f32 0.0, %v3991
  %v3993 = vpop.f32.mrf.mxu0
  %v3994 = vpop.f32.mrf.mxu0
  %v3995 = vadd.f32 0.0, %v3994
  %v3996 = vpop.f32.mrf.mxu0
  %3997 = vmatprep.mubr.bf16.mxu0 %v3744
  %3998 = vmatmul.mubr.bf16.gmra.mxu0 %v3743
  %v3999 = vpop.f32.mrf.mxu0
  %v4000 = vadd.f32 0.0, %v3999
  %v4001 = vpop.f32.mrf.mxu0
  %v4002 = vpop.f32.mrf.mxu0
  %v4003 = vadd.f32 0.0, %v4002
  %v4004 = vpop.f32.mrf.mxu0
  %4005 = vmatprep.mubr.bf16.mxu0 %v3746
  %4006 = vmatmul.mubr.bf16.gmra.mxu0 %v3745
  %v4007 = vpop.f32.mrf.mxu0
  %v4008 = vadd.f32 0.0, %v4007
  %v4009 = vpop.f32.mrf.mxu0
  %v4010 = vpop.f32.mrf.mxu0
  %v4011 = vadd.f32 0.0, %v4010
  %v4012 = vpop.f32.mrf.mxu0
  %4013 = vmatprep.mubr.bf16.mxu0 %v3748
  %4014 = vmatmul.mubr.bf16.gmra.mxu0 %v3747
  %v4015 = vpop.f32.mrf.mxu0
  %v4016 = vadd.f32 0.0, %v4015
  %v4017 = vpop.f32.mrf.mxu0
  %v4018 = vpop.f32.mrf.mxu0
  %v4019 = vadd.f32 0.0, %v4018
  %v4020 = vpop.f32.mrf.mxu0
  %4021 = vmatprep.mubr.bf16.mxu0 %v3750
  %4022 = vmatmul.mubr.bf16.gmra.mxu0 %v3749
  %v4023 = vpop.f32.mrf.mxu0
  %v4024 = vadd.f32 0.0, %v4023
  %v4025 = vpop.f32.mrf.mxu0
  %v4026 = vpop.f32.mrf.mxu0
  %v4027 = vadd.f32 0.0, %v4026
  %v4028 = vpop.f32.mrf.mxu0
  %4029 = vmatprep.mubr.bf16.mxu0 %v3752
  %4030 = vmatmul.mubr.bf16.gmra.mxu0 %v3751
  %v4031 = vpop.f32.mrf.mxu0
  %v4032 = vadd.f32 0.0, %v4031
  %v4033 = vpop.f32.mrf.mxu0
  %v4034 = vpop.f32.mrf.mxu0
  %v4035 = vadd.f32 0.0, %v4034
  %v4036 = vpop.f32.mrf.mxu0
  %4037 = vmatprep.mubr.bf16.mxu0 %v3754
  %4038 = vmatmul.mubr.bf16.gmra.mxu0 %v3753
  %v4039 = vpop.f32.mrf.mxu0
  %v4040 = vadd.f32 0.0, %v4039
  %v4041 = vpop.f32.mrf.mxu0
  %v4042 = vpop.f32.mrf.mxu0
  %v4043 = vadd.f32 0.0, %v4042
  %v4044 = vpop.f32.mrf.mxu0
  %4045 = vmatprep.mubr.bf16.mxu0 %v3756
  %4046 = vmatmul.mubr.bf16.gmra.mxu0 %v3755
  %v4047 = vpop.f32.mrf.mxu0
  %v4048 = vadd.f32 0.0, %v4047
  %v4049 = vpop.f32.mrf.mxu0
  %v4050 = vpop.f32.mrf.mxu0
  %v4051 = vadd.f32 0.0, %v4050
  %v4052 = vpop.f32.mrf.mxu0
  %4053 = vmatprep.mubr.bf16.mxu0 %v3758
  %4054 = vmatmul.mubr.bf16.gmra.mxu0 %v3757
  %v4055 = vpop.f32.mrf.mxu0
  %v4056 = vadd.f32 0.0, %v4055
  %v4057 = vpop.f32.mrf.mxu0
  %v4058 = vpop.f32.mrf.mxu0
  %v4059 = vadd.f32 0.0, %v4058
  %v4060 = vpop.f32.mrf.mxu0
  %4061 = vmatprep.mubr.bf16.mxu0 %v3760
  %4062 = vmatmul.mubr.bf16.gmra.mxu0 %v3759
  %v4063 = vpop.f32.mrf.mxu0
  %v4064 = vadd.f32 0.0, %v4063
  %v4065 = vpop.f32.mrf.mxu0
  %v4066 = vpop.f32.mrf.mxu0
  %v4067 = vadd.f32 0.0, %v4066
  %v4068 = vpop.f32.mrf.mxu0
  %4069 = vmatprep.mubr.bf16.mxu0 %v3762
  %4070 = vmatmul.mubr.bf16.gmra.mxu0 %v3761
  %v4071 = vpop.f32.mrf.mxu0
  %v4072 = vadd.f32 0.0, %v4071
  %v4073 = vpop.f32.mrf.mxu0
  %v4074 = vpop.f32.mrf.mxu0
  %v4075 = vadd.f32 0.0, %v4074
  %v4076 = vpop.f32.mrf.mxu0
  %4077 = vmatprep.mubr.bf16.mxu0 %v3764
  %4078 = vmatmul.mubr.bf16.gmra.mxu0 %v3763
  %v4079 = vpop.f32.mrf.mxu0
  %v4080 = vadd.f32 0.0, %v4079
  %v4081 = vpop.f32.mrf.mxu0
  %v4082 = vpop.f32.mrf.mxu0
  %v4083 = vadd.f32 0.0, %v4082
  %v4084 = vpop.f32.mrf.mxu0
  %4085 = vdwg.mxu0
  %v4086 = vadd.f32 %v2199, %v3960
  %v4087 = vadd.f32 %v2202, %v3963
  %v4088 = vadd.f32 %v2207, %v3968
  %v4089 = vadd.f32 %v2210, %v3971
  %v4090 = vadd.f32 %v2215, %v3976
  %v4091 = vadd.f32 %v2218, %v3979
  %v4092 = vadd.f32 %v2223, %v3984
  %v4093 = vadd.f32 %v2226, %v3987
  %v4094 = vadd.f32 %v2231, %v3992
  %v4095 = vadd.f32 %v2234, %v3995
  %v4096 = vadd.f32 %v2239, %v4000
  %v4097 = vadd.f32 %v2242, %v4003
  %v4098 = vadd.f32 %v2247, %v4008
  %v4099 = vadd.f32 %v2250, %v4011
  %v4100 = vadd.f32 %v2255, %v4016
  %v4101 = vadd.f32 %v2258, %v4019
  %v4102 = vadd.f32 %v2263, %v4024
  %v4103 = vadd.f32 %v2266, %v4027
  %v4104 = vadd.f32 %v2271, %v4032
  %v4105 = vadd.f32 %v2274, %v4035
  %v4106 = vadd.f32 %v2279, %v4040
  %v4107 = vadd.f32 %v2282, %v4043
  %v4108 = vadd.f32 %v2287, %v4048
  %v4109 = vadd.f32 %v2290, %v4051
  %v4110 = vadd.f32 %v2295, %v4056
  %v4111 = vadd.f32 %v2298, %v4059
  %v4112 = vadd.f32 %v2303, %v4064
  %v4113 = vadd.f32 %v2306, %v4067
  %v4114 = vadd.f32 %v2311, %v4072
  %v4115 = vadd.f32 %v2314, %v4075
  %v4116 = vadd.f32 %v2319, %v4080
  %v4117 = vadd.f32 %v2322, %v4083
  %v4150 = vunpack.c.l.b16 %v3797
  %v4151 = vunpack.c.l.b16 %v3798
  %v4152 = vunpack.c.l.b16 %v3799
  %v4153 = vunpack.c.l.b16 %v3800
  %v4154 = vunpack.c.l.b16 %v3801
  %v4155 = vunpack.c.l.b16 %v3802
  %v4156 = vunpack.c.l.b16 %v3803
  %v4157 = vunpack.c.l.b16 %v3804
  %v4158 = vunpack.c.l.b16 %v3805
  %v4159 = vunpack.c.l.b16 %v3806
  %v4160 = vunpack.c.l.b16 %v3807
  %v4161 = vunpack.c.l.b16 %v3808
  %v4162 = vunpack.c.l.b16 %v3809
  %v4163 = vunpack.c.l.b16 %v3810
  %v4164 = vunpack.c.l.b16 %v3811
  %v4165 = vunpack.c.l.b16 %v3812
  %v4166 = vunpack.c.l.b16 %v3813
  %v4167 = vunpack.c.l.b16 %v3814
  %v4168 = vunpack.c.l.b16 %v3815
  %v4169 = vunpack.c.l.b16 %v3816
  %v4170 = vunpack.c.l.b16 %v3817
  %v4171 = vunpack.c.l.b16 %v3818
  %v4172 = vunpack.c.l.b16 %v3819
  %v4173 = vunpack.c.l.b16 %v3820
  %v4174 = vunpack.c.l.b16 %v3821
  %v4175 = vunpack.c.l.b16 %v3822
  %v4176 = vunpack.c.l.b16 %v3823
  %v4177 = vunpack.c.l.b16 %v3824
  %v4178 = vunpack.c.l.b16 %v3825
  %v4179 = vunpack.c.l.b16 %v3826
  %v4180 = vunpack.c.l.b16 %v3827
  %v4181 = vunpack.c.l.b16 %v3828
  %v4182 = vpack.c.b16 %v4151, %v4150
  %v4183 = vpack.c.b16 %v4153, %v4152
  %v4184 = vpack.c.b16 %v4155, %v4154
  %v4185 = vpack.c.b16 %v4157, %v4156
  %v4186 = vpack.c.b16 %v4159, %v4158
  %v4187 = vpack.c.b16 %v4161, %v4160
  %v4188 = vpack.c.b16 %v4163, %v4162
  %v4189 = vpack.c.b16 %v4165, %v4164
  %v4190 = vpack.c.b16 %v4167, %v4166
  %v4191 = vpack.c.b16 %v4169, %v4168
  %v4192 = vpack.c.b16 %v4171, %v4170
  %v4193 = vpack.c.b16 %v4173, %v4172
  %v4194 = vpack.c.b16 %v4175, %v4174
  %v4195 = vpack.c.b16 %v4177, %v4176
  %v4196 = vpack.c.b16 %v4179, %v4178
  %v4197 = vpack.c.b16 %v4181, %v4180
  %4214 = vmatprep.subr.bf16.mxu0 0
  %4215 = vmatpush1.bf16.msra.mxu0 %v4189
  %4216 = vmatprep.subr.bf16.mxu0 0
  %4217 = vmatpush1.bf16.msra.mxu0 %v4188
  %4218 = vmatprep.subr.bf16.mxu0 0
  %4219 = vmatpush1.bf16.msra.mxu0 %v4187
  %4220 = vmatprep.subr.bf16.mxu0 0
  %4221 = vmatpush1.bf16.msra.mxu0 %v4186
  %4222 = vmatprep.subr.bf16.mxu0 0
  %4223 = vmatpush1.bf16.msra.mxu0 %v4185
  %4224 = vmatprep.subr.bf16.mxu0 0
  %4225 = vmatpush1.bf16.msra.mxu0 %v4184
  %4226 = vmatprep.subr.bf16.mxu0 0
  %4227 = vmatpush1.bf16.msra.mxu0 %v4183
  %4228 = vmatprep.subr.bf16.mxu0 0
  %4229 = vmatpush1.bf16.msra.mxu0 %v4182
  %4230 = vmatprep.subr.bf16.mxu0 0
  %4231 = vmatpush2.bf16.msra.mxu0 %v4197
  %4232 = vmatprep.subr.bf16.mxu0 0
  %4233 = vmatpush2.bf16.msra.mxu0 %v4196
  %4234 = vmatprep.subr.bf16.mxu0 0
  %4235 = vmatpush2.bf16.msra.mxu0 %v4195
  %4236 = vmatprep.subr.bf16.mxu0 0
  %4237 = vmatpush2.bf16.msra.mxu0 %v4194
  %4238 = vmatprep.subr.bf16.mxu0 0
  %4239 = vmatpush2.bf16.msra.mxu0 %v4193
  %4240 = vmatprep.subr.bf16.mxu0 0
  %4241 = vmatpush2.bf16.msra.mxu0 %v4192
  %4242 = vmatprep.subr.bf16.mxu0 0
  %4243 = vmatpush2.bf16.msra.mxu0 %v4191
  %4244 = vmatprep.subr.bf16.mxu0 0
  %4245 = vmatpush2.bf16.msra.mxu0 %v4190
  %4246 = vmatprep.mubr.bf16.mxu0 %v3734
  %4247 = vmatmul.mubr.bf16.gmra.mxu0 %v3733
  %v4248 = vpop.f32.mrf.mxu0
  %v4249 = vadd.f32 0.0, %v4248
  %v4250 = vpop.f32.mrf.mxu0
  %v4251 = vpop.f32.mrf.mxu0
  %v4252 = vadd.f32 0.0, %v4251
  %v4253 = vpop.f32.mrf.mxu0
  %4254 = vmatprep.mubr.bf16.mxu0 %v3736
  %4255 = vmatmul.mubr.bf16.gmra.mxu0 %v3735
  %v4256 = vpop.f32.mrf.mxu0
  %v4257 = vadd.f32 0.0, %v4256
  %v4258 = vpop.f32.mrf.mxu0
  %v4259 = vpop.f32.mrf.mxu0
  %v4260 = vadd.f32 0.0, %v4259
  %v4261 = vpop.f32.mrf.mxu0
  %4262 = vmatprep.mubr.bf16.mxu0 %v3738
  %4263 = vmatmul.mubr.bf16.gmra.mxu0 %v3737
  %v4264 = vpop.f32.mrf.mxu0
  %v4265 = vadd.f32 0.0, %v4264
  %v4266 = vpop.f32.mrf.mxu0
  %v4267 = vpop.f32.mrf.mxu0
  %v4268 = vadd.f32 0.0, %v4267
  %v4269 = vpop.f32.mrf.mxu0
  %4270 = vmatprep.mubr.bf16.mxu0 %v3740
  %4271 = vmatmul.mubr.bf16.gmra.mxu0 %v3739
  %v4272 = vpop.f32.mrf.mxu0
  %v4273 = vadd.f32 0.0, %v4272
  %v4274 = vpop.f32.mrf.mxu0
  %v4275 = vpop.f32.mrf.mxu0
  %v4276 = vadd.f32 0.0, %v4275
  %v4277 = vpop.f32.mrf.mxu0
  %4278 = vmatprep.mubr.bf16.mxu0 %v3742
  %4279 = vmatmul.mubr.bf16.gmra.mxu0 %v3741
  %v4280 = vpop.f32.mrf.mxu0
  %v4281 = vadd.f32 0.0, %v4280
  %v4282 = vpop.f32.mrf.mxu0
  %v4283 = vpop.f32.mrf.mxu0
  %v4284 = vadd.f32 0.0, %v4283
  %v4285 = vpop.f32.mrf.mxu0
  %4286 = vmatprep.mubr.bf16.mxu0 %v3744
  %4287 = vmatmul.mubr.bf16.gmra.mxu0 %v3743
  %v4288 = vpop.f32.mrf.mxu0
  %v4289 = vadd.f32 0.0, %v4288
  %v4290 = vpop.f32.mrf.mxu0
  %v4291 = vpop.f32.mrf.mxu0
  %v4292 = vadd.f32 0.0, %v4291
  %v4293 = vpop.f32.mrf.mxu0
  %4294 = vmatprep.mubr.bf16.mxu0 %v3746
  %4295 = vmatmul.mubr.bf16.gmra.mxu0 %v3745
  %v4296 = vpop.f32.mrf.mxu0
  %v4297 = vadd.f32 0.0, %v4296
  %v4298 = vpop.f32.mrf.mxu0
  %v4299 = vpop.f32.mrf.mxu0
  %v4300 = vadd.f32 0.0, %v4299
  %v4301 = vpop.f32.mrf.mxu0
  %4302 = vmatprep.mubr.bf16.mxu0 %v3748
  %4303 = vmatmul.mubr.bf16.gmra.mxu0 %v3747
  %v4304 = vpop.f32.mrf.mxu0
  %v4305 = vadd.f32 0.0, %v4304
  %v4306 = vpop.f32.mrf.mxu0
  %v4307 = vpop.f32.mrf.mxu0
  %v4308 = vadd.f32 0.0, %v4307
  %v4309 = vpop.f32.mrf.mxu0
  %4310 = vmatprep.mubr.bf16.mxu0 %v3750
  %4311 = vmatmul.mubr.bf16.gmra.mxu0 %v3749
  %v4312 = vpop.f32.mrf.mxu0
  %v4313 = vadd.f32 0.0, %v4312
  %v4314 = vpop.f32.mrf.mxu0
  %v4315 = vpop.f32.mrf.mxu0
  %v4316 = vadd.f32 0.0, %v4315
  %v4317 = vpop.f32.mrf.mxu0
  %4318 = vmatprep.mubr.bf16.mxu0 %v3752
  %4319 = vmatmul.mubr.bf16.gmra.mxu0 %v3751
  %v4320 = vpop.f32.mrf.mxu0
  %v4321 = vadd.f32 0.0, %v4320
  %v4322 = vpop.f32.mrf.mxu0
  %v4323 = vpop.f32.mrf.mxu0
  %v4324 = vadd.f32 0.0, %v4323
  %v4325 = vpop.f32.mrf.mxu0
  %4326 = vmatprep.mubr.bf16.mxu0 %v3754
  %4327 = vmatmul.mubr.bf16.gmra.mxu0 %v3753
  %v4328 = vpop.f32.mrf.mxu0
  %v4329 = vadd.f32 0.0, %v4328
  %v4330 = vpop.f32.mrf.mxu0
  %v4331 = vpop.f32.mrf.mxu0
  %v4332 = vadd.f32 0.0, %v4331
  %v4333 = vpop.f32.mrf.mxu0
  %4334 = vmatprep.mubr.bf16.mxu0 %v3756
  %4335 = vmatmul.mubr.bf16.gmra.mxu0 %v3755
  %v4336 = vpop.f32.mrf.mxu0
  %v4337 = vadd.f32 0.0, %v4336
  %v4338 = vpop.f32.mrf.mxu0
  %v4339 = vpop.f32.mrf.mxu0
  %v4340 = vadd.f32 0.0, %v4339
  %v4341 = vpop.f32.mrf.mxu0
  %4342 = vmatprep.mubr.bf16.mxu0 %v3758
  %4343 = vmatmul.mubr.bf16.gmra.mxu0 %v3757
  %v4344 = vpop.f32.mrf.mxu0
  %v4345 = vadd.f32 0.0, %v4344
  %v4346 = vpop.f32.mrf.mxu0
  %v4347 = vpop.f32.mrf.mxu0
  %v4348 = vadd.f32 0.0, %v4347
  %v4349 = vpop.f32.mrf.mxu0
  %4350 = vmatprep.mubr.bf16.mxu0 %v3760
  %4351 = vmatmul.mubr.bf16.gmra.mxu0 %v3759
  %v4352 = vpop.f32.mrf.mxu0
  %v4353 = vadd.f32 0.0, %v4352
  %v4354 = vpop.f32.mrf.mxu0
  %v4355 = vpop.f32.mrf.mxu0
  %v4356 = vadd.f32 0.0, %v4355
  %v4357 = vpop.f32.mrf.mxu0
  %4358 = vmatprep.mubr.bf16.mxu0 %v3762
  %4359 = vmatmul.mubr.bf16.gmra.mxu0 %v3761
  %v4360 = vpop.f32.mrf.mxu0
  %v4361 = vadd.f32 0.0, %v4360
  %v4362 = vpop.f32.mrf.mxu0
  %v4363 = vpop.f32.mrf.mxu0
  %v4364 = vadd.f32 0.0, %v4363
  %v4365 = vpop.f32.mrf.mxu0
  %4366 = vmatprep.mubr.bf16.mxu0 %v3764
  %4367 = vmatmul.mubr.bf16.gmra.mxu0 %v3763
  %v4368 = vpop.f32.mrf.mxu0
  %v4369 = vadd.f32 0.0, %v4368
  %v4370 = vpop.f32.mrf.mxu0
  %v4371 = vpop.f32.mrf.mxu0
  %v4372 = vadd.f32 0.0, %v4371
  %v4373 = vpop.f32.mrf.mxu0
  %4374 = vdwg.mxu0
  %v4375 = vadd.f32 %v4086, %v4249
  %v4376 = vadd.f32 %v4087, %v4252
  %v4377 = vadd.f32 %v4088, %v4257
  %v4378 = vadd.f32 %v4089, %v4260
  %v4379 = vadd.f32 %v4090, %v4265
  %v4380 = vadd.f32 %v4091, %v4268
  %v4381 = vadd.f32 %v4092, %v4273
  %v4382 = vadd.f32 %v4093, %v4276
  %v4383 = vadd.f32 %v4094, %v4281
  %v4384 = vadd.f32 %v4095, %v4284
  %v4385 = vadd.f32 %v4096, %v4289
  %v4386 = vadd.f32 %v4097, %v4292
  %v4387 = vadd.f32 %v4098, %v4297
  %v4388 = vadd.f32 %v4099, %v4300
  %v4389 = vadd.f32 %v4100, %v4305
  %v4390 = vadd.f32 %v4101, %v4308
  %v4391 = vadd.f32 %v4102, %v4313
  %v4392 = vadd.f32 %v4103, %v4316
  %v4393 = vadd.f32 %v4104, %v4321
  %v4394 = vadd.f32 %v4105, %v4324
  %v4395 = vadd.f32 %v4106, %v4329
  %v4396 = vadd.f32 %v4107, %v4332
  %v4397 = vadd.f32 %v4108, %v4337
  %v4398 = vadd.f32 %v4109, %v4340
  %v4399 = vadd.f32 %v4110, %v4345
  %v4400 = vadd.f32 %v4111, %v4348
  %v4401 = vadd.f32 %v4112, %v4353
  %v4402 = vadd.f32 %v4113, %v4356
  %v4403 = vadd.f32 %v4114, %v4361
  %v4404 = vadd.f32 %v4115, %v4364
  %v4405 = vadd.f32 %v4116, %v4369
  %v4406 = vadd.f32 %v4117, %v4372
  %v4407 = vsub.s32 %v15, 512
  %v4408 = vsub.s32 %v16, 512
  %v4409 = vsub.s32 %v17, 512
  %v4410 = vsub.s32 %v18, 512
  %v4411 = vsub.s32 %v19, 512
  %v4412 = vsub.s32 %v20, 512
  %v4413 = vsub.s32 %v21, 512
  %v4414 = vsub.s32 %v22, 512
  %v4415 = vsub.s32 %v23, 512
  %v4416 = vsub.s32 %v24, 512
  %v4417 = vsub.s32 %v25, 512
  %v4418 = vsub.s32 %v26, 512
  %v4419 = vsub.s32 %v27, 512
  %v4420 = vsub.s32 %v28, 512
  %v4421 = vsub.s32 %v29, 512
  %v4422 = vsub.s32 %v30, 512
  %v4423 = vsub.s32 %v31, 512
  %v4424 = vsub.s32 %v32, 512
  %v4425 = vsub.s32 %v33, 512
  %v4426 = vsub.s32 %v34, 512
  %v4427 = vsub.s32 %v35, 512
  %v4428 = vsub.s32 %v36, 512
  %v4429 = vsub.s32 %v37, 512
  %v4430 = vsub.s32 %v38, 512
  %v4431 = vsub.s32 %v39, 512
  %v4432 = vsub.s32 %v40, 512
  %v4433 = vsub.s32 %v41, 512
  %v4434 = vsub.s32 %v42, 512
  %v4435 = vsub.s32 %v43, 512
  %v4436 = vsub.s32 %v44, 512
  %v4437 = vsub.s32 %v45, 512
  %v4438 = vsub.s32 %v46, 512
  %4439 = vset.pattern.permute.xlu0 0
  %4440 = vperm.xlu0 %4439, %v4407
  %v4441 = vpop.permute.xlu0 %4440
  %4442 = vset.pattern.permute.xlu0 0
  %4443 = vperm.xlu0 %4442, %v4408
  %v4444 = vpop.permute.xlu0 %4443
  %4445 = vset.pattern.permute.xlu0 0
  %4446 = vperm.xlu0 %4445, %v4409
  %v4447 = vpop.permute.xlu0 %4446
  %4448 = vset.pattern.permute.xlu0 0
  %4449 = vperm.xlu0 %4448, %v4410
  %v4450 = vpop.permute.xlu0 %4449
  %4451 = vset.pattern.permute.xlu0 0
  %4452 = vperm.xlu0 %4451, %v4411
  %v4453 = vpop.permute.xlu0 %4452
  %4454 = vset.pattern.permute.xlu0 0
  %4455 = vperm.xlu0 %4454, %v4412
  %v4456 = vpop.permute.xlu0 %4455
  %4457 = vset.pattern.permute.xlu0 0
  %4458 = vperm.xlu0 %4457, %v4413
  %v4459 = vpop.permute.xlu0 %4458
  %4460 = vset.pattern.permute.xlu0 0
  %4461 = vperm.xlu0 %4460, %v4414
  %v4462 = vpop.permute.xlu0 %4461
  %4463 = vset.pattern.permute.xlu0 0
  %4464 = vperm.xlu0 %4463, %v4415
  %v4465 = vpop.permute.xlu0 %4464
  %4466 = vset.pattern.permute.xlu0 0
  %4467 = vperm.xlu0 %4466, %v4416
  %v4468 = vpop.permute.xlu0 %4467
  %4469 = vset.pattern.permute.xlu0 0
  %4470 = vperm.xlu0 %4469, %v4417
  %v4471 = vpop.permute.xlu0 %4470
  %4472 = vset.pattern.permute.xlu0 0
  %4473 = vperm.xlu0 %4472, %v4418
  %v4474 = vpop.permute.xlu0 %4473
  %4475 = vset.pattern.permute.xlu0 0
  %4476 = vperm.xlu0 %4475, %v4419
  %v4477 = vpop.permute.xlu0 %4476
  %4478 = vset.pattern.permute.xlu0 0
  %4479 = vperm.xlu0 %4478, %v4420
  %v4480 = vpop.permute.xlu0 %4479
  %4481 = vset.pattern.permute.xlu0 0
  %4482 = vperm.xlu0 %4481, %v4421
  %v4483 = vpop.permute.xlu0 %4482
  %4484 = vset.pattern.permute.xlu0 0
  %4485 = vperm.xlu0 %4484, %v4422
  %v4486 = vpop.permute.xlu0 %4485
  %4487 = vset.pattern.permute.xlu0 0
  %4488 = vperm.xlu0 %4487, %v4423
  %v4489 = vpop.permute.xlu0 %4488
  %4490 = vset.pattern.permute.xlu0 0
  %4491 = vperm.xlu0 %4490, %v4424
  %v4492 = vpop.permute.xlu0 %4491
  %4493 = vset.pattern.permute.xlu0 0
  %4494 = vperm.xlu0 %4493, %v4425
  %v4495 = vpop.permute.xlu0 %4494
  %4496 = vset.pattern.permute.xlu0 0
  %4497 = vperm.xlu0 %4496, %v4426
  %v4498 = vpop.permute.xlu0 %4497
  %4499 = vset.pattern.permute.xlu0 0
  %4500 = vperm.xlu0 %4499, %v4427
  %v4501 = vpop.permute.xlu0 %4500
  %4502 = vset.pattern.permute.xlu0 0
  %4503 = vperm.xlu0 %4502, %v4428
  %v4504 = vpop.permute.xlu0 %4503
  %4505 = vset.pattern.permute.xlu0 0
  %4506 = vperm.xlu0 %4505, %v4429
  %v4507 = vpop.permute.xlu0 %4506
  %4508 = vset.pattern.permute.xlu0 0
  %4509 = vperm.xlu0 %4508, %v4430
  %v4510 = vpop.permute.xlu0 %4509
  %4511 = vset.pattern.permute.xlu0 0
  %4512 = vperm.xlu0 %4511, %v4431
  %v4513 = vpop.permute.xlu0 %4512
  %4514 = vset.pattern.permute.xlu0 0
  %4515 = vperm.xlu0 %4514, %v4432
  %v4516 = vpop.permute.xlu0 %4515
  %4517 = vset.pattern.permute.xlu0 0
  %4518 = vperm.xlu0 %4517, %v4433
  %v4519 = vpop.permute.xlu0 %4518
  %4520 = vset.pattern.permute.xlu0 0
  %4521 = vperm.xlu0 %4520, %v4434
  %v4522 = vpop.permute.xlu0 %4521
  %4523 = vset.pattern.permute.xlu0 0
  %4524 = vperm.xlu0 %4523, %v4435
  %v4525 = vpop.permute.xlu0 %4524
  %4526 = vset.pattern.permute.xlu0 0
  %4527 = vperm.xlu0 %4526, %v4436
  %v4528 = vpop.permute.xlu0 %4527
  %4529 = vset.pattern.permute.xlu0 0
  %4530 = vperm.xlu0 %4529, %v4437
  %v4531 = vpop.permute.xlu0 %4530
  %4532 = vset.pattern.permute.xlu0 0
  %4533 = vperm.xlu0 %4532, %v4438
  %v4534 = vpop.permute.xlu0 %4533
  %vm4535 = vcmp.eq.s32.totalorder %v4441, %v337
  %vm4536 = vcmp.eq.s32.totalorder %v4441, %v338
  %vm4537 = vcmp.eq.s32.totalorder %v4444, %v337
  %vm4538 = vcmp.eq.s32.totalorder %v4444, %v338
  %vm4539 = vcmp.eq.s32.totalorder %v4447, %v337
  %vm4540 = vcmp.eq.s32.totalorder %v4447, %v338
  %vm4541 = vcmp.eq.s32.totalorder %v4450, %v337
  %vm4542 = vcmp.eq.s32.totalorder %v4450, %v338
  %vm4543 = vcmp.eq.s32.totalorder %v4453, %v337
  %vm4544 = vcmp.eq.s32.totalorder %v4453, %v338
  %vm4545 = vcmp.eq.s32.totalorder %v4456, %v337
  %vm4546 = vcmp.eq.s32.totalorder %v4456, %v338
  %vm4547 = vcmp.eq.s32.totalorder %v4459, %v337
  %vm4548 = vcmp.eq.s32.totalorder %v4459, %v338
  %vm4549 = vcmp.eq.s32.totalorder %v4462, %v337
  %vm4550 = vcmp.eq.s32.totalorder %v4462, %v338
  %vm4551 = vcmp.eq.s32.totalorder %v4465, %v337
  %vm4552 = vcmp.eq.s32.totalorder %v4465, %v338
  %vm4553 = vcmp.eq.s32.totalorder %v4468, %v337
  %vm4554 = vcmp.eq.s32.totalorder %v4468, %v338
  %vm4555 = vcmp.eq.s32.totalorder %v4471, %v337
  %vm4556 = vcmp.eq.s32.totalorder %v4471, %v338
  %vm4557 = vcmp.eq.s32.totalorder %v4474, %v337
  %vm4558 = vcmp.eq.s32.totalorder %v4474, %v338
  %vm4559 = vcmp.eq.s32.totalorder %v4477, %v337
  %vm4560 = vcmp.eq.s32.totalorder %v4477, %v338
  %vm4561 = vcmp.eq.s32.totalorder %v4480, %v337
  %vm4562 = vcmp.eq.s32.totalorder %v4480, %v338
  %vm4563 = vcmp.eq.s32.totalorder %v4483, %v337
  %vm4564 = vcmp.eq.s32.totalorder %v4483, %v338
  %vm4565 = vcmp.eq.s32.totalorder %v4486, %v337
  %vm4566 = vcmp.eq.s32.totalorder %v4486, %v338
  %vm4567 = vcmp.eq.s32.totalorder %v4489, %v337
  %vm4568 = vcmp.eq.s32.totalorder %v4489, %v338
  %vm4569 = vcmp.eq.s32.totalorder %v4492, %v337
  %vm4570 = vcmp.eq.s32.totalorder %v4492, %v338
  %vm4571 = vcmp.eq.s32.totalorder %v4495, %v337
  %vm4572 = vcmp.eq.s32.totalorder %v4495, %v338
  %vm4573 = vcmp.eq.s32.totalorder %v4498, %v337
  %vm4574 = vcmp.eq.s32.totalorder %v4498, %v338
  %vm4575 = vcmp.eq.s32.totalorder %v4501, %v337
  %vm4576 = vcmp.eq.s32.totalorder %v4501, %v338
  %vm4577 = vcmp.eq.s32.totalorder %v4504, %v337
  %vm4578 = vcmp.eq.s32.totalorder %v4504, %v338
  %vm4579 = vcmp.eq.s32.totalorder %v4507, %v337
  %vm4580 = vcmp.eq.s32.totalorder %v4507, %v338
  %vm4581 = vcmp.eq.s32.totalorder %v4510, %v337
  %vm4582 = vcmp.eq.s32.totalorder %v4510, %v338
  %vm4583 = vcmp.eq.s32.totalorder %v4513, %v337
  %vm4584 = vcmp.eq.s32.totalorder %v4513, %v338
  %vm4585 = vcmp.eq.s32.totalorder %v4516, %v337
  %vm4586 = vcmp.eq.s32.totalorder %v4516, %v338
  %vm4587 = vcmp.eq.s32.totalorder %v4519, %v337
  %vm4588 = vcmp.eq.s32.totalorder %v4519, %v338
  %vm4589 = vcmp.eq.s32.totalorder %v4522, %v337
  %vm4590 = vcmp.eq.s32.totalorder %v4522, %v338
  %vm4591 = vcmp.eq.s32.totalorder %v4525, %v337
  %vm4592 = vcmp.eq.s32.totalorder %v4525, %v338
  %vm4593 = vcmp.eq.s32.totalorder %v4528, %v337
  %vm4594 = vcmp.eq.s32.totalorder %v4528, %v338
  %vm4595 = vcmp.eq.s32.totalorder %v4531, %v337
  %vm4596 = vcmp.eq.s32.totalorder %v4531, %v338
  %vm4597 = vcmp.eq.s32.totalorder %v4534, %v337
  %vm4598 = vcmp.eq.s32.totalorder %v4534, %v338
  %v4599 = vsel %vm4535, 1, 0
  %v4600 = vsel %vm4536, 1, 0
  %v4601 = vsel %vm4537, 1, 0
  %v4602 = vsel %vm4538, 1, 0
  %v4603 = vsel %vm4539, 1, 0
  %v4604 = vsel %vm4540, 1, 0
  %v4605 = vsel %vm4541, 1, 0
  %v4606 = vsel %vm4542, 1, 0
  %v4607 = vsel %vm4543, 1, 0
  %v4608 = vsel %vm4544, 1, 0
  %v4609 = vsel %vm4545, 1, 0
  %v4610 = vsel %vm4546, 1, 0
  %v4611 = vsel %vm4547, 1, 0
  %v4612 = vsel %vm4548, 1, 0
  %v4613 = vsel %vm4549, 1, 0
  %v4614 = vsel %vm4550, 1, 0
  %v4615 = vsel %vm4551, 1, 0
  %v4616 = vsel %vm4552, 1, 0
  %v4617 = vsel %vm4553, 1, 0
  %v4618 = vsel %vm4554, 1, 0
  %v4619 = vsel %vm4555, 1, 0
  %v4620 = vsel %vm4556, 1, 0
  %v4621 = vsel %vm4557, 1, 0
  %v4622 = vsel %vm4558, 1, 0
  %v4623 = vsel %vm4559, 1, 0
  %v4624 = vsel %vm4560, 1, 0
  %v4625 = vsel %vm4561, 1, 0
  %v4626 = vsel %vm4562, 1, 0
  %v4627 = vsel %vm4563, 1, 0
  %v4628 = vsel %vm4564, 1, 0
  %v4629 = vsel %vm4565, 1, 0
  %v4630 = vsel %vm4566, 1, 0
  %v4631 = vsel %vm4567, 1, 0
  %v4632 = vsel %vm4568, 1, 0
  %v4633 = vsel %vm4569, 1, 0
  %v4634 = vsel %vm4570, 1, 0
  %v4635 = vsel %vm4571, 1, 0
  %v4636 = vsel %vm4572, 1, 0
  %v4637 = vsel %vm4573, 1, 0
  %v4638 = vsel %vm4574, 1, 0
  %v4639 = vsel %vm4575, 1, 0
  %v4640 = vsel %vm4576, 1, 0
  %v4641 = vsel %vm4577, 1, 0
  %v4642 = vsel %vm4578, 1, 0
  %v4643 = vsel %vm4579, 1, 0
  %v4644 = vsel %vm4580, 1, 0
  %v4645 = vsel %vm4581, 1, 0
  %v4646 = vsel %vm4582, 1, 0
  %v4647 = vsel %vm4583, 1, 0
  %v4648 = vsel %vm4584, 1, 0
  %v4649 = vsel %vm4585, 1, 0
  %v4650 = vsel %vm4586, 1, 0
  %v4651 = vsel %vm4587, 1, 0
  %v4652 = vsel %vm4588, 1, 0
  %v4653 = vsel %vm4589, 1, 0
  %v4654 = vsel %vm4590, 1, 0
  %v4655 = vsel %vm4591, 1, 0
  %v4656 = vsel %vm4592, 1, 0
  %v4657 = vsel %vm4593, 1, 0
  %v4658 = vsel %vm4594, 1, 0
  %v4659 = vsel %vm4595, 1, 0
  %v4660 = vsel %vm4596, 1, 0
  %v4661 = vsel %vm4597, 1, 0
  %v4662 = vsel %vm4598, 1, 0
  %v4663 = vcvt.s32.f32 %v4599
  %v4664 = vcvt.s32.f32 %v4600
  %v4665 = vcvt.s32.f32 %v4601
  %v4666 = vcvt.s32.f32 %v4602
  %v4667 = vcvt.s32.f32 %v4603
  %v4668 = vcvt.s32.f32 %v4604
  %v4669 = vcvt.s32.f32 %v4605
  %v4670 = vcvt.s32.f32 %v4606
  %v4671 = vcvt.s32.f32 %v4607
  %v4672 = vcvt.s32.f32 %v4608
  %v4673 = vcvt.s32.f32 %v4609
  %v4674 = vcvt.s32.f32 %v4610
  %v4675 = vcvt.s32.f32 %v4611
  %v4676 = vcvt.s32.f32 %v4612
  %v4677 = vcvt.s32.f32 %v4613
  %v4678 = vcvt.s32.f32 %v4614
  %v4679 = vcvt.s32.f32 %v4615
  %v4680 = vcvt.s32.f32 %v4616
  %v4681 = vcvt.s32.f32 %v4617
  %v4682 = vcvt.s32.f32 %v4618
  %v4683 = vcvt.s32.f32 %v4619
  %v4684 = vcvt.s32.f32 %v4620
  %v4685 = vcvt.s32.f32 %v4621
  %v4686 = vcvt.s32.f32 %v4622
  %v4687 = vcvt.s32.f32 %v4623
  %v4688 = vcvt.s32.f32 %v4624
  %v4689 = vcvt.s32.f32 %v4625
  %v4690 = vcvt.s32.f32 %v4626
  %v4691 = vcvt.s32.f32 %v4627
  %v4692 = vcvt.s32.f32 %v4628
  %v4693 = vcvt.s32.f32 %v4629
  %v4694 = vcvt.s32.f32 %v4630
  %v4695 = vcvt.s32.f32 %v4631
  %v4696 = vcvt.s32.f32 %v4632
  %v4697 = vcvt.s32.f32 %v4633
  %v4698 = vcvt.s32.f32 %v4634
  %v4699 = vcvt.s32.f32 %v4635
  %v4700 = vcvt.s32.f32 %v4636
  %v4701 = vcvt.s32.f32 %v4637
  %v4702 = vcvt.s32.f32 %v4638
  %v4703 = vcvt.s32.f32 %v4639
  %v4704 = vcvt.s32.f32 %v4640
  %v4705 = vcvt.s32.f32 %v4641
  %v4706 = vcvt.s32.f32 %v4642
  %v4707 = vcvt.s32.f32 %v4643
  %v4708 = vcvt.s32.f32 %v4644
  %v4709 = vcvt.s32.f32 %v4645
  %v4710 = vcvt.s32.f32 %v4646
  %v4711 = vcvt.s32.f32 %v4647
  %v4712 = vcvt.s32.f32 %v4648
  %v4713 = vcvt.s32.f32 %v4649
  %v4714 = vcvt.s32.f32 %v4650
  %v4715 = vcvt.s32.f32 %v4651
  %v4716 = vcvt.s32.f32 %v4652
  %v4717 = vcvt.s32.f32 %v4653
  %v4718 = vcvt.s32.f32 %v4654
  %v4719 = vcvt.s32.f32 %v4655
  %v4720 = vcvt.s32.f32 %v4656
  %v4721 = vcvt.s32.f32 %v4657
  %v4722 = vcvt.s32.f32 %v4658
  %v4723 = vcvt.s32.f32 %v4659
  %v4724 = vcvt.s32.f32 %v4660
  %v4725 = vcvt.s32.f32 %v4661
  %v4726 = vcvt.s32.f32 %v4662
  %v4727 = vpack.c.bf16 %v4665, %v4663
  %v4728 = vpack.c.bf16 %v4666, %v4664
  %v4729 = vpack.c.bf16 %v4669, %v4667
  %v4730 = vpack.c.bf16 %v4670, %v4668
  %v4731 = vpack.c.bf16 %v4673, %v4671
  %v4732 = vpack.c.bf16 %v4674, %v4672
  %v4733 = vpack.c.bf16 %v4677, %v4675
  %v4734 = vpack.c.bf16 %v4678, %v4676
  %v4735 = vpack.c.bf16 %v4681, %v4679
  %v4736 = vpack.c.bf16 %v4682, %v4680
  %v4737 = vpack.c.bf16 %v4685, %v4683
  %v4738 = vpack.c.bf16 %v4686, %v4684
  %v4739 = vpack.c.bf16 %v4689, %v4687
  %v4740 = vpack.c.bf16 %v4690, %v4688
  %v4741 = vpack.c.bf16 %v4693, %v4691
  %v4742 = vpack.c.bf16 %v4694, %v4692
  %v4743 = vpack.c.bf16 %v4697, %v4695
  %v4744 = vpack.c.bf16 %v4698, %v4696
  %v4745 = vpack.c.bf16 %v4701, %v4699
  %v4746 = vpack.c.bf16 %v4702, %v4700
  %v4747 = vpack.c.bf16 %v4705, %v4703
  %v4748 = vpack.c.bf16 %v4706, %v4704
  %v4749 = vpack.c.bf16 %v4709, %v4707
  %v4750 = vpack.c.bf16 %v4710, %v4708
  %v4751 = vpack.c.bf16 %v4713, %v4711
  %v4752 = vpack.c.bf16 %v4714, %v4712
  %v4753 = vpack.c.bf16 %v4717, %v4715
  %v4754 = vpack.c.bf16 %v4718, %v4716
  %v4755 = vpack.c.bf16 %v4721, %v4719
  %v4756 = vpack.c.bf16 %v4722, %v4720
  %v4757 = vpack.c.bf16 %v4725, %v4723
  %v4758 = vpack.c.bf16 %v4726, %v4724
  %v4759 = vadd.bf16 %v4727, 0
  %v4760 = vadd.bf16 %v4728, 0
  %v4761 = vadd.bf16 %v4729, 0
  %v4762 = vadd.bf16 %v4730, 0
  %v4763 = vadd.bf16 %v4731, 0
  %v4764 = vadd.bf16 %v4732, 0
  %v4765 = vadd.bf16 %v4733, 0
  %v4766 = vadd.bf16 %v4734, 0
  %v4767 = vadd.bf16 %v4735, 0
  %v4768 = vadd.bf16 %v4736, 0
  %v4769 = vadd.bf16 %v4737, 0
  %v4770 = vadd.bf16 %v4738, 0
  %v4771 = vadd.bf16 %v4739, 0
  %v4772 = vadd.bf16 %v4740, 0
  %v4773 = vadd.bf16 %v4741, 0
  %v4774 = vadd.bf16 %v4742, 0
  %v4775 = vadd.bf16 %v4743, 0
  %v4776 = vadd.bf16 %v4744, 0
  %v4777 = vadd.bf16 %v4745, 0
  %v4778 = vadd.bf16 %v4746, 0
  %v4779 = vadd.bf16 %v4747, 0
  %v4780 = vadd.bf16 %v4748, 0
  %v4781 = vadd.bf16 %v4749, 0
  %v4782 = vadd.bf16 %v4750, 0
  %v4783 = vadd.bf16 %v4751, 0
  %v4784 = vadd.bf16 %v4752, 0
  %v4785 = vadd.bf16 %v4753, 0
  %v4786 = vadd.bf16 %v4754, 0
  %v4787 = vadd.bf16 %v4755, 0
  %v4788 = vadd.bf16 %v4756, 0
  %v4789 = vadd.bf16 %v4757, 0
  %v4790 = vadd.bf16 %v4758, 0
  %4791 = vset.pattern.permute.xlu0 1
  %4792 = vperm.xlu0 %4791, %v4407
  %v4793 = vpop.permute.xlu0 %4792
  %4794 = vset.pattern.permute.xlu0 1
  %4795 = vperm.xlu0 %4794, %v4408
  %v4796 = vpop.permute.xlu0 %4795
  %4797 = vset.pattern.permute.xlu0 1
  %4798 = vperm.xlu0 %4797, %v4409
  %v4799 = vpop.permute.xlu0 %4798
  %4800 = vset.pattern.permute.xlu0 1
  %4801 = vperm.xlu0 %4800, %v4410
  %v4802 = vpop.permute.xlu0 %4801
  %4803 = vset.pattern.permute.xlu0 1
  %4804 = vperm.xlu0 %4803, %v4411
  %v4805 = vpop.permute.xlu0 %4804
  %4806 = vset.pattern.permute.xlu0 1
  %4807 = vperm.xlu0 %4806, %v4412
  %v4808 = vpop.permute.xlu0 %4807
  %4809 = vset.pattern.permute.xlu0 1
  %4810 = vperm.xlu0 %4809, %v4413
  %v4811 = vpop.permute.xlu0 %4810
  %4812 = vset.pattern.permute.xlu0 1
  %4813 = vperm.xlu0 %4812, %v4414
  %v4814 = vpop.permute.xlu0 %4813
  %4815 = vset.pattern.permute.xlu0 1
  %4816 = vperm.xlu0 %4815, %v4415
  %v4817 = vpop.permute.xlu0 %4816
  %4818 = vset.pattern.permute.xlu0 1
  %4819 = vperm.xlu0 %4818, %v4416
  %v4820 = vpop.permute.xlu0 %4819
  %4821 = vset.pattern.permute.xlu0 1
  %4822 = vperm.xlu0 %4821, %v4417
  %v4823 = vpop.permute.xlu0 %4822
  %4824 = vset.pattern.permute.xlu0 1
  %4825 = vperm.xlu0 %4824, %v4418
  %v4826 = vpop.permute.xlu0 %4825
  %4827 = vset.pattern.permute.xlu0 1
  %4828 = vperm.xlu0 %4827, %v4419
  %v4829 = vpop.permute.xlu0 %4828
  %4830 = vset.pattern.permute.xlu0 1
  %4831 = vperm.xlu0 %4830, %v4420
  %v4832 = vpop.permute.xlu0 %4831
  %4833 = vset.pattern.permute.xlu0 1
  %4834 = vperm.xlu0 %4833, %v4421
  %v4835 = vpop.permute.xlu0 %4834
  %4836 = vset.pattern.permute.xlu0 1
  %4837 = vperm.xlu0 %4836, %v4422
  %v4838 = vpop.permute.xlu0 %4837
  %4839 = vset.pattern.permute.xlu0 1
  %4840 = vperm.xlu0 %4839, %v4423
  %v4841 = vpop.permute.xlu0 %4840
  %4842 = vset.pattern.permute.xlu0 1
  %4843 = vperm.xlu0 %4842, %v4424
  %v4844 = vpop.permute.xlu0 %4843
  %4845 = vset.pattern.permute.xlu0 1
  %4846 = vperm.xlu0 %4845, %v4425
  %v4847 = vpop.permute.xlu0 %4846
  %4848 = vset.pattern.permute.xlu0 1
  %4849 = vperm.xlu0 %4848, %v4426
  %v4850 = vpop.permute.xlu0 %4849
  %4851 = vset.pattern.permute.xlu0 1
  %4852 = vperm.xlu0 %4851, %v4427
  %v4853 = vpop.permute.xlu0 %4852
  %4854 = vset.pattern.permute.xlu0 1
  %4855 = vperm.xlu0 %4854, %v4428
  %v4856 = vpop.permute.xlu0 %4855
  %4857 = vset.pattern.permute.xlu0 1
  %4858 = vperm.xlu0 %4857, %v4429
  %v4859 = vpop.permute.xlu0 %4858
  %4860 = vset.pattern.permute.xlu0 1
  %4861 = vperm.xlu0 %4860, %v4430
  %v4862 = vpop.permute.xlu0 %4861
  %4863 = vset.pattern.permute.xlu0 1
  %4864 = vperm.xlu0 %4863, %v4431
  %v4865 = vpop.permute.xlu0 %4864
  %4866 = vset.pattern.permute.xlu0 1
  %4867 = vperm.xlu0 %4866, %v4432
  %v4868 = vpop.permute.xlu0 %4867
  %4869 = vset.pattern.permute.xlu0 1
  %4870 = vperm.xlu0 %4869, %v4433
  %v4871 = vpop.permute.xlu0 %4870
  %4872 = vset.pattern.permute.xlu0 1
  %4873 = vperm.xlu0 %4872, %v4434
  %v4874 = vpop.permute.xlu0 %4873
  %4875 = vset.pattern.permute.xlu0 1
  %4876 = vperm.xlu0 %4875, %v4435
  %v4877 = vpop.permute.xlu0 %4876
  %4878 = vset.pattern.permute.xlu0 1
  %4879 = vperm.xlu0 %4878, %v4436
  %v4880 = vpop.permute.xlu0 %4879
  %4881 = vset.pattern.permute.xlu0 1
  %4882 = vperm.xlu0 %4881, %v4437
  %v4883 = vpop.permute.xlu0 %4882
  %4884 = vset.pattern.permute.xlu0 1
  %4885 = vperm.xlu0 %4884, %v4438
  %v4886 = vpop.permute.xlu0 %4885
  %vm4887 = vcmp.eq.s32.totalorder %v4793, %v337
  %vm4888 = vcmp.eq.s32.totalorder %v4793, %v338
  %vm4889 = vcmp.eq.s32.totalorder %v4796, %v337
  %vm4890 = vcmp.eq.s32.totalorder %v4796, %v338
  %vm4891 = vcmp.eq.s32.totalorder %v4799, %v337
  %vm4892 = vcmp.eq.s32.totalorder %v4799, %v338
  %vm4893 = vcmp.eq.s32.totalorder %v4802, %v337
  %vm4894 = vcmp.eq.s32.totalorder %v4802, %v338
  %vm4895 = vcmp.eq.s32.totalorder %v4805, %v337
  %vm4896 = vcmp.eq.s32.totalorder %v4805, %v338
  %vm4897 = vcmp.eq.s32.totalorder %v4808, %v337
  %vm4898 = vcmp.eq.s32.totalorder %v4808, %v338
  %vm4899 = vcmp.eq.s32.totalorder %v4811, %v337
  %vm4900 = vcmp.eq.s32.totalorder %v4811, %v338
  %vm4901 = vcmp.eq.s32.totalorder %v4814, %v337
  %vm4902 = vcmp.eq.s32.totalorder %v4814, %v338
  %vm4903 = vcmp.eq.s32.totalorder %v4817, %v337
  %vm4904 = vcmp.eq.s32.totalorder %v4817, %v338
  %vm4905 = vcmp.eq.s32.totalorder %v4820, %v337
  %vm4906 = vcmp.eq.s32.totalorder %v4820, %v338
  %vm4907 = vcmp.eq.s32.totalorder %v4823, %v337
  %vm4908 = vcmp.eq.s32.totalorder %v4823, %v338
  %vm4909 = vcmp.eq.s32.totalorder %v4826, %v337
  %vm4910 = vcmp.eq.s32.totalorder %v4826, %v338
  %vm4911 = vcmp.eq.s32.totalorder %v4829, %v337
  %vm4912 = vcmp.eq.s32.totalorder %v4829, %v338
  %vm4913 = vcmp.eq.s32.totalorder %v4832, %v337
  %vm4914 = vcmp.eq.s32.totalorder %v4832, %v338
  %vm4915 = vcmp.eq.s32.totalorder %v4835, %v337
  %vm4916 = vcmp.eq.s32.totalorder %v4835, %v338
  %vm4917 = vcmp.eq.s32.totalorder %v4838, %v337
  %vm4918 = vcmp.eq.s32.totalorder %v4838, %v338
  %vm4919 = vcmp.eq.s32.totalorder %v4841, %v337
  %vm4920 = vcmp.eq.s32.totalorder %v4841, %v338
  %vm4921 = vcmp.eq.s32.totalorder %v4844, %v337
  %vm4922 = vcmp.eq.s32.totalorder %v4844, %v338
  %vm4923 = vcmp.eq.s32.totalorder %v4847, %v337
  %vm4924 = vcmp.eq.s32.totalorder %v4847, %v338
  %vm4925 = vcmp.eq.s32.totalorder %v4850, %v337
  %vm4926 = vcmp.eq.s32.totalorder %v4850, %v338
  %vm4927 = vcmp.eq.s32.totalorder %v4853, %v337
  %vm4928 = vcmp.eq.s32.totalorder %v4853, %v338
  %vm4929 = vcmp.eq.s32.totalorder %v4856, %v337
  %vm4930 = vcmp.eq.s32.totalorder %v4856, %v338
  %vm4931 = vcmp.eq.s32.totalorder %v4859, %v337
  %vm4932 = vcmp.eq.s32.totalorder %v4859, %v338
  %vm4933 = vcmp.eq.s32.totalorder %v4862, %v337
  %vm4934 = vcmp.eq.s32.totalorder %v4862, %v338
  %vm4935 = vcmp.eq.s32.totalorder %v4865, %v337
  %vm4936 = vcmp.eq.s32.totalorder %v4865, %v338
  %vm4937 = vcmp.eq.s32.totalorder %v4868, %v337
  %vm4938 = vcmp.eq.s32.totalorder %v4868, %v338
  %vm4939 = vcmp.eq.s32.totalorder %v4871, %v337
  %vm4940 = vcmp.eq.s32.totalorder %v4871, %v338
  %vm4941 = vcmp.eq.s32.totalorder %v4874, %v337
  %vm4942 = vcmp.eq.s32.totalorder %v4874, %v338
  %vm4943 = vcmp.eq.s32.totalorder %v4877, %v337
  %vm4944 = vcmp.eq.s32.totalorder %v4877, %v338
  %vm4945 = vcmp.eq.s32.totalorder %v4880, %v337
  %vm4946 = vcmp.eq.s32.totalorder %v4880, %v338
  %vm4947 = vcmp.eq.s32.totalorder %v4883, %v337
  %vm4948 = vcmp.eq.s32.totalorder %v4883, %v338
  %vm4949 = vcmp.eq.s32.totalorder %v4886, %v337
  %vm4950 = vcmp.eq.s32.totalorder %v4886, %v338
  %v4951 = vsel %vm4887, 1, 0
  %v4952 = vsel %vm4888, 1, 0
  %v4953 = vsel %vm4889, 1, 0
  %v4954 = vsel %vm4890, 1, 0
  %v4955 = vsel %vm4891, 1, 0
  %v4956 = vsel %vm4892, 1, 0
  %v4957 = vsel %vm4893, 1, 0
  %v4958 = vsel %vm4894, 1, 0
  %v4959 = vsel %vm4895, 1, 0
  %v4960 = vsel %vm4896, 1, 0
  %v4961 = vsel %vm4897, 1, 0
  %v4962 = vsel %vm4898, 1, 0
  %v4963 = vsel %vm4899, 1, 0
  %v4964 = vsel %vm4900, 1, 0
  %v4965 = vsel %vm4901, 1, 0
  %v4966 = vsel %vm4902, 1, 0
  %v4967 = vsel %vm4903, 1, 0
  %v4968 = vsel %vm4904, 1, 0
  %v4969 = vsel %vm4905, 1, 0
  %v4970 = vsel %vm4906, 1, 0
  %v4971 = vsel %vm4907, 1, 0
  %v4972 = vsel %vm4908, 1, 0
  %v4973 = vsel %vm4909, 1, 0
  %v4974 = vsel %vm4910, 1, 0
  %v4975 = vsel %vm4911, 1, 0
  %v4976 = vsel %vm4912, 1, 0
  %v4977 = vsel %vm4913, 1, 0
  %v4978 = vsel %vm4914, 1, 0
  %v4979 = vsel %vm4915, 1, 0
  %v4980 = vsel %vm4916, 1, 0
  %v4981 = vsel %vm4917, 1, 0
  %v4982 = vsel %vm4918, 1, 0
  %v4983 = vsel %vm4919, 1, 0
  %v4984 = vsel %vm4920, 1, 0
  %v4985 = vsel %vm4921, 1, 0
  %v4986 = vsel %vm4922, 1, 0
  %v4987 = vsel %vm4923, 1, 0
  %v4988 = vsel %vm4924, 1, 0
  %v4989 = vsel %vm4925, 1, 0
  %v4990 = vsel %vm4926, 1, 0
  %v4991 = vsel %vm4927, 1, 0
  %v4992 = vsel %vm4928, 1, 0
  %v4993 = vsel %vm4929, 1, 0
  %v4994 = vsel %vm4930, 1, 0
  %v4995 = vsel %vm4931, 1, 0
  %v4996 = vsel %vm4932, 1, 0
  %v4997 = vsel %vm4933, 1, 0
  %v4998 = vsel %vm4934, 1, 0
  %v4999 = vsel %vm4935, 1, 0
  %v5000 = vsel %vm4936, 1, 0
  %v5001 = vsel %vm4937, 1, 0
  %v5002 = vsel %vm4938, 1, 0
  %v5003 = vsel %vm4939, 1, 0
  %v5004 = vsel %vm4940, 1, 0
  %v5005 = vsel %vm4941, 1, 0
  %v5006 = vsel %vm4942, 1, 0
  %v5007 = vsel %vm4943, 1, 0
  %v5008 = vsel %vm4944, 1, 0
  %v5009 = vsel %vm4945, 1, 0
  %v5010 = vsel %vm4946, 1, 0
  %v5011 = vsel %vm4947, 1, 0
  %v5012 = vsel %vm4948, 1, 0
  %v5013 = vsel %vm4949, 1, 0
  %v5014 = vsel %vm4950, 1, 0
  %v5015 = vcvt.s32.f32 %v4951
  %v5016 = vcvt.s32.f32 %v4952
  %v5017 = vcvt.s32.f32 %v4953
  %v5018 = vcvt.s32.f32 %v4954
  %v5019 = vcvt.s32.f32 %v4955
  %v5020 = vcvt.s32.f32 %v4956
  %v5021 = vcvt.s32.f32 %v4957
  %v5022 = vcvt.s32.f32 %v4958
  %v5023 = vcvt.s32.f32 %v4959
  %v5024 = vcvt.s32.f32 %v4960
  %v5025 = vcvt.s32.f32 %v4961
  %v5026 = vcvt.s32.f32 %v4962
  %v5027 = vcvt.s32.f32 %v4963
  %v5028 = vcvt.s32.f32 %v4964
  %v5029 = vcvt.s32.f32 %v4965
  %v5030 = vcvt.s32.f32 %v4966
  %v5031 = vcvt.s32.f32 %v4967
  %v5032 = vcvt.s32.f32 %v4968
  %v5033 = vcvt.s32.f32 %v4969
  %v5034 = vcvt.s32.f32 %v4970
  %v5035 = vcvt.s32.f32 %v4971
  %v5036 = vcvt.s32.f32 %v4972
  %v5037 = vcvt.s32.f32 %v4973
  %v5038 = vcvt.s32.f32 %v4974
  %v5039 = vcvt.s32.f32 %v4975
  %v5040 = vcvt.s32.f32 %v4976
  %v5041 = vcvt.s32.f32 %v4977
  %v5042 = vcvt.s32.f32 %v4978
  %v5043 = vcvt.s32.f32 %v4979
  %v5044 = vcvt.s32.f32 %v4980
  %v5045 = vcvt.s32.f32 %v4981
  %v5046 = vcvt.s32.f32 %v4982
  %v5047 = vcvt.s32.f32 %v4983
  %v5048 = vcvt.s32.f32 %v4984
  %v5049 = vcvt.s32.f32 %v4985
  %v5050 = vcvt.s32.f32 %v4986
  %v5051 = vcvt.s32.f32 %v4987
  %v5052 = vcvt.s32.f32 %v4988
  %v5053 = vcvt.s32.f32 %v4989
  %v5054 = vcvt.s32.f32 %v4990
  %v5055 = vcvt.s32.f32 %v4991
  %v5056 = vcvt.s32.f32 %v4992
  %v5057 = vcvt.s32.f32 %v4993
  %v5058 = vcvt.s32.f32 %v4994
  %v5059 = vcvt.s32.f32 %v4995
  %v5060 = vcvt.s32.f32 %v4996
  %v5061 = vcvt.s32.f32 %v4997
  %v5062 = vcvt.s32.f32 %v4998
  %v5063 = vcvt.s32.f32 %v4999
  %v5064 = vcvt.s32.f32 %v5000
  %v5065 = vcvt.s32.f32 %v5001
  %v5066 = vcvt.s32.f32 %v5002
  %v5067 = vcvt.s32.f32 %v5003
  %v5068 = vcvt.s32.f32 %v5004
  %v5069 = vcvt.s32.f32 %v5005
  %v5070 = vcvt.s32.f32 %v5006
  %v5071 = vcvt.s32.f32 %v5007
  %v5072 = vcvt.s32.f32 %v5008
  %v5073 = vcvt.s32.f32 %v5009
  %v5074 = vcvt.s32.f32 %v5010
  %v5075 = vcvt.s32.f32 %v5011
  %v5076 = vcvt.s32.f32 %v5012
  %v5077 = vcvt.s32.f32 %v5013
  %v5078 = vcvt.s32.f32 %v5014
  %v5079 = vpack.c.bf16 %v5017, %v5015
  %v5080 = vpack.c.bf16 %v5018, %v5016
  %v5081 = vpack.c.bf16 %v5021, %v5019
  %v5082 = vpack.c.bf16 %v5022, %v5020
  %v5083 = vpack.c.bf16 %v5025, %v5023
  %v5084 = vpack.c.bf16 %v5026, %v5024
  %v5085 = vpack.c.bf16 %v5029, %v5027
  %v5086 = vpack.c.bf16 %v5030, %v5028
  %v5087 = vpack.c.bf16 %v5033, %v5031
  %v5088 = vpack.c.bf16 %v5034, %v5032
  %v5089 = vpack.c.bf16 %v5037, %v5035
  %v5090 = vpack.c.bf16 %v5038, %v5036
  %v5091 = vpack.c.bf16 %v5041, %v5039
  %v5092 = vpack.c.bf16 %v5042, %v5040
  %v5093 = vpack.c.bf16 %v5045, %v5043
  %v5094 = vpack.c.bf16 %v5046, %v5044
  %v5095 = vpack.c.bf16 %v5049, %v5047
  %v5096 = vpack.c.bf16 %v5050, %v5048
  %v5097 = vpack.c.bf16 %v5053, %v5051
  %v5098 = vpack.c.bf16 %v5054, %v5052
  %v5099 = vpack.c.bf16 %v5057, %v5055
  %v5100 = vpack.c.bf16 %v5058, %v5056
  %v5101 = vpack.c.bf16 %v5061, %v5059
  %v5102 = vpack.c.bf16 %v5062, %v5060
  %v5103 = vpack.c.bf16 %v5065, %v5063
  %v5104 = vpack.c.bf16 %v5066, %v5064
  %v5105 = vpack.c.bf16 %v5069, %v5067
  %v5106 = vpack.c.bf16 %v5070, %v5068
  %v5107 = vpack.c.bf16 %v5073, %v5071
  %v5108 = vpack.c.bf16 %v5074, %v5072
  %v5109 = vpack.c.bf16 %v5077, %v5075
  %v5110 = vpack.c.bf16 %v5078, %v5076
  %v5111 = vadd.bf16 %v4759, %v5079
  %v5112 = vadd.bf16 %v4760, %v5080
  %v5113 = vadd.bf16 %v4761, %v5081
  %v5114 = vadd.bf16 %v4762, %v5082
  %v5115 = vadd.bf16 %v4763, %v5083
  %v5116 = vadd.bf16 %v4764, %v5084
  %v5117 = vadd.bf16 %v4765, %v5085
  %v5118 = vadd.bf16 %v4766, %v5086
  %v5119 = vadd.bf16 %v4767, %v5087
  %v5120 = vadd.bf16 %v4768, %v5088
  %v5121 = vadd.bf16 %v4769, %v5089
  %v5122 = vadd.bf16 %v4770, %v5090
  %v5123 = vadd.bf16 %v4771, %v5091
  %v5124 = vadd.bf16 %v4772, %v5092
  %v5125 = vadd.bf16 %v4773, %v5093
  %v5126 = vadd.bf16 %v4774, %v5094
  %v5127 = vadd.bf16 %v4775, %v5095
  %v5128 = vadd.bf16 %v4776, %v5096
  %v5129 = vadd.bf16 %v4777, %v5097
  %v5130 = vadd.bf16 %v4778, %v5098
  %v5131 = vadd.bf16 %v4779, %v5099
  %v5132 = vadd.bf16 %v4780, %v5100
  %v5133 = vadd.bf16 %v4781, %v5101
  %v5134 = vadd.bf16 %v4782, %v5102
  %v5135 = vadd.bf16 %v4783, %v5103
  %v5136 = vadd.bf16 %v4784, %v5104
  %v5137 = vadd.bf16 %v4785, %v5105
  %v5138 = vadd.bf16 %v4786, %v5106
  %v5139 = vadd.bf16 %v4787, %v5107
  %v5140 = vadd.bf16 %v4788, %v5108
  %v5141 = vadd.bf16 %v4789, %v5109
  %v5142 = vadd.bf16 %v4790, %v5110
  %5143 = vset.pattern.permute.xlu0 2
  %5144 = vperm.xlu0 %5143, %v4407
  %v5145 = vpop.permute.xlu0 %5144
  %5146 = vset.pattern.permute.xlu0 2
  %5147 = vperm.xlu0 %5146, %v4408
  %v5148 = vpop.permute.xlu0 %5147
  %5149 = vset.pattern.permute.xlu0 2
  %5150 = vperm.xlu0 %5149, %v4409
  %v5151 = vpop.permute.xlu0 %5150
  %5152 = vset.pattern.permute.xlu0 2
  %5153 = vperm.xlu0 %5152, %v4410
  %v5154 = vpop.permute.xlu0 %5153
  %5155 = vset.pattern.permute.xlu0 2
  %5156 = vperm.xlu0 %5155, %v4411
  %v5157 = vpop.permute.xlu0 %5156
  %5158 = vset.pattern.permute.xlu0 2
  %5159 = vperm.xlu0 %5158, %v4412
  %v5160 = vpop.permute.xlu0 %5159
  %5161 = vset.pattern.permute.xlu0 2
  %5162 = vperm.xlu0 %5161, %v4413
  %v5163 = vpop.permute.xlu0 %5162
  %5164 = vset.pattern.permute.xlu0 2
  %5165 = vperm.xlu0 %5164, %v4414
  %v5166 = vpop.permute.xlu0 %5165
  %5167 = vset.pattern.permute.xlu0 2
  %5168 = vperm.xlu0 %5167, %v4415
  %v5169 = vpop.permute.xlu0 %5168
  %5170 = vset.pattern.permute.xlu0 2
  %5171 = vperm.xlu0 %5170, %v4416
  %v5172 = vpop.permute.xlu0 %5171
  %5173 = vset.pattern.permute.xlu0 2
  %5174 = vperm.xlu0 %5173, %v4417
  %v5175 = vpop.permute.xlu0 %5174
  %5176 = vset.pattern.permute.xlu0 2
  %5177 = vperm.xlu0 %5176, %v4418
  %v5178 = vpop.permute.xlu0 %5177
  %5179 = vset.pattern.permute.xlu0 2
  %5180 = vperm.xlu0 %5179, %v4419
  %v5181 = vpop.permute.xlu0 %5180
  %5182 = vset.pattern.permute.xlu0 2
  %5183 = vperm.xlu0 %5182, %v4420
  %v5184 = vpop.permute.xlu0 %5183
  %5185 = vset.pattern.permute.xlu0 2
  %5186 = vperm.xlu0 %5185, %v4421
  %v5187 = vpop.permute.xlu0 %5186
  %5188 = vset.pattern.permute.xlu0 2
  %5189 = vperm.xlu0 %5188, %v4422
  %v5190 = vpop.permute.xlu0 %5189
  %5191 = vset.pattern.permute.xlu0 2
  %5192 = vperm.xlu0 %5191, %v4423
  %v5193 = vpop.permute.xlu0 %5192
  %5194 = vset.pattern.permute.xlu0 2
  %5195 = vperm.xlu0 %5194, %v4424
  %v5196 = vpop.permute.xlu0 %5195
  %5197 = vset.pattern.permute.xlu0 2
  %5198 = vperm.xlu0 %5197, %v4425
  %v5199 = vpop.permute.xlu0 %5198
  %5200 = vset.pattern.permute.xlu0 2
  %5201 = vperm.xlu0 %5200, %v4426
  %v5202 = vpop.permute.xlu0 %5201
  %5203 = vset.pattern.permute.xlu0 2
  %5204 = vperm.xlu0 %5203, %v4427
  %v5205 = vpop.permute.xlu0 %5204
  %5206 = vset.pattern.permute.xlu0 2
  %5207 = vperm.xlu0 %5206, %v4428
  %v5208 = vpop.permute.xlu0 %5207
  %5209 = vset.pattern.permute.xlu0 2
  %5210 = vperm.xlu0 %5209, %v4429
  %v5211 = vpop.permute.xlu0 %5210
  %5212 = vset.pattern.permute.xlu0 2
  %5213 = vperm.xlu0 %5212, %v4430
  %v5214 = vpop.permute.xlu0 %5213
  %5215 = vset.pattern.permute.xlu0 2
  %5216 = vperm.xlu0 %5215, %v4431
  %v5217 = vpop.permute.xlu0 %5216
  %5218 = vset.pattern.permute.xlu0 2
  %5219 = vperm.xlu0 %5218, %v4432
  %v5220 = vpop.permute.xlu0 %5219
  %5221 = vset.pattern.permute.xlu0 2
  %5222 = vperm.xlu0 %5221, %v4433
  %v5223 = vpop.permute.xlu0 %5222
  %5224 = vset.pattern.permute.xlu0 2
  %5225 = vperm.xlu0 %5224, %v4434
  %v5226 = vpop.permute.xlu0 %5225
  %5227 = vset.pattern.permute.xlu0 2
  %5228 = vperm.xlu0 %5227, %v4435
  %v5229 = vpop.permute.xlu0 %5228
  %5230 = vset.pattern.permute.xlu0 2
  %5231 = vperm.xlu0 %5230, %v4436
  %v5232 = vpop.permute.xlu0 %5231
  %5233 = vset.pattern.permute.xlu0 2
  %5234 = vperm.xlu0 %5233, %v4437
  %v5235 = vpop.permute.xlu0 %5234
  %5236 = vset.pattern.permute.xlu0 2
  %5237 = vperm.xlu0 %5236, %v4438
  %v5238 = vpop.permute.xlu0 %5237
  %vm5239 = vcmp.eq.s32.totalorder %v5145, %v337
  %vm5240 = vcmp.eq.s32.totalorder %v5145, %v338
  %vm5241 = vcmp.eq.s32.totalorder %v5148, %v337
  %vm5242 = vcmp.eq.s32.totalorder %v5148, %v338
  %vm5243 = vcmp.eq.s32.totalorder %v5151, %v337
  %vm5244 = vcmp.eq.s32.totalorder %v5151, %v338
  %vm5245 = vcmp.eq.s32.totalorder %v5154, %v337
  %vm5246 = vcmp.eq.s32.totalorder %v5154, %v338
  %vm5247 = vcmp.eq.s32.totalorder %v5157, %v337
  %vm5248 = vcmp.eq.s32.totalorder %v5157, %v338
  %vm5249 = vcmp.eq.s32.totalorder %v5160, %v337
  %vm5250 = vcmp.eq.s32.totalorder %v5160, %v338
  %vm5251 = vcmp.eq.s32.totalorder %v5163, %v337
  %vm5252 = vcmp.eq.s32.totalorder %v5163, %v338
  %vm5253 = vcmp.eq.s32.totalorder %v5166, %v337
  %vm5254 = vcmp.eq.s32.totalorder %v5166, %v338
  %vm5255 = vcmp.eq.s32.totalorder %v5169, %v337
  %vm5256 = vcmp.eq.s32.totalorder %v5169, %v338
  %vm5257 = vcmp.eq.s32.totalorder %v5172, %v337
  %vm5258 = vcmp.eq.s32.totalorder %v5172, %v338
  %vm5259 = vcmp.eq.s32.totalorder %v5175, %v337
  %vm5260 = vcmp.eq.s32.totalorder %v5175, %v338
  %vm5261 = vcmp.eq.s32.totalorder %v5178, %v337
  %vm5262 = vcmp.eq.s32.totalorder %v5178, %v338
  %vm5263 = vcmp.eq.s32.totalorder %v5181, %v337
  %vm5264 = vcmp.eq.s32.totalorder %v5181, %v338
  %vm5265 = vcmp.eq.s32.totalorder %v5184, %v337
  %vm5266 = vcmp.eq.s32.totalorder %v5184, %v338
  %vm5267 = vcmp.eq.s32.totalorder %v5187, %v337
  %vm5268 = vcmp.eq.s32.totalorder %v5187, %v338
  %vm5269 = vcmp.eq.s32.totalorder %v5190, %v337
  %vm5270 = vcmp.eq.s32.totalorder %v5190, %v338
  %vm5271 = vcmp.eq.s32.totalorder %v5193, %v337
  %vm5272 = vcmp.eq.s32.totalorder %v5193, %v338
  %vm5273 = vcmp.eq.s32.totalorder %v5196, %v337
  %vm5274 = vcmp.eq.s32.totalorder %v5196, %v338
  %vm5275 = vcmp.eq.s32.totalorder %v5199, %v337
  %vm5276 = vcmp.eq.s32.totalorder %v5199, %v338
  %vm5277 = vcmp.eq.s32.totalorder %v5202, %v337
  %vm5278 = vcmp.eq.s32.totalorder %v5202, %v338
  %vm5279 = vcmp.eq.s32.totalorder %v5205, %v337
  %vm5280 = vcmp.eq.s32.totalorder %v5205, %v338
  %vm5281 = vcmp.eq.s32.totalorder %v5208, %v337
  %vm5282 = vcmp.eq.s32.totalorder %v5208, %v338
  %vm5283 = vcmp.eq.s32.totalorder %v5211, %v337
  %vm5284 = vcmp.eq.s32.totalorder %v5211, %v338
  %vm5285 = vcmp.eq.s32.totalorder %v5214, %v337
  %vm5286 = vcmp.eq.s32.totalorder %v5214, %v338
  %vm5287 = vcmp.eq.s32.totalorder %v5217, %v337
  %vm5288 = vcmp.eq.s32.totalorder %v5217, %v338
  %vm5289 = vcmp.eq.s32.totalorder %v5220, %v337
  %vm5290 = vcmp.eq.s32.totalorder %v5220, %v338
  %vm5291 = vcmp.eq.s32.totalorder %v5223, %v337
  %vm5292 = vcmp.eq.s32.totalorder %v5223, %v338
  %vm5293 = vcmp.eq.s32.totalorder %v5226, %v337
  %vm5294 = vcmp.eq.s32.totalorder %v5226, %v338
  %vm5295 = vcmp.eq.s32.totalorder %v5229, %v337
  %vm5296 = vcmp.eq.s32.totalorder %v5229, %v338
  %vm5297 = vcmp.eq.s32.totalorder %v5232, %v337
  %vm5298 = vcmp.eq.s32.totalorder %v5232, %v338
  %vm5299 = vcmp.eq.s32.totalorder %v5235, %v337
  %vm5300 = vcmp.eq.s32.totalorder %v5235, %v338
  %vm5301 = vcmp.eq.s32.totalorder %v5238, %v337
  %vm5302 = vcmp.eq.s32.totalorder %v5238, %v338
  %v5303 = vsel %vm5239, 1, 0
  %v5304 = vsel %vm5240, 1, 0
  %v5305 = vsel %vm5241, 1, 0
  %v5306 = vsel %vm5242, 1, 0
  %v5307 = vsel %vm5243, 1, 0
  %v5308 = vsel %vm5244, 1, 0
  %v5309 = vsel %vm5245, 1, 0
  %v5310 = vsel %vm5246, 1, 0
  %v5311 = vsel %vm5247, 1, 0
  %v5312 = vsel %vm5248, 1, 0
  %v5313 = vsel %vm5249, 1, 0
  %v5314 = vsel %vm5250, 1, 0
  %v5315 = vsel %vm5251, 1, 0
  %v5316 = vsel %vm5252, 1, 0
  %v5317 = vsel %vm5253, 1, 0
  %v5318 = vsel %vm5254, 1, 0
  %v5319 = vsel %vm5255, 1, 0
  %v5320 = vsel %vm5256, 1, 0
  %v5321 = vsel %vm5257, 1, 0
  %v5322 = vsel %vm5258, 1, 0
  %v5323 = vsel %vm5259, 1, 0
  %v5324 = vsel %vm5260, 1, 0
  %v5325 = vsel %vm5261, 1, 0
  %v5326 = vsel %vm5262, 1, 0
  %v5327 = vsel %vm5263, 1, 0
  %v5328 = vsel %vm5264, 1, 0
  %v5329 = vsel %vm5265, 1, 0
  %v5330 = vsel %vm5266, 1, 0
  %v5331 = vsel %vm5267, 1, 0
  %v5332 = vsel %vm5268, 1, 0
  %v5333 = vsel %vm5269, 1, 0
  %v5334 = vsel %vm5270, 1, 0
  %v5335 = vsel %vm5271, 1, 0
  %v5336 = vsel %vm5272, 1, 0
  %v5337 = vsel %vm5273, 1, 0
  %v5338 = vsel %vm5274, 1, 0
  %v5339 = vsel %vm5275, 1, 0
  %v5340 = vsel %vm5276, 1, 0
  %v5341 = vsel %vm5277, 1, 0
  %v5342 = vsel %vm5278, 1, 0
  %v5343 = vsel %vm5279, 1, 0
  %v5344 = vsel %vm5280, 1, 0
  %v5345 = vsel %vm5281, 1, 0
  %v5346 = vsel %vm5282, 1, 0
  %v5347 = vsel %vm5283, 1, 0
  %v5348 = vsel %vm5284, 1, 0
  %v5349 = vsel %vm5285, 1, 0
  %v5350 = vsel %vm5286, 1, 0
  %v5351 = vsel %vm5287, 1, 0
  %v5352 = vsel %vm5288, 1, 0
  %v5353 = vsel %vm5289, 1, 0
  %v5354 = vsel %vm5290, 1, 0
  %v5355 = vsel %vm5291, 1, 0
  %v5356 = vsel %vm5292, 1, 0
  %v5357 = vsel %vm5293, 1, 0
  %v5358 = vsel %vm5294, 1, 0
  %v5359 = vsel %vm5295, 1, 0
  %v5360 = vsel %vm5296, 1, 0
  %v5361 = vsel %vm5297, 1, 0
  %v5362 = vsel %vm5298, 1, 0
  %v5363 = vsel %vm5299, 1, 0
  %v5364 = vsel %vm5300, 1, 0
  %v5365 = vsel %vm5301, 1, 0
  %v5366 = vsel %vm5302, 1, 0
  %v5367 = vcvt.s32.f32 %v5303
  %v5368 = vcvt.s32.f32 %v5304
  %v5369 = vcvt.s32.f32 %v5305
  %v5370 = vcvt.s32.f32 %v5306
  %v5371 = vcvt.s32.f32 %v5307
  %v5372 = vcvt.s32.f32 %v5308
  %v5373 = vcvt.s32.f32 %v5309
  %v5374 = vcvt.s32.f32 %v5310
  %v5375 = vcvt.s32.f32 %v5311
  %v5376 = vcvt.s32.f32 %v5312
  %v5377 = vcvt.s32.f32 %v5313
  %v5378 = vcvt.s32.f32 %v5314
  %v5379 = vcvt.s32.f32 %v5315
  %v5380 = vcvt.s32.f32 %v5316
  %v5381 = vcvt.s32.f32 %v5317
  %v5382 = vcvt.s32.f32 %v5318
  %v5383 = vcvt.s32.f32 %v5319
  %v5384 = vcvt.s32.f32 %v5320
  %v5385 = vcvt.s32.f32 %v5321
  %v5386 = vcvt.s32.f32 %v5322
  %v5387 = vcvt.s32.f32 %v5323
  %v5388 = vcvt.s32.f32 %v5324
  %v5389 = vcvt.s32.f32 %v5325
  %v5390 = vcvt.s32.f32 %v5326
  %v5391 = vcvt.s32.f32 %v5327
  %v5392 = vcvt.s32.f32 %v5328
  %v5393 = vcvt.s32.f32 %v5329
  %v5394 = vcvt.s32.f32 %v5330
  %v5395 = vcvt.s32.f32 %v5331
  %v5396 = vcvt.s32.f32 %v5332
  %v5397 = vcvt.s32.f32 %v5333
  %v5398 = vcvt.s32.f32 %v5334
  %v5399 = vcvt.s32.f32 %v5335
  %v5400 = vcvt.s32.f32 %v5336
  %v5401 = vcvt.s32.f32 %v5337
  %v5402 = vcvt.s32.f32 %v5338
  %v5403 = vcvt.s32.f32 %v5339
  %v5404 = vcvt.s32.f32 %v5340
  %v5405 = vcvt.s32.f32 %v5341
  %v5406 = vcvt.s32.f32 %v5342
  %v5407 = vcvt.s32.f32 %v5343
  %v5408 = vcvt.s32.f32 %v5344
  %v5409 = vcvt.s32.f32 %v5345
  %v5410 = vcvt.s32.f32 %v5346
  %v5411 = vcvt.s32.f32 %v5347
  %v5412 = vcvt.s32.f32 %v5348
  %v5413 = vcvt.s32.f32 %v5349
  %v5414 = vcvt.s32.f32 %v5350
  %v5415 = vcvt.s32.f32 %v5351
  %v5416 = vcvt.s32.f32 %v5352
  %v5417 = vcvt.s32.f32 %v5353
  %v5418 = vcvt.s32.f32 %v5354
  %v5419 = vcvt.s32.f32 %v5355
  %v5420 = vcvt.s32.f32 %v5356
  %v5421 = vcvt.s32.f32 %v5357
  %v5422 = vcvt.s32.f32 %v5358
  %v5423 = vcvt.s32.f32 %v5359
  %v5424 = vcvt.s32.f32 %v5360
  %v5425 = vcvt.s32.f32 %v5361
  %v5426 = vcvt.s32.f32 %v5362
  %v5427 = vcvt.s32.f32 %v5363
  %v5428 = vcvt.s32.f32 %v5364
  %v5429 = vcvt.s32.f32 %v5365
  %v5430 = vcvt.s32.f32 %v5366
  %v5431 = vpack.c.bf16 %v5369, %v5367
  %v5432 = vpack.c.bf16 %v5370, %v5368
  %v5433 = vpack.c.bf16 %v5373, %v5371
  %v5434 = vpack.c.bf16 %v5374, %v5372
  %v5435 = vpack.c.bf16 %v5377, %v5375
  %v5436 = vpack.c.bf16 %v5378, %v5376
  %v5437 = vpack.c.bf16 %v5381, %v5379
  %v5438 = vpack.c.bf16 %v5382, %v5380
  %v5439 = vpack.c.bf16 %v5385, %v5383
  %v5440 = vpack.c.bf16 %v5386, %v5384
  %v5441 = vpack.c.bf16 %v5389, %v5387
  %v5442 = vpack.c.bf16 %v5390, %v5388
  %v5443 = vpack.c.bf16 %v5393, %v5391
  %v5444 = vpack.c.bf16 %v5394, %v5392
  %v5445 = vpack.c.bf16 %v5397, %v5395
  %v5446 = vpack.c.bf16 %v5398, %v5396
  %v5447 = vpack.c.bf16 %v5401, %v5399
  %v5448 = vpack.c.bf16 %v5402, %v5400
  %v5449 = vpack.c.bf16 %v5405, %v5403
  %v5450 = vpack.c.bf16 %v5406, %v5404
  %v5451 = vpack.c.bf16 %v5409, %v5407
  %v5452 = vpack.c.bf16 %v5410, %v5408
  %v5453 = vpack.c.bf16 %v5413, %v5411
  %v5454 = vpack.c.bf16 %v5414, %v5412
  %v5455 = vpack.c.bf16 %v5417, %v5415
  %v5456 = vpack.c.bf16 %v5418, %v5416
  %v5457 = vpack.c.bf16 %v5421, %v5419
  %v5458 = vpack.c.bf16 %v5422, %v5420
  %v5459 = vpack.c.bf16 %v5425, %v5423
  %v5460 = vpack.c.bf16 %v5426, %v5424
  %v5461 = vpack.c.bf16 %v5429, %v5427
  %v5462 = vpack.c.bf16 %v5430, %v5428
  %v5463 = vadd.bf16 %v5111, %v5431
  %v5464 = vadd.bf16 %v5112, %v5432
  %v5465 = vadd.bf16 %v5113, %v5433
  %v5466 = vadd.bf16 %v5114, %v5434
  %v5467 = vadd.bf16 %v5115, %v5435
  %v5468 = vadd.bf16 %v5116, %v5436
  %v5469 = vadd.bf16 %v5117, %v5437
  %v5470 = vadd.bf16 %v5118, %v5438
  %v5471 = vadd.bf16 %v5119, %v5439
  %v5472 = vadd.bf16 %v5120, %v5440
  %v5473 = vadd.bf16 %v5121, %v5441
  %v5474 = vadd.bf16 %v5122, %v5442
  %v5475 = vadd.bf16 %v5123, %v5443
  %v5476 = vadd.bf16 %v5124, %v5444
  %v5477 = vadd.bf16 %v5125, %v5445
  %v5478 = vadd.bf16 %v5126, %v5446
  %v5479 = vadd.bf16 %v5127, %v5447
  %v5480 = vadd.bf16 %v5128, %v5448
  %v5481 = vadd.bf16 %v5129, %v5449
  %v5482 = vadd.bf16 %v5130, %v5450
  %v5483 = vadd.bf16 %v5131, %v5451
  %v5484 = vadd.bf16 %v5132, %v5452
  %v5485 = vadd.bf16 %v5133, %v5453
  %v5486 = vadd.bf16 %v5134, %v5454
  %v5487 = vadd.bf16 %v5135, %v5455
  %v5488 = vadd.bf16 %v5136, %v5456
  %v5489 = vadd.bf16 %v5137, %v5457
  %v5490 = vadd.bf16 %v5138, %v5458
  %v5491 = vadd.bf16 %v5139, %v5459
  %v5492 = vadd.bf16 %v5140, %v5460
  %v5493 = vadd.bf16 %v5141, %v5461
  %v5494 = vadd.bf16 %v5142, %v5462
  %5495 = vset.pattern.permute.xlu0 3
  %5496 = vperm.xlu0 %5495, %v4407
  %v5497 = vpop.permute.xlu0 %5496
  %5498 = vset.pattern.permute.xlu0 3
  %5499 = vperm.xlu0 %5498, %v4408
  %v5500 = vpop.permute.xlu0 %5499
  %5501 = vset.pattern.permute.xlu0 3
  %5502 = vperm.xlu0 %5501, %v4409
  %v5503 = vpop.permute.xlu0 %5502
  %5504 = vset.pattern.permute.xlu0 3
  %5505 = vperm.xlu0 %5504, %v4410
  %v5506 = vpop.permute.xlu0 %5505
  %5507 = vset.pattern.permute.xlu0 3
  %5508 = vperm.xlu0 %5507, %v4411
  %v5509 = vpop.permute.xlu0 %5508
  %5510 = vset.pattern.permute.xlu0 3
  %5511 = vperm.xlu0 %5510, %v4412
  %v5512 = vpop.permute.xlu0 %5511
  %5513 = vset.pattern.permute.xlu0 3
  %5514 = vperm.xlu0 %5513, %v4413
  %v5515 = vpop.permute.xlu0 %5514
  %5516 = vset.pattern.permute.xlu0 3
  %5517 = vperm.xlu0 %5516, %v4414
  %v5518 = vpop.permute.xlu0 %5517
  %5519 = vset.pattern.permute.xlu0 3
  %5520 = vperm.xlu0 %5519, %v4415
  %v5521 = vpop.permute.xlu0 %5520
  %5522 = vset.pattern.permute.xlu0 3
  %5523 = vperm.xlu0 %5522, %v4416
  %v5524 = vpop.permute.xlu0 %5523
  %5525 = vset.pattern.permute.xlu0 3
  %5526 = vperm.xlu0 %5525, %v4417
  %v5527 = vpop.permute.xlu0 %5526
  %5528 = vset.pattern.permute.xlu0 3
  %5529 = vperm.xlu0 %5528, %v4418
  %v5530 = vpop.permute.xlu0 %5529
  %5531 = vset.pattern.permute.xlu0 3
  %5532 = vperm.xlu0 %5531, %v4419
  %v5533 = vpop.permute.xlu0 %5532
  %5534 = vset.pattern.permute.xlu0 3
  %5535 = vperm.xlu0 %5534, %v4420
  %v5536 = vpop.permute.xlu0 %5535
  %5537 = vset.pattern.permute.xlu0 3
  %5538 = vperm.xlu0 %5537, %v4421
  %v5539 = vpop.permute.xlu0 %5538
  %5540 = vset.pattern.permute.xlu0 3
  %5541 = vperm.xlu0 %5540, %v4422
  %v5542 = vpop.permute.xlu0 %5541
  %5543 = vset.pattern.permute.xlu0 3
  %5544 = vperm.xlu0 %5543, %v4423
  %v5545 = vpop.permute.xlu0 %5544
  %5546 = vset.pattern.permute.xlu0 3
  %5547 = vperm.xlu0 %5546, %v4424
  %v5548 = vpop.permute.xlu0 %5547
  %5549 = vset.pattern.permute.xlu0 3
  %5550 = vperm.xlu0 %5549, %v4425
  %v5551 = vpop.permute.xlu0 %5550
  %5552 = vset.pattern.permute.xlu0 3
  %5553 = vperm.xlu0 %5552, %v4426
  %v5554 = vpop.permute.xlu0 %5553
  %5555 = vset.pattern.permute.xlu0 3
  %5556 = vperm.xlu0 %5555, %v4427
  %v5557 = vpop.permute.xlu0 %5556
  %5558 = vset.pattern.permute.xlu0 3
  %5559 = vperm.xlu0 %5558, %v4428
  %v5560 = vpop.permute.xlu0 %5559
  %5561 = vset.pattern.permute.xlu0 3
  %5562 = vperm.xlu0 %5561, %v4429
  %v5563 = vpop.permute.xlu0 %5562
  %5564 = vset.pattern.permute.xlu0 3
  %5565 = vperm.xlu0 %5564, %v4430
  %v5566 = vpop.permute.xlu0 %5565
  %5567 = vset.pattern.permute.xlu0 3
  %5568 = vperm.xlu0 %5567, %v4431
  %v5569 = vpop.permute.xlu0 %5568
  %5570 = vset.pattern.permute.xlu0 3
  %5571 = vperm.xlu0 %5570, %v4432
  %v5572 = vpop.permute.xlu0 %5571
  %5573 = vset.pattern.permute.xlu0 3
  %5574 = vperm.xlu0 %5573, %v4433
  %v5575 = vpop.permute.xlu0 %5574
  %5576 = vset.pattern.permute.xlu0 3
  %5577 = vperm.xlu0 %5576, %v4434
  %v5578 = vpop.permute.xlu0 %5577
  %5579 = vset.pattern.permute.xlu0 3
  %5580 = vperm.xlu0 %5579, %v4435
  %v5581 = vpop.permute.xlu0 %5580
  %5582 = vset.pattern.permute.xlu0 3
  %5583 = vperm.xlu0 %5582, %v4436
  %v5584 = vpop.permute.xlu0 %5583
  %5585 = vset.pattern.permute.xlu0 3
  %5586 = vperm.xlu0 %5585, %v4437
  %v5587 = vpop.permute.xlu0 %5586
  %5588 = vset.pattern.permute.xlu0 3
  %5589 = vperm.xlu0 %5588, %v4438
  %v5590 = vpop.permute.xlu0 %5589
  %vm5591 = vcmp.eq.s32.totalorder %v5497, %v337
  %vm5592 = vcmp.eq.s32.totalorder %v5497, %v338
  %vm5593 = vcmp.eq.s32.totalorder %v5500, %v337
  %vm5594 = vcmp.eq.s32.totalorder %v5500, %v338
  %vm5595 = vcmp.eq.s32.totalorder %v5503, %v337
  %vm5596 = vcmp.eq.s32.totalorder %v5503, %v338
  %vm5597 = vcmp.eq.s32.totalorder %v5506, %v337
  %vm5598 = vcmp.eq.s32.totalorder %v5506, %v338
  %vm5599 = vcmp.eq.s32.totalorder %v5509, %v337
  %vm5600 = vcmp.eq.s32.totalorder %v5509, %v338
  %vm5601 = vcmp.eq.s32.totalorder %v5512, %v337
  %vm5602 = vcmp.eq.s32.totalorder %v5512, %v338
  %vm5603 = vcmp.eq.s32.totalorder %v5515, %v337
  %vm5604 = vcmp.eq.s32.totalorder %v5515, %v338
  %vm5605 = vcmp.eq.s32.totalorder %v5518, %v337
  %vm5606 = vcmp.eq.s32.totalorder %v5518, %v338
  %vm5607 = vcmp.eq.s32.totalorder %v5521, %v337
  %vm5608 = vcmp.eq.s32.totalorder %v5521, %v338
  %vm5609 = vcmp.eq.s32.totalorder %v5524, %v337
  %vm5610 = vcmp.eq.s32.totalorder %v5524, %v338
  %vm5611 = vcmp.eq.s32.totalorder %v5527, %v337
  %vm5612 = vcmp.eq.s32.totalorder %v5527, %v338
  %vm5613 = vcmp.eq.s32.totalorder %v5530, %v337
  %vm5614 = vcmp.eq.s32.totalorder %v5530, %v338
  %vm5615 = vcmp.eq.s32.totalorder %v5533, %v337
  %vm5616 = vcmp.eq.s32.totalorder %v5533, %v338
  %vm5617 = vcmp.eq.s32.totalorder %v5536, %v337
  %vm5618 = vcmp.eq.s32.totalorder %v5536, %v338
  %vm5619 = vcmp.eq.s32.totalorder %v5539, %v337
  %vm5620 = vcmp.eq.s32.totalorder %v5539, %v338
  %vm5621 = vcmp.eq.s32.totalorder %v5542, %v337
  %vm5622 = vcmp.eq.s32.totalorder %v5542, %v338
  %vm5623 = vcmp.eq.s32.totalorder %v5545, %v337
  %vm5624 = vcmp.eq.s32.totalorder %v5545, %v338
  %vm5625 = vcmp.eq.s32.totalorder %v5548, %v337
  %vm5626 = vcmp.eq.s32.totalorder %v5548, %v338
  %vm5627 = vcmp.eq.s32.totalorder %v5551, %v337
  %vm5628 = vcmp.eq.s32.totalorder %v5551, %v338
  %vm5629 = vcmp.eq.s32.totalorder %v5554, %v337
  %vm5630 = vcmp.eq.s32.totalorder %v5554, %v338
  %vm5631 = vcmp.eq.s32.totalorder %v5557, %v337
  %vm5632 = vcmp.eq.s32.totalorder %v5557, %v338
  %vm5633 = vcmp.eq.s32.totalorder %v5560, %v337
  %vm5634 = vcmp.eq.s32.totalorder %v5560, %v338
  %vm5635 = vcmp.eq.s32.totalorder %v5563, %v337
  %vm5636 = vcmp.eq.s32.totalorder %v5563, %v338
  %vm5637 = vcmp.eq.s32.totalorder %v5566, %v337
  %vm5638 = vcmp.eq.s32.totalorder %v5566, %v338
  %vm5639 = vcmp.eq.s32.totalorder %v5569, %v337
  %vm5640 = vcmp.eq.s32.totalorder %v5569, %v338
  %vm5641 = vcmp.eq.s32.totalorder %v5572, %v337
  %vm5642 = vcmp.eq.s32.totalorder %v5572, %v338
  %vm5643 = vcmp.eq.s32.totalorder %v5575, %v337
  %vm5644 = vcmp.eq.s32.totalorder %v5575, %v338
  %vm5645 = vcmp.eq.s32.totalorder %v5578, %v337
  %vm5646 = vcmp.eq.s32.totalorder %v5578, %v338
  %vm5647 = vcmp.eq.s32.totalorder %v5581, %v337
  %vm5648 = vcmp.eq.s32.totalorder %v5581, %v338
  %vm5649 = vcmp.eq.s32.totalorder %v5584, %v337
  %vm5650 = vcmp.eq.s32.totalorder %v5584, %v338
  %vm5651 = vcmp.eq.s32.totalorder %v5587, %v337
  %vm5652 = vcmp.eq.s32.totalorder %v5587, %v338
  %vm5653 = vcmp.eq.s32.totalorder %v5590, %v337
  %vm5654 = vcmp.eq.s32.totalorder %v5590, %v338
  %v5655 = vsel %vm5591, 1, 0
  %v5656 = vsel %vm5592, 1, 0
  %v5657 = vsel %vm5593, 1, 0
  %v5658 = vsel %vm5594, 1, 0
  %v5659 = vsel %vm5595, 1, 0
  %v5660 = vsel %vm5596, 1, 0
  %v5661 = vsel %vm5597, 1, 0
  %v5662 = vsel %vm5598, 1, 0
  %v5663 = vsel %vm5599, 1, 0
  %v5664 = vsel %vm5600, 1, 0
  %v5665 = vsel %vm5601, 1, 0
  %v5666 = vsel %vm5602, 1, 0
  %v5667 = vsel %vm5603, 1, 0
  %v5668 = vsel %vm5604, 1, 0
  %v5669 = vsel %vm5605, 1, 0
  %v5670 = vsel %vm5606, 1, 0
  %v5671 = vsel %vm5607, 1, 0
  %v5672 = vsel %vm5608, 1, 0
  %v5673 = vsel %vm5609, 1, 0
  %v5674 = vsel %vm5610, 1, 0
  %v5675 = vsel %vm5611, 1, 0
  %v5676 = vsel %vm5612, 1, 0
  %v5677 = vsel %vm5613, 1, 0
  %v5678 = vsel %vm5614, 1, 0
  %v5679 = vsel %vm5615, 1, 0
  %v5680 = vsel %vm5616, 1, 0
  %v5681 = vsel %vm5617, 1, 0
  %v5682 = vsel %vm5618, 1, 0
  %v5683 = vsel %vm5619, 1, 0
  %v5684 = vsel %vm5620, 1, 0
  %v5685 = vsel %vm5621, 1, 0
  %v5686 = vsel %vm5622, 1, 0
  %v5687 = vsel %vm5623, 1, 0
  %v5688 = vsel %vm5624, 1, 0
  %v5689 = vsel %vm5625, 1, 0
  %v5690 = vsel %vm5626, 1, 0
  %v5691 = vsel %vm5627, 1, 0
  %v5692 = vsel %vm5628, 1, 0
  %v5693 = vsel %vm5629, 1, 0
  %v5694 = vsel %vm5630, 1, 0
  %v5695 = vsel %vm5631, 1, 0
  %v5696 = vsel %vm5632, 1, 0
  %v5697 = vsel %vm5633, 1, 0
  %v5698 = vsel %vm5634, 1, 0
  %v5699 = vsel %vm5635, 1, 0
  %v5700 = vsel %vm5636, 1, 0
  %v5701 = vsel %vm5637, 1, 0
  %v5702 = vsel %vm5638, 1, 0
  %v5703 = vsel %vm5639, 1, 0
  %v5704 = vsel %vm5640, 1, 0
  %v5705 = vsel %vm5641, 1, 0
  %v5706 = vsel %vm5642, 1, 0
  %v5707 = vsel %vm5643, 1, 0
  %v5708 = vsel %vm5644, 1, 0
  %v5709 = vsel %vm5645, 1, 0
  %v5710 = vsel %vm5646, 1, 0
  %v5711 = vsel %vm5647, 1, 0
  %v5712 = vsel %vm5648, 1, 0
  %v5713 = vsel %vm5649, 1, 0
  %v5714 = vsel %vm5650, 1, 0
  %v5715 = vsel %vm5651, 1, 0
  %v5716 = vsel %vm5652, 1, 0
  %v5717 = vsel %vm5653, 1, 0
  %v5718 = vsel %vm5654, 1, 0
  %v5719 = vcvt.s32.f32 %v5655
  %v5720 = vcvt.s32.f32 %v5656
  %v5721 = vcvt.s32.f32 %v5657
  %v5722 = vcvt.s32.f32 %v5658
  %v5723 = vcvt.s32.f32 %v5659
  %v5724 = vcvt.s32.f32 %v5660
  %v5725 = vcvt.s32.f32 %v5661
  %v5726 = vcvt.s32.f32 %v5662
  %v5727 = vcvt.s32.f32 %v5663
  %v5728 = vcvt.s32.f32 %v5664
  %v5729 = vcvt.s32.f32 %v5665
  %v5730 = vcvt.s32.f32 %v5666
  %v5731 = vcvt.s32.f32 %v5667
  %v5732 = vcvt.s32.f32 %v5668
  %v5733 = vcvt.s32.f32 %v5669
  %v5734 = vcvt.s32.f32 %v5670
  %v5735 = vcvt.s32.f32 %v5671
  %v5736 = vcvt.s32.f32 %v5672
  %v5737 = vcvt.s32.f32 %v5673
  %v5738 = vcvt.s32.f32 %v5674
  %v5739 = vcvt.s32.f32 %v5675
  %v5740 = vcvt.s32.f32 %v5676
  %v5741 = vcvt.s32.f32 %v5677
  %v5742 = vcvt.s32.f32 %v5678
  %v5743 = vcvt.s32.f32 %v5679
  %v5744 = vcvt.s32.f32 %v5680
  %v5745 = vcvt.s32.f32 %v5681
  %v5746 = vcvt.s32.f32 %v5682
  %v5747 = vcvt.s32.f32 %v5683
  %v5748 = vcvt.s32.f32 %v5684
  %v5749 = vcvt.s32.f32 %v5685
  %v5750 = vcvt.s32.f32 %v5686
  %v5751 = vcvt.s32.f32 %v5687
  %v5752 = vcvt.s32.f32 %v5688
  %v5753 = vcvt.s32.f32 %v5689
  %v5754 = vcvt.s32.f32 %v5690
  %v5755 = vcvt.s32.f32 %v5691
  %v5756 = vcvt.s32.f32 %v5692
  %v5757 = vcvt.s32.f32 %v5693
  %v5758 = vcvt.s32.f32 %v5694
  %v5759 = vcvt.s32.f32 %v5695
  %v5760 = vcvt.s32.f32 %v5696
  %v5761 = vcvt.s32.f32 %v5697
  %v5762 = vcvt.s32.f32 %v5698
  %v5763 = vcvt.s32.f32 %v5699
  %v5764 = vcvt.s32.f32 %v5700
  %v5765 = vcvt.s32.f32 %v5701
  %v5766 = vcvt.s32.f32 %v5702
  %v5767 = vcvt.s32.f32 %v5703
  %v5768 = vcvt.s32.f32 %v5704
  %v5769 = vcvt.s32.f32 %v5705
  %v5770 = vcvt.s32.f32 %v5706
  %v5771 = vcvt.s32.f32 %v5707
  %v5772 = vcvt.s32.f32 %v5708
  %v5773 = vcvt.s32.f32 %v5709
  %v5774 = vcvt.s32.f32 %v5710
  %v5775 = vcvt.s32.f32 %v5711
  %v5776 = vcvt.s32.f32 %v5712
  %v5777 = vcvt.s32.f32 %v5713
  %v5778 = vcvt.s32.f32 %v5714
  %v5779 = vcvt.s32.f32 %v5715
  %v5780 = vcvt.s32.f32 %v5716
  %v5781 = vcvt.s32.f32 %v5717
  %v5782 = vcvt.s32.f32 %v5718
  %v5783 = vpack.c.bf16 %v5721, %v5719
  %v5784 = vpack.c.bf16 %v5722, %v5720
  %v5785 = vpack.c.bf16 %v5725, %v5723
  %v5786 = vpack.c.bf16 %v5726, %v5724
  %v5787 = vpack.c.bf16 %v5729, %v5727
  %v5788 = vpack.c.bf16 %v5730, %v5728
  %v5789 = vpack.c.bf16 %v5733, %v5731
  %v5790 = vpack.c.bf16 %v5734, %v5732
  %v5791 = vpack.c.bf16 %v5737, %v5735
  %v5792 = vpack.c.bf16 %v5738, %v5736
  %v5793 = vpack.c.bf16 %v5741, %v5739
  %v5794 = vpack.c.bf16 %v5742, %v5740
  %v5795 = vpack.c.bf16 %v5745, %v5743
  %v5796 = vpack.c.bf16 %v5746, %v5744
  %v5797 = vpack.c.bf16 %v5749, %v5747
  %v5798 = vpack.c.bf16 %v5750, %v5748
  %v5799 = vpack.c.bf16 %v5753, %v5751
  %v5800 = vpack.c.bf16 %v5754, %v5752
  %v5801 = vpack.c.bf16 %v5757, %v5755
  %v5802 = vpack.c.bf16 %v5758, %v5756
  %v5803 = vpack.c.bf16 %v5761, %v5759
  %v5804 = vpack.c.bf16 %v5762, %v5760
  %v5805 = vpack.c.bf16 %v5765, %v5763
  %v5806 = vpack.c.bf16 %v5766, %v5764
  %v5807 = vpack.c.bf16 %v5769, %v5767
  %v5808 = vpack.c.bf16 %v5770, %v5768
  %v5809 = vpack.c.bf16 %v5773, %v5771
  %v5810 = vpack.c.bf16 %v5774, %v5772
  %v5811 = vpack.c.bf16 %v5777, %v5775
  %v5812 = vpack.c.bf16 %v5778, %v5776
  %v5813 = vpack.c.bf16 %v5781, %v5779
  %v5814 = vpack.c.bf16 %v5782, %v5780
  %v5815 = vadd.bf16 %v5463, %v5783
  %v5816 = vadd.bf16 %v5464, %v5784
  %v5817 = vadd.bf16 %v5465, %v5785
  %v5818 = vadd.bf16 %v5466, %v5786
  %v5819 = vadd.bf16 %v5467, %v5787
  %v5820 = vadd.bf16 %v5468, %v5788
  %v5821 = vadd.bf16 %v5469, %v5789
  %v5822 = vadd.bf16 %v5470, %v5790
  %v5823 = vadd.bf16 %v5471, %v5791
  %v5824 = vadd.bf16 %v5472, %v5792
  %v5825 = vadd.bf16 %v5473, %v5793
  %v5826 = vadd.bf16 %v5474, %v5794
  %v5827 = vadd.bf16 %v5475, %v5795
  %v5828 = vadd.bf16 %v5476, %v5796
  %v5829 = vadd.bf16 %v5477, %v5797
  %v5830 = vadd.bf16 %v5478, %v5798
  %v5831 = vadd.bf16 %v5479, %v5799
  %v5832 = vadd.bf16 %v5480, %v5800
  %v5833 = vadd.bf16 %v5481, %v5801
  %v5834 = vadd.bf16 %v5482, %v5802
  %v5835 = vadd.bf16 %v5483, %v5803
  %v5836 = vadd.bf16 %v5484, %v5804
  %v5837 = vadd.bf16 %v5485, %v5805
  %v5838 = vadd.bf16 %v5486, %v5806
  %v5839 = vadd.bf16 %v5487, %v5807
  %v5840 = vadd.bf16 %v5488, %v5808
  %v5841 = vadd.bf16 %v5489, %v5809
  %v5842 = vadd.bf16 %v5490, %v5810
  %v5843 = vadd.bf16 %v5491, %v5811
  %v5844 = vadd.bf16 %v5492, %v5812
  %v5845 = vadd.bf16 %v5493, %v5813
  %v5846 = vadd.bf16 %v5494, %v5814
  %v5847 = vld [vmem:[%s1 + $0x100] sm:$0xf]
  %v5848 = vld [vmem:[%s1 + $0x104] sm:$0xf]
  %v5849 = vld [vmem:[%s1 + $0x108] sm:$0xf]
  %v5850 = vld [vmem:[%s1 + $0x10c] sm:$0xf]
  %v5851 = vld [vmem:[%s1 + $0x110] sm:$0xf]
  %v5852 = vld [vmem:[%s1 + $0x114] sm:$0xf]
  %v5853 = vld [vmem:[%s1 + $0x118] sm:$0xf]
  %v5854 = vld [vmem:[%s1 + $0x11c] sm:$0xf]
  %v5855 = vld [vmem:[%s1 + $0x120] sm:$0xf]
  %v5856 = vld [vmem:[%s1 + $0x124] sm:$0xf]
  %v5857 = vld [vmem:[%s1 + $0x128] sm:$0xf]
  %v5858 = vld [vmem:[%s1 + $0x12c] sm:$0xf]
  %v5859 = vld [vmem:[%s1 + $0x130] sm:$0xf]
  %v5860 = vld [vmem:[%s1 + $0x134] sm:$0xf]
  %v5861 = vld [vmem:[%s1 + $0x138] sm:$0xf]
  %v5862 = vld [vmem:[%s1 + $0x13c] sm:$0xf]
  %v5863 = vld [vmem:[%s1 + $0x140] sm:$0xf]
  %v5864 = vld [vmem:[%s1 + $0x144] sm:$0xf]
  %v5865 = vld [vmem:[%s1 + $0x148] sm:$0xf]
  %v5866 = vld [vmem:[%s1 + $0x14c] sm:$0xf]
  %v5867 = vld [vmem:[%s1 + $0x150] sm:$0xf]
  %v5868 = vld [vmem:[%s1 + $0x154] sm:$0xf]
  %v5869 = vld [vmem:[%s1 + $0x158] sm:$0xf]
  %v5870 = vld [vmem:[%s1 + $0x15c] sm:$0xf]
  %v5871 = vld [vmem:[%s1 + $0x160] sm:$0xf]
  %v5872 = vld [vmem:[%s1 + $0x164] sm:$0xf]
  %v5873 = vld [vmem:[%s1 + $0x168] sm:$0xf]
  %v5874 = vld [vmem:[%s1 + $0x16c] sm:$0xf]
  %v5875 = vld [vmem:[%s1 + $0x170] sm:$0xf]
  %v5876 = vld [vmem:[%s1 + $0x174] sm:$0xf]
  %v5877 = vld [vmem:[%s1 + $0x178] sm:$0xf]
  %v5878 = vld [vmem:[%s1 + $0x17c] sm:$0xf]
  %v5879 = vld [vmem:[%s2 + $0x100] sm:$0xf]
  %v5880 = vld [vmem:[%s2 + $0x104] sm:$0xf]
  %v5881 = vld [vmem:[%s2 + $0x108] sm:$0xf]
  %v5882 = vld [vmem:[%s2 + $0x10c] sm:$0xf]
  %v5883 = vld [vmem:[%s2 + $0x110] sm:$0xf]
  %v5884 = vld [vmem:[%s2 + $0x114] sm:$0xf]
  %v5885 = vld [vmem:[%s2 + $0x118] sm:$0xf]
  %v5886 = vld [vmem:[%s2 + $0x11c] sm:$0xf]
  %v5887 = vld [vmem:[%s2 + $0x120] sm:$0xf]
  %v5888 = vld [vmem:[%s2 + $0x124] sm:$0xf]
  %v5889 = vld [vmem:[%s2 + $0x128] sm:$0xf]
  %v5890 = vld [vmem:[%s2 + $0x12c] sm:$0xf]
  %v5891 = vld [vmem:[%s2 + $0x130] sm:$0xf]
  %v5892 = vld [vmem:[%s2 + $0x134] sm:$0xf]
  %v5893 = vld [vmem:[%s2 + $0x138] sm:$0xf]
  %v5894 = vld [vmem:[%s2 + $0x13c] sm:$0xf]
  %v5895 = vld [vmem:[%s2 + $0x140] sm:$0xf]
  %v5896 = vld [vmem:[%s2 + $0x144] sm:$0xf]
  %v5897 = vld [vmem:[%s2 + $0x148] sm:$0xf]
  %v5898 = vld [vmem:[%s2 + $0x14c] sm:$0xf]
  %v5899 = vld [vmem:[%s2 + $0x150] sm:$0xf]
  %v5900 = vld [vmem:[%s2 + $0x154] sm:$0xf]
  %v5901 = vld [vmem:[%s2 + $0x158] sm:$0xf]
  %v5902 = vld [vmem:[%s2 + $0x15c] sm:$0xf]
  %v5903 = vld [vmem:[%s2 + $0x160] sm:$0xf]
  %v5904 = vld [vmem:[%s2 + $0x164] sm:$0xf]
  %v5905 = vld [vmem:[%s2 + $0x168] sm:$0xf]
  %v5906 = vld [vmem:[%s2 + $0x16c] sm:$0xf]
  %v5907 = vld [vmem:[%s2 + $0x170] sm:$0xf]
  %v5908 = vld [vmem:[%s2 + $0x174] sm:$0xf]
  %v5909 = vld [vmem:[%s2 + $0x178] sm:$0xf]
  %v5910 = vld [vmem:[%s2 + $0x17c] sm:$0xf]
  %v5943 = vunpack.c.l.b16 %v5847
  %v5944 = vunpack.c.l.b16 %v5848
  %v5945 = vunpack.c.l.b16 %v5849
  %v5946 = vunpack.c.l.b16 %v5850
  %v5947 = vunpack.c.l.b16 %v5851
  %v5948 = vunpack.c.l.b16 %v5852
  %v5949 = vunpack.c.l.b16 %v5853
  %v5950 = vunpack.c.l.b16 %v5854
  %v5951 = vunpack.c.l.b16 %v5855
  %v5952 = vunpack.c.l.b16 %v5856
  %v5953 = vunpack.c.l.b16 %v5857
  %v5954 = vunpack.c.l.b16 %v5858
  %v5955 = vunpack.c.l.b16 %v5859
  %v5956 = vunpack.c.l.b16 %v5860
  %v5957 = vunpack.c.l.b16 %v5861
  %v5958 = vunpack.c.l.b16 %v5862
  %v5959 = vunpack.c.l.b16 %v5863
  %v5960 = vunpack.c.l.b16 %v5864
  %v5961 = vunpack.c.l.b16 %v5865
  %v5962 = vunpack.c.l.b16 %v5866
  %v5963 = vunpack.c.l.b16 %v5867
  %v5964 = vunpack.c.l.b16 %v5868
  %v5965 = vunpack.c.l.b16 %v5869
  %v5966 = vunpack.c.l.b16 %v5870
  %v5967 = vunpack.c.l.b16 %v5871
  %v5968 = vunpack.c.l.b16 %v5872
  %v5969 = vunpack.c.l.b16 %v5873
  %v5970 = vunpack.c.l.b16 %v5874
  %v5971 = vunpack.c.l.b16 %v5875
  %v5972 = vunpack.c.l.b16 %v5876
  %v5973 = vunpack.c.l.b16 %v5877
  %v5974 = vunpack.c.l.b16 %v5878
  %v5975 = vpack.c.b16 %v5944, %v5943
  %v5976 = vpack.c.b16 %v5946, %v5945
  %v5977 = vpack.c.b16 %v5948, %v5947
  %v5978 = vpack.c.b16 %v5950, %v5949
  %v5979 = vpack.c.b16 %v5952, %v5951
  %v5980 = vpack.c.b16 %v5954, %v5953
  %v5981 = vpack.c.b16 %v5956, %v5955
  %v5982 = vpack.c.b16 %v5958, %v5957
  %v5983 = vpack.c.b16 %v5960, %v5959
  %v5984 = vpack.c.b16 %v5962, %v5961
  %v5985 = vpack.c.b16 %v5964, %v5963
  %v5986 = vpack.c.b16 %v5966, %v5965
  %v5987 = vpack.c.b16 %v5968, %v5967
  %v5988 = vpack.c.b16 %v5970, %v5969
  %v5989 = vpack.c.b16 %v5972, %v5971
  %v5990 = vpack.c.b16 %v5974, %v5973
  %6007 = vmatprep.subr.bf16.mxu0 0
  %6008 = vmatpush1.bf16.msra.mxu0 %v5982
  %6009 = vmatprep.subr.bf16.mxu0 0
  %6010 = vmatpush1.bf16.msra.mxu0 %v5981
  %6011 = vmatprep.subr.bf16.mxu0 0
  %6012 = vmatpush1.bf16.msra.mxu0 %v5980
  %6013 = vmatprep.subr.bf16.mxu0 0
  %6014 = vmatpush1.bf16.msra.mxu0 %v5979
  %6015 = vmatprep.subr.bf16.mxu0 0
  %6016 = vmatpush1.bf16.msra.mxu0 %v5978
  %6017 = vmatprep.subr.bf16.mxu0 0
  %6018 = vmatpush1.bf16.msra.mxu0 %v5977
  %6019 = vmatprep.subr.bf16.mxu0 0
  %6020 = vmatpush1.bf16.msra.mxu0 %v5976
  %6021 = vmatprep.subr.bf16.mxu0 0
  %6022 = vmatpush1.bf16.msra.mxu0 %v5975
  %6023 = vmatprep.subr.bf16.mxu0 0
  %6024 = vmatpush2.bf16.msra.mxu0 %v5990
  %6025 = vmatprep.subr.bf16.mxu0 0
  %6026 = vmatpush2.bf16.msra.mxu0 %v5989
  %6027 = vmatprep.subr.bf16.mxu0 0
  %6028 = vmatpush2.bf16.msra.mxu0 %v5988
  %6029 = vmatprep.subr.bf16.mxu0 0
  %6030 = vmatpush2.bf16.msra.mxu0 %v5987
  %6031 = vmatprep.subr.bf16.mxu0 0
  %6032 = vmatpush2.bf16.msra.mxu0 %v5986
  %6033 = vmatprep.subr.bf16.mxu0 0
  %6034 = vmatpush2.bf16.msra.mxu0 %v5985
  %6035 = vmatprep.subr.bf16.mxu0 0
  %6036 = vmatpush2.bf16.msra.mxu0 %v5984
  %6037 = vmatprep.subr.bf16.mxu0 0
  %6038 = vmatpush2.bf16.msra.mxu0 %v5983
  %6039 = vmatprep.mubr.bf16.mxu0 %v5816
  %6040 = vmatmul.mubr.bf16.gmra.mxu0 %v5815
  %v6041 = vpop.f32.mrf.mxu0
  %v6042 = vadd.f32 0.0, %v6041
  %v6043 = vpop.f32.mrf.mxu0
  %v6044 = vpop.f32.mrf.mxu0
  %v6045 = vadd.f32 0.0, %v6044
  %v6046 = vpop.f32.mrf.mxu0
  %6047 = vmatprep.mubr.bf16.mxu0 %v5818
  %6048 = vmatmul.mubr.bf16.gmra.mxu0 %v5817
  %v6049 = vpop.f32.mrf.mxu0
  %v6050 = vadd.f32 0.0, %v6049
  %v6051 = vpop.f32.mrf.mxu0
  %v6052 = vpop.f32.mrf.mxu0
  %v6053 = vadd.f32 0.0, %v6052
  %v6054 = vpop.f32.mrf.mxu0
  %6055 = vmatprep.mubr.bf16.mxu0 %v5820
  %6056 = vmatmul.mubr.bf16.gmra.mxu0 %v5819
  %v6057 = vpop.f32.mrf.mxu0
  %v6058 = vadd.f32 0.0, %v6057
  %v6059 = vpop.f32.mrf.mxu0
  %v6060 = vpop.f32.mrf.mxu0
  %v6061 = vadd.f32 0.0, %v6060
  %v6062 = vpop.f32.mrf.mxu0
  %6063 = vmatprep.mubr.bf16.mxu0 %v5822
  %6064 = vmatmul.mubr.bf16.gmra.mxu0 %v5821
  %v6065 = vpop.f32.mrf.mxu0
  %v6066 = vadd.f32 0.0, %v6065
  %v6067 = vpop.f32.mrf.mxu0
  %v6068 = vpop.f32.mrf.mxu0
  %v6069 = vadd.f32 0.0, %v6068
  %v6070 = vpop.f32.mrf.mxu0
  %6071 = vmatprep.mubr.bf16.mxu0 %v5824
  %6072 = vmatmul.mubr.bf16.gmra.mxu0 %v5823
  %v6073 = vpop.f32.mrf.mxu0
  %v6074 = vadd.f32 0.0, %v6073
  %v6075 = vpop.f32.mrf.mxu0
  %v6076 = vpop.f32.mrf.mxu0
  %v6077 = vadd.f32 0.0, %v6076
  %v6078 = vpop.f32.mrf.mxu0
  %6079 = vmatprep.mubr.bf16.mxu0 %v5826
  %6080 = vmatmul.mubr.bf16.gmra.mxu0 %v5825
  %v6081 = vpop.f32.mrf.mxu0
  %v6082 = vadd.f32 0.0, %v6081
  %v6083 = vpop.f32.mrf.mxu0
  %v6084 = vpop.f32.mrf.mxu0
  %v6085 = vadd.f32 0.0, %v6084
  %v6086 = vpop.f32.mrf.mxu0
  %6087 = vmatprep.mubr.bf16.mxu0 %v5828
  %6088 = vmatmul.mubr.bf16.gmra.mxu0 %v5827
  %v6089 = vpop.f32.mrf.mxu0
  %v6090 = vadd.f32 0.0, %v6089
  %v6091 = vpop.f32.mrf.mxu0
  %v6092 = vpop.f32.mrf.mxu0
  %v6093 = vadd.f32 0.0, %v6092
  %v6094 = vpop.f32.mrf.mxu0
  %6095 = vmatprep.mubr.bf16.mxu0 %v5830
  %6096 = vmatmul.mubr.bf16.gmra.mxu0 %v5829
  %v6097 = vpop.f32.mrf.mxu0
  %v6098 = vadd.f32 0.0, %v6097
  %v6099 = vpop.f32.mrf.mxu0
  %v6100 = vpop.f32.mrf.mxu0
  %v6101 = vadd.f32 0.0, %v6100
  %v6102 = vpop.f32.mrf.mxu0
  %6103 = vmatprep.mubr.bf16.mxu0 %v5832
  %6104 = vmatmul.mubr.bf16.gmra.mxu0 %v5831
  %v6105 = vpop.f32.mrf.mxu0
  %v6106 = vadd.f32 0.0, %v6105
  %v6107 = vpop.f32.mrf.mxu0
  %v6108 = vpop.f32.mrf.mxu0
  %v6109 = vadd.f32 0.0, %v6108
  %v6110 = vpop.f32.mrf.mxu0
  %6111 = vmatprep.mubr.bf16.mxu0 %v5834
  %6112 = vmatmul.mubr.bf16.gmra.mxu0 %v5833
  %v6113 = vpop.f32.mrf.mxu0
  %v6114 = vadd.f32 0.0, %v6113
  %v6115 = vpop.f32.mrf.mxu0
  %v6116 = vpop.f32.mrf.mxu0
  %v6117 = vadd.f32 0.0, %v6116
  %v6118 = vpop.f32.mrf.mxu0
  %6119 = vmatprep.mubr.bf16.mxu0 %v5836
  %6120 = vmatmul.mubr.bf16.gmra.mxu0 %v5835
  %v6121 = vpop.f32.mrf.mxu0
  %v6122 = vadd.f32 0.0, %v6121
  %v6123 = vpop.f32.mrf.mxu0
  %v6124 = vpop.f32.mrf.mxu0
  %v6125 = vadd.f32 0.0, %v6124
  %v6126 = vpop.f32.mrf.mxu0
  %6127 = vmatprep.mubr.bf16.mxu0 %v5838
  %6128 = vmatmul.mubr.bf16.gmra.mxu0 %v5837
  %v6129 = vpop.f32.mrf.mxu0
  %v6130 = vadd.f32 0.0, %v6129
  %v6131 = vpop.f32.mrf.mxu0
  %v6132 = vpop.f32.mrf.mxu0
  %v6133 = vadd.f32 0.0, %v6132
  %v6134 = vpop.f32.mrf.mxu0
  %6135 = vmatprep.mubr.bf16.mxu0 %v5840
  %6136 = vmatmul.mubr.bf16.gmra.mxu0 %v5839
  %v6137 = vpop.f32.mrf.mxu0
  %v6138 = vadd.f32 0.0, %v6137
  %v6139 = vpop.f32.mrf.mxu0
  %v6140 = vpop.f32.mrf.mxu0
  %v6141 = vadd.f32 0.0, %v6140
  %v6142 = vpop.f32.mrf.mxu0
  %6143 = vmatprep.mubr.bf16.mxu0 %v5842
  %6144 = vmatmul.mubr.bf16.gmra.mxu0 %v5841
  %v6145 = vpop.f32.mrf.mxu0
  %v6146 = vadd.f32 0.0, %v6145
  %v6147 = vpop.f32.mrf.mxu0
  %v6148 = vpop.f32.mrf.mxu0
  %v6149 = vadd.f32 0.0, %v6148
  %v6150 = vpop.f32.mrf.mxu0
  %6151 = vmatprep.mubr.bf16.mxu0 %v5844
  %6152 = vmatmul.mubr.bf16.gmra.mxu0 %v5843
  %v6153 = vpop.f32.mrf.mxu0
  %v6154 = vadd.f32 0.0, %v6153
  %v6155 = vpop.f32.mrf.mxu0
  %v6156 = vpop.f32.mrf.mxu0
  %v6157 = vadd.f32 0.0, %v6156
  %v6158 = vpop.f32.mrf.mxu0
  %6159 = vmatprep.mubr.bf16.mxu0 %v5846
  %6160 = vmatmul.mubr.bf16.gmra.mxu0 %v5845
  %v6161 = vpop.f32.mrf.mxu0
  %v6162 = vadd.f32 0.0, %v6161
  %v6163 = vpop.f32.mrf.mxu0
  %v6164 = vpop.f32.mrf.mxu0
  %v6165 = vadd.f32 0.0, %v6164
  %v6166 = vpop.f32.mrf.mxu0
  %6167 = vdwg.mxu0
  %v6168 = vadd.f32 %v4375, %v6042
  %v6169 = vadd.f32 %v4376, %v6045
  %v6170 = vadd.f32 %v4377, %v6050
  %v6171 = vadd.f32 %v4378, %v6053
  %v6172 = vadd.f32 %v4379, %v6058
  %v6173 = vadd.f32 %v4380, %v6061
  %v6174 = vadd.f32 %v4381, %v6066
  %v6175 = vadd.f32 %v4382, %v6069
  %v6176 = vadd.f32 %v4383, %v6074
  %v6177 = vadd.f32 %v4384, %v6077
  %v6178 = vadd.f32 %v4385, %v6082
  %v6179 = vadd.f32 %v4386, %v6085
  %v6180 = vadd.f32 %v4387, %v6090
  %v6181 = vadd.f32 %v4388, %v6093
  %v6182 = vadd.f32 %v4389, %v6098
  %v6183 = vadd.f32 %v4390, %v6101
  %v6184 = vadd.f32 %v4391, %v6106
  %v6185 = vadd.f32 %v4392, %v6109
  %v6186 = vadd.f32 %v4393, %v6114
  %v6187 = vadd.f32 %v4394, %v6117
  %v6188 = vadd.f32 %v4395, %v6122
  %v6189 = vadd.f32 %v4396, %v6125
  %v6190 = vadd.f32 %v4397, %v6130
  %v6191 = vadd.f32 %v4398, %v6133
  %v6192 = vadd.f32 %v4399, %v6138
  %v6193 = vadd.f32 %v4400, %v6141
  %v6194 = vadd.f32 %v4401, %v6146
  %v6195 = vadd.f32 %v4402, %v6149
  %v6196 = vadd.f32 %v4403, %v6154
  %v6197 = vadd.f32 %v4404, %v6157
  %v6198 = vadd.f32 %v4405, %v6162
  %v6199 = vadd.f32 %v4406, %v6165
  %v6232 = vunpack.c.l.b16 %v5879
  %v6233 = vunpack.c.l.b16 %v5880
  %v6234 = vunpack.c.l.b16 %v5881
  %v6235 = vunpack.c.l.b16 %v5882
  %v6236 = vunpack.c.l.b16 %v5883
  %v6237 = vunpack.c.l.b16 %v5884
  %v6238 = vunpack.c.l.b16 %v5885
  %v6239 = vunpack.c.l.b16 %v5886
  %v6240 = vunpack.c.l.b16 %v5887
  %v6241 = vunpack.c.l.b16 %v5888
  %v6242 = vunpack.c.l.b16 %v5889
  %v6243 = vunpack.c.l.b16 %v5890
  %v6244 = vunpack.c.l.b16 %v5891
  %v6245 = vunpack.c.l.b16 %v5892
  %v6246 = vunpack.c.l.b16 %v5893
  %v6247 = vunpack.c.l.b16 %v5894
  %v6248 = vunpack.c.l.b16 %v5895
  %v6249 = vunpack.c.l.b16 %v5896
  %v6250 = vunpack.c.l.b16 %v5897
  %v6251 = vunpack.c.l.b16 %v5898
  %v6252 = vunpack.c.l.b16 %v5899
  %v6253 = vunpack.c.l.b16 %v5900
  %v6254 = vunpack.c.l.b16 %v5901
  %v6255 = vunpack.c.l.b16 %v5902
  %v6256 = vunpack.c.l.b16 %v5903
  %v6257 = vunpack.c.l.b16 %v5904
  %v6258 = vunpack.c.l.b16 %v5905
  %v6259 = vunpack.c.l.b16 %v5906
  %v6260 = vunpack.c.l.b16 %v5907
  %v6261 = vunpack.c.l.b16 %v5908
  %v6262 = vunpack.c.l.b16 %v5909
  %v6263 = vunpack.c.l.b16 %v5910
  %v6264 = vpack.c.b16 %v6233, %v6232
  %v6265 = vpack.c.b16 %v6235, %v6234
  %v6266 = vpack.c.b16 %v6237, %v6236
  %v6267 = vpack.c.b16 %v6239, %v6238
  %v6268 = vpack.c.b16 %v6241, %v6240
  %v6269 = vpack.c.b16 %v6243, %v6242
  %v6270 = vpack.c.b16 %v6245, %v6244
  %v6271 = vpack.c.b16 %v6247, %v6246
  %v6272 = vpack.c.b16 %v6249, %v6248
  %v6273 = vpack.c.b16 %v6251, %v6250
  %v6274 = vpack.c.b16 %v6253, %v6252
  %v6275 = vpack.c.b16 %v6255, %v6254
  %v6276 = vpack.c.b16 %v6257, %v6256
  %v6277 = vpack.c.b16 %v6259, %v6258
  %v6278 = vpack.c.b16 %v6261, %v6260
  %v6279 = vpack.c.b16 %v6263, %v6262
  %6296 = vmatprep.subr.bf16.mxu0 0
  %6297 = vmatpush1.bf16.msra.mxu0 %v6271
  %6298 = vmatprep.subr.bf16.mxu0 0
  %6299 = vmatpush1.bf16.msra.mxu0 %v6270
  %6300 = vmatprep.subr.bf16.mxu0 0
  %6301 = vmatpush1.bf16.msra.mxu0 %v6269
  %6302 = vmatprep.subr.bf16.mxu0 0
  %6303 = vmatpush1.bf16.msra.mxu0 %v6268
  %6304 = vmatprep.subr.bf16.mxu0 0
  %6305 = vmatpush1.bf16.msra.mxu0 %v6267
  %6306 = vmatprep.subr.bf16.mxu0 0
  %6307 = vmatpush1.bf16.msra.mxu0 %v6266
  %6308 = vmatprep.subr.bf16.mxu0 0
  %6309 = vmatpush1.bf16.msra.mxu0 %v6265
  %6310 = vmatprep.subr.bf16.mxu0 0
  %6311 = vmatpush1.bf16.msra.mxu0 %v6264
  %6312 = vmatprep.subr.bf16.mxu0 0
  %6313 = vmatpush2.bf16.msra.mxu0 %v6279
  %6314 = vmatprep.subr.bf16.mxu0 0
  %6315 = vmatpush2.bf16.msra.mxu0 %v6278
  %6316 = vmatprep.subr.bf16.mxu0 0
  %6317 = vmatpush2.bf16.msra.mxu0 %v6277
  %6318 = vmatprep.subr.bf16.mxu0 0
  %6319 = vmatpush2.bf16.msra.mxu0 %v6276
  %6320 = vmatprep.subr.bf16.mxu0 0
  %6321 = vmatpush2.bf16.msra.mxu0 %v6275
  %6322 = vmatprep.subr.bf16.mxu0 0
  %6323 = vmatpush2.bf16.msra.mxu0 %v6274
  %6324 = vmatprep.subr.bf16.mxu0 0
  %6325 = vmatpush2.bf16.msra.mxu0 %v6273
  %6326 = vmatprep.subr.bf16.mxu0 0
  %6327 = vmatpush2.bf16.msra.mxu0 %v6272
  %6328 = vmatprep.mubr.bf16.mxu0 %v5816
  %6329 = vmatmul.mubr.bf16.gmra.mxu0 %v5815
  %v6330 = vpop.f32.mrf.mxu0
  %v6331 = vadd.f32 0.0, %v6330
  %v6332 = vpop.f32.mrf.mxu0
  %v6333 = vpop.f32.mrf.mxu0
  %v6334 = vadd.f32 0.0, %v6333
  %v6335 = vpop.f32.mrf.mxu0
  %6336 = vmatprep.mubr.bf16.mxu0 %v5818
  %6337 = vmatmul.mubr.bf16.gmra.mxu0 %v5817
  %v6338 = vpop.f32.mrf.mxu0
  %v6339 = vadd.f32 0.0, %v6338
  %v6340 = vpop.f32.mrf.mxu0
  %v6341 = vpop.f32.mrf.mxu0
  %v6342 = vadd.f32 0.0, %v6341
  %v6343 = vpop.f32.mrf.mxu0
  %6344 = vmatprep.mubr.bf16.mxu0 %v5820
  %6345 = vmatmul.mubr.bf16.gmra.mxu0 %v5819
  %v6346 = vpop.f32.mrf.mxu0
  %v6347 = vadd.f32 0.0, %v6346
  %v6348 = vpop.f32.mrf.mxu0
  %v6349 = vpop.f32.mrf.mxu0
  %v6350 = vadd.f32 0.0, %v6349
  %v6351 = vpop.f32.mrf.mxu0
  %6352 = vmatprep.mubr.bf16.mxu0 %v5822
  %6353 = vmatmul.mubr.bf16.gmra.mxu0 %v5821
  %v6354 = vpop.f32.mrf.mxu0
  %v6355 = vadd.f32 0.0, %v6354
  %v6356 = vpop.f32.mrf.mxu0
  %v6357 = vpop.f32.mrf.mxu0
  %v6358 = vadd.f32 0.0, %v6357
  %v6359 = vpop.f32.mrf.mxu0
  %6360 = vmatprep.mubr.bf16.mxu0 %v5824
  %6361 = vmatmul.mubr.bf16.gmra.mxu0 %v5823
  %v6362 = vpop.f32.mrf.mxu0
  %v6363 = vadd.f32 0.0, %v6362
  %v6364 = vpop.f32.mrf.mxu0
  %v6365 = vpop.f32.mrf.mxu0
  %v6366 = vadd.f32 0.0, %v6365
  %v6367 = vpop.f32.mrf.mxu0
  %6368 = vmatprep.mubr.bf16.mxu0 %v5826
  %6369 = vmatmul.mubr.bf16.gmra.mxu0 %v5825
  %v6370 = vpop.f32.mrf.mxu0
  %v6371 = vadd.f32 0.0, %v6370
  %v6372 = vpop.f32.mrf.mxu0
  %v6373 = vpop.f32.mrf.mxu0
  %v6374 = vadd.f32 0.0, %v6373
  %v6375 = vpop.f32.mrf.mxu0
  %6376 = vmatprep.mubr.bf16.mxu0 %v5828
  %6377 = vmatmul.mubr.bf16.gmra.mxu0 %v5827
  %v6378 = vpop.f32.mrf.mxu0
  %v6379 = vadd.f32 0.0, %v6378
  %v6380 = vpop.f32.mrf.mxu0
  %v6381 = vpop.f32.mrf.mxu0
  %v6382 = vadd.f32 0.0, %v6381
  %v6383 = vpop.f32.mrf.mxu0
  %6384 = vmatprep.mubr.bf16.mxu0 %v5830
  %6385 = vmatmul.mubr.bf16.gmra.mxu0 %v5829
  %v6386 = vpop.f32.mrf.mxu0
  %v6387 = vadd.f32 0.0, %v6386
  %v6388 = vpop.f32.mrf.mxu0
  %v6389 = vpop.f32.mrf.mxu0
  %v6390 = vadd.f32 0.0, %v6389
  %v6391 = vpop.f32.mrf.mxu0
  %6392 = vmatprep.mubr.bf16.mxu0 %v5832
  %6393 = vmatmul.mubr.bf16.gmra.mxu0 %v5831
  %v6394 = vpop.f32.mrf.mxu0
  %v6395 = vadd.f32 0.0, %v6394
  %v6396 = vpop.f32.mrf.mxu0
  %v6397 = vpop.f32.mrf.mxu0
  %v6398 = vadd.f32 0.0, %v6397
  %v6399 = vpop.f32.mrf.mxu0
  %6400 = vmatprep.mubr.bf16.mxu0 %v5834
  %6401 = vmatmul.mubr.bf16.gmra.mxu0 %v5833
  %v6402 = vpop.f32.mrf.mxu0
  %v6403 = vadd.f32 0.0, %v6402
  %v6404 = vpop.f32.mrf.mxu0
  %v6405 = vpop.f32.mrf.mxu0
  %v6406 = vadd.f32 0.0, %v6405
  %v6407 = vpop.f32.mrf.mxu0
  %6408 = vmatprep.mubr.bf16.mxu0 %v5836
  %6409 = vmatmul.mubr.bf16.gmra.mxu0 %v5835
  %v6410 = vpop.f32.mrf.mxu0
  %v6411 = vadd.f32 0.0, %v6410
  %v6412 = vpop.f32.mrf.mxu0
  %v6413 = vpop.f32.mrf.mxu0
  %v6414 = vadd.f32 0.0, %v6413
  %v6415 = vpop.f32.mrf.mxu0
  %6416 = vmatprep.mubr.bf16.mxu0 %v5838
  %6417 = vmatmul.mubr.bf16.gmra.mxu0 %v5837
  %v6418 = vpop.f32.mrf.mxu0
  %v6419 = vadd.f32 0.0, %v6418
  %v6420 = vpop.f32.mrf.mxu0
  %v6421 = vpop.f32.mrf.mxu0
  %v6422 = vadd.f32 0.0, %v6421
  %v6423 = vpop.f32.mrf.mxu0
  %6424 = vmatprep.mubr.bf16.mxu0 %v5840
  %6425 = vmatmul.mubr.bf16.gmra.mxu0 %v5839
  %v6426 = vpop.f32.mrf.mxu0
  %v6427 = vadd.f32 0.0, %v6426
  %v6428 = vpop.f32.mrf.mxu0
  %v6429 = vpop.f32.mrf.mxu0
  %v6430 = vadd.f32 0.0, %v6429
  %v6431 = vpop.f32.mrf.mxu0
  %6432 = vmatprep.mubr.bf16.mxu0 %v5842
  %6433 = vmatmul.mubr.bf16.gmra.mxu0 %v5841
  %v6434 = vpop.f32.mrf.mxu0
  %v6435 = vadd.f32 0.0, %v6434
  %v6436 = vpop.f32.mrf.mxu0
  %v6437 = vpop.f32.mrf.mxu0
  %v6438 = vadd.f32 0.0, %v6437
  %v6439 = vpop.f32.mrf.mxu0
  %6440 = vmatprep.mubr.bf16.mxu0 %v5844
  %6441 = vmatmul.mubr.bf16.gmra.mxu0 %v5843
  %v6442 = vpop.f32.mrf.mxu0
  %v6443 = vadd.f32 0.0, %v6442
  %v6444 = vpop.f32.mrf.mxu0
  %v6445 = vpop.f32.mrf.mxu0
  %v6446 = vadd.f32 0.0, %v6445
  %v6447 = vpop.f32.mrf.mxu0
  %6448 = vmatprep.mubr.bf16.mxu0 %v5846
  %6449 = vmatmul.mubr.bf16.gmra.mxu0 %v5845
  %v6450 = vpop.f32.mrf.mxu0
  %v6451 = vadd.f32 0.0, %v6450
  %v6452 = vpop.f32.mrf.mxu0
  %v6453 = vpop.f32.mrf.mxu0
  %v6454 = vadd.f32 0.0, %v6453
  %v6455 = vpop.f32.mrf.mxu0
  %6456 = vdwg.mxu0
  %v6457 = vadd.f32 %v6168, %v6331
  %v6458 = vadd.f32 %v6169, %v6334
  %v6459 = vadd.f32 %v6170, %v6339
  %v6460 = vadd.f32 %v6171, %v6342
  %v6461 = vadd.f32 %v6172, %v6347
  %v6462 = vadd.f32 %v6173, %v6350
  %v6463 = vadd.f32 %v6174, %v6355
  %v6464 = vadd.f32 %v6175, %v6358
  %v6465 = vadd.f32 %v6176, %v6363
  %v6466 = vadd.f32 %v6177, %v6366
  %v6467 = vadd.f32 %v6178, %v6371
  %v6468 = vadd.f32 %v6179, %v6374
  %v6469 = vadd.f32 %v6180, %v6379
  %v6470 = vadd.f32 %v6181, %v6382
  %v6471 = vadd.f32 %v6182, %v6387
  %v6472 = vadd.f32 %v6183, %v6390
  %v6473 = vadd.f32 %v6184, %v6395
  %v6474 = vadd.f32 %v6185, %v6398
  %v6475 = vadd.f32 %v6186, %v6403
  %v6476 = vadd.f32 %v6187, %v6406
  %v6477 = vadd.f32 %v6188, %v6411
  %v6478 = vadd.f32 %v6189, %v6414
  %v6479 = vadd.f32 %v6190, %v6419
  %v6480 = vadd.f32 %v6191, %v6422
  %v6481 = vadd.f32 %v6192, %v6427
  %v6482 = vadd.f32 %v6193, %v6430
  %v6483 = vadd.f32 %v6194, %v6435
  %v6484 = vadd.f32 %v6195, %v6438
  %v6485 = vadd.f32 %v6196, %v6443
  %v6486 = vadd.f32 %v6197, %v6446
  %v6487 = vadd.f32 %v6198, %v6451
  %v6488 = vadd.f32 %v6199, %v6454
  %v6489 = vsub.s32 %v15, 768
  %v6490 = vsub.s32 %v16, 768
  %v6491 = vsub.s32 %v17, 768
  %v6492 = vsub.s32 %v18, 768
  %v6493 = vsub.s32 %v19, 768
  %v6494 = vsub.s32 %v20, 768
  %v6495 = vsub.s32 %v21, 768
  %v6496 = vsub.s32 %v22, 768
  %v6497 = vsub.s32 %v23, 768
  %v6498 = vsub.s32 %v24, 768
  %v6499 = vsub.s32 %v25, 768
  %v6500 = vsub.s32 %v26, 768
  %v6501 = vsub.s32 %v27, 768
  %v6502 = vsub.s32 %v28, 768
  %v6503 = vsub.s32 %v29, 768
  %v6504 = vsub.s32 %v30, 768
  %v6505 = vsub.s32 %v31, 768
  %v6506 = vsub.s32 %v32, 768
  %v6507 = vsub.s32 %v33, 768
  %v6508 = vsub.s32 %v34, 768
  %v6509 = vsub.s32 %v35, 768
  %v6510 = vsub.s32 %v36, 768
  %v6511 = vsub.s32 %v37, 768
  %v6512 = vsub.s32 %v38, 768
  %v6513 = vsub.s32 %v39, 768
  %v6514 = vsub.s32 %v40, 768
  %v6515 = vsub.s32 %v41, 768
  %v6516 = vsub.s32 %v42, 768
  %v6517 = vsub.s32 %v43, 768
  %v6518 = vsub.s32 %v44, 768
  %v6519 = vsub.s32 %v45, 768
  %v6520 = vsub.s32 %v46, 768
  %6521 = vset.pattern.permute.xlu0 0
  %6522 = vperm.xlu0 %6521, %v6489
  %v6523 = vpop.permute.xlu0 %6522
  %6524 = vset.pattern.permute.xlu0 0
  %6525 = vperm.xlu0 %6524, %v6490
  %v6526 = vpop.permute.xlu0 %6525
  %6527 = vset.pattern.permute.xlu0 0
  %6528 = vperm.xlu0 %6527, %v6491
  %v6529 = vpop.permute.xlu0 %6528
  %6530 = vset.pattern.permute.xlu0 0
  %6531 = vperm.xlu0 %6530, %v6492
  %v6532 = vpop.permute.xlu0 %6531
  %6533 = vset.pattern.permute.xlu0 0
  %6534 = vperm.xlu0 %6533, %v6493
  %v6535 = vpop.permute.xlu0 %6534
  %6536 = vset.pattern.permute.xlu0 0
  %6537 = vperm.xlu0 %6536, %v6494
  %v6538 = vpop.permute.xlu0 %6537
  %6539 = vset.pattern.permute.xlu0 0
  %6540 = vperm.xlu0 %6539, %v6495
  %v6541 = vpop.permute.xlu0 %6540
  %6542 = vset.pattern.permute.xlu0 0
  %6543 = vperm.xlu0 %6542, %v6496
  %v6544 = vpop.permute.xlu0 %6543
  %6545 = vset.pattern.permute.xlu0 0
  %6546 = vperm.xlu0 %6545, %v6497
  %v6547 = vpop.permute.xlu0 %6546
  %6548 = vset.pattern.permute.xlu0 0
  %6549 = vperm.xlu0 %6548, %v6498
  %v6550 = vpop.permute.xlu0 %6549
  %6551 = vset.pattern.permute.xlu0 0
  %6552 = vperm.xlu0 %6551, %v6499
  %v6553 = vpop.permute.xlu0 %6552
  %6554 = vset.pattern.permute.xlu0 0
  %6555 = vperm.xlu0 %6554, %v6500
  %v6556 = vpop.permute.xlu0 %6555
  %6557 = vset.pattern.permute.xlu0 0
  %6558 = vperm.xlu0 %6557, %v6501
  %v6559 = vpop.permute.xlu0 %6558
  %6560 = vset.pattern.permute.xlu0 0
  %6561 = vperm.xlu0 %6560, %v6502
  %v6562 = vpop.permute.xlu0 %6561
  %6563 = vset.pattern.permute.xlu0 0
  %6564 = vperm.xlu0 %6563, %v6503
  %v6565 = vpop.permute.xlu0 %6564
  %6566 = vset.pattern.permute.xlu0 0
  %6567 = vperm.xlu0 %6566, %v6504
  %v6568 = vpop.permute.xlu0 %6567
  %6569 = vset.pattern.permute.xlu0 0
  %6570 = vperm.xlu0 %6569, %v6505
  %v6571 = vpop.permute.xlu0 %6570
  %6572 = vset.pattern.permute.xlu0 0
  %6573 = vperm.xlu0 %6572, %v6506
  %v6574 = vpop.permute.xlu0 %6573
  %6575 = vset.pattern.permute.xlu0 0
  %6576 = vperm.xlu0 %6575, %v6507
  %v6577 = vpop.permute.xlu0 %6576
  %6578 = vset.pattern.permute.xlu0 0
  %6579 = vperm.xlu0 %6578, %v6508
  %v6580 = vpop.permute.xlu0 %6579
  %6581 = vset.pattern.permute.xlu0 0
  %6582 = vperm.xlu0 %6581, %v6509
  %v6583 = vpop.permute.xlu0 %6582
  %6584 = vset.pattern.permute.xlu0 0
  %6585 = vperm.xlu0 %6584, %v6510
  %v6586 = vpop.permute.xlu0 %6585
  %6587 = vset.pattern.permute.xlu0 0
  %6588 = vperm.xlu0 %6587, %v6511
  %v6589 = vpop.permute.xlu0 %6588
  %6590 = vset.pattern.permute.xlu0 0
  %6591 = vperm.xlu0 %6590, %v6512
  %v6592 = vpop.permute.xlu0 %6591
  %6593 = vset.pattern.permute.xlu0 0
  %6594 = vperm.xlu0 %6593, %v6513
  %v6595 = vpop.permute.xlu0 %6594
  %6596 = vset.pattern.permute.xlu0 0
  %6597 = vperm.xlu0 %6596, %v6514
  %v6598 = vpop.permute.xlu0 %6597
  %6599 = vset.pattern.permute.xlu0 0
  %6600 = vperm.xlu0 %6599, %v6515
  %v6601 = vpop.permute.xlu0 %6600
  %6602 = vset.pattern.permute.xlu0 0
  %6603 = vperm.xlu0 %6602, %v6516
  %v6604 = vpop.permute.xlu0 %6603
  %6605 = vset.pattern.permute.xlu0 0
  %6606 = vperm.xlu0 %6605, %v6517
  %v6607 = vpop.permute.xlu0 %6606
  %6608 = vset.pattern.permute.xlu0 0
  %6609 = vperm.xlu0 %6608, %v6518
  %v6610 = vpop.permute.xlu0 %6609
  %6611 = vset.pattern.permute.xlu0 0
  %6612 = vperm.xlu0 %6611, %v6519
  %v6613 = vpop.permute.xlu0 %6612
  %6614 = vset.pattern.permute.xlu0 0
  %6615 = vperm.xlu0 %6614, %v6520
  %v6616 = vpop.permute.xlu0 %6615
  %vm6617 = vcmp.eq.s32.totalorder %v6523, %v337
  %vm6618 = vcmp.eq.s32.totalorder %v6523, %v338
  %vm6619 = vcmp.eq.s32.totalorder %v6526, %v337
  %vm6620 = vcmp.eq.s32.totalorder %v6526, %v338
  %vm6621 = vcmp.eq.s32.totalorder %v6529, %v337
  %vm6622 = vcmp.eq.s32.totalorder %v6529, %v338
  %vm6623 = vcmp.eq.s32.totalorder %v6532, %v337
  %vm6624 = vcmp.eq.s32.totalorder %v6532, %v338
  %vm6625 = vcmp.eq.s32.totalorder %v6535, %v337
  %vm6626 = vcmp.eq.s32.totalorder %v6535, %v338
  %vm6627 = vcmp.eq.s32.totalorder %v6538, %v337
  %vm6628 = vcmp.eq.s32.totalorder %v6538, %v338
  %vm6629 = vcmp.eq.s32.totalorder %v6541, %v337
  %vm6630 = vcmp.eq.s32.totalorder %v6541, %v338
  %vm6631 = vcmp.eq.s32.totalorder %v6544, %v337
  %vm6632 = vcmp.eq.s32.totalorder %v6544, %v338
  %vm6633 = vcmp.eq.s32.totalorder %v6547, %v337
  %vm6634 = vcmp.eq.s32.totalorder %v6547, %v338
  %vm6635 = vcmp.eq.s32.totalorder %v6550, %v337
  %vm6636 = vcmp.eq.s32.totalorder %v6550, %v338
  %vm6637 = vcmp.eq.s32.totalorder %v6553, %v337
  %vm6638 = vcmp.eq.s32.totalorder %v6553, %v338
  %vm6639 = vcmp.eq.s32.totalorder %v6556, %v337
  %vm6640 = vcmp.eq.s32.totalorder %v6556, %v338
  %vm6641 = vcmp.eq.s32.totalorder %v6559, %v337
  %vm6642 = vcmp.eq.s32.totalorder %v6559, %v338
  %vm6643 = vcmp.eq.s32.totalorder %v6562, %v337
  %vm6644 = vcmp.eq.s32.totalorder %v6562, %v338
  %vm6645 = vcmp.eq.s32.totalorder %v6565, %v337
  %vm6646 = vcmp.eq.s32.totalorder %v6565, %v338
  %vm6647 = vcmp.eq.s32.totalorder %v6568, %v337
  %vm6648 = vcmp.eq.s32.totalorder %v6568, %v338
  %vm6649 = vcmp.eq.s32.totalorder %v6571, %v337
  %vm6650 = vcmp.eq.s32.totalorder %v6571, %v338
  %vm6651 = vcmp.eq.s32.totalorder %v6574, %v337
  %vm6652 = vcmp.eq.s32.totalorder %v6574, %v338
  %vm6653 = vcmp.eq.s32.totalorder %v6577, %v337
  %vm6654 = vcmp.eq.s32.totalorder %v6577, %v338
  %vm6655 = vcmp.eq.s32.totalorder %v6580, %v337
  %vm6656 = vcmp.eq.s32.totalorder %v6580, %v338
  %vm6657 = vcmp.eq.s32.totalorder %v6583, %v337
  %vm6658 = vcmp.eq.s32.totalorder %v6583, %v338
  %vm6659 = vcmp.eq.s32.totalorder %v6586, %v337
  %vm6660 = vcmp.eq.s32.totalorder %v6586, %v338
  %vm6661 = vcmp.eq.s32.totalorder %v6589, %v337
  %vm6662 = vcmp.eq.s32.totalorder %v6589, %v338
  %vm6663 = vcmp.eq.s32.totalorder %v6592, %v337
  %vm6664 = vcmp.eq.s32.totalorder %v6592, %v338
  %vm6665 = vcmp.eq.s32.totalorder %v6595, %v337
  %vm6666 = vcmp.eq.s32.totalorder %v6595, %v338
  %vm6667 = vcmp.eq.s32.totalorder %v6598, %v337
  %vm6668 = vcmp.eq.s32.totalorder %v6598, %v338
  %vm6669 = vcmp.eq.s32.totalorder %v6601, %v337
  %vm6670 = vcmp.eq.s32.totalorder %v6601, %v338
  %vm6671 = vcmp.eq.s32.totalorder %v6604, %v337
  %vm6672 = vcmp.eq.s32.totalorder %v6604, %v338
  %vm6673 = vcmp.eq.s32.totalorder %v6607, %v337
  %vm6674 = vcmp.eq.s32.totalorder %v6607, %v338
  %vm6675 = vcmp.eq.s32.totalorder %v6610, %v337
  %vm6676 = vcmp.eq.s32.totalorder %v6610, %v338
  %vm6677 = vcmp.eq.s32.totalorder %v6613, %v337
  %vm6678 = vcmp.eq.s32.totalorder %v6613, %v338
  %vm6679 = vcmp.eq.s32.totalorder %v6616, %v337
  %vm6680 = vcmp.eq.s32.totalorder %v6616, %v338
  %v6681 = vsel %vm6617, 1, 0
  %v6682 = vsel %vm6618, 1, 0
  %v6683 = vsel %vm6619, 1, 0
  %v6684 = vsel %vm6620, 1, 0
  %v6685 = vsel %vm6621, 1, 0
  %v6686 = vsel %vm6622, 1, 0
  %v6687 = vsel %vm6623, 1, 0
  %v6688 = vsel %vm6624, 1, 0
  %v6689 = vsel %vm6625, 1, 0
  %v6690 = vsel %vm6626, 1, 0
  %v6691 = vsel %vm6627, 1, 0
  %v6692 = vsel %vm6628, 1, 0
  %v6693 = vsel %vm6629, 1, 0
  %v6694 = vsel %vm6630, 1, 0
  %v6695 = vsel %vm6631, 1, 0
  %v6696 = vsel %vm6632, 1, 0
  %v6697 = vsel %vm6633, 1, 0
  %v6698 = vsel %vm6634, 1, 0
  %v6699 = vsel %vm6635, 1, 0
  %v6700 = vsel %vm6636, 1, 0
  %v6701 = vsel %vm6637, 1, 0
  %v6702 = vsel %vm6638, 1, 0
  %v6703 = vsel %vm6639, 1, 0
  %v6704 = vsel %vm6640, 1, 0
  %v6705 = vsel %vm6641, 1, 0
  %v6706 = vsel %vm6642, 1, 0
  %v6707 = vsel %vm6643, 1, 0
  %v6708 = vsel %vm6644, 1, 0
  %v6709 = vsel %vm6645, 1, 0
  %v6710 = vsel %vm6646, 1, 0
  %v6711 = vsel %vm6647, 1, 0
  %v6712 = vsel %vm6648, 1, 0
  %v6713 = vsel %vm6649, 1, 0
  %v6714 = vsel %vm6650, 1, 0
  %v6715 = vsel %vm6651, 1, 0
  %v6716 = vsel %vm6652, 1, 0
  %v6717 = vsel %vm6653, 1, 0
  %v6718 = vsel %vm6654, 1, 0
  %v6719 = vsel %vm6655, 1, 0
  %v6720 = vsel %vm6656, 1, 0
  %v6721 = vsel %vm6657, 1, 0
  %v6722 = vsel %vm6658, 1, 0
  %v6723 = vsel %vm6659, 1, 0
  %v6724 = vsel %vm6660, 1, 0
  %v6725 = vsel %vm6661, 1, 0
  %v6726 = vsel %vm6662, 1, 0
  %v6727 = vsel %vm6663, 1, 0
  %v6728 = vsel %vm6664, 1, 0
  %v6729 = vsel %vm6665, 1, 0
  %v6730 = vsel %vm6666, 1, 0
  %v6731 = vsel %vm6667, 1, 0
  %v6732 = vsel %vm6668, 1, 0
  %v6733 = vsel %vm6669, 1, 0
  %v6734 = vsel %vm6670, 1, 0
  %v6735 = vsel %vm6671, 1, 0
  %v6736 = vsel %vm6672, 1, 0
  %v6737 = vsel %vm6673, 1, 0
  %v6738 = vsel %vm6674, 1, 0
  %v6739 = vsel %vm6675, 1, 0
  %v6740 = vsel %vm6676, 1, 0
  %v6741 = vsel %vm6677, 1, 0
  %v6742 = vsel %vm6678, 1, 0
  %v6743 = vsel %vm6679, 1, 0
  %v6744 = vsel %vm6680, 1, 0
  %v6745 = vcvt.s32.f32 %v6681
  %v6746 = vcvt.s32.f32 %v6682
  %v6747 = vcvt.s32.f32 %v6683
  %v6748 = vcvt.s32.f32 %v6684
  %v6749 = vcvt.s32.f32 %v6685
  %v6750 = vcvt.s32.f32 %v6686
  %v6751 = vcvt.s32.f32 %v6687
  %v6752 = vcvt.s32.f32 %v6688
  %v6753 = vcvt.s32.f32 %v6689
  %v6754 = vcvt.s32.f32 %v6690
  %v6755 = vcvt.s32.f32 %v6691
  %v6756 = vcvt.s32.f32 %v6692
  %v6757 = vcvt.s32.f32 %v6693
  %v6758 = vcvt.s32.f32 %v6694
  %v6759 = vcvt.s32.f32 %v6695
  %v6760 = vcvt.s32.f32 %v6696
  %v6761 = vcvt.s32.f32 %v6697
  %v6762 = vcvt.s32.f32 %v6698
  %v6763 = vcvt.s32.f32 %v6699
  %v6764 = vcvt.s32.f32 %v6700
  %v6765 = vcvt.s32.f32 %v6701
  %v6766 = vcvt.s32.f32 %v6702
  %v6767 = vcvt.s32.f32 %v6703
  %v6768 = vcvt.s32.f32 %v6704
  %v6769 = vcvt.s32.f32 %v6705
  %v6770 = vcvt.s32.f32 %v6706
  %v6771 = vcvt.s32.f32 %v6707
  %v6772 = vcvt.s32.f32 %v6708
  %v6773 = vcvt.s32.f32 %v6709
  %v6774 = vcvt.s32.f32 %v6710
  %v6775 = vcvt.s32.f32 %v6711
  %v6776 = vcvt.s32.f32 %v6712
  %v6777 = vcvt.s32.f32 %v6713
  %v6778 = vcvt.s32.f32 %v6714
  %v6779 = vcvt.s32.f32 %v6715
  %v6780 = vcvt.s32.f32 %v6716
  %v6781 = vcvt.s32.f32 %v6717
  %v6782 = vcvt.s32.f32 %v6718
  %v6783 = vcvt.s32.f32 %v6719
  %v6784 = vcvt.s32.f32 %v6720
  %v6785 = vcvt.s32.f32 %v6721
  %v6786 = vcvt.s32.f32 %v6722
  %v6787 = vcvt.s32.f32 %v6723
  %v6788 = vcvt.s32.f32 %v6724
  %v6789 = vcvt.s32.f32 %v6725
  %v6790 = vcvt.s32.f32 %v6726
  %v6791 = vcvt.s32.f32 %v6727
  %v6792 = vcvt.s32.f32 %v6728
  %v6793 = vcvt.s32.f32 %v6729
  %v6794 = vcvt.s32.f32 %v6730
  %v6795 = vcvt.s32.f32 %v6731
  %v6796 = vcvt.s32.f32 %v6732
  %v6797 = vcvt.s32.f32 %v6733
  %v6798 = vcvt.s32.f32 %v6734
  %v6799 = vcvt.s32.f32 %v6735
  %v6800 = vcvt.s32.f32 %v6736
  %v6801 = vcvt.s32.f32 %v6737
  %v6802 = vcvt.s32.f32 %v6738
  %v6803 = vcvt.s32.f32 %v6739
  %v6804 = vcvt.s32.f32 %v6740
  %v6805 = vcvt.s32.f32 %v6741
  %v6806 = vcvt.s32.f32 %v6742
  %v6807 = vcvt.s32.f32 %v6743
  %v6808 = vcvt.s32.f32 %v6744
  %v6809 = vpack.c.bf16 %v6747, %v6745
  %v6810 = vpack.c.bf16 %v6748, %v6746
  %v6811 = vpack.c.bf16 %v6751, %v6749
  %v6812 = vpack.c.bf16 %v6752, %v6750
  %v6813 = vpack.c.bf16 %v6755, %v6753
  %v6814 = vpack.c.bf16 %v6756, %v6754
  %v6815 = vpack.c.bf16 %v6759, %v6757
  %v6816 = vpack.c.bf16 %v6760, %v6758
  %v6817 = vpack.c.bf16 %v6763, %v6761
  %v6818 = vpack.c.bf16 %v6764, %v6762
  %v6819 = vpack.c.bf16 %v6767, %v6765
  %v6820 = vpack.c.bf16 %v6768, %v6766
  %v6821 = vpack.c.bf16 %v6771, %v6769
  %v6822 = vpack.c.bf16 %v6772, %v6770
  %v6823 = vpack.c.bf16 %v6775, %v6773
  %v6824 = vpack.c.bf16 %v6776, %v6774
  %v6825 = vpack.c.bf16 %v6779, %v6777
  %v6826 = vpack.c.bf16 %v6780, %v6778
  %v6827 = vpack.c.bf16 %v6783, %v6781
  %v6828 = vpack.c.bf16 %v6784, %v6782
  %v6829 = vpack.c.bf16 %v6787, %v6785
  %v6830 = vpack.c.bf16 %v6788, %v6786
  %v6831 = vpack.c.bf16 %v6791, %v6789
  %v6832 = vpack.c.bf16 %v6792, %v6790
  %v6833 = vpack.c.bf16 %v6795, %v6793
  %v6834 = vpack.c.bf16 %v6796, %v6794
  %v6835 = vpack.c.bf16 %v6799, %v6797
  %v6836 = vpack.c.bf16 %v6800, %v6798
  %v6837 = vpack.c.bf16 %v6803, %v6801
  %v6838 = vpack.c.bf16 %v6804, %v6802
  %v6839 = vpack.c.bf16 %v6807, %v6805
  %v6840 = vpack.c.bf16 %v6808, %v6806
  %v6841 = vadd.bf16 %v6809, 0
  %v6842 = vadd.bf16 %v6810, 0
  %v6843 = vadd.bf16 %v6811, 0
  %v6844 = vadd.bf16 %v6812, 0
  %v6845 = vadd.bf16 %v6813, 0
  %v6846 = vadd.bf16 %v6814, 0
  %v6847 = vadd.bf16 %v6815, 0
  %v6848 = vadd.bf16 %v6816, 0
  %v6849 = vadd.bf16 %v6817, 0
  %v6850 = vadd.bf16 %v6818, 0
  %v6851 = vadd.bf16 %v6819, 0
  %v6852 = vadd.bf16 %v6820, 0
  %v6853 = vadd.bf16 %v6821, 0
  %v6854 = vadd.bf16 %v6822, 0
  %v6855 = vadd.bf16 %v6823, 0
  %v6856 = vadd.bf16 %v6824, 0
  %v6857 = vadd.bf16 %v6825, 0
  %v6858 = vadd.bf16 %v6826, 0
  %v6859 = vadd.bf16 %v6827, 0
  %v6860 = vadd.bf16 %v6828, 0
  %v6861 = vadd.bf16 %v6829, 0
  %v6862 = vadd.bf16 %v6830, 0
  %v6863 = vadd.bf16 %v6831, 0
  %v6864 = vadd.bf16 %v6832, 0
  %v6865 = vadd.bf16 %v6833, 0
  %v6866 = vadd.bf16 %v6834, 0
  %v6867 = vadd.bf16 %v6835, 0
  %v6868 = vadd.bf16 %v6836, 0
  %v6869 = vadd.bf16 %v6837, 0
  %v6870 = vadd.bf16 %v6838, 0
  %v6871 = vadd.bf16 %v6839, 0
  %v6872 = vadd.bf16 %v6840, 0
  %6873 = vset.pattern.permute.xlu0 1
  %6874 = vperm.xlu0 %6873, %v6489
  %v6875 = vpop.permute.xlu0 %6874
  %6876 = vset.pattern.permute.xlu0 1
  %6877 = vperm.xlu0 %6876, %v6490
  %v6878 = vpop.permute.xlu0 %6877
  %6879 = vset.pattern.permute.xlu0 1
  %6880 = vperm.xlu0 %6879, %v6491
  %v6881 = vpop.permute.xlu0 %6880
  %6882 = vset.pattern.permute.xlu0 1
  %6883 = vperm.xlu0 %6882, %v6492
  %v6884 = vpop.permute.xlu0 %6883
  %6885 = vset.pattern.permute.xlu0 1
  %6886 = vperm.xlu0 %6885, %v6493
  %v6887 = vpop.permute.xlu0 %6886
  %6888 = vset.pattern.permute.xlu0 1
  %6889 = vperm.xlu0 %6888, %v6494
  %v6890 = vpop.permute.xlu0 %6889
  %6891 = vset.pattern.permute.xlu0 1
  %6892 = vperm.xlu0 %6891, %v6495
  %v6893 = vpop.permute.xlu0 %6892
  %6894 = vset.pattern.permute.xlu0 1
  %6895 = vperm.xlu0 %6894, %v6496
  %v6896 = vpop.permute.xlu0 %6895
  %6897 = vset.pattern.permute.xlu0 1
  %6898 = vperm.xlu0 %6897, %v6497
  %v6899 = vpop.permute.xlu0 %6898
  %6900 = vset.pattern.permute.xlu0 1
  %6901 = vperm.xlu0 %6900, %v6498
  %v6902 = vpop.permute.xlu0 %6901
  %6903 = vset.pattern.permute.xlu0 1
  %6904 = vperm.xlu0 %6903, %v6499
  %v6905 = vpop.permute.xlu0 %6904
  %6906 = vset.pattern.permute.xlu0 1
  %6907 = vperm.xlu0 %6906, %v6500
  %v6908 = vpop.permute.xlu0 %6907
  %6909 = vset.pattern.permute.xlu0 1
  %6910 = vperm.xlu0 %6909, %v6501
  %v6911 = vpop.permute.xlu0 %6910
  %6912 = vset.pattern.permute.xlu0 1
  %6913 = vperm.xlu0 %6912, %v6502
  %v6914 = vpop.permute.xlu0 %6913
  %6915 = vset.pattern.permute.xlu0 1
  %6916 = vperm.xlu0 %6915, %v6503
  %v6917 = vpop.permute.xlu0 %6916
  %6918 = vset.pattern.permute.xlu0 1
  %6919 = vperm.xlu0 %6918, %v6504
  %v6920 = vpop.permute.xlu0 %6919
  %6921 = vset.pattern.permute.xlu0 1
  %6922 = vperm.xlu0 %6921, %v6505
  %v6923 = vpop.permute.xlu0 %6922
  %6924 = vset.pattern.permute.xlu0 1
  %6925 = vperm.xlu0 %6924, %v6506
  %v6926 = vpop.permute.xlu0 %6925
  %6927 = vset.pattern.permute.xlu0 1
  %6928 = vperm.xlu0 %6927, %v6507
  %v6929 = vpop.permute.xlu0 %6928
  %6930 = vset.pattern.permute.xlu0 1
  %6931 = vperm.xlu0 %6930, %v6508
  %v6932 = vpop.permute.xlu0 %6931
  %6933 = vset.pattern.permute.xlu0 1
  %6934 = vperm.xlu0 %6933, %v6509
  %v6935 = vpop.permute.xlu0 %6934
  %6936 = vset.pattern.permute.xlu0 1
  %6937 = vperm.xlu0 %6936, %v6510
  %v6938 = vpop.permute.xlu0 %6937
  %6939 = vset.pattern.permute.xlu0 1
  %6940 = vperm.xlu0 %6939, %v6511
  %v6941 = vpop.permute.xlu0 %6940
  %6942 = vset.pattern.permute.xlu0 1
  %6943 = vperm.xlu0 %6942, %v6512
  %v6944 = vpop.permute.xlu0 %6943
  %6945 = vset.pattern.permute.xlu0 1
  %6946 = vperm.xlu0 %6945, %v6513
  %v6947 = vpop.permute.xlu0 %6946
  %6948 = vset.pattern.permute.xlu0 1
  %6949 = vperm.xlu0 %6948, %v6514
  %v6950 = vpop.permute.xlu0 %6949
  %6951 = vset.pattern.permute.xlu0 1
  %6952 = vperm.xlu0 %6951, %v6515
  %v6953 = vpop.permute.xlu0 %6952
  %6954 = vset.pattern.permute.xlu0 1
  %6955 = vperm.xlu0 %6954, %v6516
  %v6956 = vpop.permute.xlu0 %6955
  %6957 = vset.pattern.permute.xlu0 1
  %6958 = vperm.xlu0 %6957, %v6517
  %v6959 = vpop.permute.xlu0 %6958
  %6960 = vset.pattern.permute.xlu0 1
  %6961 = vperm.xlu0 %6960, %v6518
  %v6962 = vpop.permute.xlu0 %6961
  %6963 = vset.pattern.permute.xlu0 1
  %6964 = vperm.xlu0 %6963, %v6519
  %v6965 = vpop.permute.xlu0 %6964
  %6966 = vset.pattern.permute.xlu0 1
  %6967 = vperm.xlu0 %6966, %v6520
  %v6968 = vpop.permute.xlu0 %6967
  %vm6969 = vcmp.eq.s32.totalorder %v6875, %v337
  %vm6970 = vcmp.eq.s32.totalorder %v6875, %v338
  %vm6971 = vcmp.eq.s32.totalorder %v6878, %v337
  %vm6972 = vcmp.eq.s32.totalorder %v6878, %v338
  %vm6973 = vcmp.eq.s32.totalorder %v6881, %v337
  %vm6974 = vcmp.eq.s32.totalorder %v6881, %v338
  %vm6975 = vcmp.eq.s32.totalorder %v6884, %v337
  %vm6976 = vcmp.eq.s32.totalorder %v6884, %v338
  %vm6977 = vcmp.eq.s32.totalorder %v6887, %v337
  %vm6978 = vcmp.eq.s32.totalorder %v6887, %v338
  %vm6979 = vcmp.eq.s32.totalorder %v6890, %v337
  %vm6980 = vcmp.eq.s32.totalorder %v6890, %v338
  %vm6981 = vcmp.eq.s32.totalorder %v6893, %v337
  %vm6982 = vcmp.eq.s32.totalorder %v6893, %v338
  %vm6983 = vcmp.eq.s32.totalorder %v6896, %v337
  %vm6984 = vcmp.eq.s32.totalorder %v6896, %v338
  %vm6985 = vcmp.eq.s32.totalorder %v6899, %v337
  %vm6986 = vcmp.eq.s32.totalorder %v6899, %v338
  %vm6987 = vcmp.eq.s32.totalorder %v6902, %v337
  %vm6988 = vcmp.eq.s32.totalorder %v6902, %v338
  %vm6989 = vcmp.eq.s32.totalorder %v6905, %v337
  %vm6990 = vcmp.eq.s32.totalorder %v6905, %v338
  %vm6991 = vcmp.eq.s32.totalorder %v6908, %v337
  %vm6992 = vcmp.eq.s32.totalorder %v6908, %v338
  %vm6993 = vcmp.eq.s32.totalorder %v6911, %v337
  %vm6994 = vcmp.eq.s32.totalorder %v6911, %v338
  %vm6995 = vcmp.eq.s32.totalorder %v6914, %v337
  %vm6996 = vcmp.eq.s32.totalorder %v6914, %v338
  %vm6997 = vcmp.eq.s32.totalorder %v6917, %v337
  %vm6998 = vcmp.eq.s32.totalorder %v6917, %v338
  %vm6999 = vcmp.eq.s32.totalorder %v6920, %v337
  %vm7000 = vcmp.eq.s32.totalorder %v6920, %v338
  %vm7001 = vcmp.eq.s32.totalorder %v6923, %v337
  %vm7002 = vcmp.eq.s32.totalorder %v6923, %v338
  %vm7003 = vcmp.eq.s32.totalorder %v6926, %v337
  %vm7004 = vcmp.eq.s32.totalorder %v6926, %v338
  %vm7005 = vcmp.eq.s32.totalorder %v6929, %v337
  %vm7006 = vcmp.eq.s32.totalorder %v6929, %v338
  %vm7007 = vcmp.eq.s32.totalorder %v6932, %v337
  %vm7008 = vcmp.eq.s32.totalorder %v6932, %v338
  %vm7009 = vcmp.eq.s32.totalorder %v6935, %v337
  %vm7010 = vcmp.eq.s32.totalorder %v6935, %v338
  %vm7011 = vcmp.eq.s32.totalorder %v6938, %v337
  %vm7012 = vcmp.eq.s32.totalorder %v6938, %v338
  %vm7013 = vcmp.eq.s32.totalorder %v6941, %v337
  %vm7014 = vcmp.eq.s32.totalorder %v6941, %v338
  %vm7015 = vcmp.eq.s32.totalorder %v6944, %v337
  %vm7016 = vcmp.eq.s32.totalorder %v6944, %v338
  %vm7017 = vcmp.eq.s32.totalorder %v6947, %v337
  %vm7018 = vcmp.eq.s32.totalorder %v6947, %v338
  %vm7019 = vcmp.eq.s32.totalorder %v6950, %v337
  %vm7020 = vcmp.eq.s32.totalorder %v6950, %v338
  %vm7021 = vcmp.eq.s32.totalorder %v6953, %v337
  %vm7022 = vcmp.eq.s32.totalorder %v6953, %v338
  %vm7023 = vcmp.eq.s32.totalorder %v6956, %v337
  %vm7024 = vcmp.eq.s32.totalorder %v6956, %v338
  %vm7025 = vcmp.eq.s32.totalorder %v6959, %v337
  %vm7026 = vcmp.eq.s32.totalorder %v6959, %v338
  %vm7027 = vcmp.eq.s32.totalorder %v6962, %v337
  %vm7028 = vcmp.eq.s32.totalorder %v6962, %v338
  %vm7029 = vcmp.eq.s32.totalorder %v6965, %v337
  %vm7030 = vcmp.eq.s32.totalorder %v6965, %v338
  %vm7031 = vcmp.eq.s32.totalorder %v6968, %v337
  %vm7032 = vcmp.eq.s32.totalorder %v6968, %v338
  %v7033 = vsel %vm6969, 1, 0
  %v7034 = vsel %vm6970, 1, 0
  %v7035 = vsel %vm6971, 1, 0
  %v7036 = vsel %vm6972, 1, 0
  %v7037 = vsel %vm6973, 1, 0
  %v7038 = vsel %vm6974, 1, 0
  %v7039 = vsel %vm6975, 1, 0
  %v7040 = vsel %vm6976, 1, 0
  %v7041 = vsel %vm6977, 1, 0
  %v7042 = vsel %vm6978, 1, 0
  %v7043 = vsel %vm6979, 1, 0
  %v7044 = vsel %vm6980, 1, 0
  %v7045 = vsel %vm6981, 1, 0
  %v7046 = vsel %vm6982, 1, 0
  %v7047 = vsel %vm6983, 1, 0
  %v7048 = vsel %vm6984, 1, 0
  %v7049 = vsel %vm6985, 1, 0
  %v7050 = vsel %vm6986, 1, 0
  %v7051 = vsel %vm6987, 1, 0
  %v7052 = vsel %vm6988, 1, 0
  %v7053 = vsel %vm6989, 1, 0
  %v7054 = vsel %vm6990, 1, 0
  %v7055 = vsel %vm6991, 1, 0
  %v7056 = vsel %vm6992, 1, 0
  %v7057 = vsel %vm6993, 1, 0
  %v7058 = vsel %vm6994, 1, 0
  %v7059 = vsel %vm6995, 1, 0
  %v7060 = vsel %vm6996, 1, 0
  %v7061 = vsel %vm6997, 1, 0
  %v7062 = vsel %vm6998, 1, 0
  %v7063 = vsel %vm6999, 1, 0
  %v7064 = vsel %vm7000, 1, 0
  %v7065 = vsel %vm7001, 1, 0
  %v7066 = vsel %vm7002, 1, 0
  %v7067 = vsel %vm7003, 1, 0
  %v7068 = vsel %vm7004, 1, 0
  %v7069 = vsel %vm7005, 1, 0
  %v7070 = vsel %vm7006, 1, 0
  %v7071 = vsel %vm7007, 1, 0
  %v7072 = vsel %vm7008, 1, 0
  %v7073 = vsel %vm7009, 1, 0
  %v7074 = vsel %vm7010, 1, 0
  %v7075 = vsel %vm7011, 1, 0
  %v7076 = vsel %vm7012, 1, 0
  %v7077 = vsel %vm7013, 1, 0
  %v7078 = vsel %vm7014, 1, 0
  %v7079 = vsel %vm7015, 1, 0
  %v7080 = vsel %vm7016, 1, 0
  %v7081 = vsel %vm7017, 1, 0
  %v7082 = vsel %vm7018, 1, 0
  %v7083 = vsel %vm7019, 1, 0
  %v7084 = vsel %vm7020, 1, 0
  %v7085 = vsel %vm7021, 1, 0
  %v7086 = vsel %vm7022, 1, 0
  %v7087 = vsel %vm7023, 1, 0
  %v7088 = vsel %vm7024, 1, 0
  %v7089 = vsel %vm7025, 1, 0
  %v7090 = vsel %vm7026, 1, 0
  %v7091 = vsel %vm7027, 1, 0
  %v7092 = vsel %vm7028, 1, 0
  %v7093 = vsel %vm7029, 1, 0
  %v7094 = vsel %vm7030, 1, 0
  %v7095 = vsel %vm7031, 1, 0
  %v7096 = vsel %vm7032, 1, 0
  %v7097 = vcvt.s32.f32 %v7033
  %v7098 = vcvt.s32.f32 %v7034
  %v7099 = vcvt.s32.f32 %v7035
  %v7100 = vcvt.s32.f32 %v7036
  %v7101 = vcvt.s32.f32 %v7037
  %v7102 = vcvt.s32.f32 %v7038
  %v7103 = vcvt.s32.f32 %v7039
  %v7104 = vcvt.s32.f32 %v7040
  %v7105 = vcvt.s32.f32 %v7041
  %v7106 = vcvt.s32.f32 %v7042
  %v7107 = vcvt.s32.f32 %v7043
  %v7108 = vcvt.s32.f32 %v7044
  %v7109 = vcvt.s32.f32 %v7045
  %v7110 = vcvt.s32.f32 %v7046
  %v7111 = vcvt.s32.f32 %v7047
  %v7112 = vcvt.s32.f32 %v7048
  %v7113 = vcvt.s32.f32 %v7049
  %v7114 = vcvt.s32.f32 %v7050
  %v7115 = vcvt.s32.f32 %v7051
  %v7116 = vcvt.s32.f32 %v7052
  %v7117 = vcvt.s32.f32 %v7053
  %v7118 = vcvt.s32.f32 %v7054
  %v7119 = vcvt.s32.f32 %v7055
  %v7120 = vcvt.s32.f32 %v7056
  %v7121 = vcvt.s32.f32 %v7057
  %v7122 = vcvt.s32.f32 %v7058
  %v7123 = vcvt.s32.f32 %v7059
  %v7124 = vcvt.s32.f32 %v7060
  %v7125 = vcvt.s32.f32 %v7061
  %v7126 = vcvt.s32.f32 %v7062
  %v7127 = vcvt.s32.f32 %v7063
  %v7128 = vcvt.s32.f32 %v7064
  %v7129 = vcvt.s32.f32 %v7065
  %v7130 = vcvt.s32.f32 %v7066
  %v7131 = vcvt.s32.f32 %v7067
  %v7132 = vcvt.s32.f32 %v7068
  %v7133 = vcvt.s32.f32 %v7069
  %v7134 = vcvt.s32.f32 %v7070
  %v7135 = vcvt.s32.f32 %v7071
  %v7136 = vcvt.s32.f32 %v7072
  %v7137 = vcvt.s32.f32 %v7073
  %v7138 = vcvt.s32.f32 %v7074
  %v7139 = vcvt.s32.f32 %v7075
  %v7140 = vcvt.s32.f32 %v7076
  %v7141 = vcvt.s32.f32 %v7077
  %v7142 = vcvt.s32.f32 %v7078
  %v7143 = vcvt.s32.f32 %v7079
  %v7144 = vcvt.s32.f32 %v7080
  %v7145 = vcvt.s32.f32 %v7081
  %v7146 = vcvt.s32.f32 %v7082
  %v7147 = vcvt.s32.f32 %v7083
  %v7148 = vcvt.s32.f32 %v7084
  %v7149 = vcvt.s32.f32 %v7085
  %v7150 = vcvt.s32.f32 %v7086
  %v7151 = vcvt.s32.f32 %v7087
  %v7152 = vcvt.s32.f32 %v7088
  %v7153 = vcvt.s32.f32 %v7089
  %v7154 = vcvt.s32.f32 %v7090
  %v7155 = vcvt.s32.f32 %v7091
  %v7156 = vcvt.s32.f32 %v7092
  %v7157 = vcvt.s32.f32 %v7093
  %v7158 = vcvt.s32.f32 %v7094
  %v7159 = vcvt.s32.f32 %v7095
  %v7160 = vcvt.s32.f32 %v7096
  %v7161 = vpack.c.bf16 %v7099, %v7097
  %v7162 = vpack.c.bf16 %v7100, %v7098
  %v7163 = vpack.c.bf16 %v7103, %v7101
  %v7164 = vpack.c.bf16 %v7104, %v7102
  %v7165 = vpack.c.bf16 %v7107, %v7105
  %v7166 = vpack.c.bf16 %v7108, %v7106
  %v7167 = vpack.c.bf16 %v7111, %v7109
  %v7168 = vpack.c.bf16 %v7112, %v7110
  %v7169 = vpack.c.bf16 %v7115, %v7113
  %v7170 = vpack.c.bf16 %v7116, %v7114
  %v7171 = vpack.c.bf16 %v7119, %v7117
  %v7172 = vpack.c.bf16 %v7120, %v7118
  %v7173 = vpack.c.bf16 %v7123, %v7121
  %v7174 = vpack.c.bf16 %v7124, %v7122
  %v7175 = vpack.c.bf16 %v7127, %v7125
  %v7176 = vpack.c.bf16 %v7128, %v7126
  %v7177 = vpack.c.bf16 %v7131, %v7129
  %v7178 = vpack.c.bf16 %v7132, %v7130
  %v7179 = vpack.c.bf16 %v7135, %v7133
  %v7180 = vpack.c.bf16 %v7136, %v7134
  %v7181 = vpack.c.bf16 %v7139, %v7137
  %v7182 = vpack.c.bf16 %v7140, %v7138
  %v7183 = vpack.c.bf16 %v7143, %v7141
  %v7184 = vpack.c.bf16 %v7144, %v7142
  %v7185 = vpack.c.bf16 %v7147, %v7145
  %v7186 = vpack.c.bf16 %v7148, %v7146
  %v7187 = vpack.c.bf16 %v7151, %v7149
  %v7188 = vpack.c.bf16 %v7152, %v7150
  %v7189 = vpack.c.bf16 %v7155, %v7153
  %v7190 = vpack.c.bf16 %v7156, %v7154
  %v7191 = vpack.c.bf16 %v7159, %v7157
  %v7192 = vpack.c.bf16 %v7160, %v7158
  %v7193 = vadd.bf16 %v6841, %v7161
  %v7194 = vadd.bf16 %v6842, %v7162
  %v7195 = vadd.bf16 %v6843, %v7163
  %v7196 = vadd.bf16 %v6844, %v7164
  %v7197 = vadd.bf16 %v6845, %v7165
  %v7198 = vadd.bf16 %v6846, %v7166
  %v7199 = vadd.bf16 %v6847, %v7167
  %v7200 = vadd.bf16 %v6848, %v7168
  %v7201 = vadd.bf16 %v6849, %v7169
  %v7202 = vadd.bf16 %v6850, %v7170
  %v7203 = vadd.bf16 %v6851, %v7171
  %v7204 = vadd.bf16 %v6852, %v7172
  %v7205 = vadd.bf16 %v6853, %v7173
  %v7206 = vadd.bf16 %v6854, %v7174
  %v7207 = vadd.bf16 %v6855, %v7175
  %v7208 = vadd.bf16 %v6856, %v7176
  %v7209 = vadd.bf16 %v6857, %v7177
  %v7210 = vadd.bf16 %v6858, %v7178
  %v7211 = vadd.bf16 %v6859, %v7179
  %v7212 = vadd.bf16 %v6860, %v7180
  %v7213 = vadd.bf16 %v6861, %v7181
  %v7214 = vadd.bf16 %v6862, %v7182
  %v7215 = vadd.bf16 %v6863, %v7183
  %v7216 = vadd.bf16 %v6864, %v7184
  %v7217 = vadd.bf16 %v6865, %v7185
  %v7218 = vadd.bf16 %v6866, %v7186
  %v7219 = vadd.bf16 %v6867, %v7187
  %v7220 = vadd.bf16 %v6868, %v7188
  %v7221 = vadd.bf16 %v6869, %v7189
  %v7222 = vadd.bf16 %v6870, %v7190
  %v7223 = vadd.bf16 %v6871, %v7191
  %v7224 = vadd.bf16 %v6872, %v7192
  %7225 = vset.pattern.permute.xlu0 2
  %7226 = vperm.xlu0 %7225, %v6489
  %v7227 = vpop.permute.xlu0 %7226
  %7228 = vset.pattern.permute.xlu0 2
  %7229 = vperm.xlu0 %7228, %v6490
  %v7230 = vpop.permute.xlu0 %7229
  %7231 = vset.pattern.permute.xlu0 2
  %7232 = vperm.xlu0 %7231, %v6491
  %v7233 = vpop.permute.xlu0 %7232
  %7234 = vset.pattern.permute.xlu0 2
  %7235 = vperm.xlu0 %7234, %v6492
  %v7236 = vpop.permute.xlu0 %7235
  %7237 = vset.pattern.permute.xlu0 2
  %7238 = vperm.xlu0 %7237, %v6493
  %v7239 = vpop.permute.xlu0 %7238
  %7240 = vset.pattern.permute.xlu0 2
  %7241 = vperm.xlu0 %7240, %v6494
  %v7242 = vpop.permute.xlu0 %7241
  %7243 = vset.pattern.permute.xlu0 2
  %7244 = vperm.xlu0 %7243, %v6495
  %v7245 = vpop.permute.xlu0 %7244
  %7246 = vset.pattern.permute.xlu0 2
  %7247 = vperm.xlu0 %7246, %v6496
  %v7248 = vpop.permute.xlu0 %7247
  %7249 = vset.pattern.permute.xlu0 2
  %7250 = vperm.xlu0 %7249, %v6497
  %v7251 = vpop.permute.xlu0 %7250
  %7252 = vset.pattern.permute.xlu0 2
  %7253 = vperm.xlu0 %7252, %v6498
  %v7254 = vpop.permute.xlu0 %7253
  %7255 = vset.pattern.permute.xlu0 2
  %7256 = vperm.xlu0 %7255, %v6499
  %v7257 = vpop.permute.xlu0 %7256
  %7258 = vset.pattern.permute.xlu0 2
  %7259 = vperm.xlu0 %7258, %v6500
  %v7260 = vpop.permute.xlu0 %7259
  %7261 = vset.pattern.permute.xlu0 2
  %7262 = vperm.xlu0 %7261, %v6501
  %v7263 = vpop.permute.xlu0 %7262
  %7264 = vset.pattern.permute.xlu0 2
  %7265 = vperm.xlu0 %7264, %v6502
  %v7266 = vpop.permute.xlu0 %7265
  %7267 = vset.pattern.permute.xlu0 2
  %7268 = vperm.xlu0 %7267, %v6503
  %v7269 = vpop.permute.xlu0 %7268
  %7270 = vset.pattern.permute.xlu0 2
  %7271 = vperm.xlu0 %7270, %v6504
  %v7272 = vpop.permute.xlu0 %7271
  %7273 = vset.pattern.permute.xlu0 2
  %7274 = vperm.xlu0 %7273, %v6505
  %v7275 = vpop.permute.xlu0 %7274
  %7276 = vset.pattern.permute.xlu0 2
  %7277 = vperm.xlu0 %7276, %v6506
  %v7278 = vpop.permute.xlu0 %7277
  %7279 = vset.pattern.permute.xlu0 2
  %7280 = vperm.xlu0 %7279, %v6507
  %v7281 = vpop.permute.xlu0 %7280
  %7282 = vset.pattern.permute.xlu0 2
  %7283 = vperm.xlu0 %7282, %v6508
  %v7284 = vpop.permute.xlu0 %7283
  %7285 = vset.pattern.permute.xlu0 2
  %7286 = vperm.xlu0 %7285, %v6509
  %v7287 = vpop.permute.xlu0 %7286
  %7288 = vset.pattern.permute.xlu0 2
  %7289 = vperm.xlu0 %7288, %v6510
  %v7290 = vpop.permute.xlu0 %7289
  %7291 = vset.pattern.permute.xlu0 2
  %7292 = vperm.xlu0 %7291, %v6511
  %v7293 = vpop.permute.xlu0 %7292
  %7294 = vset.pattern.permute.xlu0 2
  %7295 = vperm.xlu0 %7294, %v6512
  %v7296 = vpop.permute.xlu0 %7295
  %7297 = vset.pattern.permute.xlu0 2
  %7298 = vperm.xlu0 %7297, %v6513
  %v7299 = vpop.permute.xlu0 %7298
  %7300 = vset.pattern.permute.xlu0 2
  %7301 = vperm.xlu0 %7300, %v6514
  %v7302 = vpop.permute.xlu0 %7301
  %7303 = vset.pattern.permute.xlu0 2
  %7304 = vperm.xlu0 %7303, %v6515
  %v7305 = vpop.permute.xlu0 %7304
  %7306 = vset.pattern.permute.xlu0 2
  %7307 = vperm.xlu0 %7306, %v6516
  %v7308 = vpop.permute.xlu0 %7307
  %7309 = vset.pattern.permute.xlu0 2
  %7310 = vperm.xlu0 %7309, %v6517
  %v7311 = vpop.permute.xlu0 %7310
  %7312 = vset.pattern.permute.xlu0 2
  %7313 = vperm.xlu0 %7312, %v6518
  %v7314 = vpop.permute.xlu0 %7313
  %7315 = vset.pattern.permute.xlu0 2
  %7316 = vperm.xlu0 %7315, %v6519
  %v7317 = vpop.permute.xlu0 %7316
  %7318 = vset.pattern.permute.xlu0 2
  %7319 = vperm.xlu0 %7318, %v6520
  %v7320 = vpop.permute.xlu0 %7319
  %vm7321 = vcmp.eq.s32.totalorder %v7227, %v337
  %vm7322 = vcmp.eq.s32.totalorder %v7227, %v338
  %vm7323 = vcmp.eq.s32.totalorder %v7230, %v337
  %vm7324 = vcmp.eq.s32.totalorder %v7230, %v338
  %vm7325 = vcmp.eq.s32.totalorder %v7233, %v337
  %vm7326 = vcmp.eq.s32.totalorder %v7233, %v338
  %vm7327 = vcmp.eq.s32.totalorder %v7236, %v337
  %vm7328 = vcmp.eq.s32.totalorder %v7236, %v338
  %vm7329 = vcmp.eq.s32.totalorder %v7239, %v337
  %vm7330 = vcmp.eq.s32.totalorder %v7239, %v338
  %vm7331 = vcmp.eq.s32.totalorder %v7242, %v337
  %vm7332 = vcmp.eq.s32.totalorder %v7242, %v338
  %vm7333 = vcmp.eq.s32.totalorder %v7245, %v337
  %vm7334 = vcmp.eq.s32.totalorder %v7245, %v338
  %vm7335 = vcmp.eq.s32.totalorder %v7248, %v337
  %vm7336 = vcmp.eq.s32.totalorder %v7248, %v338
  %vm7337 = vcmp.eq.s32.totalorder %v7251, %v337
  %vm7338 = vcmp.eq.s32.totalorder %v7251, %v338
  %vm7339 = vcmp.eq.s32.totalorder %v7254, %v337
  %vm7340 = vcmp.eq.s32.totalorder %v7254, %v338
  %vm7341 = vcmp.eq.s32.totalorder %v7257, %v337
  %vm7342 = vcmp.eq.s32.totalorder %v7257, %v338
  %vm7343 = vcmp.eq.s32.totalorder %v7260, %v337
  %vm7344 = vcmp.eq.s32.totalorder %v7260, %v338
  %vm7345 = vcmp.eq.s32.totalorder %v7263, %v337
  %vm7346 = vcmp.eq.s32.totalorder %v7263, %v338
  %vm7347 = vcmp.eq.s32.totalorder %v7266, %v337
  %vm7348 = vcmp.eq.s32.totalorder %v7266, %v338
  %vm7349 = vcmp.eq.s32.totalorder %v7269, %v337
  %vm7350 = vcmp.eq.s32.totalorder %v7269, %v338
  %vm7351 = vcmp.eq.s32.totalorder %v7272, %v337
  %vm7352 = vcmp.eq.s32.totalorder %v7272, %v338
  %vm7353 = vcmp.eq.s32.totalorder %v7275, %v337
  %vm7354 = vcmp.eq.s32.totalorder %v7275, %v338
  %vm7355 = vcmp.eq.s32.totalorder %v7278, %v337
  %vm7356 = vcmp.eq.s32.totalorder %v7278, %v338
  %vm7357 = vcmp.eq.s32.totalorder %v7281, %v337
  %vm7358 = vcmp.eq.s32.totalorder %v7281, %v338
  %vm7359 = vcmp.eq.s32.totalorder %v7284, %v337
  %vm7360 = vcmp.eq.s32.totalorder %v7284, %v338
  %vm7361 = vcmp.eq.s32.totalorder %v7287, %v337
  %vm7362 = vcmp.eq.s32.totalorder %v7287, %v338
  %vm7363 = vcmp.eq.s32.totalorder %v7290, %v337
  %vm7364 = vcmp.eq.s32.totalorder %v7290, %v338
  %vm7365 = vcmp.eq.s32.totalorder %v7293, %v337
  %vm7366 = vcmp.eq.s32.totalorder %v7293, %v338
  %vm7367 = vcmp.eq.s32.totalorder %v7296, %v337
  %vm7368 = vcmp.eq.s32.totalorder %v7296, %v338
  %vm7369 = vcmp.eq.s32.totalorder %v7299, %v337
  %vm7370 = vcmp.eq.s32.totalorder %v7299, %v338
  %vm7371 = vcmp.eq.s32.totalorder %v7302, %v337
  %vm7372 = vcmp.eq.s32.totalorder %v7302, %v338
  %vm7373 = vcmp.eq.s32.totalorder %v7305, %v337
  %vm7374 = vcmp.eq.s32.totalorder %v7305, %v338
  %vm7375 = vcmp.eq.s32.totalorder %v7308, %v337
  %vm7376 = vcmp.eq.s32.totalorder %v7308, %v338
  %vm7377 = vcmp.eq.s32.totalorder %v7311, %v337
  %vm7378 = vcmp.eq.s32.totalorder %v7311, %v338
  %vm7379 = vcmp.eq.s32.totalorder %v7314, %v337
  %vm7380 = vcmp.eq.s32.totalorder %v7314, %v338
  %vm7381 = vcmp.eq.s32.totalorder %v7317, %v337
  %vm7382 = vcmp.eq.s32.totalorder %v7317, %v338
  %vm7383 = vcmp.eq.s32.totalorder %v7320, %v337
  %vm7384 = vcmp.eq.s32.totalorder %v7320, %v338
  %v7385 = vsel %vm7321, 1, 0
  %v7386 = vsel %vm7322, 1, 0
  %v7387 = vsel %vm7323, 1, 0
  %v7388 = vsel %vm7324, 1, 0
  %v7389 = vsel %vm7325, 1, 0
  %v7390 = vsel %vm7326, 1, 0
  %v7391 = vsel %vm7327, 1, 0
  %v7392 = vsel %vm7328, 1, 0
  %v7393 = vsel %vm7329, 1, 0
  %v7394 = vsel %vm7330, 1, 0
  %v7395 = vsel %vm7331, 1, 0
  %v7396 = vsel %vm7332, 1, 0
  %v7397 = vsel %vm7333, 1, 0
  %v7398 = vsel %vm7334, 1, 0
  %v7399 = vsel %vm7335, 1, 0
  %v7400 = vsel %vm7336, 1, 0
  %v7401 = vsel %vm7337, 1, 0
  %v7402 = vsel %vm7338, 1, 0
  %v7403 = vsel %vm7339, 1, 0
  %v7404 = vsel %vm7340, 1, 0
  %v7405 = vsel %vm7341, 1, 0
  %v7406 = vsel %vm7342, 1, 0
  %v7407 = vsel %vm7343, 1, 0
  %v7408 = vsel %vm7344, 1, 0
  %v7409 = vsel %vm7345, 1, 0
  %v7410 = vsel %vm7346, 1, 0
  %v7411 = vsel %vm7347, 1, 0
  %v7412 = vsel %vm7348, 1, 0
  %v7413 = vsel %vm7349, 1, 0
  %v7414 = vsel %vm7350, 1, 0
  %v7415 = vsel %vm7351, 1, 0
  %v7416 = vsel %vm7352, 1, 0
  %v7417 = vsel %vm7353, 1, 0
  %v7418 = vsel %vm7354, 1, 0
  %v7419 = vsel %vm7355, 1, 0
  %v7420 = vsel %vm7356, 1, 0
  %v7421 = vsel %vm7357, 1, 0
  %v7422 = vsel %vm7358, 1, 0
  %v7423 = vsel %vm7359, 1, 0
  %v7424 = vsel %vm7360, 1, 0
  %v7425 = vsel %vm7361, 1, 0
  %v7426 = vsel %vm7362, 1, 0
  %v7427 = vsel %vm7363, 1, 0
  %v7428 = vsel %vm7364, 1, 0
  %v7429 = vsel %vm7365, 1, 0
  %v7430 = vsel %vm7366, 1, 0
  %v7431 = vsel %vm7367, 1, 0
  %v7432 = vsel %vm7368, 1, 0
  %v7433 = vsel %vm7369, 1, 0
  %v7434 = vsel %vm7370, 1, 0
  %v7435 = vsel %vm7371, 1, 0
  %v7436 = vsel %vm7372, 1, 0
  %v7437 = vsel %vm7373, 1, 0
  %v7438 = vsel %vm7374, 1, 0
  %v7439 = vsel %vm7375, 1, 0
  %v7440 = vsel %vm7376, 1, 0
  %v7441 = vsel %vm7377, 1, 0
  %v7442 = vsel %vm7378, 1, 0
  %v7443 = vsel %vm7379, 1, 0
  %v7444 = vsel %vm7380, 1, 0
  %v7445 = vsel %vm7381, 1, 0
  %v7446 = vsel %vm7382, 1, 0
  %v7447 = vsel %vm7383, 1, 0
  %v7448 = vsel %vm7384, 1, 0
  %v7449 = vcvt.s32.f32 %v7385
  %v7450 = vcvt.s32.f32 %v7386
  %v7451 = vcvt.s32.f32 %v7387
  %v7452 = vcvt.s32.f32 %v7388
  %v7453 = vcvt.s32.f32 %v7389
  %v7454 = vcvt.s32.f32 %v7390
  %v7455 = vcvt.s32.f32 %v7391
  %v7456 = vcvt.s32.f32 %v7392
  %v7457 = vcvt.s32.f32 %v7393
  %v7458 = vcvt.s32.f32 %v7394
  %v7459 = vcvt.s32.f32 %v7395
  %v7460 = vcvt.s32.f32 %v7396
  %v7461 = vcvt.s32.f32 %v7397
  %v7462 = vcvt.s32.f32 %v7398
  %v7463 = vcvt.s32.f32 %v7399
  %v7464 = vcvt.s32.f32 %v7400
  %v7465 = vcvt.s32.f32 %v7401
  %v7466 = vcvt.s32.f32 %v7402
  %v7467 = vcvt.s32.f32 %v7403
  %v7468 = vcvt.s32.f32 %v7404
  %v7469 = vcvt.s32.f32 %v7405
  %v7470 = vcvt.s32.f32 %v7406
  %v7471 = vcvt.s32.f32 %v7407
  %v7472 = vcvt.s32.f32 %v7408
  %v7473 = vcvt.s32.f32 %v7409
  %v7474 = vcvt.s32.f32 %v7410
  %v7475 = vcvt.s32.f32 %v7411
  %v7476 = vcvt.s32.f32 %v7412
  %v7477 = vcvt.s32.f32 %v7413
  %v7478 = vcvt.s32.f32 %v7414
  %v7479 = vcvt.s32.f32 %v7415
  %v7480 = vcvt.s32.f32 %v7416
  %v7481 = vcvt.s32.f32 %v7417
  %v7482 = vcvt.s32.f32 %v7418
  %v7483 = vcvt.s32.f32 %v7419
  %v7484 = vcvt.s32.f32 %v7420
  %v7485 = vcvt.s32.f32 %v7421
  %v7486 = vcvt.s32.f32 %v7422
  %v7487 = vcvt.s32.f32 %v7423
  %v7488 = vcvt.s32.f32 %v7424
  %v7489 = vcvt.s32.f32 %v7425
  %v7490 = vcvt.s32.f32 %v7426
  %v7491 = vcvt.s32.f32 %v7427
  %v7492 = vcvt.s32.f32 %v7428
  %v7493 = vcvt.s32.f32 %v7429
  %v7494 = vcvt.s32.f32 %v7430
  %v7495 = vcvt.s32.f32 %v7431
  %v7496 = vcvt.s32.f32 %v7432
  %v7497 = vcvt.s32.f32 %v7433
  %v7498 = vcvt.s32.f32 %v7434
  %v7499 = vcvt.s32.f32 %v7435
  %v7500 = vcvt.s32.f32 %v7436
  %v7501 = vcvt.s32.f32 %v7437
  %v7502 = vcvt.s32.f32 %v7438
  %v7503 = vcvt.s32.f32 %v7439
  %v7504 = vcvt.s32.f32 %v7440
  %v7505 = vcvt.s32.f32 %v7441
  %v7506 = vcvt.s32.f32 %v7442
  %v7507 = vcvt.s32.f32 %v7443
  %v7508 = vcvt.s32.f32 %v7444
  %v7509 = vcvt.s32.f32 %v7445
  %v7510 = vcvt.s32.f32 %v7446
  %v7511 = vcvt.s32.f32 %v7447
  %v7512 = vcvt.s32.f32 %v7448
  %v7513 = vpack.c.bf16 %v7451, %v7449
  %v7514 = vpack.c.bf16 %v7452, %v7450
  %v7515 = vpack.c.bf16 %v7455, %v7453
  %v7516 = vpack.c.bf16 %v7456, %v7454
  %v7517 = vpack.c.bf16 %v7459, %v7457
  %v7518 = vpack.c.bf16 %v7460, %v7458
  %v7519 = vpack.c.bf16 %v7463, %v7461
  %v7520 = vpack.c.bf16 %v7464, %v7462
  %v7521 = vpack.c.bf16 %v7467, %v7465
  %v7522 = vpack.c.bf16 %v7468, %v7466
  %v7523 = vpack.c.bf16 %v7471, %v7469
  %v7524 = vpack.c.bf16 %v7472, %v7470
  %v7525 = vpack.c.bf16 %v7475, %v7473
  %v7526 = vpack.c.bf16 %v7476, %v7474
  %v7527 = vpack.c.bf16 %v7479, %v7477
  %v7528 = vpack.c.bf16 %v7480, %v7478
  %v7529 = vpack.c.bf16 %v7483, %v7481
  %v7530 = vpack.c.bf16 %v7484, %v7482
  %v7531 = vpack.c.bf16 %v7487, %v7485
  %v7532 = vpack.c.bf16 %v7488, %v7486
  %v7533 = vpack.c.bf16 %v7491, %v7489
  %v7534 = vpack.c.bf16 %v7492, %v7490
  %v7535 = vpack.c.bf16 %v7495, %v7493
  %v7536 = vpack.c.bf16 %v7496, %v7494
  %v7537 = vpack.c.bf16 %v7499, %v7497
  %v7538 = vpack.c.bf16 %v7500, %v7498
  %v7539 = vpack.c.bf16 %v7503, %v7501
  %v7540 = vpack.c.bf16 %v7504, %v7502
  %v7541 = vpack.c.bf16 %v7507, %v7505
  %v7542 = vpack.c.bf16 %v7508, %v7506
  %v7543 = vpack.c.bf16 %v7511, %v7509
  %v7544 = vpack.c.bf16 %v7512, %v7510
  %v7545 = vadd.bf16 %v7193, %v7513
  %v7546 = vadd.bf16 %v7194, %v7514
  %v7547 = vadd.bf16 %v7195, %v7515
  %v7548 = vadd.bf16 %v7196, %v7516
  %v7549 = vadd.bf16 %v7197, %v7517
  %v7550 = vadd.bf16 %v7198, %v7518
  %v7551 = vadd.bf16 %v7199, %v7519
  %v7552 = vadd.bf16 %v7200, %v7520
  %v7553 = vadd.bf16 %v7201, %v7521
  %v7554 = vadd.bf16 %v7202, %v7522
  %v7555 = vadd.bf16 %v7203, %v7523
  %v7556 = vadd.bf16 %v7204, %v7524
  %v7557 = vadd.bf16 %v7205, %v7525
  %v7558 = vadd.bf16 %v7206, %v7526
  %v7559 = vadd.bf16 %v7207, %v7527
  %v7560 = vadd.bf16 %v7208, %v7528
  %v7561 = vadd.bf16 %v7209, %v7529
  %v7562 = vadd.bf16 %v7210, %v7530
  %v7563 = vadd.bf16 %v7211, %v7531
  %v7564 = vadd.bf16 %v7212, %v7532
  %v7565 = vadd.bf16 %v7213, %v7533
  %v7566 = vadd.bf16 %v7214, %v7534
  %v7567 = vadd.bf16 %v7215, %v7535
  %v7568 = vadd.bf16 %v7216, %v7536
  %v7569 = vadd.bf16 %v7217, %v7537
  %v7570 = vadd.bf16 %v7218, %v7538
  %v7571 = vadd.bf16 %v7219, %v7539
  %v7572 = vadd.bf16 %v7220, %v7540
  %v7573 = vadd.bf16 %v7221, %v7541
  %v7574 = vadd.bf16 %v7222, %v7542
  %v7575 = vadd.bf16 %v7223, %v7543
  %v7576 = vadd.bf16 %v7224, %v7544
  %7577 = vset.pattern.permute.xlu0 3
  %7578 = vperm.xlu0 %7577, %v6489
  %v7579 = vpop.permute.xlu0 %7578
  %7580 = vset.pattern.permute.xlu0 3
  %7581 = vperm.xlu0 %7580, %v6490
  %v7582 = vpop.permute.xlu0 %7581
  %7583 = vset.pattern.permute.xlu0 3
  %7584 = vperm.xlu0 %7583, %v6491
  %v7585 = vpop.permute.xlu0 %7584
  %7586 = vset.pattern.permute.xlu0 3
  %7587 = vperm.xlu0 %7586, %v6492
  %v7588 = vpop.permute.xlu0 %7587
  %7589 = vset.pattern.permute.xlu0 3
  %7590 = vperm.xlu0 %7589, %v6493
  %v7591 = vpop.permute.xlu0 %7590
  %7592 = vset.pattern.permute.xlu0 3
  %7593 = vperm.xlu0 %7592, %v6494
  %v7594 = vpop.permute.xlu0 %7593
  %7595 = vset.pattern.permute.xlu0 3
  %7596 = vperm.xlu0 %7595, %v6495
  %v7597 = vpop.permute.xlu0 %7596
  %7598 = vset.pattern.permute.xlu0 3
  %7599 = vperm.xlu0 %7598, %v6496
  %v7600 = vpop.permute.xlu0 %7599
  %7601 = vset.pattern.permute.xlu0 3
  %7602 = vperm.xlu0 %7601, %v6497
  %v7603 = vpop.permute.xlu0 %7602
  %7604 = vset.pattern.permute.xlu0 3
  %7605 = vperm.xlu0 %7604, %v6498
  %v7606 = vpop.permute.xlu0 %7605
  %7607 = vset.pattern.permute.xlu0 3
  %7608 = vperm.xlu0 %7607, %v6499
  %v7609 = vpop.permute.xlu0 %7608
  %7610 = vset.pattern.permute.xlu0 3
  %7611 = vperm.xlu0 %7610, %v6500
  %v7612 = vpop.permute.xlu0 %7611
  %7613 = vset.pattern.permute.xlu0 3
  %7614 = vperm.xlu0 %7613, %v6501
  %v7615 = vpop.permute.xlu0 %7614
  %7616 = vset.pattern.permute.xlu0 3
  %7617 = vperm.xlu0 %7616, %v6502
  %v7618 = vpop.permute.xlu0 %7617
  %7619 = vset.pattern.permute.xlu0 3
  %7620 = vperm.xlu0 %7619, %v6503
  %v7621 = vpop.permute.xlu0 %7620
  %7622 = vset.pattern.permute.xlu0 3
  %7623 = vperm.xlu0 %7622, %v6504
  %v7624 = vpop.permute.xlu0 %7623
  %7625 = vset.pattern.permute.xlu0 3
  %7626 = vperm.xlu0 %7625, %v6505
  %v7627 = vpop.permute.xlu0 %7626
  %7628 = vset.pattern.permute.xlu0 3
  %7629 = vperm.xlu0 %7628, %v6506
  %v7630 = vpop.permute.xlu0 %7629
  %7631 = vset.pattern.permute.xlu0 3
  %7632 = vperm.xlu0 %7631, %v6507
  %v7633 = vpop.permute.xlu0 %7632
  %7634 = vset.pattern.permute.xlu0 3
  %7635 = vperm.xlu0 %7634, %v6508
  %v7636 = vpop.permute.xlu0 %7635
  %7637 = vset.pattern.permute.xlu0 3
  %7638 = vperm.xlu0 %7637, %v6509
  %v7639 = vpop.permute.xlu0 %7638
  %7640 = vset.pattern.permute.xlu0 3
  %7641 = vperm.xlu0 %7640, %v6510
  %v7642 = vpop.permute.xlu0 %7641
  %7643 = vset.pattern.permute.xlu0 3
  %7644 = vperm.xlu0 %7643, %v6511
  %v7645 = vpop.permute.xlu0 %7644
  %7646 = vset.pattern.permute.xlu0 3
  %7647 = vperm.xlu0 %7646, %v6512
  %v7648 = vpop.permute.xlu0 %7647
  %7649 = vset.pattern.permute.xlu0 3
  %7650 = vperm.xlu0 %7649, %v6513
  %v7651 = vpop.permute.xlu0 %7650
  %7652 = vset.pattern.permute.xlu0 3
  %7653 = vperm.xlu0 %7652, %v6514
  %v7654 = vpop.permute.xlu0 %7653
  %7655 = vset.pattern.permute.xlu0 3
  %7656 = vperm.xlu0 %7655, %v6515
  %v7657 = vpop.permute.xlu0 %7656
  %7658 = vset.pattern.permute.xlu0 3
  %7659 = vperm.xlu0 %7658, %v6516
  %v7660 = vpop.permute.xlu0 %7659
  %7661 = vset.pattern.permute.xlu0 3
  %7662 = vperm.xlu0 %7661, %v6517
  %v7663 = vpop.permute.xlu0 %7662
  %7664 = vset.pattern.permute.xlu0 3
  %7665 = vperm.xlu0 %7664, %v6518
  %v7666 = vpop.permute.xlu0 %7665
  %7667 = vset.pattern.permute.xlu0 3
  %7668 = vperm.xlu0 %7667, %v6519
  %v7669 = vpop.permute.xlu0 %7668
  %7670 = vset.pattern.permute.xlu0 3
  %7671 = vperm.xlu0 %7670, %v6520
  %v7672 = vpop.permute.xlu0 %7671
  %vm7673 = vcmp.eq.s32.totalorder %v7579, %v337
  %vm7674 = vcmp.eq.s32.totalorder %v7579, %v338
  %vm7675 = vcmp.eq.s32.totalorder %v7582, %v337
  %vm7676 = vcmp.eq.s32.totalorder %v7582, %v338
  %vm7677 = vcmp.eq.s32.totalorder %v7585, %v337
  %vm7678 = vcmp.eq.s32.totalorder %v7585, %v338
  %vm7679 = vcmp.eq.s32.totalorder %v7588, %v337
  %vm7680 = vcmp.eq.s32.totalorder %v7588, %v338
  %vm7681 = vcmp.eq.s32.totalorder %v7591, %v337
  %vm7682 = vcmp.eq.s32.totalorder %v7591, %v338
  %vm7683 = vcmp.eq.s32.totalorder %v7594, %v337
  %vm7684 = vcmp.eq.s32.totalorder %v7594, %v338
  %vm7685 = vcmp.eq.s32.totalorder %v7597, %v337
  %vm7686 = vcmp.eq.s32.totalorder %v7597, %v338
  %vm7687 = vcmp.eq.s32.totalorder %v7600, %v337
  %vm7688 = vcmp.eq.s32.totalorder %v7600, %v338
  %vm7689 = vcmp.eq.s32.totalorder %v7603, %v337
  %vm7690 = vcmp.eq.s32.totalorder %v7603, %v338
  %vm7691 = vcmp.eq.s32.totalorder %v7606, %v337
  %vm7692 = vcmp.eq.s32.totalorder %v7606, %v338
  %vm7693 = vcmp.eq.s32.totalorder %v7609, %v337
  %vm7694 = vcmp.eq.s32.totalorder %v7609, %v338
  %vm7695 = vcmp.eq.s32.totalorder %v7612, %v337
  %vm7696 = vcmp.eq.s32.totalorder %v7612, %v338
  %vm7697 = vcmp.eq.s32.totalorder %v7615, %v337
  %vm7698 = vcmp.eq.s32.totalorder %v7615, %v338
  %vm7699 = vcmp.eq.s32.totalorder %v7618, %v337
  %vm7700 = vcmp.eq.s32.totalorder %v7618, %v338
  %vm7701 = vcmp.eq.s32.totalorder %v7621, %v337
  %vm7702 = vcmp.eq.s32.totalorder %v7621, %v338
  %vm7703 = vcmp.eq.s32.totalorder %v7624, %v337
  %vm7704 = vcmp.eq.s32.totalorder %v7624, %v338
  %vm7705 = vcmp.eq.s32.totalorder %v7627, %v337
  %vm7706 = vcmp.eq.s32.totalorder %v7627, %v338
  %vm7707 = vcmp.eq.s32.totalorder %v7630, %v337
  %vm7708 = vcmp.eq.s32.totalorder %v7630, %v338
  %vm7709 = vcmp.eq.s32.totalorder %v7633, %v337
  %vm7710 = vcmp.eq.s32.totalorder %v7633, %v338
  %vm7711 = vcmp.eq.s32.totalorder %v7636, %v337
  %vm7712 = vcmp.eq.s32.totalorder %v7636, %v338
  %vm7713 = vcmp.eq.s32.totalorder %v7639, %v337
  %vm7714 = vcmp.eq.s32.totalorder %v7639, %v338
  %vm7715 = vcmp.eq.s32.totalorder %v7642, %v337
  %vm7716 = vcmp.eq.s32.totalorder %v7642, %v338
  %vm7717 = vcmp.eq.s32.totalorder %v7645, %v337
  %vm7718 = vcmp.eq.s32.totalorder %v7645, %v338
  %vm7719 = vcmp.eq.s32.totalorder %v7648, %v337
  %vm7720 = vcmp.eq.s32.totalorder %v7648, %v338
  %vm7721 = vcmp.eq.s32.totalorder %v7651, %v337
  %vm7722 = vcmp.eq.s32.totalorder %v7651, %v338
  %vm7723 = vcmp.eq.s32.totalorder %v7654, %v337
  %vm7724 = vcmp.eq.s32.totalorder %v7654, %v338
  %vm7725 = vcmp.eq.s32.totalorder %v7657, %v337
  %vm7726 = vcmp.eq.s32.totalorder %v7657, %v338
  %vm7727 = vcmp.eq.s32.totalorder %v7660, %v337
  %vm7728 = vcmp.eq.s32.totalorder %v7660, %v338
  %vm7729 = vcmp.eq.s32.totalorder %v7663, %v337
  %vm7730 = vcmp.eq.s32.totalorder %v7663, %v338
  %vm7731 = vcmp.eq.s32.totalorder %v7666, %v337
  %vm7732 = vcmp.eq.s32.totalorder %v7666, %v338
  %vm7733 = vcmp.eq.s32.totalorder %v7669, %v337
  %vm7734 = vcmp.eq.s32.totalorder %v7669, %v338
  %vm7735 = vcmp.eq.s32.totalorder %v7672, %v337
  %vm7736 = vcmp.eq.s32.totalorder %v7672, %v338
  %v7737 = vsel %vm7673, 1, 0
  %v7738 = vsel %vm7674, 1, 0
  %v7739 = vsel %vm7675, 1, 0
  %v7740 = vsel %vm7676, 1, 0
  %v7741 = vsel %vm7677, 1, 0
  %v7742 = vsel %vm7678, 1, 0
  %v7743 = vsel %vm7679, 1, 0
  %v7744 = vsel %vm7680, 1, 0
  %v7745 = vsel %vm7681, 1, 0
  %v7746 = vsel %vm7682, 1, 0
  %v7747 = vsel %vm7683, 1, 0
  %v7748 = vsel %vm7684, 1, 0
  %v7749 = vsel %vm7685, 1, 0
  %v7750 = vsel %vm7686, 1, 0
  %v7751 = vsel %vm7687, 1, 0
  %v7752 = vsel %vm7688, 1, 0
  %v7753 = vsel %vm7689, 1, 0
  %v7754 = vsel %vm7690, 1, 0
  %v7755 = vsel %vm7691, 1, 0
  %v7756 = vsel %vm7692, 1, 0
  %v7757 = vsel %vm7693, 1, 0
  %v7758 = vsel %vm7694, 1, 0
  %v7759 = vsel %vm7695, 1, 0
  %v7760 = vsel %vm7696, 1, 0
  %v7761 = vsel %vm7697, 1, 0
  %v7762 = vsel %vm7698, 1, 0
  %v7763 = vsel %vm7699, 1, 0
  %v7764 = vsel %vm7700, 1, 0
  %v7765 = vsel %vm7701, 1, 0
  %v7766 = vsel %vm7702, 1, 0
  %v7767 = vsel %vm7703, 1, 0
  %v7768 = vsel %vm7704, 1, 0
  %v7769 = vsel %vm7705, 1, 0
  %v7770 = vsel %vm7706, 1, 0
  %v7771 = vsel %vm7707, 1, 0
  %v7772 = vsel %vm7708, 1, 0
  %v7773 = vsel %vm7709, 1, 0
  %v7774 = vsel %vm7710, 1, 0
  %v7775 = vsel %vm7711, 1, 0
  %v7776 = vsel %vm7712, 1, 0
  %v7777 = vsel %vm7713, 1, 0
  %v7778 = vsel %vm7714, 1, 0
  %v7779 = vsel %vm7715, 1, 0
  %v7780 = vsel %vm7716, 1, 0
  %v7781 = vsel %vm7717, 1, 0
  %v7782 = vsel %vm7718, 1, 0
  %v7783 = vsel %vm7719, 1, 0
  %v7784 = vsel %vm7720, 1, 0
  %v7785 = vsel %vm7721, 1, 0
  %v7786 = vsel %vm7722, 1, 0
  %v7787 = vsel %vm7723, 1, 0
  %v7788 = vsel %vm7724, 1, 0
  %v7789 = vsel %vm7725, 1, 0
  %v7790 = vsel %vm7726, 1, 0
  %v7791 = vsel %vm7727, 1, 0
  %v7792 = vsel %vm7728, 1, 0
  %v7793 = vsel %vm7729, 1, 0
  %v7794 = vsel %vm7730, 1, 0
  %v7795 = vsel %vm7731, 1, 0
  %v7796 = vsel %vm7732, 1, 0
  %v7797 = vsel %vm7733, 1, 0
  %v7798 = vsel %vm7734, 1, 0
  %v7799 = vsel %vm7735, 1, 0
  %v7800 = vsel %vm7736, 1, 0
  %v7801 = vcvt.s32.f32 %v7737
  %v7802 = vcvt.s32.f32 %v7738
  %v7803 = vcvt.s32.f32 %v7739
  %v7804 = vcvt.s32.f32 %v7740
  %v7805 = vcvt.s32.f32 %v7741
  %v7806 = vcvt.s32.f32 %v7742
  %v7807 = vcvt.s32.f32 %v7743
  %v7808 = vcvt.s32.f32 %v7744
  %v7809 = vcvt.s32.f32 %v7745
  %v7810 = vcvt.s32.f32 %v7746
  %v7811 = vcvt.s32.f32 %v7747
  %v7812 = vcvt.s32.f32 %v7748
  %v7813 = vcvt.s32.f32 %v7749
  %v7814 = vcvt.s32.f32 %v7750
  %v7815 = vcvt.s32.f32 %v7751
  %v7816 = vcvt.s32.f32 %v7752
  %v7817 = vcvt.s32.f32 %v7753
  %v7818 = vcvt.s32.f32 %v7754
  %v7819 = vcvt.s32.f32 %v7755
  %v7820 = vcvt.s32.f32 %v7756
  %v7821 = vcvt.s32.f32 %v7757
  %v7822 = vcvt.s32.f32 %v7758
  %v7823 = vcvt.s32.f32 %v7759
  %v7824 = vcvt.s32.f32 %v7760
  %v7825 = vcvt.s32.f32 %v7761
  %v7826 = vcvt.s32.f32 %v7762
  %v7827 = vcvt.s32.f32 %v7763
  %v7828 = vcvt.s32.f32 %v7764
  %v7829 = vcvt.s32.f32 %v7765
  %v7830 = vcvt.s32.f32 %v7766
  %v7831 = vcvt.s32.f32 %v7767
  %v7832 = vcvt.s32.f32 %v7768
  %v7833 = vcvt.s32.f32 %v7769
  %v7834 = vcvt.s32.f32 %v7770
  %v7835 = vcvt.s32.f32 %v7771
  %v7836 = vcvt.s32.f32 %v7772
  %v7837 = vcvt.s32.f32 %v7773
  %v7838 = vcvt.s32.f32 %v7774
  %v7839 = vcvt.s32.f32 %v7775
  %v7840 = vcvt.s32.f32 %v7776
  %v7841 = vcvt.s32.f32 %v7777
  %v7842 = vcvt.s32.f32 %v7778
  %v7843 = vcvt.s32.f32 %v7779
  %v7844 = vcvt.s32.f32 %v7780
  %v7845 = vcvt.s32.f32 %v7781
  %v7846 = vcvt.s32.f32 %v7782
  %v7847 = vcvt.s32.f32 %v7783
  %v7848 = vcvt.s32.f32 %v7784
  %v7849 = vcvt.s32.f32 %v7785
  %v7850 = vcvt.s32.f32 %v7786
  %v7851 = vcvt.s32.f32 %v7787
  %v7852 = vcvt.s32.f32 %v7788
  %v7853 = vcvt.s32.f32 %v7789
  %v7854 = vcvt.s32.f32 %v7790
  %v7855 = vcvt.s32.f32 %v7791
  %v7856 = vcvt.s32.f32 %v7792
  %v7857 = vcvt.s32.f32 %v7793
  %v7858 = vcvt.s32.f32 %v7794
  %v7859 = vcvt.s32.f32 %v7795
  %v7860 = vcvt.s32.f32 %v7796
  %v7861 = vcvt.s32.f32 %v7797
  %v7862 = vcvt.s32.f32 %v7798
  %v7863 = vcvt.s32.f32 %v7799
  %v7864 = vcvt.s32.f32 %v7800
  %v7865 = vpack.c.bf16 %v7803, %v7801
  %v7866 = vpack.c.bf16 %v7804, %v7802
  %v7867 = vpack.c.bf16 %v7807, %v7805
  %v7868 = vpack.c.bf16 %v7808, %v7806
  %v7869 = vpack.c.bf16 %v7811, %v7809
  %v7870 = vpack.c.bf16 %v7812, %v7810
  %v7871 = vpack.c.bf16 %v7815, %v7813
  %v7872 = vpack.c.bf16 %v7816, %v7814
  %v7873 = vpack.c.bf16 %v7819, %v7817
  %v7874 = vpack.c.bf16 %v7820, %v7818
  %v7875 = vpack.c.bf16 %v7823, %v7821
  %v7876 = vpack.c.bf16 %v7824, %v7822
  %v7877 = vpack.c.bf16 %v7827, %v7825
  %v7878 = vpack.c.bf16 %v7828, %v7826
  %v7879 = vpack.c.bf16 %v7831, %v7829
  %v7880 = vpack.c.bf16 %v7832, %v7830
  %v7881 = vpack.c.bf16 %v7835, %v7833
  %v7882 = vpack.c.bf16 %v7836, %v7834
  %v7883 = vpack.c.bf16 %v7839, %v7837
  %v7884 = vpack.c.bf16 %v7840, %v7838
  %v7885 = vpack.c.bf16 %v7843, %v7841
  %v7886 = vpack.c.bf16 %v7844, %v7842
  %v7887 = vpack.c.bf16 %v7847, %v7845
  %v7888 = vpack.c.bf16 %v7848, %v7846
  %v7889 = vpack.c.bf16 %v7851, %v7849
  %v7890 = vpack.c.bf16 %v7852, %v7850
  %v7891 = vpack.c.bf16 %v7855, %v7853
  %v7892 = vpack.c.bf16 %v7856, %v7854
  %v7893 = vpack.c.bf16 %v7859, %v7857
  %v7894 = vpack.c.bf16 %v7860, %v7858
  %v7895 = vpack.c.bf16 %v7863, %v7861
  %v7896 = vpack.c.bf16 %v7864, %v7862
  %v7897 = vadd.bf16 %v7545, %v7865
  %v7898 = vadd.bf16 %v7546, %v7866
  %v7899 = vadd.bf16 %v7547, %v7867
  %v7900 = vadd.bf16 %v7548, %v7868
  %v7901 = vadd.bf16 %v7549, %v7869
  %v7902 = vadd.bf16 %v7550, %v7870
  %v7903 = vadd.bf16 %v7551, %v7871
  %v7904 = vadd.bf16 %v7552, %v7872
  %v7905 = vadd.bf16 %v7553, %v7873
  %v7906 = vadd.bf16 %v7554, %v7874
  %v7907 = vadd.bf16 %v7555, %v7875
  %v7908 = vadd.bf16 %v7556, %v7876
  %v7909 = vadd.bf16 %v7557, %v7877
  %v7910 = vadd.bf16 %v7558, %v7878
  %v7911 = vadd.bf16 %v7559, %v7879
  %v7912 = vadd.bf16 %v7560, %v7880
  %v7913 = vadd.bf16 %v7561, %v7881
  %v7914 = vadd.bf16 %v7562, %v7882
  %v7915 = vadd.bf16 %v7563, %v7883
  %v7916 = vadd.bf16 %v7564, %v7884
  %v7917 = vadd.bf16 %v7565, %v7885
  %v7918 = vadd.bf16 %v7566, %v7886
  %v7919 = vadd.bf16 %v7567, %v7887
  %v7920 = vadd.bf16 %v7568, %v7888
  %v7921 = vadd.bf16 %v7569, %v7889
  %v7922 = vadd.bf16 %v7570, %v7890
  %v7923 = vadd.bf16 %v7571, %v7891
  %v7924 = vadd.bf16 %v7572, %v7892
  %v7925 = vadd.bf16 %v7573, %v7893
  %v7926 = vadd.bf16 %v7574, %v7894
  %v7927 = vadd.bf16 %v7575, %v7895
  %v7928 = vadd.bf16 %v7576, %v7896
  %v7929 = vld [vmem:[%s1 + $0x180] sm:$0xf]
  %v7930 = vld [vmem:[%s1 + $0x184] sm:$0xf]
  %v7931 = vld [vmem:[%s1 + $0x188] sm:$0xf]
  %v7932 = vld [vmem:[%s1 + $0x18c] sm:$0xf]
  %v7933 = vld [vmem:[%s1 + $0x190] sm:$0xf]
  %v7934 = vld [vmem:[%s1 + $0x194] sm:$0xf]
  %v7935 = vld [vmem:[%s1 + $0x198] sm:$0xf]
  %v7936 = vld [vmem:[%s1 + $0x19c] sm:$0xf]
  %v7937 = vld [vmem:[%s1 + $0x1a0] sm:$0xf]
  %v7938 = vld [vmem:[%s1 + $0x1a4] sm:$0xf]
  %v7939 = vld [vmem:[%s1 + $0x1a8] sm:$0xf]
  %v7940 = vld [vmem:[%s1 + $0x1ac] sm:$0xf]
  %v7941 = vld [vmem:[%s1 + $0x1b0] sm:$0xf]
  %v7942 = vld [vmem:[%s1 + $0x1b4] sm:$0xf]
  %v7943 = vld [vmem:[%s1 + $0x1b8] sm:$0xf]
  %v7944 = vld [vmem:[%s1 + $0x1bc] sm:$0xf]
  %v7945 = vld [vmem:[%s1 + $0x1c0] sm:$0xf]
  %v7946 = vld [vmem:[%s1 + $0x1c4] sm:$0xf]
  %v7947 = vld [vmem:[%s1 + $0x1c8] sm:$0xf]
  %v7948 = vld [vmem:[%s1 + $0x1cc] sm:$0xf]
  %v7949 = vld [vmem:[%s1 + $0x1d0] sm:$0xf]
  %v7950 = vld [vmem:[%s1 + $0x1d4] sm:$0xf]
  %v7951 = vld [vmem:[%s1 + $0x1d8] sm:$0xf]
  %v7952 = vld [vmem:[%s1 + $0x1dc] sm:$0xf]
  %v7953 = vld [vmem:[%s1 + $0x1e0] sm:$0xf]
  %v7954 = vld [vmem:[%s1 + $0x1e4] sm:$0xf]
  %v7955 = vld [vmem:[%s1 + $0x1e8] sm:$0xf]
  %v7956 = vld [vmem:[%s1 + $0x1ec] sm:$0xf]
  %v7957 = vld [vmem:[%s1 + $0x1f0] sm:$0xf]
  %v7958 = vld [vmem:[%s1 + $0x1f4] sm:$0xf]
  %v7959 = vld [vmem:[%s1 + $0x1f8] sm:$0xf]
  %v7960 = vld [vmem:[%s1 + $0x1fc] sm:$0xf]
  %v7961 = vld [vmem:[%s2 + $0x180] sm:$0xf]
  %v7962 = vld [vmem:[%s2 + $0x184] sm:$0xf]
  %v7963 = vld [vmem:[%s2 + $0x188] sm:$0xf]
  %v7964 = vld [vmem:[%s2 + $0x18c] sm:$0xf]
  %v7965 = vld [vmem:[%s2 + $0x190] sm:$0xf]
  %v7966 = vld [vmem:[%s2 + $0x194] sm:$0xf]
  %v7967 = vld [vmem:[%s2 + $0x198] sm:$0xf]
  %v7968 = vld [vmem:[%s2 + $0x19c] sm:$0xf]
  %v7969 = vld [vmem:[%s2 + $0x1a0] sm:$0xf]
  %v7970 = vld [vmem:[%s2 + $0x1a4] sm:$0xf]
  %v7971 = vld [vmem:[%s2 + $0x1a8] sm:$0xf]
  %v7972 = vld [vmem:[%s2 + $0x1ac] sm:$0xf]
  %v7973 = vld [vmem:[%s2 + $0x1b0] sm:$0xf]
  %v7974 = vld [vmem:[%s2 + $0x1b4] sm:$0xf]
  %v7975 = vld [vmem:[%s2 + $0x1b8] sm:$0xf]
  %v7976 = vld [vmem:[%s2 + $0x1bc] sm:$0xf]
  %v7977 = vld [vmem:[%s2 + $0x1c0] sm:$0xf]
  %v7978 = vld [vmem:[%s2 + $0x1c4] sm:$0xf]
  %v7979 = vld [vmem:[%s2 + $0x1c8] sm:$0xf]
  %v7980 = vld [vmem:[%s2 + $0x1cc] sm:$0xf]
  %v7981 = vld [vmem:[%s2 + $0x1d0] sm:$0xf]
  %v7982 = vld [vmem:[%s2 + $0x1d4] sm:$0xf]
  %v7983 = vld [vmem:[%s2 + $0x1d8] sm:$0xf]
  %v7984 = vld [vmem:[%s2 + $0x1dc] sm:$0xf]
  %v7985 = vld [vmem:[%s2 + $0x1e0] sm:$0xf]
  %v7986 = vld [vmem:[%s2 + $0x1e4] sm:$0xf]
  %v7987 = vld [vmem:[%s2 + $0x1e8] sm:$0xf]
  %v7988 = vld [vmem:[%s2 + $0x1ec] sm:$0xf]
  %v7989 = vld [vmem:[%s2 + $0x1f0] sm:$0xf]
  %v7990 = vld [vmem:[%s2 + $0x1f4] sm:$0xf]
  %v7991 = vld [vmem:[%s2 + $0x1f8] sm:$0xf]
  %v7992 = vld [vmem:[%s2 + $0x1fc] sm:$0xf]
  %v8025 = vunpack.c.l.b16 %v7929
  %v8026 = vunpack.c.l.b16 %v7930
  %v8027 = vunpack.c.l.b16 %v7931
  %v8028 = vunpack.c.l.b16 %v7932
  %v8029 = vunpack.c.l.b16 %v7933
  %v8030 = vunpack.c.l.b16 %v7934
  %v8031 = vunpack.c.l.b16 %v7935
  %v8032 = vunpack.c.l.b16 %v7936
  %v8033 = vunpack.c.l.b16 %v7937
  %v8034 = vunpack.c.l.b16 %v7938
  %v8035 = vunpack.c.l.b16 %v7939
  %v8036 = vunpack.c.l.b16 %v7940
  %v8037 = vunpack.c.l.b16 %v7941
  %v8038 = vunpack.c.l.b16 %v7942
  %v8039 = vunpack.c.l.b16 %v7943
  %v8040 = vunpack.c.l.b16 %v7944
  %v8041 = vunpack.c.l.b16 %v7945
  %v8042 = vunpack.c.l.b16 %v7946
  %v8043 = vunpack.c.l.b16 %v7947
  %v8044 = vunpack.c.l.b16 %v7948
  %v8045 = vunpack.c.l.b16 %v7949
  %v8046 = vunpack.c.l.b16 %v7950
  %v8047 = vunpack.c.l.b16 %v7951
  %v8048 = vunpack.c.l.b16 %v7952
  %v8049 = vunpack.c.l.b16 %v7953
  %v8050 = vunpack.c.l.b16 %v7954
  %v8051 = vunpack.c.l.b16 %v7955
  %v8052 = vunpack.c.l.b16 %v7956
  %v8053 = vunpack.c.l.b16 %v7957
  %v8054 = vunpack.c.l.b16 %v7958
  %v8055 = vunpack.c.l.b16 %v7959
  %v8056 = vunpack.c.l.b16 %v7960
  %v8057 = vpack.c.b16 %v8026, %v8025
  %v8058 = vpack.c.b16 %v8028, %v8027
  %v8059 = vpack.c.b16 %v8030, %v8029
  %v8060 = vpack.c.b16 %v8032, %v8031
  %v8061 = vpack.c.b16 %v8034, %v8033
  %v8062 = vpack.c.b16 %v8036, %v8035
  %v8063 = vpack.c.b16 %v8038, %v8037
  %v8064 = vpack.c.b16 %v8040, %v8039
  %v8065 = vpack.c.b16 %v8042, %v8041
  %v8066 = vpack.c.b16 %v8044, %v8043
  %v8067 = vpack.c.b16 %v8046, %v8045
  %v8068 = vpack.c.b16 %v8048, %v8047
  %v8069 = vpack.c.b16 %v8050, %v8049
  %v8070 = vpack.c.b16 %v8052, %v8051
  %v8071 = vpack.c.b16 %v8054, %v8053
  %v8072 = vpack.c.b16 %v8056, %v8055
  %8089 = vmatprep.subr.bf16.mxu0 0
  %8090 = vmatpush1.bf16.msra.mxu0 %v8064
  %8091 = vmatprep.subr.bf16.mxu0 0
  %8092 = vmatpush1.bf16.msra.mxu0 %v8063
  %8093 = vmatprep.subr.bf16.mxu0 0
  %8094 = vmatpush1.bf16.msra.mxu0 %v8062
  %8095 = vmatprep.subr.bf16.mxu0 0
  %8096 = vmatpush1.bf16.msra.mxu0 %v8061
  %8097 = vmatprep.subr.bf16.mxu0 0
  %8098 = vmatpush1.bf16.msra.mxu0 %v8060
  %8099 = vmatprep.subr.bf16.mxu0 0
  %8100 = vmatpush1.bf16.msra.mxu0 %v8059
  %8101 = vmatprep.subr.bf16.mxu0 0
  %8102 = vmatpush1.bf16.msra.mxu0 %v8058
  %8103 = vmatprep.subr.bf16.mxu0 0
  %8104 = vmatpush1.bf16.msra.mxu0 %v8057
  %8105 = vmatprep.subr.bf16.mxu0 0
  %8106 = vmatpush2.bf16.msra.mxu0 %v8072
  %8107 = vmatprep.subr.bf16.mxu0 0
  %8108 = vmatpush2.bf16.msra.mxu0 %v8071
  %8109 = vmatprep.subr.bf16.mxu0 0
  %8110 = vmatpush2.bf16.msra.mxu0 %v8070
  %8111 = vmatprep.subr.bf16.mxu0 0
  %8112 = vmatpush2.bf16.msra.mxu0 %v8069
  %8113 = vmatprep.subr.bf16.mxu0 0
  %8114 = vmatpush2.bf16.msra.mxu0 %v8068
  %8115 = vmatprep.subr.bf16.mxu0 0
  %8116 = vmatpush2.bf16.msra.mxu0 %v8067
  %8117 = vmatprep.subr.bf16.mxu0 0
  %8118 = vmatpush2.bf16.msra.mxu0 %v8066
  %8119 = vmatprep.subr.bf16.mxu0 0
  %8120 = vmatpush2.bf16.msra.mxu0 %v8065
  %8121 = vmatprep.mubr.bf16.mxu0 %v7898
  %8122 = vmatmul.mubr.bf16.gmra.mxu0 %v7897
  %v8123 = vpop.f32.mrf.mxu0
  %v8124 = vadd.f32 0.0, %v8123
  %v8125 = vpop.f32.mrf.mxu0
  %v8126 = vpop.f32.mrf.mxu0
  %v8127 = vadd.f32 0.0, %v8126
  %v8128 = vpop.f32.mrf.mxu0
  %8129 = vmatprep.mubr.bf16.mxu0 %v7900
  %8130 = vmatmul.mubr.bf16.gmra.mxu0 %v7899
  %v8131 = vpop.f32.mrf.mxu0
  %v8132 = vadd.f32 0.0, %v8131
  %v8133 = vpop.f32.mrf.mxu0
  %v8134 = vpop.f32.mrf.mxu0
  %v8135 = vadd.f32 0.0, %v8134
  %v8136 = vpop.f32.mrf.mxu0
  %8137 = vmatprep.mubr.bf16.mxu0 %v7902
  %8138 = vmatmul.mubr.bf16.gmra.mxu0 %v7901
  %v8139 = vpop.f32.mrf.mxu0
  %v8140 = vadd.f32 0.0, %v8139
  %v8141 = vpop.f32.mrf.mxu0
  %v8142 = vpop.f32.mrf.mxu0
  %v8143 = vadd.f32 0.0, %v8142
  %v8144 = vpop.f32.mrf.mxu0
  %8145 = vmatprep.mubr.bf16.mxu0 %v7904
  %8146 = vmatmul.mubr.bf16.gmra.mxu0 %v7903
  %v8147 = vpop.f32.mrf.mxu0
  %v8148 = vadd.f32 0.0, %v8147
  %v8149 = vpop.f32.mrf.mxu0
  %v8150 = vpop.f32.mrf.mxu0
  %v8151 = vadd.f32 0.0, %v8150
  %v8152 = vpop.f32.mrf.mxu0
  %8153 = vmatprep.mubr.bf16.mxu0 %v7906
  %8154 = vmatmul.mubr.bf16.gmra.mxu0 %v7905
  %v8155 = vpop.f32.mrf.mxu0
  %v8156 = vadd.f32 0.0, %v8155
  %v8157 = vpop.f32.mrf.mxu0
  %v8158 = vpop.f32.mrf.mxu0
  %v8159 = vadd.f32 0.0, %v8158
  %v8160 = vpop.f32.mrf.mxu0
  %8161 = vmatprep.mubr.bf16.mxu0 %v7908
  %8162 = vmatmul.mubr.bf16.gmra.mxu0 %v7907
  %v8163 = vpop.f32.mrf.mxu0
  %v8164 = vadd.f32 0.0, %v8163
  %v8165 = vpop.f32.mrf.mxu0
  %v8166 = vpop.f32.mrf.mxu0
  %v8167 = vadd.f32 0.0, %v8166
  %v8168 = vpop.f32.mrf.mxu0
  %8169 = vmatprep.mubr.bf16.mxu0 %v7910
  %8170 = vmatmul.mubr.bf16.gmra.mxu0 %v7909
  %v8171 = vpop.f32.mrf.mxu0
  %v8172 = vadd.f32 0.0, %v8171
  %v8173 = vpop.f32.mrf.mxu0
  %v8174 = vpop.f32.mrf.mxu0
  %v8175 = vadd.f32 0.0, %v8174
  %v8176 = vpop.f32.mrf.mxu0
  %8177 = vmatprep.mubr.bf16.mxu0 %v7912
  %8178 = vmatmul.mubr.bf16.gmra.mxu0 %v7911
  %v8179 = vpop.f32.mrf.mxu0
  %v8180 = vadd.f32 0.0, %v8179
  %v8181 = vpop.f32.mrf.mxu0
  %v8182 = vpop.f32.mrf.mxu0
  %v8183 = vadd.f32 0.0, %v8182
  %v8184 = vpop.f32.mrf.mxu0
  %8185 = vmatprep.mubr.bf16.mxu0 %v7914
  %8186 = vmatmul.mubr.bf16.gmra.mxu0 %v7913
  %v8187 = vpop.f32.mrf.mxu0
  %v8188 = vadd.f32 0.0, %v8187
  %v8189 = vpop.f32.mrf.mxu0
  %v8190 = vpop.f32.mrf.mxu0
  %v8191 = vadd.f32 0.0, %v8190
  %v8192 = vpop.f32.mrf.mxu0
  %8193 = vmatprep.mubr.bf16.mxu0 %v7916
  %8194 = vmatmul.mubr.bf16.gmra.mxu0 %v7915
  %v8195 = vpop.f32.mrf.mxu0
  %v8196 = vadd.f32 0.0, %v8195
  %v8197 = vpop.f32.mrf.mxu0
  %v8198 = vpop.f32.mrf.mxu0
  %v8199 = vadd.f32 0.0, %v8198
  %v8200 = vpop.f32.mrf.mxu0
  %8201 = vmatprep.mubr.bf16.mxu0 %v7918
  %8202 = vmatmul.mubr.bf16.gmra.mxu0 %v7917
  %v8203 = vpop.f32.mrf.mxu0
  %v8204 = vadd.f32 0.0, %v8203
  %v8205 = vpop.f32.mrf.mxu0
  %v8206 = vpop.f32.mrf.mxu0
  %v8207 = vadd.f32 0.0, %v8206
  %v8208 = vpop.f32.mrf.mxu0
  %8209 = vmatprep.mubr.bf16.mxu0 %v7920
  %8210 = vmatmul.mubr.bf16.gmra.mxu0 %v7919
  %v8211 = vpop.f32.mrf.mxu0
  %v8212 = vadd.f32 0.0, %v8211
  %v8213 = vpop.f32.mrf.mxu0
  %v8214 = vpop.f32.mrf.mxu0
  %v8215 = vadd.f32 0.0, %v8214
  %v8216 = vpop.f32.mrf.mxu0
  %8217 = vmatprep.mubr.bf16.mxu0 %v7922
  %8218 = vmatmul.mubr.bf16.gmra.mxu0 %v7921
  %v8219 = vpop.f32.mrf.mxu0
  %v8220 = vadd.f32 0.0, %v8219
  %v8221 = vpop.f32.mrf.mxu0
  %v8222 = vpop.f32.mrf.mxu0
  %v8223 = vadd.f32 0.0, %v8222
  %v8224 = vpop.f32.mrf.mxu0
  %8225 = vmatprep.mubr.bf16.mxu0 %v7924
  %8226 = vmatmul.mubr.bf16.gmra.mxu0 %v7923
  %v8227 = vpop.f32.mrf.mxu0
  %v8228 = vadd.f32 0.0, %v8227
  %v8229 = vpop.f32.mrf.mxu0
  %v8230 = vpop.f32.mrf.mxu0
  %v8231 = vadd.f32 0.0, %v8230
  %v8232 = vpop.f32.mrf.mxu0
  %8233 = vmatprep.mubr.bf16.mxu0 %v7926
  %8234 = vmatmul.mubr.bf16.gmra.mxu0 %v7925
  %v8235 = vpop.f32.mrf.mxu0
  %v8236 = vadd.f32 0.0, %v8235
  %v8237 = vpop.f32.mrf.mxu0
  %v8238 = vpop.f32.mrf.mxu0
  %v8239 = vadd.f32 0.0, %v8238
  %v8240 = vpop.f32.mrf.mxu0
  %8241 = vmatprep.mubr.bf16.mxu0 %v7928
  %8242 = vmatmul.mubr.bf16.gmra.mxu0 %v7927
  %v8243 = vpop.f32.mrf.mxu0
  %v8244 = vadd.f32 0.0, %v8243
  %v8245 = vpop.f32.mrf.mxu0
  %v8246 = vpop.f32.mrf.mxu0
  %v8247 = vadd.f32 0.0, %v8246
  %v8248 = vpop.f32.mrf.mxu0
  %8249 = vdwg.mxu0
  %v8250 = vadd.f32 %v6457, %v8124
  %v8251 = vadd.f32 %v6458, %v8127
  %v8252 = vadd.f32 %v6459, %v8132
  %v8253 = vadd.f32 %v6460, %v8135
  %v8254 = vadd.f32 %v6461, %v8140
  %v8255 = vadd.f32 %v6462, %v8143
  %v8256 = vadd.f32 %v6463, %v8148
  %v8257 = vadd.f32 %v6464, %v8151
  %v8258 = vadd.f32 %v6465, %v8156
  %v8259 = vadd.f32 %v6466, %v8159
  %v8260 = vadd.f32 %v6467, %v8164
  %v8261 = vadd.f32 %v6468, %v8167
  %v8262 = vadd.f32 %v6469, %v8172
  %v8263 = vadd.f32 %v6470, %v8175
  %v8264 = vadd.f32 %v6471, %v8180
  %v8265 = vadd.f32 %v6472, %v8183
  %v8266 = vadd.f32 %v6473, %v8188
  %v8267 = vadd.f32 %v6474, %v8191
  %v8268 = vadd.f32 %v6475, %v8196
  %v8269 = vadd.f32 %v6476, %v8199
  %v8270 = vadd.f32 %v6477, %v8204
  %v8271 = vadd.f32 %v6478, %v8207
  %v8272 = vadd.f32 %v6479, %v8212
  %v8273 = vadd.f32 %v6480, %v8215
  %v8274 = vadd.f32 %v6481, %v8220
  %v8275 = vadd.f32 %v6482, %v8223
  %v8276 = vadd.f32 %v6483, %v8228
  %v8277 = vadd.f32 %v6484, %v8231
  %v8278 = vadd.f32 %v6485, %v8236
  %v8279 = vadd.f32 %v6486, %v8239
  %v8280 = vadd.f32 %v6487, %v8244
  %v8281 = vadd.f32 %v6488, %v8247
  %v8314 = vunpack.c.l.b16 %v7961
  %v8315 = vunpack.c.l.b16 %v7962
  %v8316 = vunpack.c.l.b16 %v7963
  %v8317 = vunpack.c.l.b16 %v7964
  %v8318 = vunpack.c.l.b16 %v7965
  %v8319 = vunpack.c.l.b16 %v7966
  %v8320 = vunpack.c.l.b16 %v7967
  %v8321 = vunpack.c.l.b16 %v7968
  %v8322 = vunpack.c.l.b16 %v7969
  %v8323 = vunpack.c.l.b16 %v7970
  %v8324 = vunpack.c.l.b16 %v7971
  %v8325 = vunpack.c.l.b16 %v7972
  %v8326 = vunpack.c.l.b16 %v7973
  %v8327 = vunpack.c.l.b16 %v7974
  %v8328 = vunpack.c.l.b16 %v7975
  %v8329 = vunpack.c.l.b16 %v7976
  %v8330 = vunpack.c.l.b16 %v7977
  %v8331 = vunpack.c.l.b16 %v7978
  %v8332 = vunpack.c.l.b16 %v7979
  %v8333 = vunpack.c.l.b16 %v7980
  %v8334 = vunpack.c.l.b16 %v7981
  %v8335 = vunpack.c.l.b16 %v7982
  %v8336 = vunpack.c.l.b16 %v7983
  %v8337 = vunpack.c.l.b16 %v7984
  %v8338 = vunpack.c.l.b16 %v7985
  %v8339 = vunpack.c.l.b16 %v7986
  %v8340 = vunpack.c.l.b16 %v7987
  %v8341 = vunpack.c.l.b16 %v7988
  %v8342 = vunpack.c.l.b16 %v7989
  %v8343 = vunpack.c.l.b16 %v7990
  %v8344 = vunpack.c.l.b16 %v7991
  %v8345 = vunpack.c.l.b16 %v7992
  %v8346 = vpack.c.b16 %v8315, %v8314
  %v8347 = vpack.c.b16 %v8317, %v8316
  %v8348 = vpack.c.b16 %v8319, %v8318
  %v8349 = vpack.c.b16 %v8321, %v8320
  %v8350 = vpack.c.b16 %v8323, %v8322
  %v8351 = vpack.c.b16 %v8325, %v8324
  %v8352 = vpack.c.b16 %v8327, %v8326
  %v8353 = vpack.c.b16 %v8329, %v8328
  %v8354 = vpack.c.b16 %v8331, %v8330
  %v8355 = vpack.c.b16 %v8333, %v8332
  %v8356 = vpack.c.b16 %v8335, %v8334
  %v8357 = vpack.c.b16 %v8337, %v8336
  %v8358 = vpack.c.b16 %v8339, %v8338
  %v8359 = vpack.c.b16 %v8341, %v8340
  %v8360 = vpack.c.b16 %v8343, %v8342
  %v8361 = vpack.c.b16 %v8345, %v8344
  %8378 = vmatprep.subr.bf16.mxu0 0
  %8379 = vmatpush1.bf16.msra.mxu0 %v8353
  %8380 = vmatprep.subr.bf16.mxu0 0
  %8381 = vmatpush1.bf16.msra.mxu0 %v8352
  %8382 = vmatprep.subr.bf16.mxu0 0
  %8383 = vmatpush1.bf16.msra.mxu0 %v8351
  %8384 = vmatprep.subr.bf16.mxu0 0
  %8385 = vmatpush1.bf16.msra.mxu0 %v8350
  %8386 = vmatprep.subr.bf16.mxu0 0
  %8387 = vmatpush1.bf16.msra.mxu0 %v8349
  %8388 = vmatprep.subr.bf16.mxu0 0
  %8389 = vmatpush1.bf16.msra.mxu0 %v8348
  %8390 = vmatprep.subr.bf16.mxu0 0
  %8391 = vmatpush1.bf16.msra.mxu0 %v8347
  %8392 = vmatprep.subr.bf16.mxu0 0
  %8393 = vmatpush1.bf16.msra.mxu0 %v8346
  %8394 = vmatprep.subr.bf16.mxu0 0
  %8395 = vmatpush2.bf16.msra.mxu0 %v8361
  %8396 = vmatprep.subr.bf16.mxu0 0
  %8397 = vmatpush2.bf16.msra.mxu0 %v8360
  %8398 = vmatprep.subr.bf16.mxu0 0
  %8399 = vmatpush2.bf16.msra.mxu0 %v8359
  %8400 = vmatprep.subr.bf16.mxu0 0
  %8401 = vmatpush2.bf16.msra.mxu0 %v8358
  %8402 = vmatprep.subr.bf16.mxu0 0
  %8403 = vmatpush2.bf16.msra.mxu0 %v8357
  %8404 = vmatprep.subr.bf16.mxu0 0
  %8405 = vmatpush2.bf16.msra.mxu0 %v8356
  %8406 = vmatprep.subr.bf16.mxu0 0
  %8407 = vmatpush2.bf16.msra.mxu0 %v8355
  %8408 = vmatprep.subr.bf16.mxu0 0
  %8409 = vmatpush2.bf16.msra.mxu0 %v8354
  %8410 = vmatprep.mubr.bf16.mxu0 %v7898
  %8411 = vmatmul.mubr.bf16.gmra.mxu0 %v7897
  %v8412 = vpop.f32.mrf.mxu0
  %v8413 = vadd.f32 0.0, %v8412
  %v8414 = vpop.f32.mrf.mxu0
  %v8415 = vpop.f32.mrf.mxu0
  %v8416 = vadd.f32 0.0, %v8415
  %v8417 = vpop.f32.mrf.mxu0
  %8418 = vmatprep.mubr.bf16.mxu0 %v7900
  %8419 = vmatmul.mubr.bf16.gmra.mxu0 %v7899
  %v8420 = vpop.f32.mrf.mxu0
  %v8421 = vadd.f32 0.0, %v8420
  %v8422 = vpop.f32.mrf.mxu0
  %v8423 = vpop.f32.mrf.mxu0
  %v8424 = vadd.f32 0.0, %v8423
  %v8425 = vpop.f32.mrf.mxu0
  %8426 = vmatprep.mubr.bf16.mxu0 %v7902
  %8427 = vmatmul.mubr.bf16.gmra.mxu0 %v7901
  %v8428 = vpop.f32.mrf.mxu0
  %v8429 = vadd.f32 0.0, %v8428
  %v8430 = vpop.f32.mrf.mxu0
  %v8431 = vpop.f32.mrf.mxu0
  %v8432 = vadd.f32 0.0, %v8431
  %v8433 = vpop.f32.mrf.mxu0
  %8434 = vmatprep.mubr.bf16.mxu0 %v7904
  %8435 = vmatmul.mubr.bf16.gmra.mxu0 %v7903
  %v8436 = vpop.f32.mrf.mxu0
  %v8437 = vadd.f32 0.0, %v8436
  %v8438 = vpop.f32.mrf.mxu0
  %v8439 = vpop.f32.mrf.mxu0
  %v8440 = vadd.f32 0.0, %v8439
  %v8441 = vpop.f32.mrf.mxu0
  %8442 = vmatprep.mubr.bf16.mxu0 %v7906
  %8443 = vmatmul.mubr.bf16.gmra.mxu0 %v7905
  %v8444 = vpop.f32.mrf.mxu0
  %v8445 = vadd.f32 0.0, %v8444
  %v8446 = vpop.f32.mrf.mxu0
  %v8447 = vpop.f32.mrf.mxu0
  %v8448 = vadd.f32 0.0, %v8447
  %v8449 = vpop.f32.mrf.mxu0
  %8450 = vmatprep.mubr.bf16.mxu0 %v7908
  %8451 = vmatmul.mubr.bf16.gmra.mxu0 %v7907
  %v8452 = vpop.f32.mrf.mxu0
  %v8453 = vadd.f32 0.0, %v8452
  %v8454 = vpop.f32.mrf.mxu0
  %v8455 = vpop.f32.mrf.mxu0
  %v8456 = vadd.f32 0.0, %v8455
  %v8457 = vpop.f32.mrf.mxu0
  %8458 = vmatprep.mubr.bf16.mxu0 %v7910
  %8459 = vmatmul.mubr.bf16.gmra.mxu0 %v7909
  %v8460 = vpop.f32.mrf.mxu0
  %v8461 = vadd.f32 0.0, %v8460
  %v8462 = vpop.f32.mrf.mxu0
  %v8463 = vpop.f32.mrf.mxu0
  %v8464 = vadd.f32 0.0, %v8463
  %v8465 = vpop.f32.mrf.mxu0
  %8466 = vmatprep.mubr.bf16.mxu0 %v7912
  %8467 = vmatmul.mubr.bf16.gmra.mxu0 %v7911
  %v8468 = vpop.f32.mrf.mxu0
  %v8469 = vadd.f32 0.0, %v8468
  %v8470 = vpop.f32.mrf.mxu0
  %v8471 = vpop.f32.mrf.mxu0
  %v8472 = vadd.f32 0.0, %v8471
  %v8473 = vpop.f32.mrf.mxu0
  %8474 = vmatprep.mubr.bf16.mxu0 %v7914
  %8475 = vmatmul.mubr.bf16.gmra.mxu0 %v7913
  %v8476 = vpop.f32.mrf.mxu0
  %v8477 = vadd.f32 0.0, %v8476
  %v8478 = vpop.f32.mrf.mxu0
  %v8479 = vpop.f32.mrf.mxu0
  %v8480 = vadd.f32 0.0, %v8479
  %v8481 = vpop.f32.mrf.mxu0
  %8482 = vmatprep.mubr.bf16.mxu0 %v7916
  %8483 = vmatmul.mubr.bf16.gmra.mxu0 %v7915
  %v8484 = vpop.f32.mrf.mxu0
  %v8485 = vadd.f32 0.0, %v8484
  %v8486 = vpop.f32.mrf.mxu0
  %v8487 = vpop.f32.mrf.mxu0
  %v8488 = vadd.f32 0.0, %v8487
  %v8489 = vpop.f32.mrf.mxu0
  %8490 = vmatprep.mubr.bf16.mxu0 %v7918
  %8491 = vmatmul.mubr.bf16.gmra.mxu0 %v7917
  %v8492 = vpop.f32.mrf.mxu0
  %v8493 = vadd.f32 0.0, %v8492
  %v8494 = vpop.f32.mrf.mxu0
  %v8495 = vpop.f32.mrf.mxu0
  %v8496 = vadd.f32 0.0, %v8495
  %v8497 = vpop.f32.mrf.mxu0
  %8498 = vmatprep.mubr.bf16.mxu0 %v7920
  %8499 = vmatmul.mubr.bf16.gmra.mxu0 %v7919
  %v8500 = vpop.f32.mrf.mxu0
  %v8501 = vadd.f32 0.0, %v8500
  %v8502 = vpop.f32.mrf.mxu0
  %v8503 = vpop.f32.mrf.mxu0
  %v8504 = vadd.f32 0.0, %v8503
  %v8505 = vpop.f32.mrf.mxu0
  %8506 = vmatprep.mubr.bf16.mxu0 %v7922
  %8507 = vmatmul.mubr.bf16.gmra.mxu0 %v7921
  %v8508 = vpop.f32.mrf.mxu0
  %v8509 = vadd.f32 0.0, %v8508
  %v8510 = vpop.f32.mrf.mxu0
  %v8511 = vpop.f32.mrf.mxu0
  %v8512 = vadd.f32 0.0, %v8511
  %v8513 = vpop.f32.mrf.mxu0
  %8514 = vmatprep.mubr.bf16.mxu0 %v7924
  %8515 = vmatmul.mubr.bf16.gmra.mxu0 %v7923
  %v8516 = vpop.f32.mrf.mxu0
  %v8517 = vadd.f32 0.0, %v8516
  %v8518 = vpop.f32.mrf.mxu0
  %v8519 = vpop.f32.mrf.mxu0
  %v8520 = vadd.f32 0.0, %v8519
  %v8521 = vpop.f32.mrf.mxu0
  %8522 = vmatprep.mubr.bf16.mxu0 %v7926
  %8523 = vmatmul.mubr.bf16.gmra.mxu0 %v7925
  %v8524 = vpop.f32.mrf.mxu0
  %v8525 = vadd.f32 0.0, %v8524
  %v8526 = vpop.f32.mrf.mxu0
  %v8527 = vpop.f32.mrf.mxu0
  %v8528 = vadd.f32 0.0, %v8527
  %v8529 = vpop.f32.mrf.mxu0
  %8530 = vmatprep.mubr.bf16.mxu0 %v7928
  %8531 = vmatmul.mubr.bf16.gmra.mxu0 %v7927
  %v8532 = vpop.f32.mrf.mxu0
  %v8533 = vadd.f32 0.0, %v8532
  %v8534 = vpop.f32.mrf.mxu0
  %v8535 = vpop.f32.mrf.mxu0
  %v8536 = vadd.f32 0.0, %v8535
  %v8537 = vpop.f32.mrf.mxu0
  %8538 = vdwg.mxu0
  %v8539 = vadd.f32 %v8250, %v8413
  %v8540 = vadd.f32 %v8251, %v8416
  %v8541 = vadd.f32 %v8252, %v8421
  %v8542 = vadd.f32 %v8253, %v8424
  %v8543 = vadd.f32 %v8254, %v8429
  %v8544 = vadd.f32 %v8255, %v8432
  %v8545 = vadd.f32 %v8256, %v8437
  %v8546 = vadd.f32 %v8257, %v8440
  %v8547 = vadd.f32 %v8258, %v8445
  %v8548 = vadd.f32 %v8259, %v8448
  %v8549 = vadd.f32 %v8260, %v8453
  %v8550 = vadd.f32 %v8261, %v8456
  %v8551 = vadd.f32 %v8262, %v8461
  %v8552 = vadd.f32 %v8263, %v8464
  %v8553 = vadd.f32 %v8264, %v8469
  %v8554 = vadd.f32 %v8265, %v8472
  %v8555 = vadd.f32 %v8266, %v8477
  %v8556 = vadd.f32 %v8267, %v8480
  %v8557 = vadd.f32 %v8268, %v8485
  %v8558 = vadd.f32 %v8269, %v8488
  %v8559 = vadd.f32 %v8270, %v8493
  %v8560 = vadd.f32 %v8271, %v8496
  %v8561 = vadd.f32 %v8272, %v8501
  %v8562 = vadd.f32 %v8273, %v8504
  %v8563 = vadd.f32 %v8274, %v8509
  %v8564 = vadd.f32 %v8275, %v8512
  %v8565 = vadd.f32 %v8276, %v8517
  %v8566 = vadd.f32 %v8277, %v8520
  %v8567 = vadd.f32 %v8278, %v8525
  %v8568 = vadd.f32 %v8279, %v8528
  %v8569 = vadd.f32 %v8280, %v8533
  %v8570 = vadd.f32 %v8281, %v8536
  %v8571 = vsub.s32 %v15, 1024
  %v8572 = vsub.s32 %v16, 1024
  %v8573 = vsub.s32 %v17, 1024
  %v8574 = vsub.s32 %v18, 1024
  %v8575 = vsub.s32 %v19, 1024
  %v8576 = vsub.s32 %v20, 1024
  %v8577 = vsub.s32 %v21, 1024
  %v8578 = vsub.s32 %v22, 1024
  %v8579 = vsub.s32 %v23, 1024
  %v8580 = vsub.s32 %v24, 1024
  %v8581 = vsub.s32 %v25, 1024
  %v8582 = vsub.s32 %v26, 1024
  %v8583 = vsub.s32 %v27, 1024
  %v8584 = vsub.s32 %v28, 1024
  %v8585 = vsub.s32 %v29, 1024
  %v8586 = vsub.s32 %v30, 1024
  %v8587 = vsub.s32 %v31, 1024
  %v8588 = vsub.s32 %v32, 1024
  %v8589 = vsub.s32 %v33, 1024
  %v8590 = vsub.s32 %v34, 1024
  %v8591 = vsub.s32 %v35, 1024
  %v8592 = vsub.s32 %v36, 1024
  %v8593 = vsub.s32 %v37, 1024
  %v8594 = vsub.s32 %v38, 1024
  %v8595 = vsub.s32 %v39, 1024
  %v8596 = vsub.s32 %v40, 1024
  %v8597 = vsub.s32 %v41, 1024
  %v8598 = vsub.s32 %v42, 1024
  %v8599 = vsub.s32 %v43, 1024
  %v8600 = vsub.s32 %v44, 1024
  %v8601 = vsub.s32 %v45, 1024
  %v8602 = vsub.s32 %v46, 1024
  %8603 = vset.pattern.permute.xlu0 0
  %8604 = vperm.xlu0 %8603, %v8571
  %v8605 = vpop.permute.xlu0 %8604
  %8606 = vset.pattern.permute.xlu0 0
  %8607 = vperm.xlu0 %8606, %v8572
  %v8608 = vpop.permute.xlu0 %8607
  %8609 = vset.pattern.permute.xlu0 0
  %8610 = vperm.xlu0 %8609, %v8573
  %v8611 = vpop.permute.xlu0 %8610
  %8612 = vset.pattern.permute.xlu0 0
  %8613 = vperm.xlu0 %8612, %v8574
  %v8614 = vpop.permute.xlu0 %8613
  %8615 = vset.pattern.permute.xlu0 0
  %8616 = vperm.xlu0 %8615, %v8575
  %v8617 = vpop.permute.xlu0 %8616
  %8618 = vset.pattern.permute.xlu0 0
  %8619 = vperm.xlu0 %8618, %v8576
  %v8620 = vpop.permute.xlu0 %8619
  %8621 = vset.pattern.permute.xlu0 0
  %8622 = vperm.xlu0 %8621, %v8577
  %v8623 = vpop.permute.xlu0 %8622
  %8624 = vset.pattern.permute.xlu0 0
  %8625 = vperm.xlu0 %8624, %v8578
  %v8626 = vpop.permute.xlu0 %8625
  %8627 = vset.pattern.permute.xlu0 0
  %8628 = vperm.xlu0 %8627, %v8579
  %v8629 = vpop.permute.xlu0 %8628
  %8630 = vset.pattern.permute.xlu0 0
  %8631 = vperm.xlu0 %8630, %v8580
  %v8632 = vpop.permute.xlu0 %8631
  %8633 = vset.pattern.permute.xlu0 0
  %8634 = vperm.xlu0 %8633, %v8581
  %v8635 = vpop.permute.xlu0 %8634
  %8636 = vset.pattern.permute.xlu0 0
  %8637 = vperm.xlu0 %8636, %v8582
  %v8638 = vpop.permute.xlu0 %8637
  %8639 = vset.pattern.permute.xlu0 0
  %8640 = vperm.xlu0 %8639, %v8583
  %v8641 = vpop.permute.xlu0 %8640
  %8642 = vset.pattern.permute.xlu0 0
  %8643 = vperm.xlu0 %8642, %v8584
  %v8644 = vpop.permute.xlu0 %8643
  %8645 = vset.pattern.permute.xlu0 0
  %8646 = vperm.xlu0 %8645, %v8585
  %v8647 = vpop.permute.xlu0 %8646
  %8648 = vset.pattern.permute.xlu0 0
  %8649 = vperm.xlu0 %8648, %v8586
  %v8650 = vpop.permute.xlu0 %8649
  %8651 = vset.pattern.permute.xlu0 0
  %8652 = vperm.xlu0 %8651, %v8587
  %v8653 = vpop.permute.xlu0 %8652
  %8654 = vset.pattern.permute.xlu0 0
  %8655 = vperm.xlu0 %8654, %v8588
  %v8656 = vpop.permute.xlu0 %8655
  %8657 = vset.pattern.permute.xlu0 0
  %8658 = vperm.xlu0 %8657, %v8589
  %v8659 = vpop.permute.xlu0 %8658
  %8660 = vset.pattern.permute.xlu0 0
  %8661 = vperm.xlu0 %8660, %v8590
  %v8662 = vpop.permute.xlu0 %8661
  %8663 = vset.pattern.permute.xlu0 0
  %8664 = vperm.xlu0 %8663, %v8591
  %v8665 = vpop.permute.xlu0 %8664
  %8666 = vset.pattern.permute.xlu0 0
  %8667 = vperm.xlu0 %8666, %v8592
  %v8668 = vpop.permute.xlu0 %8667
  %8669 = vset.pattern.permute.xlu0 0
  %8670 = vperm.xlu0 %8669, %v8593
  %v8671 = vpop.permute.xlu0 %8670
  %8672 = vset.pattern.permute.xlu0 0
  %8673 = vperm.xlu0 %8672, %v8594
  %v8674 = vpop.permute.xlu0 %8673
  %8675 = vset.pattern.permute.xlu0 0
  %8676 = vperm.xlu0 %8675, %v8595
  %v8677 = vpop.permute.xlu0 %8676
  %8678 = vset.pattern.permute.xlu0 0
  %8679 = vperm.xlu0 %8678, %v8596
  %v8680 = vpop.permute.xlu0 %8679
  %8681 = vset.pattern.permute.xlu0 0
  %8682 = vperm.xlu0 %8681, %v8597
  %v8683 = vpop.permute.xlu0 %8682
  %8684 = vset.pattern.permute.xlu0 0
  %8685 = vperm.xlu0 %8684, %v8598
  %v8686 = vpop.permute.xlu0 %8685
  %8687 = vset.pattern.permute.xlu0 0
  %8688 = vperm.xlu0 %8687, %v8599
  %v8689 = vpop.permute.xlu0 %8688
  %8690 = vset.pattern.permute.xlu0 0
  %8691 = vperm.xlu0 %8690, %v8600
  %v8692 = vpop.permute.xlu0 %8691
  %8693 = vset.pattern.permute.xlu0 0
  %8694 = vperm.xlu0 %8693, %v8601
  %v8695 = vpop.permute.xlu0 %8694
  %8696 = vset.pattern.permute.xlu0 0
  %8697 = vperm.xlu0 %8696, %v8602
  %v8698 = vpop.permute.xlu0 %8697
  %vm8699 = vcmp.eq.s32.totalorder %v8605, %v337
  %vm8700 = vcmp.eq.s32.totalorder %v8605, %v338
  %vm8701 = vcmp.eq.s32.totalorder %v8608, %v337
  %vm8702 = vcmp.eq.s32.totalorder %v8608, %v338
  %vm8703 = vcmp.eq.s32.totalorder %v8611, %v337
  %vm8704 = vcmp.eq.s32.totalorder %v8611, %v338
  %vm8705 = vcmp.eq.s32.totalorder %v8614, %v337
  %vm8706 = vcmp.eq.s32.totalorder %v8614, %v338
  %vm8707 = vcmp.eq.s32.totalorder %v8617, %v337
  %vm8708 = vcmp.eq.s32.totalorder %v8617, %v338
  %vm8709 = vcmp.eq.s32.totalorder %v8620, %v337
  %vm8710 = vcmp.eq.s32.totalorder %v8620, %v338
  %vm8711 = vcmp.eq.s32.totalorder %v8623, %v337
  %vm8712 = vcmp.eq.s32.totalorder %v8623, %v338
  %vm8713 = vcmp.eq.s32.totalorder %v8626, %v337
  %vm8714 = vcmp.eq.s32.totalorder %v8626, %v338
  %vm8715 = vcmp.eq.s32.totalorder %v8629, %v337
  %vm8716 = vcmp.eq.s32.totalorder %v8629, %v338
  %vm8717 = vcmp.eq.s32.totalorder %v8632, %v337
  %vm8718 = vcmp.eq.s32.totalorder %v8632, %v338
  %vm8719 = vcmp.eq.s32.totalorder %v8635, %v337
  %vm8720 = vcmp.eq.s32.totalorder %v8635, %v338
  %vm8721 = vcmp.eq.s32.totalorder %v8638, %v337
  %vm8722 = vcmp.eq.s32.totalorder %v8638, %v338
  %vm8723 = vcmp.eq.s32.totalorder %v8641, %v337
  %vm8724 = vcmp.eq.s32.totalorder %v8641, %v338
  %vm8725 = vcmp.eq.s32.totalorder %v8644, %v337
  %vm8726 = vcmp.eq.s32.totalorder %v8644, %v338
  %vm8727 = vcmp.eq.s32.totalorder %v8647, %v337
  %vm8728 = vcmp.eq.s32.totalorder %v8647, %v338
  %vm8729 = vcmp.eq.s32.totalorder %v8650, %v337
  %vm8730 = vcmp.eq.s32.totalorder %v8650, %v338
  %vm8731 = vcmp.eq.s32.totalorder %v8653, %v337
  %vm8732 = vcmp.eq.s32.totalorder %v8653, %v338
  %vm8733 = vcmp.eq.s32.totalorder %v8656, %v337
  %vm8734 = vcmp.eq.s32.totalorder %v8656, %v338
  %vm8735 = vcmp.eq.s32.totalorder %v8659, %v337
  %vm8736 = vcmp.eq.s32.totalorder %v8659, %v338
  %vm8737 = vcmp.eq.s32.totalorder %v8662, %v337
  %vm8738 = vcmp.eq.s32.totalorder %v8662, %v338
  %vm8739 = vcmp.eq.s32.totalorder %v8665, %v337
  %vm8740 = vcmp.eq.s32.totalorder %v8665, %v338
  %vm8741 = vcmp.eq.s32.totalorder %v8668, %v337
  %vm8742 = vcmp.eq.s32.totalorder %v8668, %v338
  %vm8743 = vcmp.eq.s32.totalorder %v8671, %v337
  %vm8744 = vcmp.eq.s32.totalorder %v8671, %v338
  %vm8745 = vcmp.eq.s32.totalorder %v8674, %v337
  %vm8746 = vcmp.eq.s32.totalorder %v8674, %v338
  %vm8747 = vcmp.eq.s32.totalorder %v8677, %v337
  %vm8748 = vcmp.eq.s32.totalorder %v8677, %v338
  %vm8749 = vcmp.eq.s32.totalorder %v8680, %v337
  %vm8750 = vcmp.eq.s32.totalorder %v8680, %v338
  %vm8751 = vcmp.eq.s32.totalorder %v8683, %v337
  %vm8752 = vcmp.eq.s32.totalorder %v8683, %v338
  %vm8753 = vcmp.eq.s32.totalorder %v8686, %v337
  %vm8754 = vcmp.eq.s32.totalorder %v8686, %v338
  %vm8755 = vcmp.eq.s32.totalorder %v8689, %v337
  %vm8756 = vcmp.eq.s32.totalorder %v8689, %v338
  %vm8757 = vcmp.eq.s32.totalorder %v8692, %v337
  %vm8758 = vcmp.eq.s32.totalorder %v8692, %v338
  %vm8759 = vcmp.eq.s32.totalorder %v8695, %v337
  %vm8760 = vcmp.eq.s32.totalorder %v8695, %v338
  %vm8761 = vcmp.eq.s32.totalorder %v8698, %v337
  %vm8762 = vcmp.eq.s32.totalorder %v8698, %v338
  %v8763 = vsel %vm8699, 1, 0
  %v8764 = vsel %vm8700, 1, 0
  %v8765 = vsel %vm8701, 1, 0
  %v8766 = vsel %vm8702, 1, 0
  %v8767 = vsel %vm8703, 1, 0
  %v8768 = vsel %vm8704, 1, 0
  %v8769 = vsel %vm8705, 1, 0
  %v8770 = vsel %vm8706, 1, 0
  %v8771 = vsel %vm8707, 1, 0
  %v8772 = vsel %vm8708, 1, 0
  %v8773 = vsel %vm8709, 1, 0
  %v8774 = vsel %vm8710, 1, 0
  %v8775 = vsel %vm8711, 1, 0
  %v8776 = vsel %vm8712, 1, 0
  %v8777 = vsel %vm8713, 1, 0
  %v8778 = vsel %vm8714, 1, 0
  %v8779 = vsel %vm8715, 1, 0
  %v8780 = vsel %vm8716, 1, 0
  %v8781 = vsel %vm8717, 1, 0
  %v8782 = vsel %vm8718, 1, 0
  %v8783 = vsel %vm8719, 1, 0
  %v8784 = vsel %vm8720, 1, 0
  %v8785 = vsel %vm8721, 1, 0
  %v8786 = vsel %vm8722, 1, 0
  %v8787 = vsel %vm8723, 1, 0
  %v8788 = vsel %vm8724, 1, 0
  %v8789 = vsel %vm8725, 1, 0
  %v8790 = vsel %vm8726, 1, 0
  %v8791 = vsel %vm8727, 1, 0
  %v8792 = vsel %vm8728, 1, 0
  %v8793 = vsel %vm8729, 1, 0
  %v8794 = vsel %vm8730, 1, 0
  %v8795 = vsel %vm8731, 1, 0
  %v8796 = vsel %vm8732, 1, 0
  %v8797 = vsel %vm8733, 1, 0
  %v8798 = vsel %vm8734, 1, 0
  %v8799 = vsel %vm8735, 1, 0
  %v8800 = vsel %vm8736, 1, 0
  %v8801 = vsel %vm8737, 1, 0
  %v8802 = vsel %vm8738, 1, 0
  %v8803 = vsel %vm8739, 1, 0
  %v8804 = vsel %vm8740, 1, 0
  %v8805 = vsel %vm8741, 1, 0
  %v8806 = vsel %vm8742, 1, 0
  %v8807 = vsel %vm8743, 1, 0
  %v8808 = vsel %vm8744, 1, 0
  %v8809 = vsel %vm8745, 1, 0
  %v8810 = vsel %vm8746, 1, 0
  %v8811 = vsel %vm8747, 1, 0
  %v8812 = vsel %vm8748, 1, 0
  %v8813 = vsel %vm8749, 1, 0
  %v8814 = vsel %vm8750, 1, 0
  %v8815 = vsel %vm8751, 1, 0
  %v8816 = vsel %vm8752, 1, 0
  %v8817 = vsel %vm8753, 1, 0
  %v8818 = vsel %vm8754, 1, 0
  %v8819 = vsel %vm8755, 1, 0
  %v8820 = vsel %vm8756, 1, 0
  %v8821 = vsel %vm8757, 1, 0
  %v8822 = vsel %vm8758, 1, 0
  %v8823 = vsel %vm8759, 1, 0
  %v8824 = vsel %vm8760, 1, 0
  %v8825 = vsel %vm8761, 1, 0
  %v8826 = vsel %vm8762, 1, 0
  %v8827 = vcvt.s32.f32 %v8763
  %v8828 = vcvt.s32.f32 %v8764
  %v8829 = vcvt.s32.f32 %v8765
  %v8830 = vcvt.s32.f32 %v8766
  %v8831 = vcvt.s32.f32 %v8767
  %v8832 = vcvt.s32.f32 %v8768
  %v8833 = vcvt.s32.f32 %v8769
  %v8834 = vcvt.s32.f32 %v8770
  %v8835 = vcvt.s32.f32 %v8771
  %v8836 = vcvt.s32.f32 %v8772
  %v8837 = vcvt.s32.f32 %v8773
  %v8838 = vcvt.s32.f32 %v8774
  %v8839 = vcvt.s32.f32 %v8775
  %v8840 = vcvt.s32.f32 %v8776
  %v8841 = vcvt.s32.f32 %v8777
  %v8842 = vcvt.s32.f32 %v8778
  %v8843 = vcvt.s32.f32 %v8779
  %v8844 = vcvt.s32.f32 %v8780
  %v8845 = vcvt.s32.f32 %v8781
  %v8846 = vcvt.s32.f32 %v8782
  %v8847 = vcvt.s32.f32 %v8783
  %v8848 = vcvt.s32.f32 %v8784
  %v8849 = vcvt.s32.f32 %v8785
  %v8850 = vcvt.s32.f32 %v8786
  %v8851 = vcvt.s32.f32 %v8787
  %v8852 = vcvt.s32.f32 %v8788
  %v8853 = vcvt.s32.f32 %v8789
  %v8854 = vcvt.s32.f32 %v8790
  %v8855 = vcvt.s32.f32 %v8791
  %v8856 = vcvt.s32.f32 %v8792
  %v8857 = vcvt.s32.f32 %v8793
  %v8858 = vcvt.s32.f32 %v8794
  %v8859 = vcvt.s32.f32 %v8795
  %v8860 = vcvt.s32.f32 %v8796
  %v8861 = vcvt.s32.f32 %v8797
  %v8862 = vcvt.s32.f32 %v8798
  %v8863 = vcvt.s32.f32 %v8799
  %v8864 = vcvt.s32.f32 %v8800
  %v8865 = vcvt.s32.f32 %v8801
  %v8866 = vcvt.s32.f32 %v8802
  %v8867 = vcvt.s32.f32 %v8803
  %v8868 = vcvt.s32.f32 %v8804
  %v8869 = vcvt.s32.f32 %v8805
  %v8870 = vcvt.s32.f32 %v8806
  %v8871 = vcvt.s32.f32 %v8807
  %v8872 = vcvt.s32.f32 %v8808
  %v8873 = vcvt.s32.f32 %v8809
  %v8874 = vcvt.s32.f32 %v8810
  %v8875 = vcvt.s32.f32 %v8811
  %v8876 = vcvt.s32.f32 %v8812
  %v8877 = vcvt.s32.f32 %v8813
  %v8878 = vcvt.s32.f32 %v8814
  %v8879 = vcvt.s32.f32 %v8815
  %v8880 = vcvt.s32.f32 %v8816
  %v8881 = vcvt.s32.f32 %v8817
  %v8882 = vcvt.s32.f32 %v8818
  %v8883 = vcvt.s32.f32 %v8819
  %v8884 = vcvt.s32.f32 %v8820
  %v8885 = vcvt.s32.f32 %v8821
  %v8886 = vcvt.s32.f32 %v8822
  %v8887 = vcvt.s32.f32 %v8823
  %v8888 = vcvt.s32.f32 %v8824
  %v8889 = vcvt.s32.f32 %v8825
  %v8890 = vcvt.s32.f32 %v8826
  %v8891 = vpack.c.bf16 %v8829, %v8827
  %v8892 = vpack.c.bf16 %v8830, %v8828
  %v8893 = vpack.c.bf16 %v8833, %v8831
  %v8894 = vpack.c.bf16 %v8834, %v8832
  %v8895 = vpack.c.bf16 %v8837, %v8835
  %v8896 = vpack.c.bf16 %v8838, %v8836
  %v8897 = vpack.c.bf16 %v8841, %v8839
  %v8898 = vpack.c.bf16 %v8842, %v8840
  %v8899 = vpack.c.bf16 %v8845, %v8843
  %v8900 = vpack.c.bf16 %v8846, %v8844
  %v8901 = vpack.c.bf16 %v8849, %v8847
  %v8902 = vpack.c.bf16 %v8850, %v8848
  %v8903 = vpack.c.bf16 %v8853, %v8851
  %v8904 = vpack.c.bf16 %v8854, %v8852
  %v8905 = vpack.c.bf16 %v8857, %v8855
  %v8906 = vpack.c.bf16 %v8858, %v8856
  %v8907 = vpack.c.bf16 %v8861, %v8859
  %v8908 = vpack.c.bf16 %v8862, %v8860
  %v8909 = vpack.c.bf16 %v8865, %v8863
  %v8910 = vpack.c.bf16 %v8866, %v8864
  %v8911 = vpack.c.bf16 %v8869, %v8867
  %v8912 = vpack.c.bf16 %v8870, %v8868
  %v8913 = vpack.c.bf16 %v8873, %v8871
  %v8914 = vpack.c.bf16 %v8874, %v8872
  %v8915 = vpack.c.bf16 %v8877, %v8875
  %v8916 = vpack.c.bf16 %v8878, %v8876
  %v8917 = vpack.c.bf16 %v8881, %v8879
  %v8918 = vpack.c.bf16 %v8882, %v8880
  %v8919 = vpack.c.bf16 %v8885, %v8883
  %v8920 = vpack.c.bf16 %v8886, %v8884
  %v8921 = vpack.c.bf16 %v8889, %v8887
  %v8922 = vpack.c.bf16 %v8890, %v8888
  %v8923 = vadd.bf16 %v8891, 0
  %v8924 = vadd.bf16 %v8892, 0
  %v8925 = vadd.bf16 %v8893, 0
  %v8926 = vadd.bf16 %v8894, 0
  %v8927 = vadd.bf16 %v8895, 0
  %v8928 = vadd.bf16 %v8896, 0
  %v8929 = vadd.bf16 %v8897, 0
  %v8930 = vadd.bf16 %v8898, 0
  %v8931 = vadd.bf16 %v8899, 0
  %v8932 = vadd.bf16 %v8900, 0
  %v8933 = vadd.bf16 %v8901, 0
  %v8934 = vadd.bf16 %v8902, 0
  %v8935 = vadd.bf16 %v8903, 0
  %v8936 = vadd.bf16 %v8904, 0
  %v8937 = vadd.bf16 %v8905, 0
  %v8938 = vadd.bf16 %v8906, 0
  %v8939 = vadd.bf16 %v8907, 0
  %v8940 = vadd.bf16 %v8908, 0
  %v8941 = vadd.bf16 %v8909, 0
  %v8942 = vadd.bf16 %v8910, 0
  %v8943 = vadd.bf16 %v8911, 0
  %v8944 = vadd.bf16 %v8912, 0
  %v8945 = vadd.bf16 %v8913, 0
  %v8946 = vadd.bf16 %v8914, 0
  %v8947 = vadd.bf16 %v8915, 0
  %v8948 = vadd.bf16 %v8916, 0
  %v8949 = vadd.bf16 %v8917, 0
  %v8950 = vadd.bf16 %v8918, 0
  %v8951 = vadd.bf16 %v8919, 0
  %v8952 = vadd.bf16 %v8920, 0
  %v8953 = vadd.bf16 %v8921, 0
  %v8954 = vadd.bf16 %v8922, 0
  %8955 = vset.pattern.permute.xlu0 1
  %8956 = vperm.xlu0 %8955, %v8571
  %v8957 = vpop.permute.xlu0 %8956
  %8958 = vset.pattern.permute.xlu0 1
  %8959 = vperm.xlu0 %8958, %v8572
  %v8960 = vpop.permute.xlu0 %8959
  %8961 = vset.pattern.permute.xlu0 1
  %8962 = vperm.xlu0 %8961, %v8573
  %v8963 = vpop.permute.xlu0 %8962
  %8964 = vset.pattern.permute.xlu0 1
  %8965 = vperm.xlu0 %8964, %v8574
  %v8966 = vpop.permute.xlu0 %8965
  %8967 = vset.pattern.permute.xlu0 1
  %8968 = vperm.xlu0 %8967, %v8575
  %v8969 = vpop.permute.xlu0 %8968
  %8970 = vset.pattern.permute.xlu0 1
  %8971 = vperm.xlu0 %8970, %v8576
  %v8972 = vpop.permute.xlu0 %8971
  %8973 = vset.pattern.permute.xlu0 1
  %8974 = vperm.xlu0 %8973, %v8577
  %v8975 = vpop.permute.xlu0 %8974
  %8976 = vset.pattern.permute.xlu0 1
  %8977 = vperm.xlu0 %8976, %v8578
  %v8978 = vpop.permute.xlu0 %8977
  %8979 = vset.pattern.permute.xlu0 1
  %8980 = vperm.xlu0 %8979, %v8579
  %v8981 = vpop.permute.xlu0 %8980
  %8982 = vset.pattern.permute.xlu0 1
  %8983 = vperm.xlu0 %8982, %v8580
  %v8984 = vpop.permute.xlu0 %8983
  %8985 = vset.pattern.permute.xlu0 1
  %8986 = vperm.xlu0 %8985, %v8581
  %v8987 = vpop.permute.xlu0 %8986
  %8988 = vset.pattern.permute.xlu0 1
  %8989 = vperm.xlu0 %8988, %v8582
  %v8990 = vpop.permute.xlu0 %8989
  %8991 = vset.pattern.permute.xlu0 1
  %8992 = vperm.xlu0 %8991, %v8583
  %v8993 = vpop.permute.xlu0 %8992
  %8994 = vset.pattern.permute.xlu0 1
  %8995 = vperm.xlu0 %8994, %v8584
  %v8996 = vpop.permute.xlu0 %8995
  %8997 = vset.pattern.permute.xlu0 1
  %8998 = vperm.xlu0 %8997, %v8585
  %v8999 = vpop.permute.xlu0 %8998
  %9000 = vset.pattern.permute.xlu0 1
  %9001 = vperm.xlu0 %9000, %v8586
  %v9002 = vpop.permute.xlu0 %9001
  %9003 = vset.pattern.permute.xlu0 1
  %9004 = vperm.xlu0 %9003, %v8587
  %v9005 = vpop.permute.xlu0 %9004
  %9006 = vset.pattern.permute.xlu0 1
  %9007 = vperm.xlu0 %9006, %v8588
  %v9008 = vpop.permute.xlu0 %9007
  %9009 = vset.pattern.permute.xlu0 1
  %9010 = vperm.xlu0 %9009, %v8589
  %v9011 = vpop.permute.xlu0 %9010
  %9012 = vset.pattern.permute.xlu0 1
  %9013 = vperm.xlu0 %9012, %v8590
  %v9014 = vpop.permute.xlu0 %9013
  %9015 = vset.pattern.permute.xlu0 1
  %9016 = vperm.xlu0 %9015, %v8591
  %v9017 = vpop.permute.xlu0 %9016
  %9018 = vset.pattern.permute.xlu0 1
  %9019 = vperm.xlu0 %9018, %v8592
  %v9020 = vpop.permute.xlu0 %9019
  %9021 = vset.pattern.permute.xlu0 1
  %9022 = vperm.xlu0 %9021, %v8593
  %v9023 = vpop.permute.xlu0 %9022
  %9024 = vset.pattern.permute.xlu0 1
  %9025 = vperm.xlu0 %9024, %v8594
  %v9026 = vpop.permute.xlu0 %9025
  %9027 = vset.pattern.permute.xlu0 1
  %9028 = vperm.xlu0 %9027, %v8595
  %v9029 = vpop.permute.xlu0 %9028
  %9030 = vset.pattern.permute.xlu0 1
  %9031 = vperm.xlu0 %9030, %v8596
  %v9032 = vpop.permute.xlu0 %9031
  %9033 = vset.pattern.permute.xlu0 1
  %9034 = vperm.xlu0 %9033, %v8597
  %v9035 = vpop.permute.xlu0 %9034
  %9036 = vset.pattern.permute.xlu0 1
  %9037 = vperm.xlu0 %9036, %v8598
  %v9038 = vpop.permute.xlu0 %9037
  %9039 = vset.pattern.permute.xlu0 1
  %9040 = vperm.xlu0 %9039, %v8599
  %v9041 = vpop.permute.xlu0 %9040
  %9042 = vset.pattern.permute.xlu0 1
  %9043 = vperm.xlu0 %9042, %v8600
  %v9044 = vpop.permute.xlu0 %9043
  %9045 = vset.pattern.permute.xlu0 1
  %9046 = vperm.xlu0 %9045, %v8601
  %v9047 = vpop.permute.xlu0 %9046
  %9048 = vset.pattern.permute.xlu0 1
  %9049 = vperm.xlu0 %9048, %v8602
  %v9050 = vpop.permute.xlu0 %9049
  %vm9051 = vcmp.eq.s32.totalorder %v8957, %v337
  %vm9052 = vcmp.eq.s32.totalorder %v8957, %v338
  %vm9053 = vcmp.eq.s32.totalorder %v8960, %v337
  %vm9054 = vcmp.eq.s32.totalorder %v8960, %v338
  %vm9055 = vcmp.eq.s32.totalorder %v8963, %v337
  %vm9056 = vcmp.eq.s32.totalorder %v8963, %v338
  %vm9057 = vcmp.eq.s32.totalorder %v8966, %v337
  %vm9058 = vcmp.eq.s32.totalorder %v8966, %v338
  %vm9059 = vcmp.eq.s32.totalorder %v8969, %v337
  %vm9060 = vcmp.eq.s32.totalorder %v8969, %v338
  %vm9061 = vcmp.eq.s32.totalorder %v8972, %v337
  %vm9062 = vcmp.eq.s32.totalorder %v8972, %v338
  %vm9063 = vcmp.eq.s32.totalorder %v8975, %v337
  %vm9064 = vcmp.eq.s32.totalorder %v8975, %v338
  %vm9065 = vcmp.eq.s32.totalorder %v8978, %v337
  %vm9066 = vcmp.eq.s32.totalorder %v8978, %v338
  %vm9067 = vcmp.eq.s32.totalorder %v8981, %v337
  %vm9068 = vcmp.eq.s32.totalorder %v8981, %v338
  %vm9069 = vcmp.eq.s32.totalorder %v8984, %v337
  %vm9070 = vcmp.eq.s32.totalorder %v8984, %v338
  %vm9071 = vcmp.eq.s32.totalorder %v8987, %v337
  %vm9072 = vcmp.eq.s32.totalorder %v8987, %v338
  %vm9073 = vcmp.eq.s32.totalorder %v8990, %v337
  %vm9074 = vcmp.eq.s32.totalorder %v8990, %v338
  %vm9075 = vcmp.eq.s32.totalorder %v8993, %v337
  %vm9076 = vcmp.eq.s32.totalorder %v8993, %v338
  %vm9077 = vcmp.eq.s32.totalorder %v8996, %v337
  %vm9078 = vcmp.eq.s32.totalorder %v8996, %v338
  %vm9079 = vcmp.eq.s32.totalorder %v8999, %v337
  %vm9080 = vcmp.eq.s32.totalorder %v8999, %v338
  %vm9081 = vcmp.eq.s32.totalorder %v9002, %v337
  %vm9082 = vcmp.eq.s32.totalorder %v9002, %v338
  %vm9083 = vcmp.eq.s32.totalorder %v9005, %v337
  %vm9084 = vcmp.eq.s32.totalorder %v9005, %v338
  %vm9085 = vcmp.eq.s32.totalorder %v9008, %v337
  %vm9086 = vcmp.eq.s32.totalorder %v9008, %v338
  %vm9087 = vcmp.eq.s32.totalorder %v9011, %v337
  %vm9088 = vcmp.eq.s32.totalorder %v9011, %v338
  %vm9089 = vcmp.eq.s32.totalorder %v9014, %v337
  %vm9090 = vcmp.eq.s32.totalorder %v9014, %v338
  %vm9091 = vcmp.eq.s32.totalorder %v9017, %v337
  %vm9092 = vcmp.eq.s32.totalorder %v9017, %v338
  %vm9093 = vcmp.eq.s32.totalorder %v9020, %v337
  %vm9094 = vcmp.eq.s32.totalorder %v9020, %v338
  %vm9095 = vcmp.eq.s32.totalorder %v9023, %v337
  %vm9096 = vcmp.eq.s32.totalorder %v9023, %v338
  %vm9097 = vcmp.eq.s32.totalorder %v9026, %v337
  %vm9098 = vcmp.eq.s32.totalorder %v9026, %v338
  %vm9099 = vcmp.eq.s32.totalorder %v9029, %v337
  %vm9100 = vcmp.eq.s32.totalorder %v9029, %v338
  %vm9101 = vcmp.eq.s32.totalorder %v9032, %v337
  %vm9102 = vcmp.eq.s32.totalorder %v9032, %v338
  %vm9103 = vcmp.eq.s32.totalorder %v9035, %v337
  %vm9104 = vcmp.eq.s32.totalorder %v9035, %v338
  %vm9105 = vcmp.eq.s32.totalorder %v9038, %v337
  %vm9106 = vcmp.eq.s32.totalorder %v9038, %v338
  %vm9107 = vcmp.eq.s32.totalorder %v9041, %v337
  %vm9108 = vcmp.eq.s32.totalorder %v9041, %v338
  %vm9109 = vcmp.eq.s32.totalorder %v9044, %v337
  %vm9110 = vcmp.eq.s32.totalorder %v9044, %v338
  %vm9111 = vcmp.eq.s32.totalorder %v9047, %v337
  %vm9112 = vcmp.eq.s32.totalorder %v9047, %v338
  %vm9113 = vcmp.eq.s32.totalorder %v9050, %v337
  %vm9114 = vcmp.eq.s32.totalorder %v9050, %v338
  %v9115 = vsel %vm9051, 1, 0
  %v9116 = vsel %vm9052, 1, 0
  %v9117 = vsel %vm9053, 1, 0
  %v9118 = vsel %vm9054, 1, 0
  %v9119 = vsel %vm9055, 1, 0
  %v9120 = vsel %vm9056, 1, 0
  %v9121 = vsel %vm9057, 1, 0
  %v9122 = vsel %vm9058, 1, 0
  %v9123 = vsel %vm9059, 1, 0
  %v9124 = vsel %vm9060, 1, 0
  %v9125 = vsel %vm9061, 1, 0
  %v9126 = vsel %vm9062, 1, 0
  %v9127 = vsel %vm9063, 1, 0
  %v9128 = vsel %vm9064, 1, 0
  %v9129 = vsel %vm9065, 1, 0
  %v9130 = vsel %vm9066, 1, 0
  %v9131 = vsel %vm9067, 1, 0
  %v9132 = vsel %vm9068, 1, 0
  %v9133 = vsel %vm9069, 1, 0
  %v9134 = vsel %vm9070, 1, 0
  %v9135 = vsel %vm9071, 1, 0
  %v9136 = vsel %vm9072, 1, 0
  %v9137 = vsel %vm9073, 1, 0
  %v9138 = vsel %vm9074, 1, 0
  %v9139 = vsel %vm9075, 1, 0
  %v9140 = vsel %vm9076, 1, 0
  %v9141 = vsel %vm9077, 1, 0
  %v9142 = vsel %vm9078, 1, 0
  %v9143 = vsel %vm9079, 1, 0
  %v9144 = vsel %vm9080, 1, 0
  %v9145 = vsel %vm9081, 1, 0
  %v9146 = vsel %vm9082, 1, 0
  %v9147 = vsel %vm9083, 1, 0
  %v9148 = vsel %vm9084, 1, 0
  %v9149 = vsel %vm9085, 1, 0
  %v9150 = vsel %vm9086, 1, 0
  %v9151 = vsel %vm9087, 1, 0
  %v9152 = vsel %vm9088, 1, 0
  %v9153 = vsel %vm9089, 1, 0
  %v9154 = vsel %vm9090, 1, 0
  %v9155 = vsel %vm9091, 1, 0
  %v9156 = vsel %vm9092, 1, 0
  %v9157 = vsel %vm9093, 1, 0
  %v9158 = vsel %vm9094, 1, 0
  %v9159 = vsel %vm9095, 1, 0
  %v9160 = vsel %vm9096, 1, 0
  %v9161 = vsel %vm9097, 1, 0
  %v9162 = vsel %vm9098, 1, 0
  %v9163 = vsel %vm9099, 1, 0
  %v9164 = vsel %vm9100, 1, 0
  %v9165 = vsel %vm9101, 1, 0
  %v9166 = vsel %vm9102, 1, 0
  %v9167 = vsel %vm9103, 1, 0
  %v9168 = vsel %vm9104, 1, 0
  %v9169 = vsel %vm9105, 1, 0
  %v9170 = vsel %vm9106, 1, 0
  %v9171 = vsel %vm9107, 1, 0
  %v9172 = vsel %vm9108, 1, 0
  %v9173 = vsel %vm9109, 1, 0
  %v9174 = vsel %vm9110, 1, 0
  %v9175 = vsel %vm9111, 1, 0
  %v9176 = vsel %vm9112, 1, 0
  %v9177 = vsel %vm9113, 1, 0
  %v9178 = vsel %vm9114, 1, 0
  %v9179 = vcvt.s32.f32 %v9115
  %v9180 = vcvt.s32.f32 %v9116
  %v9181 = vcvt.s32.f32 %v9117
  %v9182 = vcvt.s32.f32 %v9118
  %v9183 = vcvt.s32.f32 %v9119
  %v9184 = vcvt.s32.f32 %v9120
  %v9185 = vcvt.s32.f32 %v9121
  %v9186 = vcvt.s32.f32 %v9122
  %v9187 = vcvt.s32.f32 %v9123
  %v9188 = vcvt.s32.f32 %v9124
  %v9189 = vcvt.s32.f32 %v9125
  %v9190 = vcvt.s32.f32 %v9126
  %v9191 = vcvt.s32.f32 %v9127
  %v9192 = vcvt.s32.f32 %v9128
  %v9193 = vcvt.s32.f32 %v9129
  %v9194 = vcvt.s32.f32 %v9130
  %v9195 = vcvt.s32.f32 %v9131
  %v9196 = vcvt.s32.f32 %v9132
  %v9197 = vcvt.s32.f32 %v9133
  %v9198 = vcvt.s32.f32 %v9134
  %v9199 = vcvt.s32.f32 %v9135
  %v9200 = vcvt.s32.f32 %v9136
  %v9201 = vcvt.s32.f32 %v9137
  %v9202 = vcvt.s32.f32 %v9138
  %v9203 = vcvt.s32.f32 %v9139
  %v9204 = vcvt.s32.f32 %v9140
  %v9205 = vcvt.s32.f32 %v9141
  %v9206 = vcvt.s32.f32 %v9142
  %v9207 = vcvt.s32.f32 %v9143
  %v9208 = vcvt.s32.f32 %v9144
  %v9209 = vcvt.s32.f32 %v9145
  %v9210 = vcvt.s32.f32 %v9146
  %v9211 = vcvt.s32.f32 %v9147
  %v9212 = vcvt.s32.f32 %v9148
  %v9213 = vcvt.s32.f32 %v9149
  %v9214 = vcvt.s32.f32 %v9150
  %v9215 = vcvt.s32.f32 %v9151
  %v9216 = vcvt.s32.f32 %v9152
  %v9217 = vcvt.s32.f32 %v9153
  %v9218 = vcvt.s32.f32 %v9154
  %v9219 = vcvt.s32.f32 %v9155
  %v9220 = vcvt.s32.f32 %v9156
  %v9221 = vcvt.s32.f32 %v9157
  %v9222 = vcvt.s32.f32 %v9158
  %v9223 = vcvt.s32.f32 %v9159
  %v9224 = vcvt.s32.f32 %v9160
  %v9225 = vcvt.s32.f32 %v9161
  %v9226 = vcvt.s32.f32 %v9162
  %v9227 = vcvt.s32.f32 %v9163
  %v9228 = vcvt.s32.f32 %v9164
  %v9229 = vcvt.s32.f32 %v9165
  %v9230 = vcvt.s32.f32 %v9166
  %v9231 = vcvt.s32.f32 %v9167
  %v9232 = vcvt.s32.f32 %v9168
  %v9233 = vcvt.s32.f32 %v9169
  %v9234 = vcvt.s32.f32 %v9170
  %v9235 = vcvt.s32.f32 %v9171
  %v9236 = vcvt.s32.f32 %v9172
  %v9237 = vcvt.s32.f32 %v9173
  %v9238 = vcvt.s32.f32 %v9174
  %v9239 = vcvt.s32.f32 %v9175
  %v9240 = vcvt.s32.f32 %v9176
  %v9241 = vcvt.s32.f32 %v9177
  %v9242 = vcvt.s32.f32 %v9178
  %v9243 = vpack.c.bf16 %v9181, %v9179
  %v9244 = vpack.c.bf16 %v9182, %v9180
  %v9245 = vpack.c.bf16 %v9185, %v9183
  %v9246 = vpack.c.bf16 %v9186, %v9184
  %v9247 = vpack.c.bf16 %v9189, %v9187
  %v9248 = vpack.c.bf16 %v9190, %v9188
  %v9249 = vpack.c.bf16 %v9193, %v9191
  %v9250 = vpack.c.bf16 %v9194, %v9192
  %v9251 = vpack.c.bf16 %v9197, %v9195
  %v9252 = vpack.c.bf16 %v9198, %v9196
  %v9253 = vpack.c.bf16 %v9201, %v9199
  %v9254 = vpack.c.bf16 %v9202, %v9200
  %v9255 = vpack.c.bf16 %v9205, %v9203
  %v9256 = vpack.c.bf16 %v9206, %v9204
  %v9257 = vpack.c.bf16 %v9209, %v9207
  %v9258 = vpack.c.bf16 %v9210, %v9208
  %v9259 = vpack.c.bf16 %v9213, %v9211
  %v9260 = vpack.c.bf16 %v9214, %v9212
  %v9261 = vpack.c.bf16 %v9217, %v9215
  %v9262 = vpack.c.bf16 %v9218, %v9216
  %v9263 = vpack.c.bf16 %v9221, %v9219
  %v9264 = vpack.c.bf16 %v9222, %v9220
  %v9265 = vpack.c.bf16 %v9225, %v9223
  %v9266 = vpack.c.bf16 %v9226, %v9224
  %v9267 = vpack.c.bf16 %v9229, %v9227
  %v9268 = vpack.c.bf16 %v9230, %v9228
  %v9269 = vpack.c.bf16 %v9233, %v9231
  %v9270 = vpack.c.bf16 %v9234, %v9232
  %v9271 = vpack.c.bf16 %v9237, %v9235
  %v9272 = vpack.c.bf16 %v9238, %v9236
  %v9273 = vpack.c.bf16 %v9241, %v9239
  %v9274 = vpack.c.bf16 %v9242, %v9240
  %v9275 = vadd.bf16 %v8923, %v9243
  %v9276 = vadd.bf16 %v8924, %v9244
  %v9277 = vadd.bf16 %v8925, %v9245
  %v9278 = vadd.bf16 %v8926, %v9246
  %v9279 = vadd.bf16 %v8927, %v9247
  %v9280 = vadd.bf16 %v8928, %v9248
  %v9281 = vadd.bf16 %v8929, %v9249
  %v9282 = vadd.bf16 %v8930, %v9250
  %v9283 = vadd.bf16 %v8931, %v9251
  %v9284 = vadd.bf16 %v8932, %v9252
  %v9285 = vadd.bf16 %v8933, %v9253
  %v9286 = vadd.bf16 %v8934, %v9254
  %v9287 = vadd.bf16 %v8935, %v9255
  %v9288 = vadd.bf16 %v8936, %v9256
  %v9289 = vadd.bf16 %v8937, %v9257
  %v9290 = vadd.bf16 %v8938, %v9258
  %v9291 = vadd.bf16 %v8939, %v9259
  %v9292 = vadd.bf16 %v8940, %v9260
  %v9293 = vadd.bf16 %v8941, %v9261
  %v9294 = vadd.bf16 %v8942, %v9262
  %v9295 = vadd.bf16 %v8943, %v9263
  %v9296 = vadd.bf16 %v8944, %v9264
  %v9297 = vadd.bf16 %v8945, %v9265
  %v9298 = vadd.bf16 %v8946, %v9266
  %v9299 = vadd.bf16 %v8947, %v9267
  %v9300 = vadd.bf16 %v8948, %v9268
  %v9301 = vadd.bf16 %v8949, %v9269
  %v9302 = vadd.bf16 %v8950, %v9270
  %v9303 = vadd.bf16 %v8951, %v9271
  %v9304 = vadd.bf16 %v8952, %v9272
  %v9305 = vadd.bf16 %v8953, %v9273
  %v9306 = vadd.bf16 %v8954, %v9274
  %9307 = vset.pattern.permute.xlu0 2
  %9308 = vperm.xlu0 %9307, %v8571
  %v9309 = vpop.permute.xlu0 %9308
  %9310 = vset.pattern.permute.xlu0 2
  %9311 = vperm.xlu0 %9310, %v8572
  %v9312 = vpop.permute.xlu0 %9311
  %9313 = vset.pattern.permute.xlu0 2
  %9314 = vperm.xlu0 %9313, %v8573
  %v9315 = vpop.permute.xlu0 %9314
  %9316 = vset.pattern.permute.xlu0 2
  %9317 = vperm.xlu0 %9316, %v8574
  %v9318 = vpop.permute.xlu0 %9317
  %9319 = vset.pattern.permute.xlu0 2
  %9320 = vperm.xlu0 %9319, %v8575
  %v9321 = vpop.permute.xlu0 %9320
  %9322 = vset.pattern.permute.xlu0 2
  %9323 = vperm.xlu0 %9322, %v8576
  %v9324 = vpop.permute.xlu0 %9323
  %9325 = vset.pattern.permute.xlu0 2
  %9326 = vperm.xlu0 %9325, %v8577
  %v9327 = vpop.permute.xlu0 %9326
  %9328 = vset.pattern.permute.xlu0 2
  %9329 = vperm.xlu0 %9328, %v8578
  %v9330 = vpop.permute.xlu0 %9329
  %9331 = vset.pattern.permute.xlu0 2
  %9332 = vperm.xlu0 %9331, %v8579
  %v9333 = vpop.permute.xlu0 %9332
  %9334 = vset.pattern.permute.xlu0 2
  %9335 = vperm.xlu0 %9334, %v8580
  %v9336 = vpop.permute.xlu0 %9335
  %9337 = vset.pattern.permute.xlu0 2
  %9338 = vperm.xlu0 %9337, %v8581
  %v9339 = vpop.permute.xlu0 %9338
  %9340 = vset.pattern.permute.xlu0 2
  %9341 = vperm.xlu0 %9340, %v8582
  %v9342 = vpop.permute.xlu0 %9341
  %9343 = vset.pattern.permute.xlu0 2
  %9344 = vperm.xlu0 %9343, %v8583
  %v9345 = vpop.permute.xlu0 %9344
  %9346 = vset.pattern.permute.xlu0 2
  %9347 = vperm.xlu0 %9346, %v8584
  %v9348 = vpop.permute.xlu0 %9347
  %9349 = vset.pattern.permute.xlu0 2
  %9350 = vperm.xlu0 %9349, %v8585
  %v9351 = vpop.permute.xlu0 %9350
  %9352 = vset.pattern.permute.xlu0 2
  %9353 = vperm.xlu0 %9352, %v8586
  %v9354 = vpop.permute.xlu0 %9353
  %9355 = vset.pattern.permute.xlu0 2
  %9356 = vperm.xlu0 %9355, %v8587
  %v9357 = vpop.permute.xlu0 %9356
  %9358 = vset.pattern.permute.xlu0 2
  %9359 = vperm.xlu0 %9358, %v8588
  %v9360 = vpop.permute.xlu0 %9359
  %9361 = vset.pattern.permute.xlu0 2
  %9362 = vperm.xlu0 %9361, %v8589
  %v9363 = vpop.permute.xlu0 %9362
  %9364 = vset.pattern.permute.xlu0 2
  %9365 = vperm.xlu0 %9364, %v8590
  %v9366 = vpop.permute.xlu0 %9365
  %9367 = vset.pattern.permute.xlu0 2
  %9368 = vperm.xlu0 %9367, %v8591
  %v9369 = vpop.permute.xlu0 %9368
  %9370 = vset.pattern.permute.xlu0 2
  %9371 = vperm.xlu0 %9370, %v8592
  %v9372 = vpop.permute.xlu0 %9371
  %9373 = vset.pattern.permute.xlu0 2
  %9374 = vperm.xlu0 %9373, %v8593
  %v9375 = vpop.permute.xlu0 %9374
  %9376 = vset.pattern.permute.xlu0 2
  %9377 = vperm.xlu0 %9376, %v8594
  %v9378 = vpop.permute.xlu0 %9377
  %9379 = vset.pattern.permute.xlu0 2
  %9380 = vperm.xlu0 %9379, %v8595
  %v9381 = vpop.permute.xlu0 %9380
  %9382 = vset.pattern.permute.xlu0 2
  %9383 = vperm.xlu0 %9382, %v8596
  %v9384 = vpop.permute.xlu0 %9383
  %9385 = vset.pattern.permute.xlu0 2
  %9386 = vperm.xlu0 %9385, %v8597
  %v9387 = vpop.permute.xlu0 %9386
  %9388 = vset.pattern.permute.xlu0 2
  %9389 = vperm.xlu0 %9388, %v8598
  %v9390 = vpop.permute.xlu0 %9389
  %9391 = vset.pattern.permute.xlu0 2
  %9392 = vperm.xlu0 %9391, %v8599
  %v9393 = vpop.permute.xlu0 %9392
  %9394 = vset.pattern.permute.xlu0 2
  %9395 = vperm.xlu0 %9394, %v8600
  %v9396 = vpop.permute.xlu0 %9395
  %9397 = vset.pattern.permute.xlu0 2
  %9398 = vperm.xlu0 %9397, %v8601
  %v9399 = vpop.permute.xlu0 %9398
  %9400 = vset.pattern.permute.xlu0 2
  %9401 = vperm.xlu0 %9400, %v8602
  %v9402 = vpop.permute.xlu0 %9401
  %vm9403 = vcmp.eq.s32.totalorder %v9309, %v337
  %vm9404 = vcmp.eq.s32.totalorder %v9309, %v338
  %vm9405 = vcmp.eq.s32.totalorder %v9312, %v337
  %vm9406 = vcmp.eq.s32.totalorder %v9312, %v338
  %vm9407 = vcmp.eq.s32.totalorder %v9315, %v337
  %vm9408 = vcmp.eq.s32.totalorder %v9315, %v338
  %vm9409 = vcmp.eq.s32.totalorder %v9318, %v337
  %vm9410 = vcmp.eq.s32.totalorder %v9318, %v338
  %vm9411 = vcmp.eq.s32.totalorder %v9321, %v337
  %vm9412 = vcmp.eq.s32.totalorder %v9321, %v338
  %vm9413 = vcmp.eq.s32.totalorder %v9324, %v337
  %vm9414 = vcmp.eq.s32.totalorder %v9324, %v338
  %vm9415 = vcmp.eq.s32.totalorder %v9327, %v337
  %vm9416 = vcmp.eq.s32.totalorder %v9327, %v338
  %vm9417 = vcmp.eq.s32.totalorder %v9330, %v337
  %vm9418 = vcmp.eq.s32.totalorder %v9330, %v338
  %vm9419 = vcmp.eq.s32.totalorder %v9333, %v337
  %vm9420 = vcmp.eq.s32.totalorder %v9333, %v338
  %vm9421 = vcmp.eq.s32.totalorder %v9336, %v337
  %vm9422 = vcmp.eq.s32.totalorder %v9336, %v338
  %vm9423 = vcmp.eq.s32.totalorder %v9339, %v337
  %vm9424 = vcmp.eq.s32.totalorder %v9339, %v338
  %vm9425 = vcmp.eq.s32.totalorder %v9342, %v337
  %vm9426 = vcmp.eq.s32.totalorder %v9342, %v338
  %vm9427 = vcmp.eq.s32.totalorder %v9345, %v337
  %vm9428 = vcmp.eq.s32.totalorder %v9345, %v338
  %vm9429 = vcmp.eq.s32.totalorder %v9348, %v337
  %vm9430 = vcmp.eq.s32.totalorder %v9348, %v338
  %vm9431 = vcmp.eq.s32.totalorder %v9351, %v337
  %vm9432 = vcmp.eq.s32.totalorder %v9351, %v338
  %vm9433 = vcmp.eq.s32.totalorder %v9354, %v337
  %vm9434 = vcmp.eq.s32.totalorder %v9354, %v338
  %vm9435 = vcmp.eq.s32.totalorder %v9357, %v337
  %vm9436 = vcmp.eq.s32.totalorder %v9357, %v338
  %vm9437 = vcmp.eq.s32.totalorder %v9360, %v337
  %vm9438 = vcmp.eq.s32.totalorder %v9360, %v338
  %vm9439 = vcmp.eq.s32.totalorder %v9363, %v337
  %vm9440 = vcmp.eq.s32.totalorder %v9363, %v338
  %vm9441 = vcmp.eq.s32.totalorder %v9366, %v337
  %vm9442 = vcmp.eq.s32.totalorder %v9366, %v338
  %vm9443 = vcmp.eq.s32.totalorder %v9369, %v337
  %vm9444 = vcmp.eq.s32.totalorder %v9369, %v338
  %vm9445 = vcmp.eq.s32.totalorder %v9372, %v337
  %vm9446 = vcmp.eq.s32.totalorder %v9372, %v338
  %vm9447 = vcmp.eq.s32.totalorder %v9375, %v337
  %vm9448 = vcmp.eq.s32.totalorder %v9375, %v338
  %vm9449 = vcmp.eq.s32.totalorder %v9378, %v337
  %vm9450 = vcmp.eq.s32.totalorder %v9378, %v338
  %vm9451 = vcmp.eq.s32.totalorder %v9381, %v337
  %vm9452 = vcmp.eq.s32.totalorder %v9381, %v338
  %vm9453 = vcmp.eq.s32.totalorder %v9384, %v337
  %vm9454 = vcmp.eq.s32.totalorder %v9384, %v338
  %vm9455 = vcmp.eq.s32.totalorder %v9387, %v337
  %vm9456 = vcmp.eq.s32.totalorder %v9387, %v338
  %vm9457 = vcmp.eq.s32.totalorder %v9390, %v337
  %vm9458 = vcmp.eq.s32.totalorder %v9390, %v338
  %vm9459 = vcmp.eq.s32.totalorder %v9393, %v337
  %vm9460 = vcmp.eq.s32.totalorder %v9393, %v338
  %vm9461 = vcmp.eq.s32.totalorder %v9396, %v337
  %vm9462 = vcmp.eq.s32.totalorder %v9396, %v338
  %vm9463 = vcmp.eq.s32.totalorder %v9399, %v337
  %vm9464 = vcmp.eq.s32.totalorder %v9399, %v338
  %vm9465 = vcmp.eq.s32.totalorder %v9402, %v337
  %vm9466 = vcmp.eq.s32.totalorder %v9402, %v338
  %v9467 = vsel %vm9403, 1, 0
  %v9468 = vsel %vm9404, 1, 0
  %v9469 = vsel %vm9405, 1, 0
  %v9470 = vsel %vm9406, 1, 0
  %v9471 = vsel %vm9407, 1, 0
  %v9472 = vsel %vm9408, 1, 0
  %v9473 = vsel %vm9409, 1, 0
  %v9474 = vsel %vm9410, 1, 0
  %v9475 = vsel %vm9411, 1, 0
  %v9476 = vsel %vm9412, 1, 0
  %v9477 = vsel %vm9413, 1, 0
  %v9478 = vsel %vm9414, 1, 0
  %v9479 = vsel %vm9415, 1, 0
  %v9480 = vsel %vm9416, 1, 0
  %v9481 = vsel %vm9417, 1, 0
  %v9482 = vsel %vm9418, 1, 0
  %v9483 = vsel %vm9419, 1, 0
  %v9484 = vsel %vm9420, 1, 0
  %v9485 = vsel %vm9421, 1, 0
  %v9486 = vsel %vm9422, 1, 0
  %v9487 = vsel %vm9423, 1, 0
  %v9488 = vsel %vm9424, 1, 0
  %v9489 = vsel %vm9425, 1, 0
  %v9490 = vsel %vm9426, 1, 0
  %v9491 = vsel %vm9427, 1, 0
  %v9492 = vsel %vm9428, 1, 0
  %v9493 = vsel %vm9429, 1, 0
  %v9494 = vsel %vm9430, 1, 0
  %v9495 = vsel %vm9431, 1, 0
  %v9496 = vsel %vm9432, 1, 0
  %v9497 = vsel %vm9433, 1, 0
  %v9498 = vsel %vm9434, 1, 0
  %v9499 = vsel %vm9435, 1, 0
  %v9500 = vsel %vm9436, 1, 0
  %v9501 = vsel %vm9437, 1, 0
  %v9502 = vsel %vm9438, 1, 0
  %v9503 = vsel %vm9439, 1, 0
  %v9504 = vsel %vm9440, 1, 0
  %v9505 = vsel %vm9441, 1, 0
  %v9506 = vsel %vm9442, 1, 0
  %v9507 = vsel %vm9443, 1, 0
  %v9508 = vsel %vm9444, 1, 0
  %v9509 = vsel %vm9445, 1, 0
  %v9510 = vsel %vm9446, 1, 0
  %v9511 = vsel %vm9447, 1, 0
  %v9512 = vsel %vm9448, 1, 0
  %v9513 = vsel %vm9449, 1, 0
  %v9514 = vsel %vm9450, 1, 0
  %v9515 = vsel %vm9451, 1, 0
  %v9516 = vsel %vm9452, 1, 0
  %v9517 = vsel %vm9453, 1, 0
  %v9518 = vsel %vm9454, 1, 0
  %v9519 = vsel %vm9455, 1, 0
  %v9520 = vsel %vm9456, 1, 0
  %v9521 = vsel %vm9457, 1, 0
  %v9522 = vsel %vm9458, 1, 0
  %v9523 = vsel %vm9459, 1, 0
  %v9524 = vsel %vm9460, 1, 0
  %v9525 = vsel %vm9461, 1, 0
  %v9526 = vsel %vm9462, 1, 0
  %v9527 = vsel %vm9463, 1, 0
  %v9528 = vsel %vm9464, 1, 0
  %v9529 = vsel %vm9465, 1, 0
  %v9530 = vsel %vm9466, 1, 0
  %v9531 = vcvt.s32.f32 %v9467
  %v9532 = vcvt.s32.f32 %v9468
  %v9533 = vcvt.s32.f32 %v9469
  %v9534 = vcvt.s32.f32 %v9470
  %v9535 = vcvt.s32.f32 %v9471
  %v9536 = vcvt.s32.f32 %v9472
  %v9537 = vcvt.s32.f32 %v9473
  %v9538 = vcvt.s32.f32 %v9474
  %v9539 = vcvt.s32.f32 %v9475
  %v9540 = vcvt.s32.f32 %v9476
  %v9541 = vcvt.s32.f32 %v9477
  %v9542 = vcvt.s32.f32 %v9478
  %v9543 = vcvt.s32.f32 %v9479
  %v9544 = vcvt.s32.f32 %v9480
  %v9545 = vcvt.s32.f32 %v9481
  %v9546 = vcvt.s32.f32 %v9482
  %v9547 = vcvt.s32.f32 %v9483
  %v9548 = vcvt.s32.f32 %v9484
  %v9549 = vcvt.s32.f32 %v9485
  %v9550 = vcvt.s32.f32 %v9486
  %v9551 = vcvt.s32.f32 %v9487
  %v9552 = vcvt.s32.f32 %v9488
  %v9553 = vcvt.s32.f32 %v9489
  %v9554 = vcvt.s32.f32 %v9490
  %v9555 = vcvt.s32.f32 %v9491
  %v9556 = vcvt.s32.f32 %v9492
  %v9557 = vcvt.s32.f32 %v9493
  %v9558 = vcvt.s32.f32 %v9494
  %v9559 = vcvt.s32.f32 %v9495
  %v9560 = vcvt.s32.f32 %v9496
  %v9561 = vcvt.s32.f32 %v9497
  %v9562 = vcvt.s32.f32 %v9498
  %v9563 = vcvt.s32.f32 %v9499
  %v9564 = vcvt.s32.f32 %v9500
  %v9565 = vcvt.s32.f32 %v9501
  %v9566 = vcvt.s32.f32 %v9502
  %v9567 = vcvt.s32.f32 %v9503
  %v9568 = vcvt.s32.f32 %v9504
  %v9569 = vcvt.s32.f32 %v9505
  %v9570 = vcvt.s32.f32 %v9506
  %v9571 = vcvt.s32.f32 %v9507
  %v9572 = vcvt.s32.f32 %v9508
  %v9573 = vcvt.s32.f32 %v9509
  %v9574 = vcvt.s32.f32 %v9510
  %v9575 = vcvt.s32.f32 %v9511
  %v9576 = vcvt.s32.f32 %v9512
  %v9577 = vcvt.s32.f32 %v9513
  %v9578 = vcvt.s32.f32 %v9514
  %v9579 = vcvt.s32.f32 %v9515
  %v9580 = vcvt.s32.f32 %v9516
  %v9581 = vcvt.s32.f32 %v9517
  %v9582 = vcvt.s32.f32 %v9518
  %v9583 = vcvt.s32.f32 %v9519
  %v9584 = vcvt.s32.f32 %v9520
  %v9585 = vcvt.s32.f32 %v9521
  %v9586 = vcvt.s32.f32 %v9522
  %v9587 = vcvt.s32.f32 %v9523
  %v9588 = vcvt.s32.f32 %v9524
  %v9589 = vcvt.s32.f32 %v9525
  %v9590 = vcvt.s32.f32 %v9526
  %v9591 = vcvt.s32.f32 %v9527
  %v9592 = vcvt.s32.f32 %v9528
  %v9593 = vcvt.s32.f32 %v9529
  %v9594 = vcvt.s32.f32 %v9530
  %v9595 = vpack.c.bf16 %v9533, %v9531
  %v9596 = vpack.c.bf16 %v9534, %v9532
  %v9597 = vpack.c.bf16 %v9537, %v9535
  %v9598 = vpack.c.bf16 %v9538, %v9536
  %v9599 = vpack.c.bf16 %v9541, %v9539
  %v9600 = vpack.c.bf16 %v9542, %v9540
  %v9601 = vpack.c.bf16 %v9545, %v9543
  %v9602 = vpack.c.bf16 %v9546, %v9544
  %v9603 = vpack.c.bf16 %v9549, %v9547
  %v9604 = vpack.c.bf16 %v9550, %v9548
  %v9605 = vpack.c.bf16 %v9553, %v9551
  %v9606 = vpack.c.bf16 %v9554, %v9552
  %v9607 = vpack.c.bf16 %v9557, %v9555
  %v9608 = vpack.c.bf16 %v9558, %v9556
  %v9609 = vpack.c.bf16 %v9561, %v9559
  %v9610 = vpack.c.bf16 %v9562, %v9560
  %v9611 = vpack.c.bf16 %v9565, %v9563
  %v9612 = vpack.c.bf16 %v9566, %v9564
  %v9613 = vpack.c.bf16 %v9569, %v9567
  %v9614 = vpack.c.bf16 %v9570, %v9568
  %v9615 = vpack.c.bf16 %v9573, %v9571
  %v9616 = vpack.c.bf16 %v9574, %v9572
  %v9617 = vpack.c.bf16 %v9577, %v9575
  %v9618 = vpack.c.bf16 %v9578, %v9576
  %v9619 = vpack.c.bf16 %v9581, %v9579
  %v9620 = vpack.c.bf16 %v9582, %v9580
  %v9621 = vpack.c.bf16 %v9585, %v9583
  %v9622 = vpack.c.bf16 %v9586, %v9584
  %v9623 = vpack.c.bf16 %v9589, %v9587
  %v9624 = vpack.c.bf16 %v9590, %v9588
  %v9625 = vpack.c.bf16 %v9593, %v9591
  %v9626 = vpack.c.bf16 %v9594, %v9592
  %v9627 = vadd.bf16 %v9275, %v9595
  %v9628 = vadd.bf16 %v9276, %v9596
  %v9629 = vadd.bf16 %v9277, %v9597
  %v9630 = vadd.bf16 %v9278, %v9598
  %v9631 = vadd.bf16 %v9279, %v9599
  %v9632 = vadd.bf16 %v9280, %v9600
  %v9633 = vadd.bf16 %v9281, %v9601
  %v9634 = vadd.bf16 %v9282, %v9602
  %v9635 = vadd.bf16 %v9283, %v9603
  %v9636 = vadd.bf16 %v9284, %v9604
  %v9637 = vadd.bf16 %v9285, %v9605
  %v9638 = vadd.bf16 %v9286, %v9606
  %v9639 = vadd.bf16 %v9287, %v9607
  %v9640 = vadd.bf16 %v9288, %v9608
  %v9641 = vadd.bf16 %v9289, %v9609
  %v9642 = vadd.bf16 %v9290, %v9610
  %v9643 = vadd.bf16 %v9291, %v9611
  %v9644 = vadd.bf16 %v9292, %v9612
  %v9645 = vadd.bf16 %v9293, %v9613
  %v9646 = vadd.bf16 %v9294, %v9614
  %v9647 = vadd.bf16 %v9295, %v9615
  %v9648 = vadd.bf16 %v9296, %v9616
  %v9649 = vadd.bf16 %v9297, %v9617
  %v9650 = vadd.bf16 %v9298, %v9618
  %v9651 = vadd.bf16 %v9299, %v9619
  %v9652 = vadd.bf16 %v9300, %v9620
  %v9653 = vadd.bf16 %v9301, %v9621
  %v9654 = vadd.bf16 %v9302, %v9622
  %v9655 = vadd.bf16 %v9303, %v9623
  %v9656 = vadd.bf16 %v9304, %v9624
  %v9657 = vadd.bf16 %v9305, %v9625
  %v9658 = vadd.bf16 %v9306, %v9626
  %9659 = vset.pattern.permute.xlu0 3
  %9660 = vperm.xlu0 %9659, %v8571
  %v9661 = vpop.permute.xlu0 %9660
  %9662 = vset.pattern.permute.xlu0 3
  %9663 = vperm.xlu0 %9662, %v8572
  %v9664 = vpop.permute.xlu0 %9663
  %9665 = vset.pattern.permute.xlu0 3
  %9666 = vperm.xlu0 %9665, %v8573
  %v9667 = vpop.permute.xlu0 %9666
  %9668 = vset.pattern.permute.xlu0 3
  %9669 = vperm.xlu0 %9668, %v8574
  %v9670 = vpop.permute.xlu0 %9669
  %9671 = vset.pattern.permute.xlu0 3
  %9672 = vperm.xlu0 %9671, %v8575
  %v9673 = vpop.permute.xlu0 %9672
  %9674 = vset.pattern.permute.xlu0 3
  %9675 = vperm.xlu0 %9674, %v8576
  %v9676 = vpop.permute.xlu0 %9675
  %9677 = vset.pattern.permute.xlu0 3
  %9678 = vperm.xlu0 %9677, %v8577
  %v9679 = vpop.permute.xlu0 %9678
  %9680 = vset.pattern.permute.xlu0 3
  %9681 = vperm.xlu0 %9680, %v8578
  %v9682 = vpop.permute.xlu0 %9681
  %9683 = vset.pattern.permute.xlu0 3
  %9684 = vperm.xlu0 %9683, %v8579
  %v9685 = vpop.permute.xlu0 %9684
  %9686 = vset.pattern.permute.xlu0 3
  %9687 = vperm.xlu0 %9686, %v8580
  %v9688 = vpop.permute.xlu0 %9687
  %9689 = vset.pattern.permute.xlu0 3
  %9690 = vperm.xlu0 %9689, %v8581
  %v9691 = vpop.permute.xlu0 %9690
  %9692 = vset.pattern.permute.xlu0 3
  %9693 = vperm.xlu0 %9692, %v8582
  %v9694 = vpop.permute.xlu0 %9693
  %9695 = vset.pattern.permute.xlu0 3
  %9696 = vperm.xlu0 %9695, %v8583
  %v9697 = vpop.permute.xlu0 %9696
  %9698 = vset.pattern.permute.xlu0 3
  %9699 = vperm.xlu0 %9698, %v8584
  %v9700 = vpop.permute.xlu0 %9699
  %9701 = vset.pattern.permute.xlu0 3
  %9702 = vperm.xlu0 %9701, %v8585
  %v9703 = vpop.permute.xlu0 %9702
  %9704 = vset.pattern.permute.xlu0 3
  %9705 = vperm.xlu0 %9704, %v8586
  %v9706 = vpop.permute.xlu0 %9705
  %9707 = vset.pattern.permute.xlu0 3
  %9708 = vperm.xlu0 %9707, %v8587
  %v9709 = vpop.permute.xlu0 %9708
  %9710 = vset.pattern.permute.xlu0 3
  %9711 = vperm.xlu0 %9710, %v8588
  %v9712 = vpop.permute.xlu0 %9711
  %9713 = vset.pattern.permute.xlu0 3
  %9714 = vperm.xlu0 %9713, %v8589
  %v9715 = vpop.permute.xlu0 %9714
  %9716 = vset.pattern.permute.xlu0 3
  %9717 = vperm.xlu0 %9716, %v8590
  %v9718 = vpop.permute.xlu0 %9717
  %9719 = vset.pattern.permute.xlu0 3
  %9720 = vperm.xlu0 %9719, %v8591
  %v9721 = vpop.permute.xlu0 %9720
  %9722 = vset.pattern.permute.xlu0 3
  %9723 = vperm.xlu0 %9722, %v8592
  %v9724 = vpop.permute.xlu0 %9723
  %9725 = vset.pattern.permute.xlu0 3
  %9726 = vperm.xlu0 %9725, %v8593
  %v9727 = vpop.permute.xlu0 %9726
  %9728 = vset.pattern.permute.xlu0 3
  %9729 = vperm.xlu0 %9728, %v8594
  %v9730 = vpop.permute.xlu0 %9729
  %9731 = vset.pattern.permute.xlu0 3
  %9732 = vperm.xlu0 %9731, %v8595
  %v9733 = vpop.permute.xlu0 %9732
  %9734 = vset.pattern.permute.xlu0 3
  %9735 = vperm.xlu0 %9734, %v8596
  %v9736 = vpop.permute.xlu0 %9735
  %9737 = vset.pattern.permute.xlu0 3
  %9738 = vperm.xlu0 %9737, %v8597
  %v9739 = vpop.permute.xlu0 %9738
  %9740 = vset.pattern.permute.xlu0 3
  %9741 = vperm.xlu0 %9740, %v8598
  %v9742 = vpop.permute.xlu0 %9741
  %9743 = vset.pattern.permute.xlu0 3
  %9744 = vperm.xlu0 %9743, %v8599
  %v9745 = vpop.permute.xlu0 %9744
  %9746 = vset.pattern.permute.xlu0 3
  %9747 = vperm.xlu0 %9746, %v8600
  %v9748 = vpop.permute.xlu0 %9747
  %9749 = vset.pattern.permute.xlu0 3
  %9750 = vperm.xlu0 %9749, %v8601
  %v9751 = vpop.permute.xlu0 %9750
  %9752 = vset.pattern.permute.xlu0 3
  %9753 = vperm.xlu0 %9752, %v8602
  %v9754 = vpop.permute.xlu0 %9753
  %vm9755 = vcmp.eq.s32.totalorder %v9661, %v337
  %vm9756 = vcmp.eq.s32.totalorder %v9661, %v338
  %vm9757 = vcmp.eq.s32.totalorder %v9664, %v337
  %vm9758 = vcmp.eq.s32.totalorder %v9664, %v338
  %vm9759 = vcmp.eq.s32.totalorder %v9667, %v337
  %vm9760 = vcmp.eq.s32.totalorder %v9667, %v338
  %vm9761 = vcmp.eq.s32.totalorder %v9670, %v337
  %vm9762 = vcmp.eq.s32.totalorder %v9670, %v338
  %vm9763 = vcmp.eq.s32.totalorder %v9673, %v337
  %vm9764 = vcmp.eq.s32.totalorder %v9673, %v338
  %vm9765 = vcmp.eq.s32.totalorder %v9676, %v337
  %vm9766 = vcmp.eq.s32.totalorder %v9676, %v338
  %vm9767 = vcmp.eq.s32.totalorder %v9679, %v337
  %vm9768 = vcmp.eq.s32.totalorder %v9679, %v338
  %vm9769 = vcmp.eq.s32.totalorder %v9682, %v337
  %vm9770 = vcmp.eq.s32.totalorder %v9682, %v338
  %vm9771 = vcmp.eq.s32.totalorder %v9685, %v337
  %vm9772 = vcmp.eq.s32.totalorder %v9685, %v338
  %vm9773 = vcmp.eq.s32.totalorder %v9688, %v337
  %vm9774 = vcmp.eq.s32.totalorder %v9688, %v338
  %vm9775 = vcmp.eq.s32.totalorder %v9691, %v337
  %vm9776 = vcmp.eq.s32.totalorder %v9691, %v338
  %vm9777 = vcmp.eq.s32.totalorder %v9694, %v337
  %vm9778 = vcmp.eq.s32.totalorder %v9694, %v338
  %vm9779 = vcmp.eq.s32.totalorder %v9697, %v337
  %vm9780 = vcmp.eq.s32.totalorder %v9697, %v338
  %vm9781 = vcmp.eq.s32.totalorder %v9700, %v337
  %vm9782 = vcmp.eq.s32.totalorder %v9700, %v338
  %vm9783 = vcmp.eq.s32.totalorder %v9703, %v337
  %vm9784 = vcmp.eq.s32.totalorder %v9703, %v338
  %vm9785 = vcmp.eq.s32.totalorder %v9706, %v337
  %vm9786 = vcmp.eq.s32.totalorder %v9706, %v338
  %vm9787 = vcmp.eq.s32.totalorder %v9709, %v337
  %vm9788 = vcmp.eq.s32.totalorder %v9709, %v338
  %vm9789 = vcmp.eq.s32.totalorder %v9712, %v337
  %vm9790 = vcmp.eq.s32.totalorder %v9712, %v338
  %vm9791 = vcmp.eq.s32.totalorder %v9715, %v337
  %vm9792 = vcmp.eq.s32.totalorder %v9715, %v338
  %vm9793 = vcmp.eq.s32.totalorder %v9718, %v337
  %vm9794 = vcmp.eq.s32.totalorder %v9718, %v338
  %vm9795 = vcmp.eq.s32.totalorder %v9721, %v337
  %vm9796 = vcmp.eq.s32.totalorder %v9721, %v338
  %vm9797 = vcmp.eq.s32.totalorder %v9724, %v337
  %vm9798 = vcmp.eq.s32.totalorder %v9724, %v338
  %vm9799 = vcmp.eq.s32.totalorder %v9727, %v337
  %vm9800 = vcmp.eq.s32.totalorder %v9727, %v338
  %vm9801 = vcmp.eq.s32.totalorder %v9730, %v337
  %vm9802 = vcmp.eq.s32.totalorder %v9730, %v338
  %vm9803 = vcmp.eq.s32.totalorder %v9733, %v337
  %vm9804 = vcmp.eq.s32.totalorder %v9733, %v338
  %vm9805 = vcmp.eq.s32.totalorder %v9736, %v337
  %vm9806 = vcmp.eq.s32.totalorder %v9736, %v338
  %vm9807 = vcmp.eq.s32.totalorder %v9739, %v337
  %vm9808 = vcmp.eq.s32.totalorder %v9739, %v338
  %vm9809 = vcmp.eq.s32.totalorder %v9742, %v337
  %vm9810 = vcmp.eq.s32.totalorder %v9742, %v338
  %vm9811 = vcmp.eq.s32.totalorder %v9745, %v337
  %vm9812 = vcmp.eq.s32.totalorder %v9745, %v338
  %vm9813 = vcmp.eq.s32.totalorder %v9748, %v337
  %vm9814 = vcmp.eq.s32.totalorder %v9748, %v338
  %vm9815 = vcmp.eq.s32.totalorder %v9751, %v337
  %vm9816 = vcmp.eq.s32.totalorder %v9751, %v338
  %vm9817 = vcmp.eq.s32.totalorder %v9754, %v337
  %vm9818 = vcmp.eq.s32.totalorder %v9754, %v338
  %v9819 = vsel %vm9755, 1, 0
  %v9820 = vsel %vm9756, 1, 0
  %v9821 = vsel %vm9757, 1, 0
  %v9822 = vsel %vm9758, 1, 0
  %v9823 = vsel %vm9759, 1, 0
  %v9824 = vsel %vm9760, 1, 0
  %v9825 = vsel %vm9761, 1, 0
  %v9826 = vsel %vm9762, 1, 0
  %v9827 = vsel %vm9763, 1, 0
  %v9828 = vsel %vm9764, 1, 0
  %v9829 = vsel %vm9765, 1, 0
  %v9830 = vsel %vm9766, 1, 0
  %v9831 = vsel %vm9767, 1, 0
  %v9832 = vsel %vm9768, 1, 0
  %v9833 = vsel %vm9769, 1, 0
  %v9834 = vsel %vm9770, 1, 0
  %v9835 = vsel %vm9771, 1, 0
  %v9836 = vsel %vm9772, 1, 0
  %v9837 = vsel %vm9773, 1, 0
  %v9838 = vsel %vm9774, 1, 0
  %v9839 = vsel %vm9775, 1, 0
  %v9840 = vsel %vm9776, 1, 0
  %v9841 = vsel %vm9777, 1, 0
  %v9842 = vsel %vm9778, 1, 0
  %v9843 = vsel %vm9779, 1, 0
  %v9844 = vsel %vm9780, 1, 0
  %v9845 = vsel %vm9781, 1, 0
  %v9846 = vsel %vm9782, 1, 0
  %v9847 = vsel %vm9783, 1, 0
  %v9848 = vsel %vm9784, 1, 0
  %v9849 = vsel %vm9785, 1, 0
  %v9850 = vsel %vm9786, 1, 0
  %v9851 = vsel %vm9787, 1, 0
  %v9852 = vsel %vm9788, 1, 0
  %v9853 = vsel %vm9789, 1, 0
  %v9854 = vsel %vm9790, 1, 0
  %v9855 = vsel %vm9791, 1, 0
  %v9856 = vsel %vm9792, 1, 0
  %v9857 = vsel %vm9793, 1, 0
  %v9858 = vsel %vm9794, 1, 0
  %v9859 = vsel %vm9795, 1, 0
  %v9860 = vsel %vm9796, 1, 0
  %v9861 = vsel %vm9797, 1, 0
  %v9862 = vsel %vm9798, 1, 0
  %v9863 = vsel %vm9799, 1, 0
  %v9864 = vsel %vm9800, 1, 0
  %v9865 = vsel %vm9801, 1, 0
  %v9866 = vsel %vm9802, 1, 0
  %v9867 = vsel %vm9803, 1, 0
  %v9868 = vsel %vm9804, 1, 0
  %v9869 = vsel %vm9805, 1, 0
  %v9870 = vsel %vm9806, 1, 0
  %v9871 = vsel %vm9807, 1, 0
  %v9872 = vsel %vm9808, 1, 0
  %v9873 = vsel %vm9809, 1, 0
  %v9874 = vsel %vm9810, 1, 0
  %v9875 = vsel %vm9811, 1, 0
  %v9876 = vsel %vm9812, 1, 0
  %v9877 = vsel %vm9813, 1, 0
  %v9878 = vsel %vm9814, 1, 0
  %v9879 = vsel %vm9815, 1, 0
  %v9880 = vsel %vm9816, 1, 0
  %v9881 = vsel %vm9817, 1, 0
  %v9882 = vsel %vm9818, 1, 0
  %v9883 = vcvt.s32.f32 %v9819
  %v9884 = vcvt.s32.f32 %v9820
  %v9885 = vcvt.s32.f32 %v9821
  %v9886 = vcvt.s32.f32 %v9822
  %v9887 = vcvt.s32.f32 %v9823
  %v9888 = vcvt.s32.f32 %v9824
  %v9889 = vcvt.s32.f32 %v9825
  %v9890 = vcvt.s32.f32 %v9826
  %v9891 = vcvt.s32.f32 %v9827
  %v9892 = vcvt.s32.f32 %v9828
  %v9893 = vcvt.s32.f32 %v9829
  %v9894 = vcvt.s32.f32 %v9830
  %v9895 = vcvt.s32.f32 %v9831
  %v9896 = vcvt.s32.f32 %v9832
  %v9897 = vcvt.s32.f32 %v9833
  %v9898 = vcvt.s32.f32 %v9834
  %v9899 = vcvt.s32.f32 %v9835
  %v9900 = vcvt.s32.f32 %v9836
  %v9901 = vcvt.s32.f32 %v9837
  %v9902 = vcvt.s32.f32 %v9838
  %v9903 = vcvt.s32.f32 %v9839
  %v9904 = vcvt.s32.f32 %v9840
  %v9905 = vcvt.s32.f32 %v9841
  %v9906 = vcvt.s32.f32 %v9842
  %v9907 = vcvt.s32.f32 %v9843
  %v9908 = vcvt.s32.f32 %v9844
  %v9909 = vcvt.s32.f32 %v9845
  %v9910 = vcvt.s32.f32 %v9846
  %v9911 = vcvt.s32.f32 %v9847
  %v9912 = vcvt.s32.f32 %v9848
  %v9913 = vcvt.s32.f32 %v9849
  %v9914 = vcvt.s32.f32 %v9850
  %v9915 = vcvt.s32.f32 %v9851
  %v9916 = vcvt.s32.f32 %v9852
  %v9917 = vcvt.s32.f32 %v9853
  %v9918 = vcvt.s32.f32 %v9854
  %v9919 = vcvt.s32.f32 %v9855
  %v9920 = vcvt.s32.f32 %v9856
  %v9921 = vcvt.s32.f32 %v9857
  %v9922 = vcvt.s32.f32 %v9858
  %v9923 = vcvt.s32.f32 %v9859
  %v9924 = vcvt.s32.f32 %v9860
  %v9925 = vcvt.s32.f32 %v9861
  %v9926 = vcvt.s32.f32 %v9862
  %v9927 = vcvt.s32.f32 %v9863
  %v9928 = vcvt.s32.f32 %v9864
  %v9929 = vcvt.s32.f32 %v9865
  %v9930 = vcvt.s32.f32 %v9866
  %v9931 = vcvt.s32.f32 %v9867
  %v9932 = vcvt.s32.f32 %v9868
  %v9933 = vcvt.s32.f32 %v9869
  %v9934 = vcvt.s32.f32 %v9870
  %v9935 = vcvt.s32.f32 %v9871
  %v9936 = vcvt.s32.f32 %v9872
  %v9937 = vcvt.s32.f32 %v9873
  %v9938 = vcvt.s32.f32 %v9874
  %v9939 = vcvt.s32.f32 %v9875
  %v9940 = vcvt.s32.f32 %v9876
  %v9941 = vcvt.s32.f32 %v9877
  %v9942 = vcvt.s32.f32 %v9878
  %v9943 = vcvt.s32.f32 %v9879
  %v9944 = vcvt.s32.f32 %v9880
  %v9945 = vcvt.s32.f32 %v9881
  %v9946 = vcvt.s32.f32 %v9882
  %v9947 = vpack.c.bf16 %v9885, %v9883
  %v9948 = vpack.c.bf16 %v9886, %v9884
  %v9949 = vpack.c.bf16 %v9889, %v9887
  %v9950 = vpack.c.bf16 %v9890, %v9888
  %v9951 = vpack.c.bf16 %v9893, %v9891
  %v9952 = vpack.c.bf16 %v9894, %v9892
  %v9953 = vpack.c.bf16 %v9897, %v9895
  %v9954 = vpack.c.bf16 %v9898, %v9896
  %v9955 = vpack.c.bf16 %v9901, %v9899
  %v9956 = vpack.c.bf16 %v9902, %v9900
  %v9957 = vpack.c.bf16 %v9905, %v9903
  %v9958 = vpack.c.bf16 %v9906, %v9904
  %v9959 = vpack.c.bf16 %v9909, %v9907
  %v9960 = vpack.c.bf16 %v9910, %v9908
  %v9961 = vpack.c.bf16 %v9913, %v9911
  %v9962 = vpack.c.bf16 %v9914, %v9912
  %v9963 = vpack.c.bf16 %v9917, %v9915
  %v9964 = vpack.c.bf16 %v9918, %v9916
  %v9965 = vpack.c.bf16 %v9921, %v9919
  %v9966 = vpack.c.bf16 %v9922, %v9920
  %v9967 = vpack.c.bf16 %v9925, %v9923
  %v9968 = vpack.c.bf16 %v9926, %v9924
  %v9969 = vpack.c.bf16 %v9929, %v9927
  %v9970 = vpack.c.bf16 %v9930, %v9928
  %v9971 = vpack.c.bf16 %v9933, %v9931
  %v9972 = vpack.c.bf16 %v9934, %v9932
  %v9973 = vpack.c.bf16 %v9937, %v9935
  %v9974 = vpack.c.bf16 %v9938, %v9936
  %v9975 = vpack.c.bf16 %v9941, %v9939
  %v9976 = vpack.c.bf16 %v9942, %v9940
  %v9977 = vpack.c.bf16 %v9945, %v9943
  %v9978 = vpack.c.bf16 %v9946, %v9944
  %v9979 = vadd.bf16 %v9627, %v9947
  %v9980 = vadd.bf16 %v9628, %v9948
  %v9981 = vadd.bf16 %v9629, %v9949
  %v9982 = vadd.bf16 %v9630, %v9950
  %v9983 = vadd.bf16 %v9631, %v9951
  %v9984 = vadd.bf16 %v9632, %v9952
  %v9985 = vadd.bf16 %v9633, %v9953
  %v9986 = vadd.bf16 %v9634, %v9954
  %v9987 = vadd.bf16 %v9635, %v9955
  %v9988 = vadd.bf16 %v9636, %v9956
  %v9989 = vadd.bf16 %v9637, %v9957
  %v9990 = vadd.bf16 %v9638, %v9958
  %v9991 = vadd.bf16 %v9639, %v9959
  %v9992 = vadd.bf16 %v9640, %v9960
  %v9993 = vadd.bf16 %v9641, %v9961
  %v9994 = vadd.bf16 %v9642, %v9962
  %v9995 = vadd.bf16 %v9643, %v9963
  %v9996 = vadd.bf16 %v9644, %v9964
  %v9997 = vadd.bf16 %v9645, %v9965
  %v9998 = vadd.bf16 %v9646, %v9966
  %v9999 = vadd.bf16 %v9647, %v9967
  %v10000 = vadd.bf16 %v9648, %v9968
  %v10001 = vadd.bf16 %v9649, %v9969
  %v10002 = vadd.bf16 %v9650, %v9970
  %v10003 = vadd.bf16 %v9651, %v9971
  %v10004 = vadd.bf16 %v9652, %v9972
  %v10005 = vadd.bf16 %v9653, %v9973
  %v10006 = vadd.bf16 %v9654, %v9974
  %v10007 = vadd.bf16 %v9655, %v9975
  %v10008 = vadd.bf16 %v9656, %v9976
  %v10009 = vadd.bf16 %v9657, %v9977
  %v10010 = vadd.bf16 %v9658, %v9978
  %v10011 = vld [vmem:[%s1 + $0x200] sm:$0xf]
  %v10012 = vld [vmem:[%s1 + $0x204] sm:$0xf]
  %v10013 = vld [vmem:[%s1 + $0x208] sm:$0xf]
  %v10014 = vld [vmem:[%s1 + $0x20c] sm:$0xf]
  %v10015 = vld [vmem:[%s1 + $0x210] sm:$0xf]
  %v10016 = vld [vmem:[%s1 + $0x214] sm:$0xf]
  %v10017 = vld [vmem:[%s1 + $0x218] sm:$0xf]
  %v10018 = vld [vmem:[%s1 + $0x21c] sm:$0xf]
  %v10019 = vld [vmem:[%s1 + $0x220] sm:$0xf]
  %v10020 = vld [vmem:[%s1 + $0x224] sm:$0xf]
  %v10021 = vld [vmem:[%s1 + $0x228] sm:$0xf]
  %v10022 = vld [vmem:[%s1 + $0x22c] sm:$0xf]
  %v10023 = vld [vmem:[%s1 + $0x230] sm:$0xf]
  %v10024 = vld [vmem:[%s1 + $0x234] sm:$0xf]
  %v10025 = vld [vmem:[%s1 + $0x238] sm:$0xf]
  %v10026 = vld [vmem:[%s1 + $0x23c] sm:$0xf]
  %v10027 = vld [vmem:[%s1 + $0x240] sm:$0xf]
  %v10028 = vld [vmem:[%s1 + $0x244] sm:$0xf]
  %v10029 = vld [vmem:[%s1 + $0x248] sm:$0xf]
  %v10030 = vld [vmem:[%s1 + $0x24c] sm:$0xf]
  %v10031 = vld [vmem:[%s1 + $0x250] sm:$0xf]
  %v10032 = vld [vmem:[%s1 + $0x254] sm:$0xf]
  %v10033 = vld [vmem:[%s1 + $0x258] sm:$0xf]
  %v10034 = vld [vmem:[%s1 + $0x25c] sm:$0xf]
  %v10035 = vld [vmem:[%s1 + $0x260] sm:$0xf]
  %v10036 = vld [vmem:[%s1 + $0x264] sm:$0xf]
  %v10037 = vld [vmem:[%s1 + $0x268] sm:$0xf]
  %v10038 = vld [vmem:[%s1 + $0x26c] sm:$0xf]
  %v10039 = vld [vmem:[%s1 + $0x270] sm:$0xf]
  %v10040 = vld [vmem:[%s1 + $0x274] sm:$0xf]
  %v10041 = vld [vmem:[%s1 + $0x278] sm:$0xf]
  %v10042 = vld [vmem:[%s1 + $0x27c] sm:$0xf]
  %v10043 = vld [vmem:[%s2 + $0x200] sm:$0xf]
  %v10044 = vld [vmem:[%s2 + $0x204] sm:$0xf]
  %v10045 = vld [vmem:[%s2 + $0x208] sm:$0xf]
  %v10046 = vld [vmem:[%s2 + $0x20c] sm:$0xf]
  %v10047 = vld [vmem:[%s2 + $0x210] sm:$0xf]
  %v10048 = vld [vmem:[%s2 + $0x214] sm:$0xf]
  %v10049 = vld [vmem:[%s2 + $0x218] sm:$0xf]
  %v10050 = vld [vmem:[%s2 + $0x21c] sm:$0xf]
  %v10051 = vld [vmem:[%s2 + $0x220] sm:$0xf]
  %v10052 = vld [vmem:[%s2 + $0x224] sm:$0xf]
  %v10053 = vld [vmem:[%s2 + $0x228] sm:$0xf]
  %v10054 = vld [vmem:[%s2 + $0x22c] sm:$0xf]
  %v10055 = vld [vmem:[%s2 + $0x230] sm:$0xf]
  %v10056 = vld [vmem:[%s2 + $0x234] sm:$0xf]
  %v10057 = vld [vmem:[%s2 + $0x238] sm:$0xf]
  %v10058 = vld [vmem:[%s2 + $0x23c] sm:$0xf]
  %v10059 = vld [vmem:[%s2 + $0x240] sm:$0xf]
  %v10060 = vld [vmem:[%s2 + $0x244] sm:$0xf]
  %v10061 = vld [vmem:[%s2 + $0x248] sm:$0xf]
  %v10062 = vld [vmem:[%s2 + $0x24c] sm:$0xf]
  %v10063 = vld [vmem:[%s2 + $0x250] sm:$0xf]
  %v10064 = vld [vmem:[%s2 + $0x254] sm:$0xf]
  %v10065 = vld [vmem:[%s2 + $0x258] sm:$0xf]
  %v10066 = vld [vmem:[%s2 + $0x25c] sm:$0xf]
  %v10067 = vld [vmem:[%s2 + $0x260] sm:$0xf]
  %v10068 = vld [vmem:[%s2 + $0x264] sm:$0xf]
  %v10069 = vld [vmem:[%s2 + $0x268] sm:$0xf]
  %v10070 = vld [vmem:[%s2 + $0x26c] sm:$0xf]
  %v10071 = vld [vmem:[%s2 + $0x270] sm:$0xf]
  %v10072 = vld [vmem:[%s2 + $0x274] sm:$0xf]
  %v10073 = vld [vmem:[%s2 + $0x278] sm:$0xf]
  %v10074 = vld [vmem:[%s2 + $0x27c] sm:$0xf]
  %v10107 = vunpack.c.l.b16 %v10011
  %v10108 = vunpack.c.l.b16 %v10012
  %v10109 = vunpack.c.l.b16 %v10013
  %v10110 = vunpack.c.l.b16 %v10014
  %v10111 = vunpack.c.l.b16 %v10015
  %v10112 = vunpack.c.l.b16 %v10016
  %v10113 = vunpack.c.l.b16 %v10017
  %v10114 = vunpack.c.l.b16 %v10018
  %v10115 = vunpack.c.l.b16 %v10019
  %v10116 = vunpack.c.l.b16 %v10020
  %v10117 = vunpack.c.l.b16 %v10021
  %v10118 = vunpack.c.l.b16 %v10022
  %v10119 = vunpack.c.l.b16 %v10023
  %v10120 = vunpack.c.l.b16 %v10024
  %v10121 = vunpack.c.l.b16 %v10025
  %v10122 = vunpack.c.l.b16 %v10026
  %v10123 = vunpack.c.l.b16 %v10027
  %v10124 = vunpack.c.l.b16 %v10028
  %v10125 = vunpack.c.l.b16 %v10029
  %v10126 = vunpack.c.l.b16 %v10030
  %v10127 = vunpack.c.l.b16 %v10031
  %v10128 = vunpack.c.l.b16 %v10032
  %v10129 = vunpack.c.l.b16 %v10033
  %v10130 = vunpack.c.l.b16 %v10034
  %v10131 = vunpack.c.l.b16 %v10035
  %v10132 = vunpack.c.l.b16 %v10036
  %v10133 = vunpack.c.l.b16 %v10037
  %v10134 = vunpack.c.l.b16 %v10038
  %v10135 = vunpack.c.l.b16 %v10039
  %v10136 = vunpack.c.l.b16 %v10040
  %v10137 = vunpack.c.l.b16 %v10041
  %v10138 = vunpack.c.l.b16 %v10042
  %v10139 = vpack.c.b16 %v10108, %v10107
  %v10140 = vpack.c.b16 %v10110, %v10109
  %v10141 = vpack.c.b16 %v10112, %v10111
  %v10142 = vpack.c.b16 %v10114, %v10113
  %v10143 = vpack.c.b16 %v10116, %v10115
  %v10144 = vpack.c.b16 %v10118, %v10117
  %v10145 = vpack.c.b16 %v10120, %v10119
  %v10146 = vpack.c.b16 %v10122, %v10121
  %v10147 = vpack.c.b16 %v10124, %v10123
  %v10148 = vpack.c.b16 %v10126, %v10125
  %v10149 = vpack.c.b16 %v10128, %v10127
  %v10150 = vpack.c.b16 %v10130, %v10129
  %v10151 = vpack.c.b16 %v10132, %v10131
  %v10152 = vpack.c.b16 %v10134, %v10133
  %v10153 = vpack.c.b16 %v10136, %v10135
  %v10154 = vpack.c.b16 %v10138, %v10137
  %10171 = vmatprep.subr.bf16.mxu0 0
  %10172 = vmatpush1.bf16.msra.mxu0 %v10146
  %10173 = vmatprep.subr.bf16.mxu0 0
  %10174 = vmatpush1.bf16.msra.mxu0 %v10145
  %10175 = vmatprep.subr.bf16.mxu0 0
  %10176 = vmatpush1.bf16.msra.mxu0 %v10144
  %10177 = vmatprep.subr.bf16.mxu0 0
  %10178 = vmatpush1.bf16.msra.mxu0 %v10143
  %10179 = vmatprep.subr.bf16.mxu0 0
  %10180 = vmatpush1.bf16.msra.mxu0 %v10142
  %10181 = vmatprep.subr.bf16.mxu0 0
  %10182 = vmatpush1.bf16.msra.mxu0 %v10141
  %10183 = vmatprep.subr.bf16.mxu0 0
  %10184 = vmatpush1.bf16.msra.mxu0 %v10140
  %10185 = vmatprep.subr.bf16.mxu0 0
  %10186 = vmatpush1.bf16.msra.mxu0 %v10139
  %10187 = vmatprep.subr.bf16.mxu0 0
  %10188 = vmatpush2.bf16.msra.mxu0 %v10154
  %10189 = vmatprep.subr.bf16.mxu0 0
  %10190 = vmatpush2.bf16.msra.mxu0 %v10153
  %10191 = vmatprep.subr.bf16.mxu0 0
  %10192 = vmatpush2.bf16.msra.mxu0 %v10152
  %10193 = vmatprep.subr.bf16.mxu0 0
  %10194 = vmatpush2.bf16.msra.mxu0 %v10151
  %10195 = vmatprep.subr.bf16.mxu0 0
  %10196 = vmatpush2.bf16.msra.mxu0 %v10150
  %10197 = vmatprep.subr.bf16.mxu0 0
  %10198 = vmatpush2.bf16.msra.mxu0 %v10149
  %10199 = vmatprep.subr.bf16.mxu0 0
  %10200 = vmatpush2.bf16.msra.mxu0 %v10148
  %10201 = vmatprep.subr.bf16.mxu0 0
  %10202 = vmatpush2.bf16.msra.mxu0 %v10147
  %10203 = vmatprep.mubr.bf16.mxu0 %v9980
  %10204 = vmatmul.mubr.bf16.gmra.mxu0 %v9979
  %v10205 = vpop.f32.mrf.mxu0
  %v10206 = vadd.f32 0.0, %v10205
  %v10207 = vpop.f32.mrf.mxu0
  %v10208 = vpop.f32.mrf.mxu0
  %v10209 = vadd.f32 0.0, %v10208
  %v10210 = vpop.f32.mrf.mxu0
  %10211 = vmatprep.mubr.bf16.mxu0 %v9982
  %10212 = vmatmul.mubr.bf16.gmra.mxu0 %v9981
  %v10213 = vpop.f32.mrf.mxu0
  %v10214 = vadd.f32 0.0, %v10213
  %v10215 = vpop.f32.mrf.mxu0
  %v10216 = vpop.f32.mrf.mxu0
  %v10217 = vadd.f32 0.0, %v10216
  %v10218 = vpop.f32.mrf.mxu0
  %10219 = vmatprep.mubr.bf16.mxu0 %v9984
  %10220 = vmatmul.mubr.bf16.gmra.mxu0 %v9983
  %v10221 = vpop.f32.mrf.mxu0
  %v10222 = vadd.f32 0.0, %v10221
  %v10223 = vpop.f32.mrf.mxu0
  %v10224 = vpop.f32.mrf.mxu0
  %v10225 = vadd.f32 0.0, %v10224
  %v10226 = vpop.f32.mrf.mxu0
  %10227 = vmatprep.mubr.bf16.mxu0 %v9986
  %10228 = vmatmul.mubr.bf16.gmra.mxu0 %v9985
  %v10229 = vpop.f32.mrf.mxu0
  %v10230 = vadd.f32 0.0, %v10229
  %v10231 = vpop.f32.mrf.mxu0
  %v10232 = vpop.f32.mrf.mxu0
  %v10233 = vadd.f32 0.0, %v10232
  %v10234 = vpop.f32.mrf.mxu0
  %10235 = vmatprep.mubr.bf16.mxu0 %v9988
  %10236 = vmatmul.mubr.bf16.gmra.mxu0 %v9987
  %v10237 = vpop.f32.mrf.mxu0
  %v10238 = vadd.f32 0.0, %v10237
  %v10239 = vpop.f32.mrf.mxu0
  %v10240 = vpop.f32.mrf.mxu0
  %v10241 = vadd.f32 0.0, %v10240
  %v10242 = vpop.f32.mrf.mxu0
  %10243 = vmatprep.mubr.bf16.mxu0 %v9990
  %10244 = vmatmul.mubr.bf16.gmra.mxu0 %v9989
  %v10245 = vpop.f32.mrf.mxu0
  %v10246 = vadd.f32 0.0, %v10245
  %v10247 = vpop.f32.mrf.mxu0
  %v10248 = vpop.f32.mrf.mxu0
  %v10249 = vadd.f32 0.0, %v10248
  %v10250 = vpop.f32.mrf.mxu0
  %10251 = vmatprep.mubr.bf16.mxu0 %v9992
  %10252 = vmatmul.mubr.bf16.gmra.mxu0 %v9991
  %v10253 = vpop.f32.mrf.mxu0
  %v10254 = vadd.f32 0.0, %v10253
  %v10255 = vpop.f32.mrf.mxu0
  %v10256 = vpop.f32.mrf.mxu0
  %v10257 = vadd.f32 0.0, %v10256
  %v10258 = vpop.f32.mrf.mxu0
  %10259 = vmatprep.mubr.bf16.mxu0 %v9994
  %10260 = vmatmul.mubr.bf16.gmra.mxu0 %v9993
  %v10261 = vpop.f32.mrf.mxu0
  %v10262 = vadd.f32 0.0, %v10261
  %v10263 = vpop.f32.mrf.mxu0
  %v10264 = vpop.f32.mrf.mxu0
  %v10265 = vadd.f32 0.0, %v10264
  %v10266 = vpop.f32.mrf.mxu0
  %10267 = vmatprep.mubr.bf16.mxu0 %v9996
  %10268 = vmatmul.mubr.bf16.gmra.mxu0 %v9995
  %v10269 = vpop.f32.mrf.mxu0
  %v10270 = vadd.f32 0.0, %v10269
  %v10271 = vpop.f32.mrf.mxu0
  %v10272 = vpop.f32.mrf.mxu0
  %v10273 = vadd.f32 0.0, %v10272
  %v10274 = vpop.f32.mrf.mxu0
  %10275 = vmatprep.mubr.bf16.mxu0 %v9998
  %10276 = vmatmul.mubr.bf16.gmra.mxu0 %v9997
  %v10277 = vpop.f32.mrf.mxu0
  %v10278 = vadd.f32 0.0, %v10277
  %v10279 = vpop.f32.mrf.mxu0
  %v10280 = vpop.f32.mrf.mxu0
  %v10281 = vadd.f32 0.0, %v10280
  %v10282 = vpop.f32.mrf.mxu0
  %10283 = vmatprep.mubr.bf16.mxu0 %v10000
  %10284 = vmatmul.mubr.bf16.gmra.mxu0 %v9999
  %v10285 = vpop.f32.mrf.mxu0
  %v10286 = vadd.f32 0.0, %v10285
  %v10287 = vpop.f32.mrf.mxu0
  %v10288 = vpop.f32.mrf.mxu0
  %v10289 = vadd.f32 0.0, %v10288
  %v10290 = vpop.f32.mrf.mxu0
  %10291 = vmatprep.mubr.bf16.mxu0 %v10002
  %10292 = vmatmul.mubr.bf16.gmra.mxu0 %v10001
  %v10293 = vpop.f32.mrf.mxu0
  %v10294 = vadd.f32 0.0, %v10293
  %v10295 = vpop.f32.mrf.mxu0
  %v10296 = vpop.f32.mrf.mxu0
  %v10297 = vadd.f32 0.0, %v10296
  %v10298 = vpop.f32.mrf.mxu0
  %10299 = vmatprep.mubr.bf16.mxu0 %v10004
  %10300 = vmatmul.mubr.bf16.gmra.mxu0 %v10003
  %v10301 = vpop.f32.mrf.mxu0
  %v10302 = vadd.f32 0.0, %v10301
  %v10303 = vpop.f32.mrf.mxu0
  %v10304 = vpop.f32.mrf.mxu0
  %v10305 = vadd.f32 0.0, %v10304
  %v10306 = vpop.f32.mrf.mxu0
  %10307 = vmatprep.mubr.bf16.mxu0 %v10006
  %10308 = vmatmul.mubr.bf16.gmra.mxu0 %v10005
  %v10309 = vpop.f32.mrf.mxu0
  %v10310 = vadd.f32 0.0, %v10309
  %v10311 = vpop.f32.mrf.mxu0
  %v10312 = vpop.f32.mrf.mxu0
  %v10313 = vadd.f32 0.0, %v10312
  %v10314 = vpop.f32.mrf.mxu0
  %10315 = vmatprep.mubr.bf16.mxu0 %v10008
  %10316 = vmatmul.mubr.bf16.gmra.mxu0 %v10007
  %v10317 = vpop.f32.mrf.mxu0
  %v10318 = vadd.f32 0.0, %v10317
  %v10319 = vpop.f32.mrf.mxu0
  %v10320 = vpop.f32.mrf.mxu0
  %v10321 = vadd.f32 0.0, %v10320
  %v10322 = vpop.f32.mrf.mxu0
  %10323 = vmatprep.mubr.bf16.mxu0 %v10010
  %10324 = vmatmul.mubr.bf16.gmra.mxu0 %v10009
  %v10325 = vpop.f32.mrf.mxu0
  %v10326 = vadd.f32 0.0, %v10325
  %v10327 = vpop.f32.mrf.mxu0
  %v10328 = vpop.f32.mrf.mxu0
  %v10329 = vadd.f32 0.0, %v10328
  %v10330 = vpop.f32.mrf.mxu0
  %10331 = vdwg.mxu0
  %v10332 = vadd.f32 %v8539, %v10206
  %v10333 = vadd.f32 %v8540, %v10209
  %v10334 = vadd.f32 %v8541, %v10214
  %v10335 = vadd.f32 %v8542, %v10217
  %v10336 = vadd.f32 %v8543, %v10222
  %v10337 = vadd.f32 %v8544, %v10225
  %v10338 = vadd.f32 %v8545, %v10230
  %v10339 = vadd.f32 %v8546, %v10233
  %v10340 = vadd.f32 %v8547, %v10238
  %v10341 = vadd.f32 %v8548, %v10241
  %v10342 = vadd.f32 %v8549, %v10246
  %v10343 = vadd.f32 %v8550, %v10249
  %v10344 = vadd.f32 %v8551, %v10254
  %v10345 = vadd.f32 %v8552, %v10257
  %v10346 = vadd.f32 %v8553, %v10262
  %v10347 = vadd.f32 %v8554, %v10265
  %v10348 = vadd.f32 %v8555, %v10270
  %v10349 = vadd.f32 %v8556, %v10273
  %v10350 = vadd.f32 %v8557, %v10278
  %v10351 = vadd.f32 %v8558, %v10281
  %v10352 = vadd.f32 %v8559, %v10286
  %v10353 = vadd.f32 %v8560, %v10289
  %v10354 = vadd.f32 %v8561, %v10294
  %v10355 = vadd.f32 %v8562, %v10297
  %v10356 = vadd.f32 %v8563, %v10302
  %v10357 = vadd.f32 %v8564, %v10305
  %v10358 = vadd.f32 %v8565, %v10310
  %v10359 = vadd.f32 %v8566, %v10313
  %v10360 = vadd.f32 %v8567, %v10318
  %v10361 = vadd.f32 %v8568, %v10321
  %v10362 = vadd.f32 %v8569, %v10326
  %v10363 = vadd.f32 %v8570, %v10329
  %v10396 = vunpack.c.l.b16 %v10043
  %v10397 = vunpack.c.l.b16 %v10044
  %v10398 = vunpack.c.l.b16 %v10045
  %v10399 = vunpack.c.l.b16 %v10046
  %v10400 = vunpack.c.l.b16 %v10047
  %v10401 = vunpack.c.l.b16 %v10048
  %v10402 = vunpack.c.l.b16 %v10049
  %v10403 = vunpack.c.l.b16 %v10050
  %v10404 = vunpack.c.l.b16 %v10051
  %v10405 = vunpack.c.l.b16 %v10052
  %v10406 = vunpack.c.l.b16 %v10053
  %v10407 = vunpack.c.l.b16 %v10054
  %v10408 = vunpack.c.l.b16 %v10055
  %v10409 = vunpack.c.l.b16 %v10056
  %v10410 = vunpack.c.l.b16 %v10057
  %v10411 = vunpack.c.l.b16 %v10058
  %v10412 = vunpack.c.l.b16 %v10059
  %v10413 = vunpack.c.l.b16 %v10060
  %v10414 = vunpack.c.l.b16 %v10061
  %v10415 = vunpack.c.l.b16 %v10062
  %v10416 = vunpack.c.l.b16 %v10063
  %v10417 = vunpack.c.l.b16 %v10064
  %v10418 = vunpack.c.l.b16 %v10065
  %v10419 = vunpack.c.l.b16 %v10066
  %v10420 = vunpack.c.l.b16 %v10067
  %v10421 = vunpack.c.l.b16 %v10068
  %v10422 = vunpack.c.l.b16 %v10069
  %v10423 = vunpack.c.l.b16 %v10070
  %v10424 = vunpack.c.l.b16 %v10071
  %v10425 = vunpack.c.l.b16 %v10072
  %v10426 = vunpack.c.l.b16 %v10073
  %v10427 = vunpack.c.l.b16 %v10074
  %v10428 = vpack.c.b16 %v10397, %v10396
  %v10429 = vpack.c.b16 %v10399, %v10398
  %v10430 = vpack.c.b16 %v10401, %v10400
  %v10431 = vpack.c.b16 %v10403, %v10402
  %v10432 = vpack.c.b16 %v10405, %v10404
  %v10433 = vpack.c.b16 %v10407, %v10406
  %v10434 = vpack.c.b16 %v10409, %v10408
  %v10435 = vpack.c.b16 %v10411, %v10410
  %v10436 = vpack.c.b16 %v10413, %v10412
  %v10437 = vpack.c.b16 %v10415, %v10414
  %v10438 = vpack.c.b16 %v10417, %v10416
  %v10439 = vpack.c.b16 %v10419, %v10418
  %v10440 = vpack.c.b16 %v10421, %v10420
  %v10441 = vpack.c.b16 %v10423, %v10422
  %v10442 = vpack.c.b16 %v10425, %v10424
  %v10443 = vpack.c.b16 %v10427, %v10426
  %10460 = vmatprep.subr.bf16.mxu0 0
  %10461 = vmatpush1.bf16.msra.mxu0 %v10435
  %10462 = vmatprep.subr.bf16.mxu0 0
  %10463 = vmatpush1.bf16.msra.mxu0 %v10434
  %10464 = vmatprep.subr.bf16.mxu0 0
  %10465 = vmatpush1.bf16.msra.mxu0 %v10433
  %10466 = vmatprep.subr.bf16.mxu0 0
  %10467 = vmatpush1.bf16.msra.mxu0 %v10432
  %10468 = vmatprep.subr.bf16.mxu0 0
  %10469 = vmatpush1.bf16.msra.mxu0 %v10431
  %10470 = vmatprep.subr.bf16.mxu0 0
  %10471 = vmatpush1.bf16.msra.mxu0 %v10430
  %10472 = vmatprep.subr.bf16.mxu0 0
  %10473 = vmatpush1.bf16.msra.mxu0 %v10429
  %10474 = vmatprep.subr.bf16.mxu0 0
  %10475 = vmatpush1.bf16.msra.mxu0 %v10428
  %10476 = vmatprep.subr.bf16.mxu0 0
  %10477 = vmatpush2.bf16.msra.mxu0 %v10443
  %10478 = vmatprep.subr.bf16.mxu0 0
  %10479 = vmatpush2.bf16.msra.mxu0 %v10442
  %10480 = vmatprep.subr.bf16.mxu0 0
  %10481 = vmatpush2.bf16.msra.mxu0 %v10441
  %10482 = vmatprep.subr.bf16.mxu0 0
  %10483 = vmatpush2.bf16.msra.mxu0 %v10440
  %10484 = vmatprep.subr.bf16.mxu0 0
  %10485 = vmatpush2.bf16.msra.mxu0 %v10439
  %10486 = vmatprep.subr.bf16.mxu0 0
  %10487 = vmatpush2.bf16.msra.mxu0 %v10438
  %10488 = vmatprep.subr.bf16.mxu0 0
  %10489 = vmatpush2.bf16.msra.mxu0 %v10437
  %10490 = vmatprep.subr.bf16.mxu0 0
  %10491 = vmatpush2.bf16.msra.mxu0 %v10436
  %10492 = vmatprep.mubr.bf16.mxu0 %v9980
  %10493 = vmatmul.mubr.bf16.gmra.mxu0 %v9979
  %v10494 = vpop.f32.mrf.mxu0
  %v10495 = vadd.f32 0.0, %v10494
  %v10496 = vpop.f32.mrf.mxu0
  %v10497 = vpop.f32.mrf.mxu0
  %v10498 = vadd.f32 0.0, %v10497
  %v10499 = vpop.f32.mrf.mxu0
  %10500 = vmatprep.mubr.bf16.mxu0 %v9982
  %10501 = vmatmul.mubr.bf16.gmra.mxu0 %v9981
  %v10502 = vpop.f32.mrf.mxu0
  %v10503 = vadd.f32 0.0, %v10502
  %v10504 = vpop.f32.mrf.mxu0
  %v10505 = vpop.f32.mrf.mxu0
  %v10506 = vadd.f32 0.0, %v10505
  %v10507 = vpop.f32.mrf.mxu0
  %10508 = vmatprep.mubr.bf16.mxu0 %v9984
  %10509 = vmatmul.mubr.bf16.gmra.mxu0 %v9983
  %v10510 = vpop.f32.mrf.mxu0
  %v10511 = vadd.f32 0.0, %v10510
  %v10512 = vpop.f32.mrf.mxu0
  %v10513 = vpop.f32.mrf.mxu0
  %v10514 = vadd.f32 0.0, %v10513
  %v10515 = vpop.f32.mrf.mxu0
  %10516 = vmatprep.mubr.bf16.mxu0 %v9986
  %10517 = vmatmul.mubr.bf16.gmra.mxu0 %v9985
  %v10518 = vpop.f32.mrf.mxu0
  %v10519 = vadd.f32 0.0, %v10518
  %v10520 = vpop.f32.mrf.mxu0
  %v10521 = vpop.f32.mrf.mxu0
  %v10522 = vadd.f32 0.0, %v10521
  %v10523 = vpop.f32.mrf.mxu0
  %10524 = vmatprep.mubr.bf16.mxu0 %v9988
  %10525 = vmatmul.mubr.bf16.gmra.mxu0 %v9987
  %v10526 = vpop.f32.mrf.mxu0
  %v10527 = vadd.f32 0.0, %v10526
  %v10528 = vpop.f32.mrf.mxu0
  %v10529 = vpop.f32.mrf.mxu0
  %v10530 = vadd.f32 0.0, %v10529
  %v10531 = vpop.f32.mrf.mxu0
  %10532 = vmatprep.mubr.bf16.mxu0 %v9990
  %10533 = vmatmul.mubr.bf16.gmra.mxu0 %v9989
  %v10534 = vpop.f32.mrf.mxu0
  %v10535 = vadd.f32 0.0, %v10534
  %v10536 = vpop.f32.mrf.mxu0
  %v10537 = vpop.f32.mrf.mxu0
  %v10538 = vadd.f32 0.0, %v10537
  %v10539 = vpop.f32.mrf.mxu0
  %10540 = vmatprep.mubr.bf16.mxu0 %v9992
  %10541 = vmatmul.mubr.bf16.gmra.mxu0 %v9991
  %v10542 = vpop.f32.mrf.mxu0
  %v10543 = vadd.f32 0.0, %v10542
  %v10544 = vpop.f32.mrf.mxu0
  %v10545 = vpop.f32.mrf.mxu0
  %v10546 = vadd.f32 0.0, %v10545
  %v10547 = vpop.f32.mrf.mxu0
  %10548 = vmatprep.mubr.bf16.mxu0 %v9994
  %10549 = vmatmul.mubr.bf16.gmra.mxu0 %v9993
  %v10550 = vpop.f32.mrf.mxu0
  %v10551 = vadd.f32 0.0, %v10550
  %v10552 = vpop.f32.mrf.mxu0
  %v10553 = vpop.f32.mrf.mxu0
  %v10554 = vadd.f32 0.0, %v10553
  %v10555 = vpop.f32.mrf.mxu0
  %10556 = vmatprep.mubr.bf16.mxu0 %v9996
  %10557 = vmatmul.mubr.bf16.gmra.mxu0 %v9995
  %v10558 = vpop.f32.mrf.mxu0
  %v10559 = vadd.f32 0.0, %v10558
  %v10560 = vpop.f32.mrf.mxu0
  %v10561 = vpop.f32.mrf.mxu0
  %v10562 = vadd.f32 0.0, %v10561
  %v10563 = vpop.f32.mrf.mxu0
  %10564 = vmatprep.mubr.bf16.mxu0 %v9998
  %10565 = vmatmul.mubr.bf16.gmra.mxu0 %v9997
  %v10566 = vpop.f32.mrf.mxu0
  %v10567 = vadd.f32 0.0, %v10566
  %v10568 = vpop.f32.mrf.mxu0
  %v10569 = vpop.f32.mrf.mxu0
  %v10570 = vadd.f32 0.0, %v10569
  %v10571 = vpop.f32.mrf.mxu0
  %10572 = vmatprep.mubr.bf16.mxu0 %v10000
  %10573 = vmatmul.mubr.bf16.gmra.mxu0 %v9999
  %v10574 = vpop.f32.mrf.mxu0
  %v10575 = vadd.f32 0.0, %v10574
  %v10576 = vpop.f32.mrf.mxu0
  %v10577 = vpop.f32.mrf.mxu0
  %v10578 = vadd.f32 0.0, %v10577
  %v10579 = vpop.f32.mrf.mxu0
  %10580 = vmatprep.mubr.bf16.mxu0 %v10002
  %10581 = vmatmul.mubr.bf16.gmra.mxu0 %v10001
  %v10582 = vpop.f32.mrf.mxu0
  %v10583 = vadd.f32 0.0, %v10582
  %v10584 = vpop.f32.mrf.mxu0
  %v10585 = vpop.f32.mrf.mxu0
  %v10586 = vadd.f32 0.0, %v10585
  %v10587 = vpop.f32.mrf.mxu0
  %10588 = vmatprep.mubr.bf16.mxu0 %v10004
  %10589 = vmatmul.mubr.bf16.gmra.mxu0 %v10003
  %v10590 = vpop.f32.mrf.mxu0
  %v10591 = vadd.f32 0.0, %v10590
  %v10592 = vpop.f32.mrf.mxu0
  %v10593 = vpop.f32.mrf.mxu0
  %v10594 = vadd.f32 0.0, %v10593
  %v10595 = vpop.f32.mrf.mxu0
  %10596 = vmatprep.mubr.bf16.mxu0 %v10006
  %10597 = vmatmul.mubr.bf16.gmra.mxu0 %v10005
  %v10598 = vpop.f32.mrf.mxu0
  %v10599 = vadd.f32 0.0, %v10598
  %v10600 = vpop.f32.mrf.mxu0
  %v10601 = vpop.f32.mrf.mxu0
  %v10602 = vadd.f32 0.0, %v10601
  %v10603 = vpop.f32.mrf.mxu0
  %10604 = vmatprep.mubr.bf16.mxu0 %v10008
  %10605 = vmatmul.mubr.bf16.gmra.mxu0 %v10007
  %v10606 = vpop.f32.mrf.mxu0
  %v10607 = vadd.f32 0.0, %v10606
  %v10608 = vpop.f32.mrf.mxu0
  %v10609 = vpop.f32.mrf.mxu0
  %v10610 = vadd.f32 0.0, %v10609
  %v10611 = vpop.f32.mrf.mxu0
  %10612 = vmatprep.mubr.bf16.mxu0 %v10010
  %10613 = vmatmul.mubr.bf16.gmra.mxu0 %v10009
  %v10614 = vpop.f32.mrf.mxu0
  %v10615 = vadd.f32 0.0, %v10614
  %v10616 = vpop.f32.mrf.mxu0
  %v10617 = vpop.f32.mrf.mxu0
  %v10618 = vadd.f32 0.0, %v10617
  %v10619 = vpop.f32.mrf.mxu0
  %10620 = vdwg.mxu0
  %v10621 = vadd.f32 %v10332, %v10495
  %v10622 = vadd.f32 %v10333, %v10498
  %v10623 = vadd.f32 %v10334, %v10503
  %v10624 = vadd.f32 %v10335, %v10506
  %v10625 = vadd.f32 %v10336, %v10511
  %v10626 = vadd.f32 %v10337, %v10514
  %v10627 = vadd.f32 %v10338, %v10519
  %v10628 = vadd.f32 %v10339, %v10522
  %v10629 = vadd.f32 %v10340, %v10527
  %v10630 = vadd.f32 %v10341, %v10530
  %v10631 = vadd.f32 %v10342, %v10535
  %v10632 = vadd.f32 %v10343, %v10538
  %v10633 = vadd.f32 %v10344, %v10543
  %v10634 = vadd.f32 %v10345, %v10546
  %v10635 = vadd.f32 %v10346, %v10551
  %v10636 = vadd.f32 %v10347, %v10554
  %v10637 = vadd.f32 %v10348, %v10559
  %v10638 = vadd.f32 %v10349, %v10562
  %v10639 = vadd.f32 %v10350, %v10567
  %v10640 = vadd.f32 %v10351, %v10570
  %v10641 = vadd.f32 %v10352, %v10575
  %v10642 = vadd.f32 %v10353, %v10578
  %v10643 = vadd.f32 %v10354, %v10583
  %v10644 = vadd.f32 %v10355, %v10586
  %v10645 = vadd.f32 %v10356, %v10591
  %v10646 = vadd.f32 %v10357, %v10594
  %v10647 = vadd.f32 %v10358, %v10599
  %v10648 = vadd.f32 %v10359, %v10602
  %v10649 = vadd.f32 %v10360, %v10607
  %v10650 = vadd.f32 %v10361, %v10610
  %v10651 = vadd.f32 %v10362, %v10615
  %v10652 = vadd.f32 %v10363, %v10618
  %v10653 = vsub.s32 %v15, 1280
  %v10654 = vsub.s32 %v16, 1280
  %v10655 = vsub.s32 %v17, 1280
  %v10656 = vsub.s32 %v18, 1280
  %v10657 = vsub.s32 %v19, 1280
  %v10658 = vsub.s32 %v20, 1280
  %v10659 = vsub.s32 %v21, 1280
  %v10660 = vsub.s32 %v22, 1280
  %v10661 = vsub.s32 %v23, 1280
  %v10662 = vsub.s32 %v24, 1280
  %v10663 = vsub.s32 %v25, 1280
  %v10664 = vsub.s32 %v26, 1280
  %v10665 = vsub.s32 %v27, 1280
  %v10666 = vsub.s32 %v28, 1280
  %v10667 = vsub.s32 %v29, 1280
  %v10668 = vsub.s32 %v30, 1280
  %v10669 = vsub.s32 %v31, 1280
  %v10670 = vsub.s32 %v32, 1280
  %v10671 = vsub.s32 %v33, 1280
  %v10672 = vsub.s32 %v34, 1280
  %v10673 = vsub.s32 %v35, 1280
  %v10674 = vsub.s32 %v36, 1280
  %v10675 = vsub.s32 %v37, 1280
  %v10676 = vsub.s32 %v38, 1280
  %v10677 = vsub.s32 %v39, 1280
  %v10678 = vsub.s32 %v40, 1280
  %v10679 = vsub.s32 %v41, 1280
  %v10680 = vsub.s32 %v42, 1280
  %v10681 = vsub.s32 %v43, 1280
  %v10682 = vsub.s32 %v44, 1280
  %v10683 = vsub.s32 %v45, 1280
  %v10684 = vsub.s32 %v46, 1280
  %10685 = vset.pattern.permute.xlu0 0
  %10686 = vperm.xlu0 %10685, %v10653
  %v10687 = vpop.permute.xlu0 %10686
  %10688 = vset.pattern.permute.xlu0 0
  %10689 = vperm.xlu0 %10688, %v10654
  %v10690 = vpop.permute.xlu0 %10689
  %10691 = vset.pattern.permute.xlu0 0
  %10692 = vperm.xlu0 %10691, %v10655
  %v10693 = vpop.permute.xlu0 %10692
  %10694 = vset.pattern.permute.xlu0 0
  %10695 = vperm.xlu0 %10694, %v10656
  %v10696 = vpop.permute.xlu0 %10695
  %10697 = vset.pattern.permute.xlu0 0
  %10698 = vperm.xlu0 %10697, %v10657
  %v10699 = vpop.permute.xlu0 %10698
  %10700 = vset.pattern.permute.xlu0 0
  %10701 = vperm.xlu0 %10700, %v10658
  %v10702 = vpop.permute.xlu0 %10701
  %10703 = vset.pattern.permute.xlu0 0
  %10704 = vperm.xlu0 %10703, %v10659
  %v10705 = vpop.permute.xlu0 %10704
  %10706 = vset.pattern.permute.xlu0 0
  %10707 = vperm.xlu0 %10706, %v10660
  %v10708 = vpop.permute.xlu0 %10707
  %10709 = vset.pattern.permute.xlu0 0
  %10710 = vperm.xlu0 %10709, %v10661
  %v10711 = vpop.permute.xlu0 %10710
  %10712 = vset.pattern.permute.xlu0 0
  %10713 = vperm.xlu0 %10712, %v10662
  %v10714 = vpop.permute.xlu0 %10713
  %10715 = vset.pattern.permute.xlu0 0
  %10716 = vperm.xlu0 %10715, %v10663
  %v10717 = vpop.permute.xlu0 %10716
  %10718 = vset.pattern.permute.xlu0 0
  %10719 = vperm.xlu0 %10718, %v10664
  %v10720 = vpop.permute.xlu0 %10719
  %10721 = vset.pattern.permute.xlu0 0
  %10722 = vperm.xlu0 %10721, %v10665
  %v10723 = vpop.permute.xlu0 %10722
  %10724 = vset.pattern.permute.xlu0 0
  %10725 = vperm.xlu0 %10724, %v10666
  %v10726 = vpop.permute.xlu0 %10725
  %10727 = vset.pattern.permute.xlu0 0
  %10728 = vperm.xlu0 %10727, %v10667
  %v10729 = vpop.permute.xlu0 %10728
  %10730 = vset.pattern.permute.xlu0 0
  %10731 = vperm.xlu0 %10730, %v10668
  %v10732 = vpop.permute.xlu0 %10731
  %10733 = vset.pattern.permute.xlu0 0
  %10734 = vperm.xlu0 %10733, %v10669
  %v10735 = vpop.permute.xlu0 %10734
  %10736 = vset.pattern.permute.xlu0 0
  %10737 = vperm.xlu0 %10736, %v10670
  %v10738 = vpop.permute.xlu0 %10737
  %10739 = vset.pattern.permute.xlu0 0
  %10740 = vperm.xlu0 %10739, %v10671
  %v10741 = vpop.permute.xlu0 %10740
  %10742 = vset.pattern.permute.xlu0 0
  %10743 = vperm.xlu0 %10742, %v10672
  %v10744 = vpop.permute.xlu0 %10743
  %10745 = vset.pattern.permute.xlu0 0
  %10746 = vperm.xlu0 %10745, %v10673
  %v10747 = vpop.permute.xlu0 %10746
  %10748 = vset.pattern.permute.xlu0 0
  %10749 = vperm.xlu0 %10748, %v10674
  %v10750 = vpop.permute.xlu0 %10749
  %10751 = vset.pattern.permute.xlu0 0
  %10752 = vperm.xlu0 %10751, %v10675
  %v10753 = vpop.permute.xlu0 %10752
  %10754 = vset.pattern.permute.xlu0 0
  %10755 = vperm.xlu0 %10754, %v10676
  %v10756 = vpop.permute.xlu0 %10755
  %10757 = vset.pattern.permute.xlu0 0
  %10758 = vperm.xlu0 %10757, %v10677
  %v10759 = vpop.permute.xlu0 %10758
  %10760 = vset.pattern.permute.xlu0 0
  %10761 = vperm.xlu0 %10760, %v10678
  %v10762 = vpop.permute.xlu0 %10761
  %10763 = vset.pattern.permute.xlu0 0
  %10764 = vperm.xlu0 %10763, %v10679
  %v10765 = vpop.permute.xlu0 %10764
  %10766 = vset.pattern.permute.xlu0 0
  %10767 = vperm.xlu0 %10766, %v10680
  %v10768 = vpop.permute.xlu0 %10767
  %10769 = vset.pattern.permute.xlu0 0
  %10770 = vperm.xlu0 %10769, %v10681
  %v10771 = vpop.permute.xlu0 %10770
  %10772 = vset.pattern.permute.xlu0 0
  %10773 = vperm.xlu0 %10772, %v10682
  %v10774 = vpop.permute.xlu0 %10773
  %10775 = vset.pattern.permute.xlu0 0
  %10776 = vperm.xlu0 %10775, %v10683
  %v10777 = vpop.permute.xlu0 %10776
  %10778 = vset.pattern.permute.xlu0 0
  %10779 = vperm.xlu0 %10778, %v10684
  %v10780 = vpop.permute.xlu0 %10779
  %vm10781 = vcmp.eq.s32.totalorder %v10687, %v337
  %vm10782 = vcmp.eq.s32.totalorder %v10687, %v338
  %vm10783 = vcmp.eq.s32.totalorder %v10690, %v337
  %vm10784 = vcmp.eq.s32.totalorder %v10690, %v338
  %vm10785 = vcmp.eq.s32.totalorder %v10693, %v337
  %vm10786 = vcmp.eq.s32.totalorder %v10693, %v338
  %vm10787 = vcmp.eq.s32.totalorder %v10696, %v337
  %vm10788 = vcmp.eq.s32.totalorder %v10696, %v338
  %vm10789 = vcmp.eq.s32.totalorder %v10699, %v337
  %vm10790 = vcmp.eq.s32.totalorder %v10699, %v338
  %vm10791 = vcmp.eq.s32.totalorder %v10702, %v337
  %vm10792 = vcmp.eq.s32.totalorder %v10702, %v338
  %vm10793 = vcmp.eq.s32.totalorder %v10705, %v337
  %vm10794 = vcmp.eq.s32.totalorder %v10705, %v338
  %vm10795 = vcmp.eq.s32.totalorder %v10708, %v337
  %vm10796 = vcmp.eq.s32.totalorder %v10708, %v338
  %vm10797 = vcmp.eq.s32.totalorder %v10711, %v337
  %vm10798 = vcmp.eq.s32.totalorder %v10711, %v338
  %vm10799 = vcmp.eq.s32.totalorder %v10714, %v337
  %vm10800 = vcmp.eq.s32.totalorder %v10714, %v338
  %vm10801 = vcmp.eq.s32.totalorder %v10717, %v337
  %vm10802 = vcmp.eq.s32.totalorder %v10717, %v338
  %vm10803 = vcmp.eq.s32.totalorder %v10720, %v337
  %vm10804 = vcmp.eq.s32.totalorder %v10720, %v338
  %vm10805 = vcmp.eq.s32.totalorder %v10723, %v337
  %vm10806 = vcmp.eq.s32.totalorder %v10723, %v338
  %vm10807 = vcmp.eq.s32.totalorder %v10726, %v337
  %vm10808 = vcmp.eq.s32.totalorder %v10726, %v338
  %vm10809 = vcmp.eq.s32.totalorder %v10729, %v337
  %vm10810 = vcmp.eq.s32.totalorder %v10729, %v338
  %vm10811 = vcmp.eq.s32.totalorder %v10732, %v337
  %vm10812 = vcmp.eq.s32.totalorder %v10732, %v338
  %vm10813 = vcmp.eq.s32.totalorder %v10735, %v337
  %vm10814 = vcmp.eq.s32.totalorder %v10735, %v338
  %vm10815 = vcmp.eq.s32.totalorder %v10738, %v337
  %vm10816 = vcmp.eq.s32.totalorder %v10738, %v338
  %vm10817 = vcmp.eq.s32.totalorder %v10741, %v337
  %vm10818 = vcmp.eq.s32.totalorder %v10741, %v338
  %vm10819 = vcmp.eq.s32.totalorder %v10744, %v337
  %vm10820 = vcmp.eq.s32.totalorder %v10744, %v338
  %vm10821 = vcmp.eq.s32.totalorder %v10747, %v337
  %vm10822 = vcmp.eq.s32.totalorder %v10747, %v338
  %vm10823 = vcmp.eq.s32.totalorder %v10750, %v337
  %vm10824 = vcmp.eq.s32.totalorder %v10750, %v338
  %vm10825 = vcmp.eq.s32.totalorder %v10753, %v337
  %vm10826 = vcmp.eq.s32.totalorder %v10753, %v338
  %vm10827 = vcmp.eq.s32.totalorder %v10756, %v337
  %vm10828 = vcmp.eq.s32.totalorder %v10756, %v338
  %vm10829 = vcmp.eq.s32.totalorder %v10759, %v337
  %vm10830 = vcmp.eq.s32.totalorder %v10759, %v338
  %vm10831 = vcmp.eq.s32.totalorder %v10762, %v337
  %vm10832 = vcmp.eq.s32.totalorder %v10762, %v338
  %vm10833 = vcmp.eq.s32.totalorder %v10765, %v337
  %vm10834 = vcmp.eq.s32.totalorder %v10765, %v338
  %vm10835 = vcmp.eq.s32.totalorder %v10768, %v337
  %vm10836 = vcmp.eq.s32.totalorder %v10768, %v338
  %vm10837 = vcmp.eq.s32.totalorder %v10771, %v337
  %vm10838 = vcmp.eq.s32.totalorder %v10771, %v338
  %vm10839 = vcmp.eq.s32.totalorder %v10774, %v337
  %vm10840 = vcmp.eq.s32.totalorder %v10774, %v338
  %vm10841 = vcmp.eq.s32.totalorder %v10777, %v337
  %vm10842 = vcmp.eq.s32.totalorder %v10777, %v338
  %vm10843 = vcmp.eq.s32.totalorder %v10780, %v337
  %vm10844 = vcmp.eq.s32.totalorder %v10780, %v338
  %v10845 = vsel %vm10781, 1, 0
  %v10846 = vsel %vm10782, 1, 0
  %v10847 = vsel %vm10783, 1, 0
  %v10848 = vsel %vm10784, 1, 0
  %v10849 = vsel %vm10785, 1, 0
  %v10850 = vsel %vm10786, 1, 0
  %v10851 = vsel %vm10787, 1, 0
  %v10852 = vsel %vm10788, 1, 0
  %v10853 = vsel %vm10789, 1, 0
  %v10854 = vsel %vm10790, 1, 0
  %v10855 = vsel %vm10791, 1, 0
  %v10856 = vsel %vm10792, 1, 0
  %v10857 = vsel %vm10793, 1, 0
  %v10858 = vsel %vm10794, 1, 0
  %v10859 = vsel %vm10795, 1, 0
  %v10860 = vsel %vm10796, 1, 0
  %v10861 = vsel %vm10797, 1, 0
  %v10862 = vsel %vm10798, 1, 0
  %v10863 = vsel %vm10799, 1, 0
  %v10864 = vsel %vm10800, 1, 0
  %v10865 = vsel %vm10801, 1, 0
  %v10866 = vsel %vm10802, 1, 0
  %v10867 = vsel %vm10803, 1, 0
  %v10868 = vsel %vm10804, 1, 0
  %v10869 = vsel %vm10805, 1, 0
  %v10870 = vsel %vm10806, 1, 0
  %v10871 = vsel %vm10807, 1, 0
  %v10872 = vsel %vm10808, 1, 0
  %v10873 = vsel %vm10809, 1, 0
  %v10874 = vsel %vm10810, 1, 0
  %v10875 = vsel %vm10811, 1, 0
  %v10876 = vsel %vm10812, 1, 0
  %v10877 = vsel %vm10813, 1, 0
  %v10878 = vsel %vm10814, 1, 0
  %v10879 = vsel %vm10815, 1, 0
  %v10880 = vsel %vm10816, 1, 0
  %v10881 = vsel %vm10817, 1, 0
  %v10882 = vsel %vm10818, 1, 0
  %v10883 = vsel %vm10819, 1, 0
  %v10884 = vsel %vm10820, 1, 0
  %v10885 = vsel %vm10821, 1, 0
  %v10886 = vsel %vm10822, 1, 0
  %v10887 = vsel %vm10823, 1, 0
  %v10888 = vsel %vm10824, 1, 0
  %v10889 = vsel %vm10825, 1, 0
  %v10890 = vsel %vm10826, 1, 0
  %v10891 = vsel %vm10827, 1, 0
  %v10892 = vsel %vm10828, 1, 0
  %v10893 = vsel %vm10829, 1, 0
  %v10894 = vsel %vm10830, 1, 0
  %v10895 = vsel %vm10831, 1, 0
  %v10896 = vsel %vm10832, 1, 0
  %v10897 = vsel %vm10833, 1, 0
  %v10898 = vsel %vm10834, 1, 0
  %v10899 = vsel %vm10835, 1, 0
  %v10900 = vsel %vm10836, 1, 0
  %v10901 = vsel %vm10837, 1, 0
  %v10902 = vsel %vm10838, 1, 0
  %v10903 = vsel %vm10839, 1, 0
  %v10904 = vsel %vm10840, 1, 0
  %v10905 = vsel %vm10841, 1, 0
  %v10906 = vsel %vm10842, 1, 0
  %v10907 = vsel %vm10843, 1, 0
  %v10908 = vsel %vm10844, 1, 0
  %v10909 = vcvt.s32.f32 %v10845
  %v10910 = vcvt.s32.f32 %v10846
  %v10911 = vcvt.s32.f32 %v10847
  %v10912 = vcvt.s32.f32 %v10848
  %v10913 = vcvt.s32.f32 %v10849
  %v10914 = vcvt.s32.f32 %v10850
  %v10915 = vcvt.s32.f32 %v10851
  %v10916 = vcvt.s32.f32 %v10852
  %v10917 = vcvt.s32.f32 %v10853
  %v10918 = vcvt.s32.f32 %v10854
  %v10919 = vcvt.s32.f32 %v10855
  %v10920 = vcvt.s32.f32 %v10856
  %v10921 = vcvt.s32.f32 %v10857
  %v10922 = vcvt.s32.f32 %v10858
  %v10923 = vcvt.s32.f32 %v10859
  %v10924 = vcvt.s32.f32 %v10860
  %v10925 = vcvt.s32.f32 %v10861
  %v10926 = vcvt.s32.f32 %v10862
  %v10927 = vcvt.s32.f32 %v10863
  %v10928 = vcvt.s32.f32 %v10864
  %v10929 = vcvt.s32.f32 %v10865
  %v10930 = vcvt.s32.f32 %v10866
  %v10931 = vcvt.s32.f32 %v10867
  %v10932 = vcvt.s32.f32 %v10868
  %v10933 = vcvt.s32.f32 %v10869
  %v10934 = vcvt.s32.f32 %v10870
  %v10935 = vcvt.s32.f32 %v10871
  %v10936 = vcvt.s32.f32 %v10872
  %v10937 = vcvt.s32.f32 %v10873
  %v10938 = vcvt.s32.f32 %v10874
  %v10939 = vcvt.s32.f32 %v10875
  %v10940 = vcvt.s32.f32 %v10876
  %v10941 = vcvt.s32.f32 %v10877
  %v10942 = vcvt.s32.f32 %v10878
  %v10943 = vcvt.s32.f32 %v10879
  %v10944 = vcvt.s32.f32 %v10880
  %v10945 = vcvt.s32.f32 %v10881
  %v10946 = vcvt.s32.f32 %v10882
  %v10947 = vcvt.s32.f32 %v10883
  %v10948 = vcvt.s32.f32 %v10884
  %v10949 = vcvt.s32.f32 %v10885
  %v10950 = vcvt.s32.f32 %v10886
  %v10951 = vcvt.s32.f32 %v10887
  %v10952 = vcvt.s32.f32 %v10888
  %v10953 = vcvt.s32.f32 %v10889
  %v10954 = vcvt.s32.f32 %v10890
  %v10955 = vcvt.s32.f32 %v10891
  %v10956 = vcvt.s32.f32 %v10892
  %v10957 = vcvt.s32.f32 %v10893
  %v10958 = vcvt.s32.f32 %v10894
  %v10959 = vcvt.s32.f32 %v10895
  %v10960 = vcvt.s32.f32 %v10896
  %v10961 = vcvt.s32.f32 %v10897
  %v10962 = vcvt.s32.f32 %v10898
  %v10963 = vcvt.s32.f32 %v10899
  %v10964 = vcvt.s32.f32 %v10900
  %v10965 = vcvt.s32.f32 %v10901
  %v10966 = vcvt.s32.f32 %v10902
  %v10967 = vcvt.s32.f32 %v10903
  %v10968 = vcvt.s32.f32 %v10904
  %v10969 = vcvt.s32.f32 %v10905
  %v10970 = vcvt.s32.f32 %v10906
  %v10971 = vcvt.s32.f32 %v10907
  %v10972 = vcvt.s32.f32 %v10908
  %v10973 = vpack.c.bf16 %v10911, %v10909
  %v10974 = vpack.c.bf16 %v10912, %v10910
  %v10975 = vpack.c.bf16 %v10915, %v10913
  %v10976 = vpack.c.bf16 %v10916, %v10914
  %v10977 = vpack.c.bf16 %v10919, %v10917
  %v10978 = vpack.c.bf16 %v10920, %v10918
  %v10979 = vpack.c.bf16 %v10923, %v10921
  %v10980 = vpack.c.bf16 %v10924, %v10922
  %v10981 = vpack.c.bf16 %v10927, %v10925
  %v10982 = vpack.c.bf16 %v10928, %v10926
  %v10983 = vpack.c.bf16 %v10931, %v10929
  %v10984 = vpack.c.bf16 %v10932, %v10930
  %v10985 = vpack.c.bf16 %v10935, %v10933
  %v10986 = vpack.c.bf16 %v10936, %v10934
  %v10987 = vpack.c.bf16 %v10939, %v10937
  %v10988 = vpack.c.bf16 %v10940, %v10938
  %v10989 = vpack.c.bf16 %v10943, %v10941
  %v10990 = vpack.c.bf16 %v10944, %v10942
  %v10991 = vpack.c.bf16 %v10947, %v10945
  %v10992 = vpack.c.bf16 %v10948, %v10946
  %v10993 = vpack.c.bf16 %v10951, %v10949
  %v10994 = vpack.c.bf16 %v10952, %v10950
  %v10995 = vpack.c.bf16 %v10955, %v10953
  %v10996 = vpack.c.bf16 %v10956, %v10954
  %v10997 = vpack.c.bf16 %v10959, %v10957
  %v10998 = vpack.c.bf16 %v10960, %v10958
  %v10999 = vpack.c.bf16 %v10963, %v10961
  %v11000 = vpack.c.bf16 %v10964, %v10962
  %v11001 = vpack.c.bf16 %v10967, %v10965
  %v11002 = vpack.c.bf16 %v10968, %v10966
  %v11003 = vpack.c.bf16 %v10971, %v10969
  %v11004 = vpack.c.bf16 %v10972, %v10970
  %v11005 = vadd.bf16 %v10973, 0
  %v11006 = vadd.bf16 %v10974, 0
  %v11007 = vadd.bf16 %v10975, 0
  %v11008 = vadd.bf16 %v10976, 0
  %v11009 = vadd.bf16 %v10977, 0
  %v11010 = vadd.bf16 %v10978, 0
  %v11011 = vadd.bf16 %v10979, 0
  %v11012 = vadd.bf16 %v10980, 0
  %v11013 = vadd.bf16 %v10981, 0
  %v11014 = vadd.bf16 %v10982, 0
  %v11015 = vadd.bf16 %v10983, 0
  %v11016 = vadd.bf16 %v10984, 0
  %v11017 = vadd.bf16 %v10985, 0
  %v11018 = vadd.bf16 %v10986, 0
  %v11019 = vadd.bf16 %v10987, 0
  %v11020 = vadd.bf16 %v10988, 0
  %v11021 = vadd.bf16 %v10989, 0
  %v11022 = vadd.bf16 %v10990, 0
  %v11023 = vadd.bf16 %v10991, 0
  %v11024 = vadd.bf16 %v10992, 0
  %v11025 = vadd.bf16 %v10993, 0
  %v11026 = vadd.bf16 %v10994, 0
  %v11027 = vadd.bf16 %v10995, 0
  %v11028 = vadd.bf16 %v10996, 0
  %v11029 = vadd.bf16 %v10997, 0
  %v11030 = vadd.bf16 %v10998, 0
  %v11031 = vadd.bf16 %v10999, 0
  %v11032 = vadd.bf16 %v11000, 0
  %v11033 = vadd.bf16 %v11001, 0
  %v11034 = vadd.bf16 %v11002, 0
  %v11035 = vadd.bf16 %v11003, 0
  %v11036 = vadd.bf16 %v11004, 0
  %11037 = vset.pattern.permute.xlu0 1
  %11038 = vperm.xlu0 %11037, %v10653
  %v11039 = vpop.permute.xlu0 %11038
  %11040 = vset.pattern.permute.xlu0 1
  %11041 = vperm.xlu0 %11040, %v10654
  %v11042 = vpop.permute.xlu0 %11041
  %11043 = vset.pattern.permute.xlu0 1
  %11044 = vperm.xlu0 %11043, %v10655
  %v11045 = vpop.permute.xlu0 %11044
  %11046 = vset.pattern.permute.xlu0 1
  %11047 = vperm.xlu0 %11046, %v10656
  %v11048 = vpop.permute.xlu0 %11047
  %11049 = vset.pattern.permute.xlu0 1
  %11050 = vperm.xlu0 %11049, %v10657
  %v11051 = vpop.permute.xlu0 %11050
  %11052 = vset.pattern.permute.xlu0 1
  %11053 = vperm.xlu0 %11052, %v10658
  %v11054 = vpop.permute.xlu0 %11053
  %11055 = vset.pattern.permute.xlu0 1
  %11056 = vperm.xlu0 %11055, %v10659
  %v11057 = vpop.permute.xlu0 %11056
  %11058 = vset.pattern.permute.xlu0 1
  %11059 = vperm.xlu0 %11058, %v10660
  %v11060 = vpop.permute.xlu0 %11059
  %11061 = vset.pattern.permute.xlu0 1
  %11062 = vperm.xlu0 %11061, %v10661
  %v11063 = vpop.permute.xlu0 %11062
  %11064 = vset.pattern.permute.xlu0 1
  %11065 = vperm.xlu0 %11064, %v10662
  %v11066 = vpop.permute.xlu0 %11065
  %11067 = vset.pattern.permute.xlu0 1
  %11068 = vperm.xlu0 %11067, %v10663
  %v11069 = vpop.permute.xlu0 %11068
  %11070 = vset.pattern.permute.xlu0 1
  %11071 = vperm.xlu0 %11070, %v10664
  %v11072 = vpop.permute.xlu0 %11071
  %11073 = vset.pattern.permute.xlu0 1
  %11074 = vperm.xlu0 %11073, %v10665
  %v11075 = vpop.permute.xlu0 %11074
  %11076 = vset.pattern.permute.xlu0 1
  %11077 = vperm.xlu0 %11076, %v10666
  %v11078 = vpop.permute.xlu0 %11077
  %11079 = vset.pattern.permute.xlu0 1
  %11080 = vperm.xlu0 %11079, %v10667
  %v11081 = vpop.permute.xlu0 %11080
  %11082 = vset.pattern.permute.xlu0 1
  %11083 = vperm.xlu0 %11082, %v10668
  %v11084 = vpop.permute.xlu0 %11083
  %11085 = vset.pattern.permute.xlu0 1
  %11086 = vperm.xlu0 %11085, %v10669
  %v11087 = vpop.permute.xlu0 %11086
  %11088 = vset.pattern.permute.xlu0 1
  %11089 = vperm.xlu0 %11088, %v10670
  %v11090 = vpop.permute.xlu0 %11089
  %11091 = vset.pattern.permute.xlu0 1
  %11092 = vperm.xlu0 %11091, %v10671
  %v11093 = vpop.permute.xlu0 %11092
  %11094 = vset.pattern.permute.xlu0 1
  %11095 = vperm.xlu0 %11094, %v10672
  %v11096 = vpop.permute.xlu0 %11095
  %11097 = vset.pattern.permute.xlu0 1
  %11098 = vperm.xlu0 %11097, %v10673
  %v11099 = vpop.permute.xlu0 %11098
  %11100 = vset.pattern.permute.xlu0 1
  %11101 = vperm.xlu0 %11100, %v10674
  %v11102 = vpop.permute.xlu0 %11101
  %11103 = vset.pattern.permute.xlu0 1
  %11104 = vperm.xlu0 %11103, %v10675
  %v11105 = vpop.permute.xlu0 %11104
  %11106 = vset.pattern.permute.xlu0 1
  %11107 = vperm.xlu0 %11106, %v10676
  %v11108 = vpop.permute.xlu0 %11107
  %11109 = vset.pattern.permute.xlu0 1
  %11110 = vperm.xlu0 %11109, %v10677
  %v11111 = vpop.permute.xlu0 %11110
  %11112 = vset.pattern.permute.xlu0 1
  %11113 = vperm.xlu0 %11112, %v10678
  %v11114 = vpop.permute.xlu0 %11113
  %11115 = vset.pattern.permute.xlu0 1
  %11116 = vperm.xlu0 %11115, %v10679
  %v11117 = vpop.permute.xlu0 %11116
  %11118 = vset.pattern.permute.xlu0 1
  %11119 = vperm.xlu0 %11118, %v10680
  %v11120 = vpop.permute.xlu0 %11119
  %11121 = vset.pattern.permute.xlu0 1
  %11122 = vperm.xlu0 %11121, %v10681
  %v11123 = vpop.permute.xlu0 %11122
  %11124 = vset.pattern.permute.xlu0 1
  %11125 = vperm.xlu0 %11124, %v10682
  %v11126 = vpop.permute.xlu0 %11125
  %11127 = vset.pattern.permute.xlu0 1
  %11128 = vperm.xlu0 %11127, %v10683
  %v11129 = vpop.permute.xlu0 %11128
  %11130 = vset.pattern.permute.xlu0 1
  %11131 = vperm.xlu0 %11130, %v10684
  %v11132 = vpop.permute.xlu0 %11131
  %vm11133 = vcmp.eq.s32.totalorder %v11039, %v337
  %vm11134 = vcmp.eq.s32.totalorder %v11039, %v338
  %vm11135 = vcmp.eq.s32.totalorder %v11042, %v337
  %vm11136 = vcmp.eq.s32.totalorder %v11042, %v338
  %vm11137 = vcmp.eq.s32.totalorder %v11045, %v337
  %vm11138 = vcmp.eq.s32.totalorder %v11045, %v338
  %vm11139 = vcmp.eq.s32.totalorder %v11048, %v337
  %vm11140 = vcmp.eq.s32.totalorder %v11048, %v338
  %vm11141 = vcmp.eq.s32.totalorder %v11051, %v337
  %vm11142 = vcmp.eq.s32.totalorder %v11051, %v338
  %vm11143 = vcmp.eq.s32.totalorder %v11054, %v337
  %vm11144 = vcmp.eq.s32.totalorder %v11054, %v338
  %vm11145 = vcmp.eq.s32.totalorder %v11057, %v337
  %vm11146 = vcmp.eq.s32.totalorder %v11057, %v338
  %vm11147 = vcmp.eq.s32.totalorder %v11060, %v337
  %vm11148 = vcmp.eq.s32.totalorder %v11060, %v338
  %vm11149 = vcmp.eq.s32.totalorder %v11063, %v337
  %vm11150 = vcmp.eq.s32.totalorder %v11063, %v338
  %vm11151 = vcmp.eq.s32.totalorder %v11066, %v337
  %vm11152 = vcmp.eq.s32.totalorder %v11066, %v338
  %vm11153 = vcmp.eq.s32.totalorder %v11069, %v337
  %vm11154 = vcmp.eq.s32.totalorder %v11069, %v338
  %vm11155 = vcmp.eq.s32.totalorder %v11072, %v337
  %vm11156 = vcmp.eq.s32.totalorder %v11072, %v338
  %vm11157 = vcmp.eq.s32.totalorder %v11075, %v337
  %vm11158 = vcmp.eq.s32.totalorder %v11075, %v338
  %vm11159 = vcmp.eq.s32.totalorder %v11078, %v337
  %vm11160 = vcmp.eq.s32.totalorder %v11078, %v338
  %vm11161 = vcmp.eq.s32.totalorder %v11081, %v337
  %vm11162 = vcmp.eq.s32.totalorder %v11081, %v338
  %vm11163 = vcmp.eq.s32.totalorder %v11084, %v337
  %vm11164 = vcmp.eq.s32.totalorder %v11084, %v338
  %vm11165 = vcmp.eq.s32.totalorder %v11087, %v337
  %vm11166 = vcmp.eq.s32.totalorder %v11087, %v338
  %vm11167 = vcmp.eq.s32.totalorder %v11090, %v337
  %vm11168 = vcmp.eq.s32.totalorder %v11090, %v338
  %vm11169 = vcmp.eq.s32.totalorder %v11093, %v337
  %vm11170 = vcmp.eq.s32.totalorder %v11093, %v338
  %vm11171 = vcmp.eq.s32.totalorder %v11096, %v337
  %vm11172 = vcmp.eq.s32.totalorder %v11096, %v338
  %vm11173 = vcmp.eq.s32.totalorder %v11099, %v337
  %vm11174 = vcmp.eq.s32.totalorder %v11099, %v338
  %vm11175 = vcmp.eq.s32.totalorder %v11102, %v337
  %vm11176 = vcmp.eq.s32.totalorder %v11102, %v338
  %vm11177 = vcmp.eq.s32.totalorder %v11105, %v337
  %vm11178 = vcmp.eq.s32.totalorder %v11105, %v338
  %vm11179 = vcmp.eq.s32.totalorder %v11108, %v337
  %vm11180 = vcmp.eq.s32.totalorder %v11108, %v338
  %vm11181 = vcmp.eq.s32.totalorder %v11111, %v337
  %vm11182 = vcmp.eq.s32.totalorder %v11111, %v338
  %vm11183 = vcmp.eq.s32.totalorder %v11114, %v337
  %vm11184 = vcmp.eq.s32.totalorder %v11114, %v338
  %vm11185 = vcmp.eq.s32.totalorder %v11117, %v337
  %vm11186 = vcmp.eq.s32.totalorder %v11117, %v338
  %vm11187 = vcmp.eq.s32.totalorder %v11120, %v337
  %vm11188 = vcmp.eq.s32.totalorder %v11120, %v338
  %vm11189 = vcmp.eq.s32.totalorder %v11123, %v337
  %vm11190 = vcmp.eq.s32.totalorder %v11123, %v338
  %vm11191 = vcmp.eq.s32.totalorder %v11126, %v337
  %vm11192 = vcmp.eq.s32.totalorder %v11126, %v338
  %vm11193 = vcmp.eq.s32.totalorder %v11129, %v337
  %vm11194 = vcmp.eq.s32.totalorder %v11129, %v338
  %vm11195 = vcmp.eq.s32.totalorder %v11132, %v337
  %vm11196 = vcmp.eq.s32.totalorder %v11132, %v338
  %v11197 = vsel %vm11133, 1, 0
  %v11198 = vsel %vm11134, 1, 0
  %v11199 = vsel %vm11135, 1, 0
  %v11200 = vsel %vm11136, 1, 0
  %v11201 = vsel %vm11137, 1, 0
  %v11202 = vsel %vm11138, 1, 0
  %v11203 = vsel %vm11139, 1, 0
  %v11204 = vsel %vm11140, 1, 0
  %v11205 = vsel %vm11141, 1, 0
  %v11206 = vsel %vm11142, 1, 0
  %v11207 = vsel %vm11143, 1, 0
  %v11208 = vsel %vm11144, 1, 0
  %v11209 = vsel %vm11145, 1, 0
  %v11210 = vsel %vm11146, 1, 0
  %v11211 = vsel %vm11147, 1, 0
  %v11212 = vsel %vm11148, 1, 0
  %v11213 = vsel %vm11149, 1, 0
  %v11214 = vsel %vm11150, 1, 0
  %v11215 = vsel %vm11151, 1, 0
  %v11216 = vsel %vm11152, 1, 0
  %v11217 = vsel %vm11153, 1, 0
  %v11218 = vsel %vm11154, 1, 0
  %v11219 = vsel %vm11155, 1, 0
  %v11220 = vsel %vm11156, 1, 0
  %v11221 = vsel %vm11157, 1, 0
  %v11222 = vsel %vm11158, 1, 0
  %v11223 = vsel %vm11159, 1, 0
  %v11224 = vsel %vm11160, 1, 0
  %v11225 = vsel %vm11161, 1, 0
  %v11226 = vsel %vm11162, 1, 0
  %v11227 = vsel %vm11163, 1, 0
  %v11228 = vsel %vm11164, 1, 0
  %v11229 = vsel %vm11165, 1, 0
  %v11230 = vsel %vm11166, 1, 0
  %v11231 = vsel %vm11167, 1, 0
  %v11232 = vsel %vm11168, 1, 0
  %v11233 = vsel %vm11169, 1, 0
  %v11234 = vsel %vm11170, 1, 0
  %v11235 = vsel %vm11171, 1, 0
  %v11236 = vsel %vm11172, 1, 0
  %v11237 = vsel %vm11173, 1, 0
  %v11238 = vsel %vm11174, 1, 0
  %v11239 = vsel %vm11175, 1, 0
  %v11240 = vsel %vm11176, 1, 0
  %v11241 = vsel %vm11177, 1, 0
  %v11242 = vsel %vm11178, 1, 0
  %v11243 = vsel %vm11179, 1, 0
  %v11244 = vsel %vm11180, 1, 0
  %v11245 = vsel %vm11181, 1, 0
  %v11246 = vsel %vm11182, 1, 0
  %v11247 = vsel %vm11183, 1, 0
  %v11248 = vsel %vm11184, 1, 0
  %v11249 = vsel %vm11185, 1, 0
  %v11250 = vsel %vm11186, 1, 0
  %v11251 = vsel %vm11187, 1, 0
  %v11252 = vsel %vm11188, 1, 0
  %v11253 = vsel %vm11189, 1, 0
  %v11254 = vsel %vm11190, 1, 0
  %v11255 = vsel %vm11191, 1, 0
  %v11256 = vsel %vm11192, 1, 0
  %v11257 = vsel %vm11193, 1, 0
  %v11258 = vsel %vm11194, 1, 0
  %v11259 = vsel %vm11195, 1, 0
  %v11260 = vsel %vm11196, 1, 0
  %v11261 = vcvt.s32.f32 %v11197
  %v11262 = vcvt.s32.f32 %v11198
  %v11263 = vcvt.s32.f32 %v11199
  %v11264 = vcvt.s32.f32 %v11200
  %v11265 = vcvt.s32.f32 %v11201
  %v11266 = vcvt.s32.f32 %v11202
  %v11267 = vcvt.s32.f32 %v11203
  %v11268 = vcvt.s32.f32 %v11204
  %v11269 = vcvt.s32.f32 %v11205
  %v11270 = vcvt.s32.f32 %v11206
  %v11271 = vcvt.s32.f32 %v11207
  %v11272 = vcvt.s32.f32 %v11208
  %v11273 = vcvt.s32.f32 %v11209
  %v11274 = vcvt.s32.f32 %v11210
  %v11275 = vcvt.s32.f32 %v11211
  %v11276 = vcvt.s32.f32 %v11212
  %v11277 = vcvt.s32.f32 %v11213
  %v11278 = vcvt.s32.f32 %v11214
  %v11279 = vcvt.s32.f32 %v11215
  %v11280 = vcvt.s32.f32 %v11216
  %v11281 = vcvt.s32.f32 %v11217
  %v11282 = vcvt.s32.f32 %v11218
  %v11283 = vcvt.s32.f32 %v11219
  %v11284 = vcvt.s32.f32 %v11220
  %v11285 = vcvt.s32.f32 %v11221
  %v11286 = vcvt.s32.f32 %v11222
  %v11287 = vcvt.s32.f32 %v11223
  %v11288 = vcvt.s32.f32 %v11224
  %v11289 = vcvt.s32.f32 %v11225
  %v11290 = vcvt.s32.f32 %v11226
  %v11291 = vcvt.s32.f32 %v11227
  %v11292 = vcvt.s32.f32 %v11228
  %v11293 = vcvt.s32.f32 %v11229
  %v11294 = vcvt.s32.f32 %v11230
  %v11295 = vcvt.s32.f32 %v11231
  %v11296 = vcvt.s32.f32 %v11232
  %v11297 = vcvt.s32.f32 %v11233
  %v11298 = vcvt.s32.f32 %v11234
  %v11299 = vcvt.s32.f32 %v11235
  %v11300 = vcvt.s32.f32 %v11236
  %v11301 = vcvt.s32.f32 %v11237
  %v11302 = vcvt.s32.f32 %v11238
  %v11303 = vcvt.s32.f32 %v11239
  %v11304 = vcvt.s32.f32 %v11240
  %v11305 = vcvt.s32.f32 %v11241
  %v11306 = vcvt.s32.f32 %v11242
  %v11307 = vcvt.s32.f32 %v11243
  %v11308 = vcvt.s32.f32 %v11244
  %v11309 = vcvt.s32.f32 %v11245
  %v11310 = vcvt.s32.f32 %v11246
  %v11311 = vcvt.s32.f32 %v11247
  %v11312 = vcvt.s32.f32 %v11248
  %v11313 = vcvt.s32.f32 %v11249
  %v11314 = vcvt.s32.f32 %v11250
  %v11315 = vcvt.s32.f32 %v11251
  %v11316 = vcvt.s32.f32 %v11252
  %v11317 = vcvt.s32.f32 %v11253
  %v11318 = vcvt.s32.f32 %v11254
  %v11319 = vcvt.s32.f32 %v11255
  %v11320 = vcvt.s32.f32 %v11256
  %v11321 = vcvt.s32.f32 %v11257
  %v11322 = vcvt.s32.f32 %v11258
  %v11323 = vcvt.s32.f32 %v11259
  %v11324 = vcvt.s32.f32 %v11260
  %v11325 = vpack.c.bf16 %v11263, %v11261
  %v11326 = vpack.c.bf16 %v11264, %v11262
  %v11327 = vpack.c.bf16 %v11267, %v11265
  %v11328 = vpack.c.bf16 %v11268, %v11266
  %v11329 = vpack.c.bf16 %v11271, %v11269
  %v11330 = vpack.c.bf16 %v11272, %v11270
  %v11331 = vpack.c.bf16 %v11275, %v11273
  %v11332 = vpack.c.bf16 %v11276, %v11274
  %v11333 = vpack.c.bf16 %v11279, %v11277
  %v11334 = vpack.c.bf16 %v11280, %v11278
  %v11335 = vpack.c.bf16 %v11283, %v11281
  %v11336 = vpack.c.bf16 %v11284, %v11282
  %v11337 = vpack.c.bf16 %v11287, %v11285
  %v11338 = vpack.c.bf16 %v11288, %v11286
  %v11339 = vpack.c.bf16 %v11291, %v11289
  %v11340 = vpack.c.bf16 %v11292, %v11290
  %v11341 = vpack.c.bf16 %v11295, %v11293
  %v11342 = vpack.c.bf16 %v11296, %v11294
  %v11343 = vpack.c.bf16 %v11299, %v11297
  %v11344 = vpack.c.bf16 %v11300, %v11298
  %v11345 = vpack.c.bf16 %v11303, %v11301
  %v11346 = vpack.c.bf16 %v11304, %v11302
  %v11347 = vpack.c.bf16 %v11307, %v11305
  %v11348 = vpack.c.bf16 %v11308, %v11306
  %v11349 = vpack.c.bf16 %v11311, %v11309
  %v11350 = vpack.c.bf16 %v11312, %v11310
  %v11351 = vpack.c.bf16 %v11315, %v11313
  %v11352 = vpack.c.bf16 %v11316, %v11314
  %v11353 = vpack.c.bf16 %v11319, %v11317
  %v11354 = vpack.c.bf16 %v11320, %v11318
  %v11355 = vpack.c.bf16 %v11323, %v11321
  %v11356 = vpack.c.bf16 %v11324, %v11322
  %v11357 = vadd.bf16 %v11005, %v11325
  %v11358 = vadd.bf16 %v11006, %v11326
  %v11359 = vadd.bf16 %v11007, %v11327
  %v11360 = vadd.bf16 %v11008, %v11328
  %v11361 = vadd.bf16 %v11009, %v11329
  %v11362 = vadd.bf16 %v11010, %v11330
  %v11363 = vadd.bf16 %v11011, %v11331
  %v11364 = vadd.bf16 %v11012, %v11332
  %v11365 = vadd.bf16 %v11013, %v11333
  %v11366 = vadd.bf16 %v11014, %v11334
  %v11367 = vadd.bf16 %v11015, %v11335
  %v11368 = vadd.bf16 %v11016, %v11336
  %v11369 = vadd.bf16 %v11017, %v11337
  %v11370 = vadd.bf16 %v11018, %v11338
  %v11371 = vadd.bf16 %v11019, %v11339
  %v11372 = vadd.bf16 %v11020, %v11340
  %v11373 = vadd.bf16 %v11021, %v11341
  %v11374 = vadd.bf16 %v11022, %v11342
  %v11375 = vadd.bf16 %v11023, %v11343
  %v11376 = vadd.bf16 %v11024, %v11344
  %v11377 = vadd.bf16 %v11025, %v11345
  %v11378 = vadd.bf16 %v11026, %v11346
  %v11379 = vadd.bf16 %v11027, %v11347
  %v11380 = vadd.bf16 %v11028, %v11348
  %v11381 = vadd.bf16 %v11029, %v11349
  %v11382 = vadd.bf16 %v11030, %v11350
  %v11383 = vadd.bf16 %v11031, %v11351
  %v11384 = vadd.bf16 %v11032, %v11352
  %v11385 = vadd.bf16 %v11033, %v11353
  %v11386 = vadd.bf16 %v11034, %v11354
  %v11387 = vadd.bf16 %v11035, %v11355
  %v11388 = vadd.bf16 %v11036, %v11356
  %11389 = vset.pattern.permute.xlu0 2
  %11390 = vperm.xlu0 %11389, %v10653
  %v11391 = vpop.permute.xlu0 %11390
  %11392 = vset.pattern.permute.xlu0 2
  %11393 = vperm.xlu0 %11392, %v10654
  %v11394 = vpop.permute.xlu0 %11393
  %11395 = vset.pattern.permute.xlu0 2
  %11396 = vperm.xlu0 %11395, %v10655
  %v11397 = vpop.permute.xlu0 %11396
  %11398 = vset.pattern.permute.xlu0 2
  %11399 = vperm.xlu0 %11398, %v10656
  %v11400 = vpop.permute.xlu0 %11399
  %11401 = vset.pattern.permute.xlu0 2
  %11402 = vperm.xlu0 %11401, %v10657
  %v11403 = vpop.permute.xlu0 %11402
  %11404 = vset.pattern.permute.xlu0 2
  %11405 = vperm.xlu0 %11404, %v10658
  %v11406 = vpop.permute.xlu0 %11405
  %11407 = vset.pattern.permute.xlu0 2
  %11408 = vperm.xlu0 %11407, %v10659
  %v11409 = vpop.permute.xlu0 %11408
  %11410 = vset.pattern.permute.xlu0 2
  %11411 = vperm.xlu0 %11410, %v10660
  %v11412 = vpop.permute.xlu0 %11411
  %11413 = vset.pattern.permute.xlu0 2
  %11414 = vperm.xlu0 %11413, %v10661
  %v11415 = vpop.permute.xlu0 %11414
  %11416 = vset.pattern.permute.xlu0 2
  %11417 = vperm.xlu0 %11416, %v10662
  %v11418 = vpop.permute.xlu0 %11417
  %11419 = vset.pattern.permute.xlu0 2
  %11420 = vperm.xlu0 %11419, %v10663
  %v11421 = vpop.permute.xlu0 %11420
  %11422 = vset.pattern.permute.xlu0 2
  %11423 = vperm.xlu0 %11422, %v10664
  %v11424 = vpop.permute.xlu0 %11423
  %11425 = vset.pattern.permute.xlu0 2
  %11426 = vperm.xlu0 %11425, %v10665
  %v11427 = vpop.permute.xlu0 %11426
  %11428 = vset.pattern.permute.xlu0 2
  %11429 = vperm.xlu0 %11428, %v10666
  %v11430 = vpop.permute.xlu0 %11429
  %11431 = vset.pattern.permute.xlu0 2
  %11432 = vperm.xlu0 %11431, %v10667
  %v11433 = vpop.permute.xlu0 %11432
  %11434 = vset.pattern.permute.xlu0 2
  %11435 = vperm.xlu0 %11434, %v10668
  %v11436 = vpop.permute.xlu0 %11435
  %11437 = vset.pattern.permute.xlu0 2
  %11438 = vperm.xlu0 %11437, %v10669
  %v11439 = vpop.permute.xlu0 %11438
  %11440 = vset.pattern.permute.xlu0 2
  %11441 = vperm.xlu0 %11440, %v10670
  %v11442 = vpop.permute.xlu0 %11441
  %11443 = vset.pattern.permute.xlu0 2
  %11444 = vperm.xlu0 %11443, %v10671
  %v11445 = vpop.permute.xlu0 %11444
  %11446 = vset.pattern.permute.xlu0 2
  %11447 = vperm.xlu0 %11446, %v10672
  %v11448 = vpop.permute.xlu0 %11447
  %11449 = vset.pattern.permute.xlu0 2
  %11450 = vperm.xlu0 %11449, %v10673
  %v11451 = vpop.permute.xlu0 %11450
  %11452 = vset.pattern.permute.xlu0 2
  %11453 = vperm.xlu0 %11452, %v10674
  %v11454 = vpop.permute.xlu0 %11453
  %11455 = vset.pattern.permute.xlu0 2
  %11456 = vperm.xlu0 %11455, %v10675
  %v11457 = vpop.permute.xlu0 %11456
  %11458 = vset.pattern.permute.xlu0 2
  %11459 = vperm.xlu0 %11458, %v10676
  %v11460 = vpop.permute.xlu0 %11459
  %11461 = vset.pattern.permute.xlu0 2
  %11462 = vperm.xlu0 %11461, %v10677
  %v11463 = vpop.permute.xlu0 %11462
  %11464 = vset.pattern.permute.xlu0 2
  %11465 = vperm.xlu0 %11464, %v10678
  %v11466 = vpop.permute.xlu0 %11465
  %11467 = vset.pattern.permute.xlu0 2
  %11468 = vperm.xlu0 %11467, %v10679
  %v11469 = vpop.permute.xlu0 %11468
  %11470 = vset.pattern.permute.xlu0 2
  %11471 = vperm.xlu0 %11470, %v10680
  %v11472 = vpop.permute.xlu0 %11471
  %11473 = vset.pattern.permute.xlu0 2
  %11474 = vperm.xlu0 %11473, %v10681
  %v11475 = vpop.permute.xlu0 %11474
  %11476 = vset.pattern.permute.xlu0 2
  %11477 = vperm.xlu0 %11476, %v10682
  %v11478 = vpop.permute.xlu0 %11477
  %11479 = vset.pattern.permute.xlu0 2
  %11480 = vperm.xlu0 %11479, %v10683
  %v11481 = vpop.permute.xlu0 %11480
  %11482 = vset.pattern.permute.xlu0 2
  %11483 = vperm.xlu0 %11482, %v10684
  %v11484 = vpop.permute.xlu0 %11483
  %vm11485 = vcmp.eq.s32.totalorder %v11391, %v337
  %vm11486 = vcmp.eq.s32.totalorder %v11391, %v338
  %vm11487 = vcmp.eq.s32.totalorder %v11394, %v337
  %vm11488 = vcmp.eq.s32.totalorder %v11394, %v338
  %vm11489 = vcmp.eq.s32.totalorder %v11397, %v337
  %vm11490 = vcmp.eq.s32.totalorder %v11397, %v338
  %vm11491 = vcmp.eq.s32.totalorder %v11400, %v337
  %vm11492 = vcmp.eq.s32.totalorder %v11400, %v338
  %vm11493 = vcmp.eq.s32.totalorder %v11403, %v337
  %vm11494 = vcmp.eq.s32.totalorder %v11403, %v338
  %vm11495 = vcmp.eq.s32.totalorder %v11406, %v337
  %vm11496 = vcmp.eq.s32.totalorder %v11406, %v338
  %vm11497 = vcmp.eq.s32.totalorder %v11409, %v337
  %vm11498 = vcmp.eq.s32.totalorder %v11409, %v338
  %vm11499 = vcmp.eq.s32.totalorder %v11412, %v337
  %vm11500 = vcmp.eq.s32.totalorder %v11412, %v338
  %vm11501 = vcmp.eq.s32.totalorder %v11415, %v337
  %vm11502 = vcmp.eq.s32.totalorder %v11415, %v338
  %vm11503 = vcmp.eq.s32.totalorder %v11418, %v337
  %vm11504 = vcmp.eq.s32.totalorder %v11418, %v338
  %vm11505 = vcmp.eq.s32.totalorder %v11421, %v337
  %vm11506 = vcmp.eq.s32.totalorder %v11421, %v338
  %vm11507 = vcmp.eq.s32.totalorder %v11424, %v337
  %vm11508 = vcmp.eq.s32.totalorder %v11424, %v338
  %vm11509 = vcmp.eq.s32.totalorder %v11427, %v337
  %vm11510 = vcmp.eq.s32.totalorder %v11427, %v338
  %vm11511 = vcmp.eq.s32.totalorder %v11430, %v337
  %vm11512 = vcmp.eq.s32.totalorder %v11430, %v338
  %vm11513 = vcmp.eq.s32.totalorder %v11433, %v337
  %vm11514 = vcmp.eq.s32.totalorder %v11433, %v338
  %vm11515 = vcmp.eq.s32.totalorder %v11436, %v337
  %vm11516 = vcmp.eq.s32.totalorder %v11436, %v338
  %vm11517 = vcmp.eq.s32.totalorder %v11439, %v337
  %vm11518 = vcmp.eq.s32.totalorder %v11439, %v338
  %vm11519 = vcmp.eq.s32.totalorder %v11442, %v337
  %vm11520 = vcmp.eq.s32.totalorder %v11442, %v338
  %vm11521 = vcmp.eq.s32.totalorder %v11445, %v337
  %vm11522 = vcmp.eq.s32.totalorder %v11445, %v338
  %vm11523 = vcmp.eq.s32.totalorder %v11448, %v337
  %vm11524 = vcmp.eq.s32.totalorder %v11448, %v338
  %vm11525 = vcmp.eq.s32.totalorder %v11451, %v337
  %vm11526 = vcmp.eq.s32.totalorder %v11451, %v338
  %vm11527 = vcmp.eq.s32.totalorder %v11454, %v337
  %vm11528 = vcmp.eq.s32.totalorder %v11454, %v338
  %vm11529 = vcmp.eq.s32.totalorder %v11457, %v337
  %vm11530 = vcmp.eq.s32.totalorder %v11457, %v338
  %vm11531 = vcmp.eq.s32.totalorder %v11460, %v337
  %vm11532 = vcmp.eq.s32.totalorder %v11460, %v338
  %vm11533 = vcmp.eq.s32.totalorder %v11463, %v337
  %vm11534 = vcmp.eq.s32.totalorder %v11463, %v338
  %vm11535 = vcmp.eq.s32.totalorder %v11466, %v337
  %vm11536 = vcmp.eq.s32.totalorder %v11466, %v338
  %vm11537 = vcmp.eq.s32.totalorder %v11469, %v337
  %vm11538 = vcmp.eq.s32.totalorder %v11469, %v338
  %vm11539 = vcmp.eq.s32.totalorder %v11472, %v337
  %vm11540 = vcmp.eq.s32.totalorder %v11472, %v338
  %vm11541 = vcmp.eq.s32.totalorder %v11475, %v337
  %vm11542 = vcmp.eq.s32.totalorder %v11475, %v338
  %vm11543 = vcmp.eq.s32.totalorder %v11478, %v337
  %vm11544 = vcmp.eq.s32.totalorder %v11478, %v338
  %vm11545 = vcmp.eq.s32.totalorder %v11481, %v337
  %vm11546 = vcmp.eq.s32.totalorder %v11481, %v338
  %vm11547 = vcmp.eq.s32.totalorder %v11484, %v337
  %vm11548 = vcmp.eq.s32.totalorder %v11484, %v338
  %v11549 = vsel %vm11485, 1, 0
  %v11550 = vsel %vm11486, 1, 0
  %v11551 = vsel %vm11487, 1, 0
  %v11552 = vsel %vm11488, 1, 0
  %v11553 = vsel %vm11489, 1, 0
  %v11554 = vsel %vm11490, 1, 0
  %v11555 = vsel %vm11491, 1, 0
  %v11556 = vsel %vm11492, 1, 0
  %v11557 = vsel %vm11493, 1, 0
  %v11558 = vsel %vm11494, 1, 0
  %v11559 = vsel %vm11495, 1, 0
  %v11560 = vsel %vm11496, 1, 0
  %v11561 = vsel %vm11497, 1, 0
  %v11562 = vsel %vm11498, 1, 0
  %v11563 = vsel %vm11499, 1, 0
  %v11564 = vsel %vm11500, 1, 0
  %v11565 = vsel %vm11501, 1, 0
  %v11566 = vsel %vm11502, 1, 0
  %v11567 = vsel %vm11503, 1, 0
  %v11568 = vsel %vm11504, 1, 0
  %v11569 = vsel %vm11505, 1, 0
  %v11570 = vsel %vm11506, 1, 0
  %v11571 = vsel %vm11507, 1, 0
  %v11572 = vsel %vm11508, 1, 0
  %v11573 = vsel %vm11509, 1, 0
  %v11574 = vsel %vm11510, 1, 0
  %v11575 = vsel %vm11511, 1, 0
  %v11576 = vsel %vm11512, 1, 0
  %v11577 = vsel %vm11513, 1, 0
  %v11578 = vsel %vm11514, 1, 0
  %v11579 = vsel %vm11515, 1, 0
  %v11580 = vsel %vm11516, 1, 0
  %v11581 = vsel %vm11517, 1, 0
  %v11582 = vsel %vm11518, 1, 0
  %v11583 = vsel %vm11519, 1, 0
  %v11584 = vsel %vm11520, 1, 0
  %v11585 = vsel %vm11521, 1, 0
  %v11586 = vsel %vm11522, 1, 0
  %v11587 = vsel %vm11523, 1, 0
  %v11588 = vsel %vm11524, 1, 0
  %v11589 = vsel %vm11525, 1, 0
  %v11590 = vsel %vm11526, 1, 0
  %v11591 = vsel %vm11527, 1, 0
  %v11592 = vsel %vm11528, 1, 0
  %v11593 = vsel %vm11529, 1, 0
  %v11594 = vsel %vm11530, 1, 0
  %v11595 = vsel %vm11531, 1, 0
  %v11596 = vsel %vm11532, 1, 0
  %v11597 = vsel %vm11533, 1, 0
  %v11598 = vsel %vm11534, 1, 0
  %v11599 = vsel %vm11535, 1, 0
  %v11600 = vsel %vm11536, 1, 0
  %v11601 = vsel %vm11537, 1, 0
  %v11602 = vsel %vm11538, 1, 0
  %v11603 = vsel %vm11539, 1, 0
  %v11604 = vsel %vm11540, 1, 0
  %v11605 = vsel %vm11541, 1, 0
  %v11606 = vsel %vm11542, 1, 0
  %v11607 = vsel %vm11543, 1, 0
  %v11608 = vsel %vm11544, 1, 0
  %v11609 = vsel %vm11545, 1, 0
  %v11610 = vsel %vm11546, 1, 0
  %v11611 = vsel %vm11547, 1, 0
  %v11612 = vsel %vm11548, 1, 0
  %v11613 = vcvt.s32.f32 %v11549
  %v11614 = vcvt.s32.f32 %v11550
  %v11615 = vcvt.s32.f32 %v11551
  %v11616 = vcvt.s32.f32 %v11552
  %v11617 = vcvt.s32.f32 %v11553
  %v11618 = vcvt.s32.f32 %v11554
  %v11619 = vcvt.s32.f32 %v11555
  %v11620 = vcvt.s32.f32 %v11556
  %v11621 = vcvt.s32.f32 %v11557
  %v11622 = vcvt.s32.f32 %v11558
  %v11623 = vcvt.s32.f32 %v11559
  %v11624 = vcvt.s32.f32 %v11560
  %v11625 = vcvt.s32.f32 %v11561
  %v11626 = vcvt.s32.f32 %v11562
  %v11627 = vcvt.s32.f32 %v11563
  %v11628 = vcvt.s32.f32 %v11564
  %v11629 = vcvt.s32.f32 %v11565
  %v11630 = vcvt.s32.f32 %v11566
  %v11631 = vcvt.s32.f32 %v11567
  %v11632 = vcvt.s32.f32 %v11568
  %v11633 = vcvt.s32.f32 %v11569
  %v11634 = vcvt.s32.f32 %v11570
  %v11635 = vcvt.s32.f32 %v11571
  %v11636 = vcvt.s32.f32 %v11572
  %v11637 = vcvt.s32.f32 %v11573
  %v11638 = vcvt.s32.f32 %v11574
  %v11639 = vcvt.s32.f32 %v11575
  %v11640 = vcvt.s32.f32 %v11576
  %v11641 = vcvt.s32.f32 %v11577
  %v11642 = vcvt.s32.f32 %v11578
  %v11643 = vcvt.s32.f32 %v11579
  %v11644 = vcvt.s32.f32 %v11580
  %v11645 = vcvt.s32.f32 %v11581
  %v11646 = vcvt.s32.f32 %v11582
  %v11647 = vcvt.s32.f32 %v11583
  %v11648 = vcvt.s32.f32 %v11584
  %v11649 = vcvt.s32.f32 %v11585
  %v11650 = vcvt.s32.f32 %v11586
  %v11651 = vcvt.s32.f32 %v11587
  %v11652 = vcvt.s32.f32 %v11588
  %v11653 = vcvt.s32.f32 %v11589
  %v11654 = vcvt.s32.f32 %v11590
  %v11655 = vcvt.s32.f32 %v11591
  %v11656 = vcvt.s32.f32 %v11592
  %v11657 = vcvt.s32.f32 %v11593
  %v11658 = vcvt.s32.f32 %v11594
  %v11659 = vcvt.s32.f32 %v11595
  %v11660 = vcvt.s32.f32 %v11596
  %v11661 = vcvt.s32.f32 %v11597
  %v11662 = vcvt.s32.f32 %v11598
  %v11663 = vcvt.s32.f32 %v11599
  %v11664 = vcvt.s32.f32 %v11600
  %v11665 = vcvt.s32.f32 %v11601
  %v11666 = vcvt.s32.f32 %v11602
  %v11667 = vcvt.s32.f32 %v11603
  %v11668 = vcvt.s32.f32 %v11604
  %v11669 = vcvt.s32.f32 %v11605
  %v11670 = vcvt.s32.f32 %v11606
  %v11671 = vcvt.s32.f32 %v11607
  %v11672 = vcvt.s32.f32 %v11608
  %v11673 = vcvt.s32.f32 %v11609
  %v11674 = vcvt.s32.f32 %v11610
  %v11675 = vcvt.s32.f32 %v11611
  %v11676 = vcvt.s32.f32 %v11612
  %v11677 = vpack.c.bf16 %v11615, %v11613
  %v11678 = vpack.c.bf16 %v11616, %v11614
  %v11679 = vpack.c.bf16 %v11619, %v11617
  %v11680 = vpack.c.bf16 %v11620, %v11618
  %v11681 = vpack.c.bf16 %v11623, %v11621
  %v11682 = vpack.c.bf16 %v11624, %v11622
  %v11683 = vpack.c.bf16 %v11627, %v11625
  %v11684 = vpack.c.bf16 %v11628, %v11626
  %v11685 = vpack.c.bf16 %v11631, %v11629
  %v11686 = vpack.c.bf16 %v11632, %v11630
  %v11687 = vpack.c.bf16 %v11635, %v11633
  %v11688 = vpack.c.bf16 %v11636, %v11634
  %v11689 = vpack.c.bf16 %v11639, %v11637
  %v11690 = vpack.c.bf16 %v11640, %v11638
  %v11691 = vpack.c.bf16 %v11643, %v11641
  %v11692 = vpack.c.bf16 %v11644, %v11642
  %v11693 = vpack.c.bf16 %v11647, %v11645
  %v11694 = vpack.c.bf16 %v11648, %v11646
  %v11695 = vpack.c.bf16 %v11651, %v11649
  %v11696 = vpack.c.bf16 %v11652, %v11650
  %v11697 = vpack.c.bf16 %v11655, %v11653
  %v11698 = vpack.c.bf16 %v11656, %v11654
  %v11699 = vpack.c.bf16 %v11659, %v11657
  %v11700 = vpack.c.bf16 %v11660, %v11658
  %v11701 = vpack.c.bf16 %v11663, %v11661
  %v11702 = vpack.c.bf16 %v11664, %v11662
  %v11703 = vpack.c.bf16 %v11667, %v11665
  %v11704 = vpack.c.bf16 %v11668, %v11666
  %v11705 = vpack.c.bf16 %v11671, %v11669
  %v11706 = vpack.c.bf16 %v11672, %v11670
  %v11707 = vpack.c.bf16 %v11675, %v11673
  %v11708 = vpack.c.bf16 %v11676, %v11674
  %v11709 = vadd.bf16 %v11357, %v11677
  %v11710 = vadd.bf16 %v11358, %v11678
  %v11711 = vadd.bf16 %v11359, %v11679
  %v11712 = vadd.bf16 %v11360, %v11680
  %v11713 = vadd.bf16 %v11361, %v11681
  %v11714 = vadd.bf16 %v11362, %v11682
  %v11715 = vadd.bf16 %v11363, %v11683
  %v11716 = vadd.bf16 %v11364, %v11684
  %v11717 = vadd.bf16 %v11365, %v11685
  %v11718 = vadd.bf16 %v11366, %v11686
  %v11719 = vadd.bf16 %v11367, %v11687
  %v11720 = vadd.bf16 %v11368, %v11688
  %v11721 = vadd.bf16 %v11369, %v11689
  %v11722 = vadd.bf16 %v11370, %v11690
  %v11723 = vadd.bf16 %v11371, %v11691
  %v11724 = vadd.bf16 %v11372, %v11692
  %v11725 = vadd.bf16 %v11373, %v11693
  %v11726 = vadd.bf16 %v11374, %v11694
  %v11727 = vadd.bf16 %v11375, %v11695
  %v11728 = vadd.bf16 %v11376, %v11696
  %v11729 = vadd.bf16 %v11377, %v11697
  %v11730 = vadd.bf16 %v11378, %v11698
  %v11731 = vadd.bf16 %v11379, %v11699
  %v11732 = vadd.bf16 %v11380, %v11700
  %v11733 = vadd.bf16 %v11381, %v11701
  %v11734 = vadd.bf16 %v11382, %v11702
  %v11735 = vadd.bf16 %v11383, %v11703
  %v11736 = vadd.bf16 %v11384, %v11704
  %v11737 = vadd.bf16 %v11385, %v11705
  %v11738 = vadd.bf16 %v11386, %v11706
  %v11739 = vadd.bf16 %v11387, %v11707
  %v11740 = vadd.bf16 %v11388, %v11708
  %11741 = vset.pattern.permute.xlu0 3
  %11742 = vperm.xlu0 %11741, %v10653
  %v11743 = vpop.permute.xlu0 %11742
  %11744 = vset.pattern.permute.xlu0 3
  %11745 = vperm.xlu0 %11744, %v10654
  %v11746 = vpop.permute.xlu0 %11745
  %11747 = vset.pattern.permute.xlu0 3
  %11748 = vperm.xlu0 %11747, %v10655
  %v11749 = vpop.permute.xlu0 %11748
  %11750 = vset.pattern.permute.xlu0 3
  %11751 = vperm.xlu0 %11750, %v10656
  %v11752 = vpop.permute.xlu0 %11751
  %11753 = vset.pattern.permute.xlu0 3
  %11754 = vperm.xlu0 %11753, %v10657
  %v11755 = vpop.permute.xlu0 %11754
  %11756 = vset.pattern.permute.xlu0 3
  %11757 = vperm.xlu0 %11756, %v10658
  %v11758 = vpop.permute.xlu0 %11757
  %11759 = vset.pattern.permute.xlu0 3
  %11760 = vperm.xlu0 %11759, %v10659
  %v11761 = vpop.permute.xlu0 %11760
  %11762 = vset.pattern.permute.xlu0 3
  %11763 = vperm.xlu0 %11762, %v10660
  %v11764 = vpop.permute.xlu0 %11763
  %11765 = vset.pattern.permute.xlu0 3
  %11766 = vperm.xlu0 %11765, %v10661
  %v11767 = vpop.permute.xlu0 %11766
  %11768 = vset.pattern.permute.xlu0 3
  %11769 = vperm.xlu0 %11768, %v10662
  %v11770 = vpop.permute.xlu0 %11769
  %11771 = vset.pattern.permute.xlu0 3
  %11772 = vperm.xlu0 %11771, %v10663
  %v11773 = vpop.permute.xlu0 %11772
  %11774 = vset.pattern.permute.xlu0 3
  %11775 = vperm.xlu0 %11774, %v10664
  %v11776 = vpop.permute.xlu0 %11775
  %11777 = vset.pattern.permute.xlu0 3
  %11778 = vperm.xlu0 %11777, %v10665
  %v11779 = vpop.permute.xlu0 %11778
  %11780 = vset.pattern.permute.xlu0 3
  %11781 = vperm.xlu0 %11780, %v10666
  %v11782 = vpop.permute.xlu0 %11781
  %11783 = vset.pattern.permute.xlu0 3
  %11784 = vperm.xlu0 %11783, %v10667
  %v11785 = vpop.permute.xlu0 %11784
  %11786 = vset.pattern.permute.xlu0 3
  %11787 = vperm.xlu0 %11786, %v10668
  %v11788 = vpop.permute.xlu0 %11787
  %11789 = vset.pattern.permute.xlu0 3
  %11790 = vperm.xlu0 %11789, %v10669
  %v11791 = vpop.permute.xlu0 %11790
  %11792 = vset.pattern.permute.xlu0 3
  %11793 = vperm.xlu0 %11792, %v10670
  %v11794 = vpop.permute.xlu0 %11793
  %11795 = vset.pattern.permute.xlu0 3
  %11796 = vperm.xlu0 %11795, %v10671
  %v11797 = vpop.permute.xlu0 %11796
  %11798 = vset.pattern.permute.xlu0 3
  %11799 = vperm.xlu0 %11798, %v10672
  %v11800 = vpop.permute.xlu0 %11799
  %11801 = vset.pattern.permute.xlu0 3
  %11802 = vperm.xlu0 %11801, %v10673
  %v11803 = vpop.permute.xlu0 %11802
  %11804 = vset.pattern.permute.xlu0 3
  %11805 = vperm.xlu0 %11804, %v10674
  %v11806 = vpop.permute.xlu0 %11805
  %11807 = vset.pattern.permute.xlu0 3
  %11808 = vperm.xlu0 %11807, %v10675
  %v11809 = vpop.permute.xlu0 %11808
  %11810 = vset.pattern.permute.xlu0 3
  %11811 = vperm.xlu0 %11810, %v10676
  %v11812 = vpop.permute.xlu0 %11811
  %11813 = vset.pattern.permute.xlu0 3
  %11814 = vperm.xlu0 %11813, %v10677
  %v11815 = vpop.permute.xlu0 %11814
  %11816 = vset.pattern.permute.xlu0 3
  %11817 = vperm.xlu0 %11816, %v10678
  %v11818 = vpop.permute.xlu0 %11817
  %11819 = vset.pattern.permute.xlu0 3
  %11820 = vperm.xlu0 %11819, %v10679
  %v11821 = vpop.permute.xlu0 %11820
  %11822 = vset.pattern.permute.xlu0 3
  %11823 = vperm.xlu0 %11822, %v10680
  %v11824 = vpop.permute.xlu0 %11823
  %11825 = vset.pattern.permute.xlu0 3
  %11826 = vperm.xlu0 %11825, %v10681
  %v11827 = vpop.permute.xlu0 %11826
  %11828 = vset.pattern.permute.xlu0 3
  %11829 = vperm.xlu0 %11828, %v10682
  %v11830 = vpop.permute.xlu0 %11829
  %11831 = vset.pattern.permute.xlu0 3
  %11832 = vperm.xlu0 %11831, %v10683
  %v11833 = vpop.permute.xlu0 %11832
  %11834 = vset.pattern.permute.xlu0 3
  %11835 = vperm.xlu0 %11834, %v10684
  %v11836 = vpop.permute.xlu0 %11835
  %vm11837 = vcmp.eq.s32.totalorder %v11743, %v337
  %vm11838 = vcmp.eq.s32.totalorder %v11743, %v338
  %vm11839 = vcmp.eq.s32.totalorder %v11746, %v337
  %vm11840 = vcmp.eq.s32.totalorder %v11746, %v338
  %vm11841 = vcmp.eq.s32.totalorder %v11749, %v337
  %vm11842 = vcmp.eq.s32.totalorder %v11749, %v338
  %vm11843 = vcmp.eq.s32.totalorder %v11752, %v337
  %vm11844 = vcmp.eq.s32.totalorder %v11752, %v338
  %vm11845 = vcmp.eq.s32.totalorder %v11755, %v337
  %vm11846 = vcmp.eq.s32.totalorder %v11755, %v338
  %vm11847 = vcmp.eq.s32.totalorder %v11758, %v337
  %vm11848 = vcmp.eq.s32.totalorder %v11758, %v338
  %vm11849 = vcmp.eq.s32.totalorder %v11761, %v337
  %vm11850 = vcmp.eq.s32.totalorder %v11761, %v338
  %vm11851 = vcmp.eq.s32.totalorder %v11764, %v337
  %vm11852 = vcmp.eq.s32.totalorder %v11764, %v338
  %vm11853 = vcmp.eq.s32.totalorder %v11767, %v337
  %vm11854 = vcmp.eq.s32.totalorder %v11767, %v338
  %vm11855 = vcmp.eq.s32.totalorder %v11770, %v337
  %vm11856 = vcmp.eq.s32.totalorder %v11770, %v338
  %vm11857 = vcmp.eq.s32.totalorder %v11773, %v337
  %vm11858 = vcmp.eq.s32.totalorder %v11773, %v338
  %vm11859 = vcmp.eq.s32.totalorder %v11776, %v337
  %vm11860 = vcmp.eq.s32.totalorder %v11776, %v338
  %vm11861 = vcmp.eq.s32.totalorder %v11779, %v337
  %vm11862 = vcmp.eq.s32.totalorder %v11779, %v338
  %vm11863 = vcmp.eq.s32.totalorder %v11782, %v337
  %vm11864 = vcmp.eq.s32.totalorder %v11782, %v338
  %vm11865 = vcmp.eq.s32.totalorder %v11785, %v337
  %vm11866 = vcmp.eq.s32.totalorder %v11785, %v338
  %vm11867 = vcmp.eq.s32.totalorder %v11788, %v337
  %vm11868 = vcmp.eq.s32.totalorder %v11788, %v338
  %vm11869 = vcmp.eq.s32.totalorder %v11791, %v337
  %vm11870 = vcmp.eq.s32.totalorder %v11791, %v338
  %vm11871 = vcmp.eq.s32.totalorder %v11794, %v337
  %vm11872 = vcmp.eq.s32.totalorder %v11794, %v338
  %vm11873 = vcmp.eq.s32.totalorder %v11797, %v337
  %vm11874 = vcmp.eq.s32.totalorder %v11797, %v338
  %vm11875 = vcmp.eq.s32.totalorder %v11800, %v337
  %vm11876 = vcmp.eq.s32.totalorder %v11800, %v338
  %vm11877 = vcmp.eq.s32.totalorder %v11803, %v337
  %vm11878 = vcmp.eq.s32.totalorder %v11803, %v338
  %vm11879 = vcmp.eq.s32.totalorder %v11806, %v337
  %vm11880 = vcmp.eq.s32.totalorder %v11806, %v338
  %vm11881 = vcmp.eq.s32.totalorder %v11809, %v337
  %vm11882 = vcmp.eq.s32.totalorder %v11809, %v338
  %vm11883 = vcmp.eq.s32.totalorder %v11812, %v337
  %vm11884 = vcmp.eq.s32.totalorder %v11812, %v338
  %vm11885 = vcmp.eq.s32.totalorder %v11815, %v337
  %vm11886 = vcmp.eq.s32.totalorder %v11815, %v338
  %vm11887 = vcmp.eq.s32.totalorder %v11818, %v337
  %vm11888 = vcmp.eq.s32.totalorder %v11818, %v338
  %vm11889 = vcmp.eq.s32.totalorder %v11821, %v337
  %vm11890 = vcmp.eq.s32.totalorder %v11821, %v338
  %vm11891 = vcmp.eq.s32.totalorder %v11824, %v337
  %vm11892 = vcmp.eq.s32.totalorder %v11824, %v338
  %vm11893 = vcmp.eq.s32.totalorder %v11827, %v337
  %vm11894 = vcmp.eq.s32.totalorder %v11827, %v338
  %vm11895 = vcmp.eq.s32.totalorder %v11830, %v337
  %vm11896 = vcmp.eq.s32.totalorder %v11830, %v338
  %vm11897 = vcmp.eq.s32.totalorder %v11833, %v337
  %vm11898 = vcmp.eq.s32.totalorder %v11833, %v338
  %vm11899 = vcmp.eq.s32.totalorder %v11836, %v337
  %vm11900 = vcmp.eq.s32.totalorder %v11836, %v338
  %v11901 = vsel %vm11837, 1, 0
  %v11902 = vsel %vm11838, 1, 0
  %v11903 = vsel %vm11839, 1, 0
  %v11904 = vsel %vm11840, 1, 0
  %v11905 = vsel %vm11841, 1, 0
  %v11906 = vsel %vm11842, 1, 0
  %v11907 = vsel %vm11843, 1, 0
  %v11908 = vsel %vm11844, 1, 0
  %v11909 = vsel %vm11845, 1, 0
  %v11910 = vsel %vm11846, 1, 0
  %v11911 = vsel %vm11847, 1, 0
  %v11912 = vsel %vm11848, 1, 0
  %v11913 = vsel %vm11849, 1, 0
  %v11914 = vsel %vm11850, 1, 0
  %v11915 = vsel %vm11851, 1, 0
  %v11916 = vsel %vm11852, 1, 0
  %v11917 = vsel %vm11853, 1, 0
  %v11918 = vsel %vm11854, 1, 0
  %v11919 = vsel %vm11855, 1, 0
  %v11920 = vsel %vm11856, 1, 0
  %v11921 = vsel %vm11857, 1, 0
  %v11922 = vsel %vm11858, 1, 0
  %v11923 = vsel %vm11859, 1, 0
  %v11924 = vsel %vm11860, 1, 0
  %v11925 = vsel %vm11861, 1, 0
  %v11926 = vsel %vm11862, 1, 0
  %v11927 = vsel %vm11863, 1, 0
  %v11928 = vsel %vm11864, 1, 0
  %v11929 = vsel %vm11865, 1, 0
  %v11930 = vsel %vm11866, 1, 0
  %v11931 = vsel %vm11867, 1, 0
  %v11932 = vsel %vm11868, 1, 0
  %v11933 = vsel %vm11869, 1, 0
  %v11934 = vsel %vm11870, 1, 0
  %v11935 = vsel %vm11871, 1, 0
  %v11936 = vsel %vm11872, 1, 0
  %v11937 = vsel %vm11873, 1, 0
  %v11938 = vsel %vm11874, 1, 0
  %v11939 = vsel %vm11875, 1, 0
  %v11940 = vsel %vm11876, 1, 0
  %v11941 = vsel %vm11877, 1, 0
  %v11942 = vsel %vm11878, 1, 0
  %v11943 = vsel %vm11879, 1, 0
  %v11944 = vsel %vm11880, 1, 0
  %v11945 = vsel %vm11881, 1, 0
  %v11946 = vsel %vm11882, 1, 0
  %v11947 = vsel %vm11883, 1, 0
  %v11948 = vsel %vm11884, 1, 0
  %v11949 = vsel %vm11885, 1, 0
  %v11950 = vsel %vm11886, 1, 0
  %v11951 = vsel %vm11887, 1, 0
  %v11952 = vsel %vm11888, 1, 0
  %v11953 = vsel %vm11889, 1, 0
  %v11954 = vsel %vm11890, 1, 0
  %v11955 = vsel %vm11891, 1, 0
  %v11956 = vsel %vm11892, 1, 0
  %v11957 = vsel %vm11893, 1, 0
  %v11958 = vsel %vm11894, 1, 0
  %v11959 = vsel %vm11895, 1, 0
  %v11960 = vsel %vm11896, 1, 0
  %v11961 = vsel %vm11897, 1, 0
  %v11962 = vsel %vm11898, 1, 0
  %v11963 = vsel %vm11899, 1, 0
  %v11964 = vsel %vm11900, 1, 0
  %v11965 = vcvt.s32.f32 %v11901
  %v11966 = vcvt.s32.f32 %v11902
  %v11967 = vcvt.s32.f32 %v11903
  %v11968 = vcvt.s32.f32 %v11904
  %v11969 = vcvt.s32.f32 %v11905
  %v11970 = vcvt.s32.f32 %v11906
  %v11971 = vcvt.s32.f32 %v11907
  %v11972 = vcvt.s32.f32 %v11908
  %v11973 = vcvt.s32.f32 %v11909
  %v11974 = vcvt.s32.f32 %v11910
  %v11975 = vcvt.s32.f32 %v11911
  %v11976 = vcvt.s32.f32 %v11912
  %v11977 = vcvt.s32.f32 %v11913
  %v11978 = vcvt.s32.f32 %v11914
  %v11979 = vcvt.s32.f32 %v11915
  %v11980 = vcvt.s32.f32 %v11916
  %v11981 = vcvt.s32.f32 %v11917
  %v11982 = vcvt.s32.f32 %v11918
  %v11983 = vcvt.s32.f32 %v11919
  %v11984 = vcvt.s32.f32 %v11920
  %v11985 = vcvt.s32.f32 %v11921
  %v11986 = vcvt.s32.f32 %v11922
  %v11987 = vcvt.s32.f32 %v11923
  %v11988 = vcvt.s32.f32 %v11924
  %v11989 = vcvt.s32.f32 %v11925
  %v11990 = vcvt.s32.f32 %v11926
  %v11991 = vcvt.s32.f32 %v11927
  %v11992 = vcvt.s32.f32 %v11928
  %v11993 = vcvt.s32.f32 %v11929
  %v11994 = vcvt.s32.f32 %v11930
  %v11995 = vcvt.s32.f32 %v11931
  %v11996 = vcvt.s32.f32 %v11932
  %v11997 = vcvt.s32.f32 %v11933
  %v11998 = vcvt.s32.f32 %v11934
  %v11999 = vcvt.s32.f32 %v11935
  %v12000 = vcvt.s32.f32 %v11936
  %v12001 = vcvt.s32.f32 %v11937
  %v12002 = vcvt.s32.f32 %v11938
  %v12003 = vcvt.s32.f32 %v11939
  %v12004 = vcvt.s32.f32 %v11940
  %v12005 = vcvt.s32.f32 %v11941
  %v12006 = vcvt.s32.f32 %v11942
  %v12007 = vcvt.s32.f32 %v11943
  %v12008 = vcvt.s32.f32 %v11944
  %v12009 = vcvt.s32.f32 %v11945
  %v12010 = vcvt.s32.f32 %v11946
  %v12011 = vcvt.s32.f32 %v11947
  %v12012 = vcvt.s32.f32 %v11948
  %v12013 = vcvt.s32.f32 %v11949
  %v12014 = vcvt.s32.f32 %v11950
  %v12015 = vcvt.s32.f32 %v11951
  %v12016 = vcvt.s32.f32 %v11952
  %v12017 = vcvt.s32.f32 %v11953
  %v12018 = vcvt.s32.f32 %v11954
  %v12019 = vcvt.s32.f32 %v11955
  %v12020 = vcvt.s32.f32 %v11956
  %v12021 = vcvt.s32.f32 %v11957
  %v12022 = vcvt.s32.f32 %v11958
  %v12023 = vcvt.s32.f32 %v11959
  %v12024 = vcvt.s32.f32 %v11960
  %v12025 = vcvt.s32.f32 %v11961
  %v12026 = vcvt.s32.f32 %v11962
  %v12027 = vcvt.s32.f32 %v11963
  %v12028 = vcvt.s32.f32 %v11964
  %v12029 = vpack.c.bf16 %v11967, %v11965
  %v12030 = vpack.c.bf16 %v11968, %v11966
  %v12031 = vpack.c.bf16 %v11971, %v11969
  %v12032 = vpack.c.bf16 %v11972, %v11970
  %v12033 = vpack.c.bf16 %v11975, %v11973
  %v12034 = vpack.c.bf16 %v11976, %v11974
  %v12035 = vpack.c.bf16 %v11979, %v11977
  %v12036 = vpack.c.bf16 %v11980, %v11978
  %v12037 = vpack.c.bf16 %v11983, %v11981
  %v12038 = vpack.c.bf16 %v11984, %v11982
  %v12039 = vpack.c.bf16 %v11987, %v11985
  %v12040 = vpack.c.bf16 %v11988, %v11986
  %v12041 = vpack.c.bf16 %v11991, %v11989
  %v12042 = vpack.c.bf16 %v11992, %v11990
  %v12043 = vpack.c.bf16 %v11995, %v11993
  %v12044 = vpack.c.bf16 %v11996, %v11994
  %v12045 = vpack.c.bf16 %v11999, %v11997
  %v12046 = vpack.c.bf16 %v12000, %v11998
  %v12047 = vpack.c.bf16 %v12003, %v12001
  %v12048 = vpack.c.bf16 %v12004, %v12002
  %v12049 = vpack.c.bf16 %v12007, %v12005
  %v12050 = vpack.c.bf16 %v12008, %v12006
  %v12051 = vpack.c.bf16 %v12011, %v12009
  %v12052 = vpack.c.bf16 %v12012, %v12010
  %v12053 = vpack.c.bf16 %v12015, %v12013
  %v12054 = vpack.c.bf16 %v12016, %v12014
  %v12055 = vpack.c.bf16 %v12019, %v12017
  %v12056 = vpack.c.bf16 %v12020, %v12018
  %v12057 = vpack.c.bf16 %v12023, %v12021
  %v12058 = vpack.c.bf16 %v12024, %v12022
  %v12059 = vpack.c.bf16 %v12027, %v12025
  %v12060 = vpack.c.bf16 %v12028, %v12026
  %v12061 = vadd.bf16 %v11709, %v12029
  %v12062 = vadd.bf16 %v11710, %v12030
  %v12063 = vadd.bf16 %v11711, %v12031
  %v12064 = vadd.bf16 %v11712, %v12032
  %v12065 = vadd.bf16 %v11713, %v12033
  %v12066 = vadd.bf16 %v11714, %v12034
  %v12067 = vadd.bf16 %v11715, %v12035
  %v12068 = vadd.bf16 %v11716, %v12036
  %v12069 = vadd.bf16 %v11717, %v12037
  %v12070 = vadd.bf16 %v11718, %v12038
  %v12071 = vadd.bf16 %v11719, %v12039
  %v12072 = vadd.bf16 %v11720, %v12040
  %v12073 = vadd.bf16 %v11721, %v12041
  %v12074 = vadd.bf16 %v11722, %v12042
  %v12075 = vadd.bf16 %v11723, %v12043
  %v12076 = vadd.bf16 %v11724, %v12044
  %v12077 = vadd.bf16 %v11725, %v12045
  %v12078 = vadd.bf16 %v11726, %v12046
  %v12079 = vadd.bf16 %v11727, %v12047
  %v12080 = vadd.bf16 %v11728, %v12048
  %v12081 = vadd.bf16 %v11729, %v12049
  %v12082 = vadd.bf16 %v11730, %v12050
  %v12083 = vadd.bf16 %v11731, %v12051
  %v12084 = vadd.bf16 %v11732, %v12052
  %v12085 = vadd.bf16 %v11733, %v12053
  %v12086 = vadd.bf16 %v11734, %v12054
  %v12087 = vadd.bf16 %v11735, %v12055
  %v12088 = vadd.bf16 %v11736, %v12056
  %v12089 = vadd.bf16 %v11737, %v12057
  %v12090 = vadd.bf16 %v11738, %v12058
  %v12091 = vadd.bf16 %v11739, %v12059
  %v12092 = vadd.bf16 %v11740, %v12060
  %v12093 = vld [vmem:[%s1 + $0x280] sm:$0xf]
  %v12094 = vld [vmem:[%s1 + $0x284] sm:$0xf]
  %v12095 = vld [vmem:[%s1 + $0x288] sm:$0xf]
  %v12096 = vld [vmem:[%s1 + $0x28c] sm:$0xf]
  %v12097 = vld [vmem:[%s1 + $0x290] sm:$0xf]
  %v12098 = vld [vmem:[%s1 + $0x294] sm:$0xf]
  %v12099 = vld [vmem:[%s1 + $0x298] sm:$0xf]
  %v12100 = vld [vmem:[%s1 + $0x29c] sm:$0xf]
  %v12101 = vld [vmem:[%s1 + $0x2a0] sm:$0xf]
  %v12102 = vld [vmem:[%s1 + $0x2a4] sm:$0xf]
  %v12103 = vld [vmem:[%s1 + $0x2a8] sm:$0xf]
  %v12104 = vld [vmem:[%s1 + $0x2ac] sm:$0xf]
  %v12105 = vld [vmem:[%s1 + $0x2b0] sm:$0xf]
  %v12106 = vld [vmem:[%s1 + $0x2b4] sm:$0xf]
  %v12107 = vld [vmem:[%s1 + $0x2b8] sm:$0xf]
  %v12108 = vld [vmem:[%s1 + $0x2bc] sm:$0xf]
  %v12109 = vld [vmem:[%s1 + $0x2c0] sm:$0xf]
  %v12110 = vld [vmem:[%s1 + $0x2c4] sm:$0xf]
  %v12111 = vld [vmem:[%s1 + $0x2c8] sm:$0xf]
  %v12112 = vld [vmem:[%s1 + $0x2cc] sm:$0xf]
  %v12113 = vld [vmem:[%s1 + $0x2d0] sm:$0xf]
  %v12114 = vld [vmem:[%s1 + $0x2d4] sm:$0xf]
  %v12115 = vld [vmem:[%s1 + $0x2d8] sm:$0xf]
  %v12116 = vld [vmem:[%s1 + $0x2dc] sm:$0xf]
  %v12117 = vld [vmem:[%s1 + $0x2e0] sm:$0xf]
  %v12118 = vld [vmem:[%s1 + $0x2e4] sm:$0xf]
  %v12119 = vld [vmem:[%s1 + $0x2e8] sm:$0xf]
  %v12120 = vld [vmem:[%s1 + $0x2ec] sm:$0xf]
  %v12121 = vld [vmem:[%s1 + $0x2f0] sm:$0xf]
  %v12122 = vld [vmem:[%s1 + $0x2f4] sm:$0xf]
  %v12123 = vld [vmem:[%s1 + $0x2f8] sm:$0xf]
  %v12124 = vld [vmem:[%s1 + $0x2fc] sm:$0xf]
  %v12125 = vld [vmem:[%s2 + $0x280] sm:$0xf]
  %v12126 = vld [vmem:[%s2 + $0x284] sm:$0xf]
  %v12127 = vld [vmem:[%s2 + $0x288] sm:$0xf]
  %v12128 = vld [vmem:[%s2 + $0x28c] sm:$0xf]
  %v12129 = vld [vmem:[%s2 + $0x290] sm:$0xf]
  %v12130 = vld [vmem:[%s2 + $0x294] sm:$0xf]
  %v12131 = vld [vmem:[%s2 + $0x298] sm:$0xf]
  %v12132 = vld [vmem:[%s2 + $0x29c] sm:$0xf]
  %v12133 = vld [vmem:[%s2 + $0x2a0] sm:$0xf]
  %v12134 = vld [vmem:[%s2 + $0x2a4] sm:$0xf]
  %v12135 = vld [vmem:[%s2 + $0x2a8] sm:$0xf]
  %v12136 = vld [vmem:[%s2 + $0x2ac] sm:$0xf]
  %v12137 = vld [vmem:[%s2 + $0x2b0] sm:$0xf]
  %v12138 = vld [vmem:[%s2 + $0x2b4] sm:$0xf]
  %v12139 = vld [vmem:[%s2 + $0x2b8] sm:$0xf]
  %v12140 = vld [vmem:[%s2 + $0x2bc] sm:$0xf]
  %v12141 = vld [vmem:[%s2 + $0x2c0] sm:$0xf]
  %v12142 = vld [vmem:[%s2 + $0x2c4] sm:$0xf]
  %v12143 = vld [vmem:[%s2 + $0x2c8] sm:$0xf]
  %v12144 = vld [vmem:[%s2 + $0x2cc] sm:$0xf]
  %v12145 = vld [vmem:[%s2 + $0x2d0] sm:$0xf]
  %v12146 = vld [vmem:[%s2 + $0x2d4] sm:$0xf]
  %v12147 = vld [vmem:[%s2 + $0x2d8] sm:$0xf]
  %v12148 = vld [vmem:[%s2 + $0x2dc] sm:$0xf]
  %v12149 = vld [vmem:[%s2 + $0x2e0] sm:$0xf]
  %v12150 = vld [vmem:[%s2 + $0x2e4] sm:$0xf]
  %v12151 = vld [vmem:[%s2 + $0x2e8] sm:$0xf]
  %v12152 = vld [vmem:[%s2 + $0x2ec] sm:$0xf]
  %v12153 = vld [vmem:[%s2 + $0x2f0] sm:$0xf]
  %v12154 = vld [vmem:[%s2 + $0x2f4] sm:$0xf]
  %v12155 = vld [vmem:[%s2 + $0x2f8] sm:$0xf]
  %v12156 = vld [vmem:[%s2 + $0x2fc] sm:$0xf]
  %v12189 = vunpack.c.l.b16 %v12093
  %v12190 = vunpack.c.l.b16 %v12094
  %v12191 = vunpack.c.l.b16 %v12095
  %v12192 = vunpack.c.l.b16 %v12096
  %v12193 = vunpack.c.l.b16 %v12097
  %v12194 = vunpack.c.l.b16 %v12098
  %v12195 = vunpack.c.l.b16 %v12099
  %v12196 = vunpack.c.l.b16 %v12100
  %v12197 = vunpack.c.l.b16 %v12101
  %v12198 = vunpack.c.l.b16 %v12102
  %v12199 = vunpack.c.l.b16 %v12103
  %v12200 = vunpack.c.l.b16 %v12104
  %v12201 = vunpack.c.l.b16 %v12105
  %v12202 = vunpack.c.l.b16 %v12106
  %v12203 = vunpack.c.l.b16 %v12107
  %v12204 = vunpack.c.l.b16 %v12108
  %v12205 = vunpack.c.l.b16 %v12109
  %v12206 = vunpack.c.l.b16 %v12110
  %v12207 = vunpack.c.l.b16 %v12111
  %v12208 = vunpack.c.l.b16 %v12112
  %v12209 = vunpack.c.l.b16 %v12113
  %v12210 = vunpack.c.l.b16 %v12114
  %v12211 = vunpack.c.l.b16 %v12115
  %v12212 = vunpack.c.l.b16 %v12116
  %v12213 = vunpack.c.l.b16 %v12117
  %v12214 = vunpack.c.l.b16 %v12118
  %v12215 = vunpack.c.l.b16 %v12119
  %v12216 = vunpack.c.l.b16 %v12120
  %v12217 = vunpack.c.l.b16 %v12121
  %v12218 = vunpack.c.l.b16 %v12122
  %v12219 = vunpack.c.l.b16 %v12123
  %v12220 = vunpack.c.l.b16 %v12124
  %v12221 = vpack.c.b16 %v12190, %v12189
  %v12222 = vpack.c.b16 %v12192, %v12191
  %v12223 = vpack.c.b16 %v12194, %v12193
  %v12224 = vpack.c.b16 %v12196, %v12195
  %v12225 = vpack.c.b16 %v12198, %v12197
  %v12226 = vpack.c.b16 %v12200, %v12199
  %v12227 = vpack.c.b16 %v12202, %v12201
  %v12228 = vpack.c.b16 %v12204, %v12203
  %v12229 = vpack.c.b16 %v12206, %v12205
  %v12230 = vpack.c.b16 %v12208, %v12207
  %v12231 = vpack.c.b16 %v12210, %v12209
  %v12232 = vpack.c.b16 %v12212, %v12211
  %v12233 = vpack.c.b16 %v12214, %v12213
  %v12234 = vpack.c.b16 %v12216, %v12215
  %v12235 = vpack.c.b16 %v12218, %v12217
  %v12236 = vpack.c.b16 %v12220, %v12219
  %12253 = vmatprep.subr.bf16.mxu0 0
  %12254 = vmatpush1.bf16.msra.mxu0 %v12228
  %12255 = vmatprep.subr.bf16.mxu0 0
  %12256 = vmatpush1.bf16.msra.mxu0 %v12227
  %12257 = vmatprep.subr.bf16.mxu0 0
  %12258 = vmatpush1.bf16.msra.mxu0 %v12226
  %12259 = vmatprep.subr.bf16.mxu0 0
  %12260 = vmatpush1.bf16.msra.mxu0 %v12225
  %12261 = vmatprep.subr.bf16.mxu0 0
  %12262 = vmatpush1.bf16.msra.mxu0 %v12224
  %12263 = vmatprep.subr.bf16.mxu0 0
  %12264 = vmatpush1.bf16.msra.mxu0 %v12223
  %12265 = vmatprep.subr.bf16.mxu0 0
  %12266 = vmatpush1.bf16.msra.mxu0 %v12222
  %12267 = vmatprep.subr.bf16.mxu0 0
  %12268 = vmatpush1.bf16.msra.mxu0 %v12221
  %12269 = vmatprep.subr.bf16.mxu0 0
  %12270 = vmatpush2.bf16.msra.mxu0 %v12236
  %12271 = vmatprep.subr.bf16.mxu0 0
  %12272 = vmatpush2.bf16.msra.mxu0 %v12235
  %12273 = vmatprep.subr.bf16.mxu0 0
  %12274 = vmatpush2.bf16.msra.mxu0 %v12234
  %12275 = vmatprep.subr.bf16.mxu0 0
  %12276 = vmatpush2.bf16.msra.mxu0 %v12233
  %12277 = vmatprep.subr.bf16.mxu0 0
  %12278 = vmatpush2.bf16.msra.mxu0 %v12232
  %12279 = vmatprep.subr.bf16.mxu0 0
  %12280 = vmatpush2.bf16.msra.mxu0 %v12231
  %12281 = vmatprep.subr.bf16.mxu0 0
  %12282 = vmatpush2.bf16.msra.mxu0 %v12230
  %12283 = vmatprep.subr.bf16.mxu0 0
  %12284 = vmatpush2.bf16.msra.mxu0 %v12229
  %12285 = vmatprep.mubr.bf16.mxu0 %v12062
  %12286 = vmatmul.mubr.bf16.gmra.mxu0 %v12061
  %v12287 = vpop.f32.mrf.mxu0
  %v12288 = vadd.f32 0.0, %v12287
  %v12289 = vpop.f32.mrf.mxu0
  %v12290 = vpop.f32.mrf.mxu0
  %v12291 = vadd.f32 0.0, %v12290
  %v12292 = vpop.f32.mrf.mxu0
  %12293 = vmatprep.mubr.bf16.mxu0 %v12064
  %12294 = vmatmul.mubr.bf16.gmra.mxu0 %v12063
  %v12295 = vpop.f32.mrf.mxu0
  %v12296 = vadd.f32 0.0, %v12295
  %v12297 = vpop.f32.mrf.mxu0
  %v12298 = vpop.f32.mrf.mxu0
  %v12299 = vadd.f32 0.0, %v12298
  %v12300 = vpop.f32.mrf.mxu0
  %12301 = vmatprep.mubr.bf16.mxu0 %v12066
  %12302 = vmatmul.mubr.bf16.gmra.mxu0 %v12065
  %v12303 = vpop.f32.mrf.mxu0
  %v12304 = vadd.f32 0.0, %v12303
  %v12305 = vpop.f32.mrf.mxu0
  %v12306 = vpop.f32.mrf.mxu0
  %v12307 = vadd.f32 0.0, %v12306
  %v12308 = vpop.f32.mrf.mxu0
  %12309 = vmatprep.mubr.bf16.mxu0 %v12068
  %12310 = vmatmul.mubr.bf16.gmra.mxu0 %v12067
  %v12311 = vpop.f32.mrf.mxu0
  %v12312 = vadd.f32 0.0, %v12311
  %v12313 = vpop.f32.mrf.mxu0
  %v12314 = vpop.f32.mrf.mxu0
  %v12315 = vadd.f32 0.0, %v12314
  %v12316 = vpop.f32.mrf.mxu0
  %12317 = vmatprep.mubr.bf16.mxu0 %v12070
  %12318 = vmatmul.mubr.bf16.gmra.mxu0 %v12069
  %v12319 = vpop.f32.mrf.mxu0
  %v12320 = vadd.f32 0.0, %v12319
  %v12321 = vpop.f32.mrf.mxu0
  %v12322 = vpop.f32.mrf.mxu0
  %v12323 = vadd.f32 0.0, %v12322
  %v12324 = vpop.f32.mrf.mxu0
  %12325 = vmatprep.mubr.bf16.mxu0 %v12072
  %12326 = vmatmul.mubr.bf16.gmra.mxu0 %v12071
  %v12327 = vpop.f32.mrf.mxu0
  %v12328 = vadd.f32 0.0, %v12327
  %v12329 = vpop.f32.mrf.mxu0
  %v12330 = vpop.f32.mrf.mxu0
  %v12331 = vadd.f32 0.0, %v12330
  %v12332 = vpop.f32.mrf.mxu0
  %12333 = vmatprep.mubr.bf16.mxu0 %v12074
  %12334 = vmatmul.mubr.bf16.gmra.mxu0 %v12073
  %v12335 = vpop.f32.mrf.mxu0
  %v12336 = vadd.f32 0.0, %v12335
  %v12337 = vpop.f32.mrf.mxu0
  %v12338 = vpop.f32.mrf.mxu0
  %v12339 = vadd.f32 0.0, %v12338
  %v12340 = vpop.f32.mrf.mxu0
  %12341 = vmatprep.mubr.bf16.mxu0 %v12076
  %12342 = vmatmul.mubr.bf16.gmra.mxu0 %v12075
  %v12343 = vpop.f32.mrf.mxu0
  %v12344 = vadd.f32 0.0, %v12343
  %v12345 = vpop.f32.mrf.mxu0
  %v12346 = vpop.f32.mrf.mxu0
  %v12347 = vadd.f32 0.0, %v12346
  %v12348 = vpop.f32.mrf.mxu0
  %12349 = vmatprep.mubr.bf16.mxu0 %v12078
  %12350 = vmatmul.mubr.bf16.gmra.mxu0 %v12077
  %v12351 = vpop.f32.mrf.mxu0
  %v12352 = vadd.f32 0.0, %v12351
  %v12353 = vpop.f32.mrf.mxu0
  %v12354 = vpop.f32.mrf.mxu0
  %v12355 = vadd.f32 0.0, %v12354
  %v12356 = vpop.f32.mrf.mxu0
  %12357 = vmatprep.mubr.bf16.mxu0 %v12080
  %12358 = vmatmul.mubr.bf16.gmra.mxu0 %v12079
  %v12359 = vpop.f32.mrf.mxu0
  %v12360 = vadd.f32 0.0, %v12359
  %v12361 = vpop.f32.mrf.mxu0
  %v12362 = vpop.f32.mrf.mxu0
  %v12363 = vadd.f32 0.0, %v12362
  %v12364 = vpop.f32.mrf.mxu0
  %12365 = vmatprep.mubr.bf16.mxu0 %v12082
  %12366 = vmatmul.mubr.bf16.gmra.mxu0 %v12081
  %v12367 = vpop.f32.mrf.mxu0
  %v12368 = vadd.f32 0.0, %v12367
  %v12369 = vpop.f32.mrf.mxu0
  %v12370 = vpop.f32.mrf.mxu0
  %v12371 = vadd.f32 0.0, %v12370
  %v12372 = vpop.f32.mrf.mxu0
  %12373 = vmatprep.mubr.bf16.mxu0 %v12084
  %12374 = vmatmul.mubr.bf16.gmra.mxu0 %v12083
  %v12375 = vpop.f32.mrf.mxu0
  %v12376 = vadd.f32 0.0, %v12375
  %v12377 = vpop.f32.mrf.mxu0
  %v12378 = vpop.f32.mrf.mxu0
  %v12379 = vadd.f32 0.0, %v12378
  %v12380 = vpop.f32.mrf.mxu0
  %12381 = vmatprep.mubr.bf16.mxu0 %v12086
  %12382 = vmatmul.mubr.bf16.gmra.mxu0 %v12085
  %v12383 = vpop.f32.mrf.mxu0
  %v12384 = vadd.f32 0.0, %v12383
  %v12385 = vpop.f32.mrf.mxu0
  %v12386 = vpop.f32.mrf.mxu0
  %v12387 = vadd.f32 0.0, %v12386
  %v12388 = vpop.f32.mrf.mxu0
  %12389 = vmatprep.mubr.bf16.mxu0 %v12088
  %12390 = vmatmul.mubr.bf16.gmra.mxu0 %v12087
  %v12391 = vpop.f32.mrf.mxu0
  %v12392 = vadd.f32 0.0, %v12391
  %v12393 = vpop.f32.mrf.mxu0
  %v12394 = vpop.f32.mrf.mxu0
  %v12395 = vadd.f32 0.0, %v12394
  %v12396 = vpop.f32.mrf.mxu0
  %12397 = vmatprep.mubr.bf16.mxu0 %v12090
  %12398 = vmatmul.mubr.bf16.gmra.mxu0 %v12089
  %v12399 = vpop.f32.mrf.mxu0
  %v12400 = vadd.f32 0.0, %v12399
  %v12401 = vpop.f32.mrf.mxu0
  %v12402 = vpop.f32.mrf.mxu0
  %v12403 = vadd.f32 0.0, %v12402
  %v12404 = vpop.f32.mrf.mxu0
  %12405 = vmatprep.mubr.bf16.mxu0 %v12092
  %12406 = vmatmul.mubr.bf16.gmra.mxu0 %v12091
  %v12407 = vpop.f32.mrf.mxu0
  %v12408 = vadd.f32 0.0, %v12407
  %v12409 = vpop.f32.mrf.mxu0
  %v12410 = vpop.f32.mrf.mxu0
  %v12411 = vadd.f32 0.0, %v12410
  %v12412 = vpop.f32.mrf.mxu0
  %12413 = vdwg.mxu0
  %v12414 = vadd.f32 %v10621, %v12288
  %v12415 = vadd.f32 %v10622, %v12291
  %v12416 = vadd.f32 %v10623, %v12296
  %v12417 = vadd.f32 %v10624, %v12299
  %v12418 = vadd.f32 %v10625, %v12304
  %v12419 = vadd.f32 %v10626, %v12307
  %v12420 = vadd.f32 %v10627, %v12312
  %v12421 = vadd.f32 %v10628, %v12315
  %v12422 = vadd.f32 %v10629, %v12320
  %v12423 = vadd.f32 %v10630, %v12323
  %v12424 = vadd.f32 %v10631, %v12328
  %v12425 = vadd.f32 %v10632, %v12331
  %v12426 = vadd.f32 %v10633, %v12336
  %v12427 = vadd.f32 %v10634, %v12339
  %v12428 = vadd.f32 %v10635, %v12344
  %v12429 = vadd.f32 %v10636, %v12347
  %v12430 = vadd.f32 %v10637, %v12352
  %v12431 = vadd.f32 %v10638, %v12355
  %v12432 = vadd.f32 %v10639, %v12360
  %v12433 = vadd.f32 %v10640, %v12363
  %v12434 = vadd.f32 %v10641, %v12368
  %v12435 = vadd.f32 %v10642, %v12371
  %v12436 = vadd.f32 %v10643, %v12376
  %v12437 = vadd.f32 %v10644, %v12379
  %v12438 = vadd.f32 %v10645, %v12384
  %v12439 = vadd.f32 %v10646, %v12387
  %v12440 = vadd.f32 %v10647, %v12392
  %v12441 = vadd.f32 %v10648, %v12395
  %v12442 = vadd.f32 %v10649, %v12400
  %v12443 = vadd.f32 %v10650, %v12403
  %v12444 = vadd.f32 %v10651, %v12408
  %v12445 = vadd.f32 %v10652, %v12411
  %v12478 = vunpack.c.l.b16 %v12125
  %v12479 = vunpack.c.l.b16 %v12126
  %v12480 = vunpack.c.l.b16 %v12127
  %v12481 = vunpack.c.l.b16 %v12128
  %v12482 = vunpack.c.l.b16 %v12129
  %v12483 = vunpack.c.l.b16 %v12130
  %v12484 = vunpack.c.l.b16 %v12131
  %v12485 = vunpack.c.l.b16 %v12132
  %v12486 = vunpack.c.l.b16 %v12133
  %v12487 = vunpack.c.l.b16 %v12134
  %v12488 = vunpack.c.l.b16 %v12135
  %v12489 = vunpack.c.l.b16 %v12136
  %v12490 = vunpack.c.l.b16 %v12137
  %v12491 = vunpack.c.l.b16 %v12138
  %v12492 = vunpack.c.l.b16 %v12139
  %v12493 = vunpack.c.l.b16 %v12140
  %v12494 = vunpack.c.l.b16 %v12141
  %v12495 = vunpack.c.l.b16 %v12142
  %v12496 = vunpack.c.l.b16 %v12143
  %v12497 = vunpack.c.l.b16 %v12144
  %v12498 = vunpack.c.l.b16 %v12145
  %v12499 = vunpack.c.l.b16 %v12146
  %v12500 = vunpack.c.l.b16 %v12147
  %v12501 = vunpack.c.l.b16 %v12148
  %v12502 = vunpack.c.l.b16 %v12149
  %v12503 = vunpack.c.l.b16 %v12150
  %v12504 = vunpack.c.l.b16 %v12151
  %v12505 = vunpack.c.l.b16 %v12152
  %v12506 = vunpack.c.l.b16 %v12153
  %v12507 = vunpack.c.l.b16 %v12154
  %v12508 = vunpack.c.l.b16 %v12155
  %v12509 = vunpack.c.l.b16 %v12156
  %v12510 = vpack.c.b16 %v12479, %v12478
  %v12511 = vpack.c.b16 %v12481, %v12480
  %v12512 = vpack.c.b16 %v12483, %v12482
  %v12513 = vpack.c.b16 %v12485, %v12484
  %v12514 = vpack.c.b16 %v12487, %v12486
  %v12515 = vpack.c.b16 %v12489, %v12488
  %v12516 = vpack.c.b16 %v12491, %v12490
  %v12517 = vpack.c.b16 %v12493, %v12492
  %v12518 = vpack.c.b16 %v12495, %v12494
  %v12519 = vpack.c.b16 %v12497, %v12496
  %v12520 = vpack.c.b16 %v12499, %v12498
  %v12521 = vpack.c.b16 %v12501, %v12500
  %v12522 = vpack.c.b16 %v12503, %v12502
  %v12523 = vpack.c.b16 %v12505, %v12504
  %v12524 = vpack.c.b16 %v12507, %v12506
  %v12525 = vpack.c.b16 %v12509, %v12508
  %12542 = vmatprep.subr.bf16.mxu0 0
  %12543 = vmatpush1.bf16.msra.mxu0 %v12517
  %12544 = vmatprep.subr.bf16.mxu0 0
  %12545 = vmatpush1.bf16.msra.mxu0 %v12516
  %12546 = vmatprep.subr.bf16.mxu0 0
  %12547 = vmatpush1.bf16.msra.mxu0 %v12515
  %12548 = vmatprep.subr.bf16.mxu0 0
  %12549 = vmatpush1.bf16.msra.mxu0 %v12514
  %12550 = vmatprep.subr.bf16.mxu0 0
  %12551 = vmatpush1.bf16.msra.mxu0 %v12513
  %12552 = vmatprep.subr.bf16.mxu0 0
  %12553 = vmatpush1.bf16.msra.mxu0 %v12512
  %12554 = vmatprep.subr.bf16.mxu0 0
  %12555 = vmatpush1.bf16.msra.mxu0 %v12511
  %12556 = vmatprep.subr.bf16.mxu0 0
  %12557 = vmatpush1.bf16.msra.mxu0 %v12510
  %12558 = vmatprep.subr.bf16.mxu0 0
  %12559 = vmatpush2.bf16.msra.mxu0 %v12525
  %12560 = vmatprep.subr.bf16.mxu0 0
  %12561 = vmatpush2.bf16.msra.mxu0 %v12524
  %12562 = vmatprep.subr.bf16.mxu0 0
  %12563 = vmatpush2.bf16.msra.mxu0 %v12523
  %12564 = vmatprep.subr.bf16.mxu0 0
  %12565 = vmatpush2.bf16.msra.mxu0 %v12522
  %12566 = vmatprep.subr.bf16.mxu0 0
  %12567 = vmatpush2.bf16.msra.mxu0 %v12521
  %12568 = vmatprep.subr.bf16.mxu0 0
  %12569 = vmatpush2.bf16.msra.mxu0 %v12520
  %12570 = vmatprep.subr.bf16.mxu0 0
  %12571 = vmatpush2.bf16.msra.mxu0 %v12519
  %12572 = vmatprep.subr.bf16.mxu0 0
  %12573 = vmatpush2.bf16.msra.mxu0 %v12518
  %12574 = vmatprep.mubr.bf16.mxu0 %v12062
  %12575 = vmatmul.mubr.bf16.gmra.mxu0 %v12061
  %v12576 = vpop.f32.mrf.mxu0
  %v12577 = vadd.f32 0.0, %v12576
  %v12578 = vpop.f32.mrf.mxu0
  %v12579 = vpop.f32.mrf.mxu0
  %v12580 = vadd.f32 0.0, %v12579
  %v12581 = vpop.f32.mrf.mxu0
  %12582 = vmatprep.mubr.bf16.mxu0 %v12064
  %12583 = vmatmul.mubr.bf16.gmra.mxu0 %v12063
  %v12584 = vpop.f32.mrf.mxu0
  %v12585 = vadd.f32 0.0, %v12584
  %v12586 = vpop.f32.mrf.mxu0
  %v12587 = vpop.f32.mrf.mxu0
  %v12588 = vadd.f32 0.0, %v12587
  %v12589 = vpop.f32.mrf.mxu0
  %12590 = vmatprep.mubr.bf16.mxu0 %v12066
  %12591 = vmatmul.mubr.bf16.gmra.mxu0 %v12065
  %v12592 = vpop.f32.mrf.mxu0
  %v12593 = vadd.f32 0.0, %v12592
  %v12594 = vpop.f32.mrf.mxu0
  %v12595 = vpop.f32.mrf.mxu0
  %v12596 = vadd.f32 0.0, %v12595
  %v12597 = vpop.f32.mrf.mxu0
  %12598 = vmatprep.mubr.bf16.mxu0 %v12068
  %12599 = vmatmul.mubr.bf16.gmra.mxu0 %v12067
  %v12600 = vpop.f32.mrf.mxu0
  %v12601 = vadd.f32 0.0, %v12600
  %v12602 = vpop.f32.mrf.mxu0
  %v12603 = vpop.f32.mrf.mxu0
  %v12604 = vadd.f32 0.0, %v12603
  %v12605 = vpop.f32.mrf.mxu0
  %12606 = vmatprep.mubr.bf16.mxu0 %v12070
  %12607 = vmatmul.mubr.bf16.gmra.mxu0 %v12069
  %v12608 = vpop.f32.mrf.mxu0
  %v12609 = vadd.f32 0.0, %v12608
  %v12610 = vpop.f32.mrf.mxu0
  %v12611 = vpop.f32.mrf.mxu0
  %v12612 = vadd.f32 0.0, %v12611
  %v12613 = vpop.f32.mrf.mxu0
  %12614 = vmatprep.mubr.bf16.mxu0 %v12072
  %12615 = vmatmul.mubr.bf16.gmra.mxu0 %v12071
  %v12616 = vpop.f32.mrf.mxu0
  %v12617 = vadd.f32 0.0, %v12616
  %v12618 = vpop.f32.mrf.mxu0
  %v12619 = vpop.f32.mrf.mxu0
  %v12620 = vadd.f32 0.0, %v12619
  %v12621 = vpop.f32.mrf.mxu0
  %12622 = vmatprep.mubr.bf16.mxu0 %v12074
  %12623 = vmatmul.mubr.bf16.gmra.mxu0 %v12073
  %v12624 = vpop.f32.mrf.mxu0
  %v12625 = vadd.f32 0.0, %v12624
  %v12626 = vpop.f32.mrf.mxu0
  %v12627 = vpop.f32.mrf.mxu0
  %v12628 = vadd.f32 0.0, %v12627
  %v12629 = vpop.f32.mrf.mxu0
  %12630 = vmatprep.mubr.bf16.mxu0 %v12076
  %12631 = vmatmul.mubr.bf16.gmra.mxu0 %v12075
  %v12632 = vpop.f32.mrf.mxu0
  %v12633 = vadd.f32 0.0, %v12632
  %v12634 = vpop.f32.mrf.mxu0
  %v12635 = vpop.f32.mrf.mxu0
  %v12636 = vadd.f32 0.0, %v12635
  %v12637 = vpop.f32.mrf.mxu0
  %12638 = vmatprep.mubr.bf16.mxu0 %v12078
  %12639 = vmatmul.mubr.bf16.gmra.mxu0 %v12077
  %v12640 = vpop.f32.mrf.mxu0
  %v12641 = vadd.f32 0.0, %v12640
  %v12642 = vpop.f32.mrf.mxu0
  %v12643 = vpop.f32.mrf.mxu0
  %v12644 = vadd.f32 0.0, %v12643
  %v12645 = vpop.f32.mrf.mxu0
  %12646 = vmatprep.mubr.bf16.mxu0 %v12080
  %12647 = vmatmul.mubr.bf16.gmra.mxu0 %v12079
  %v12648 = vpop.f32.mrf.mxu0
  %v12649 = vadd.f32 0.0, %v12648
  %v12650 = vpop.f32.mrf.mxu0
  %v12651 = vpop.f32.mrf.mxu0
  %v12652 = vadd.f32 0.0, %v12651
  %v12653 = vpop.f32.mrf.mxu0
  %12654 = vmatprep.mubr.bf16.mxu0 %v12082
  %12655 = vmatmul.mubr.bf16.gmra.mxu0 %v12081
  %v12656 = vpop.f32.mrf.mxu0
  %v12657 = vadd.f32 0.0, %v12656
  %v12658 = vpop.f32.mrf.mxu0
  %v12659 = vpop.f32.mrf.mxu0
  %v12660 = vadd.f32 0.0, %v12659
  %v12661 = vpop.f32.mrf.mxu0
  %12662 = vmatprep.mubr.bf16.mxu0 %v12084
  %12663 = vmatmul.mubr.bf16.gmra.mxu0 %v12083
  %v12664 = vpop.f32.mrf.mxu0
  %v12665 = vadd.f32 0.0, %v12664
  %v12666 = vpop.f32.mrf.mxu0
  %v12667 = vpop.f32.mrf.mxu0
  %v12668 = vadd.f32 0.0, %v12667
  %v12669 = vpop.f32.mrf.mxu0
  %12670 = vmatprep.mubr.bf16.mxu0 %v12086
  %12671 = vmatmul.mubr.bf16.gmra.mxu0 %v12085
  %v12672 = vpop.f32.mrf.mxu0
  %v12673 = vadd.f32 0.0, %v12672
  %v12674 = vpop.f32.mrf.mxu0
  %v12675 = vpop.f32.mrf.mxu0
  %v12676 = vadd.f32 0.0, %v12675
  %v12677 = vpop.f32.mrf.mxu0
  %12678 = vmatprep.mubr.bf16.mxu0 %v12088
  %12679 = vmatmul.mubr.bf16.gmra.mxu0 %v12087
  %v12680 = vpop.f32.mrf.mxu0
  %v12681 = vadd.f32 0.0, %v12680
  %v12682 = vpop.f32.mrf.mxu0
  %v12683 = vpop.f32.mrf.mxu0
  %v12684 = vadd.f32 0.0, %v12683
  %v12685 = vpop.f32.mrf.mxu0
  %12686 = vmatprep.mubr.bf16.mxu0 %v12090
  %12687 = vmatmul.mubr.bf16.gmra.mxu0 %v12089
  %v12688 = vpop.f32.mrf.mxu0
  %v12689 = vadd.f32 0.0, %v12688
  %v12690 = vpop.f32.mrf.mxu0
  %v12691 = vpop.f32.mrf.mxu0
  %v12692 = vadd.f32 0.0, %v12691
  %v12693 = vpop.f32.mrf.mxu0
  %12694 = vmatprep.mubr.bf16.mxu0 %v12092
  %12695 = vmatmul.mubr.bf16.gmra.mxu0 %v12091
  %v12696 = vpop.f32.mrf.mxu0
  %v12697 = vadd.f32 0.0, %v12696
  %v12698 = vpop.f32.mrf.mxu0
  %v12699 = vpop.f32.mrf.mxu0
  %v12700 = vadd.f32 0.0, %v12699
  %v12701 = vpop.f32.mrf.mxu0
  %12702 = vdwg.mxu0
  %v12703 = vadd.f32 %v12414, %v12577
  %v12704 = vadd.f32 %v12415, %v12580
  %v12705 = vadd.f32 %v12416, %v12585
  %v12706 = vadd.f32 %v12417, %v12588
  %v12707 = vadd.f32 %v12418, %v12593
  %v12708 = vadd.f32 %v12419, %v12596
  %v12709 = vadd.f32 %v12420, %v12601
  %v12710 = vadd.f32 %v12421, %v12604
  %v12711 = vadd.f32 %v12422, %v12609
  %v12712 = vadd.f32 %v12423, %v12612
  %v12713 = vadd.f32 %v12424, %v12617
  %v12714 = vadd.f32 %v12425, %v12620
  %v12715 = vadd.f32 %v12426, %v12625
  %v12716 = vadd.f32 %v12427, %v12628
  %v12717 = vadd.f32 %v12428, %v12633
  %v12718 = vadd.f32 %v12429, %v12636
  %v12719 = vadd.f32 %v12430, %v12641
  %v12720 = vadd.f32 %v12431, %v12644
  %v12721 = vadd.f32 %v12432, %v12649
  %v12722 = vadd.f32 %v12433, %v12652
  %v12723 = vadd.f32 %v12434, %v12657
  %v12724 = vadd.f32 %v12435, %v12660
  %v12725 = vadd.f32 %v12436, %v12665
  %v12726 = vadd.f32 %v12437, %v12668
  %v12727 = vadd.f32 %v12438, %v12673
  %v12728 = vadd.f32 %v12439, %v12676
  %v12729 = vadd.f32 %v12440, %v12681
  %v12730 = vadd.f32 %v12441, %v12684
  %v12731 = vadd.f32 %v12442, %v12689
  %v12732 = vadd.f32 %v12443, %v12692
  %v12733 = vadd.f32 %v12444, %v12697
  %v12734 = vadd.f32 %v12445, %v12700
  %v12735 = vmul.f32 %v12703, %v273
  %v12736 = vmul.f32 %v12704, %v275
  %v12737 = vmul.f32 %v12705, %v277
  %v12738 = vmul.f32 %v12706, %v279
  %v12739 = vmul.f32 %v12707, %v281
  %v12740 = vmul.f32 %v12708, %v283
  %v12741 = vmul.f32 %v12709, %v285
  %v12742 = vmul.f32 %v12710, %v287
  %v12743 = vmul.f32 %v12711, %v289
  %v12744 = vmul.f32 %v12712, %v291
  %v12745 = vmul.f32 %v12713, %v293
  %v12746 = vmul.f32 %v12714, %v295
  %v12747 = vmul.f32 %v12715, %v297
  %v12748 = vmul.f32 %v12716, %v299
  %v12749 = vmul.f32 %v12717, %v301
  %v12750 = vmul.f32 %v12718, %v303
  %v12751 = vmul.f32 %v12719, %v305
  %v12752 = vmul.f32 %v12720, %v307
  %v12753 = vmul.f32 %v12721, %v309
  %v12754 = vmul.f32 %v12722, %v311
  %v12755 = vmul.f32 %v12723, %v313
  %v12756 = vmul.f32 %v12724, %v315
  %v12757 = vmul.f32 %v12725, %v317
  %v12758 = vmul.f32 %v12726, %v319
  %v12759 = vmul.f32 %v12727, %v321
  %v12760 = vmul.f32 %v12728, %v323
  %v12761 = vmul.f32 %v12729, %v325
  %v12762 = vmul.f32 %v12730, %v327
  %v12763 = vmul.f32 %v12731, %v329
  %v12764 = vmul.f32 %v12732, %v331
  %v12765 = vmul.f32 %v12733, %v333
  %v12766 = vmul.f32 %v12734, %v335
  %vm12767 = vcmask 261120
  %12768 = vst.msk [vmem:[%s3] sm:$0xff] %vm12767, %v12735
  %12769 = vst.msk [vmem:[%s3 + $0x8] sm:$0xff] %vm12767, %v12736
  %12770 = vst.msk [vmem:[%s3 + $0x10] sm:$0xff] %vm12767, %v12737
  %12771 = vst.msk [vmem:[%s3 + $0x18] sm:$0xff] %vm12767, %v12738
  %12772 = vst.msk [vmem:[%s3 + $0x20] sm:$0xff] %vm12767, %v12739
  %12773 = vst.msk [vmem:[%s3 + $0x28] sm:$0xff] %vm12767, %v12740
  %12774 = vst.msk [vmem:[%s3 + $0x30] sm:$0xff] %vm12767, %v12741
  %12775 = vst.msk [vmem:[%s3 + $0x38] sm:$0xff] %vm12767, %v12742
  %12776 = vst.msk [vmem:[%s3 + $0x40] sm:$0xff] %vm12767, %v12743
  %12777 = vst.msk [vmem:[%s3 + $0x48] sm:$0xff] %vm12767, %v12744
  %12778 = vst.msk [vmem:[%s3 + $0x50] sm:$0xff] %vm12767, %v12745
  %12779 = vst.msk [vmem:[%s3 + $0x58] sm:$0xff] %vm12767, %v12746
  %12780 = vst.msk [vmem:[%s3 + $0x60] sm:$0xff] %vm12767, %v12747
  %12781 = vst.msk [vmem:[%s3 + $0x68] sm:$0xff] %vm12767, %v12748
  %12782 = vst.msk [vmem:[%s3 + $0x70] sm:$0xff] %vm12767, %v12749
  %12783 = vst.msk [vmem:[%s3 + $0x78] sm:$0xff] %vm12767, %v12750
  %12784 = vst.msk [vmem:[%s3 + $0x80] sm:$0xff] %vm12767, %v12751
  %12785 = vst.msk [vmem:[%s3 + $0x88] sm:$0xff] %vm12767, %v12752
  %12786 = vst.msk [vmem:[%s3 + $0x90] sm:$0xff] %vm12767, %v12753
  %12787 = vst.msk [vmem:[%s3 + $0x98] sm:$0xff] %vm12767, %v12754
  %12788 = vst.msk [vmem:[%s3 + $0xa0] sm:$0xff] %vm12767, %v12755
  %12789 = vst.msk [vmem:[%s3 + $0xa8] sm:$0xff] %vm12767, %v12756
  %12790 = vst.msk [vmem:[%s3 + $0xb0] sm:$0xff] %vm12767, %v12757
  %12791 = vst.msk [vmem:[%s3 + $0xb8] sm:$0xff] %vm12767, %v12758
  %12792 = vst.msk [vmem:[%s3 + $0xc0] sm:$0xff] %vm12767, %v12759
  %12793 = vst.msk [vmem:[%s3 + $0xc8] sm:$0xff] %vm12767, %v12760
  %12794 = vst.msk [vmem:[%s3 + $0xd0] sm:$0xff] %vm12767, %v12761
  %12795 = vst.msk [vmem:[%s3 + $0xd8] sm:$0xff] %vm12767, %v12762
  %12796 = vst.msk [vmem:[%s3 + $0xe0] sm:$0xff] %vm12767, %v12763
  %12797 = vst.msk [vmem:[%s3 + $0xe8] sm:$0xff] %vm12767, %v12764
  %12798 = vst.msk [vmem:[%s3 + $0xf0] sm:$0xff] %vm12767, %v12765
  %12799 = vst.msk [vmem:[%s3 + $0xf8] sm:$0xff] %vm12767, %v12766
  // Predicated region
  $region14: #{tpu_custom_call.1} parent=0 // pred_check
    _
  $region15: #{tpu_custom_call.1} parent=0 // pred_check_branch
    %12801 = sbr.rel (0) target = $region17
  $region16: #{tpu_custom_call.1} parent=0 // pred_region
    _
  $region17: #{tpu_custom_call.1} parent=0 // pred_fallthru
    _
  // Predicated region
  $region18: #{tpu_custom_call.1} parent=0 // pred_check
    _
  $region19: #{tpu_custom_call.1} parent=0 // pred_check_branch
    %12803 = sbr.rel (0) target = $region21
  $region20: #{tpu_custom_call.1} parent=0 // pred_region
    _
  $region21: #{tpu_custom_call.1} parent=0 // pred_fallthru
    _

</llo_original>
